<compile_context>
chip_gen: v7x
topology: tpu7x:2x2x1
jax: 0.10.0
libtpu: 0.0.40
codegen_flags: <defaults>
</compile_context>

<pallas_src>
import math
import jax
import jax.numpy as jnp
from jax.experimental import pallas as pl
from jax.experimental.pallas import tpu as pltpu


_VMEM_LIMIT = 32 * 1024 * 1024  # within every chip generation's VMEM budget


# ----------------------------------------------------------------------------
# Fused conv GEMM + bias + BatchNorm (batch stats) + hardtanh(0, 20)
# ----------------------------------------------------------------------------

def _conv_bn_single_kernel(a_ref, w_ref, b_ref, g_ref, be_ref, o_ref):
    y = jnp.dot(a_ref[...], w_ref[...], preferred_element_type=jnp.float32) + b_ref[...]
    mean = jnp.mean(y, axis=0, keepdims=True)
    var = jnp.mean((y - mean) ** 2, axis=0, keepdims=True)
    inv = jax.lax.rsqrt(var + 1e-5)
    o_ref[...] = jnp.clip((y - mean) * inv * g_ref[...] + be_ref[...], 0.0, 20.0)


def _make_conv_bn_tiled_kernel(M, TM):
    inv_m = 1.0 / M

    def kernel(a_ref, w_ref, b_ref, g_ref, be_ref, o_ref, y_scr):
        i = pl.program_id(0)
        # Stream one (TM, K) patch tile through the MXU; weight block resident.
        yt = (jnp.dot(a_ref[...], w_ref[...], preferred_element_type=jnp.float32)
              + b_ref[...])
        start = pl.multiple_of(i * TM, 8)
        y_scr[pl.ds(start, TM), :] = yt

        # BN + hardtanh epilogue on the last grid step (needs full-batch stats).
        @pl.when(i == pl.num_programs(0) - 1)
        def _():
            y = y_scr[...]
            mp = y.shape[0]
            mask = jax.lax.broadcasted_iota(jnp.int32, (mp, 1), 0) < M
            yv = jnp.where(mask, y, 0.0)
            mean = jnp.sum(yv, axis=0, keepdims=True) * inv_m
            cen = jnp.where(mask, y - mean, 0.0)
            var = jnp.sum(cen * cen, axis=0, keepdims=True) * inv_m
            inv = jax.lax.rsqrt(var + 1e-5)
            yn = jnp.clip((y - mean) * inv * g_ref[...] + be_ref[...], 0.0, 20.0)
            o_ref[...] = yn[0:M, :]

    return kernel


def conv_bn_hardtanh(a, w, bias, gamma, beta, *, tile_budget_bytes=4 << 20,
                     tile_cap=512):
    """Fused (M,K)@(K,C) + bias + BatchNorm(batch stats) + hardtanh(0,20)."""
    M, K = a.shape
    C = w.shape[1]
    tm = max(8, min(tile_cap, (tile_budget_bytes // (K * 4)) // 8 * 8))
    cparams = pltpu.CompilerParams(dimension_semantics=("arbitrary",),
                                   vmem_limit_bytes=_VMEM_LIMIT)
    vec_specs = [pl.BlockSpec((1, C), lambda i: (0, 0)) for _ in range(3)]

    if M <= tm:
        # Whole problem fits in one tile: no scratch, full-extent blocks.
        return pl.pallas_call(
            _conv_bn_single_kernel,
            grid=(1,),
            in_specs=[pl.BlockSpec((M, K), lambda i: (0, 0)),
                      pl.BlockSpec((K, C), lambda i: (0, 0))] + vec_specs,
            out_specs=pl.BlockSpec((M, C), lambda i: (0, 0)),
            out_shape=jax.ShapeDtypeStruct((M, C), jnp.float32),
            compiler_params=cparams,
        )(a, w, bias, gamma, beta)

    n_m = pl.cdiv(M, tm)
    mp = n_m * tm
    return pl.pallas_call(
        _make_conv_bn_tiled_kernel(M, tm),
        grid=(n_m,),
        in_specs=[pl.BlockSpec((tm, K), lambda i: (i, 0)),
                  pl.BlockSpec((K, C), lambda i: (0, 0))] + vec_specs,
        out_specs=pl.BlockSpec((M, C), lambda i: (0, 0)),   # resident, written at end
        out_shape=jax.ShapeDtypeStruct((M, C), jnp.float32),
        scratch_shapes=[pltpu.VMEM((mp, C), jnp.float32)],
        compiler_params=cparams,
    )(a, w, bias, gamma, beta)


# ----------------------------------------------------------------------------
# Plain fused matmul + bias (LSTM input projections), tiled over M
# ----------------------------------------------------------------------------

def _matmul_bias_kernel(a_ref, w_ref, b_ref, o_ref):
    o_ref[...] = (jnp.dot(a_ref[...], w_ref[...], preferred_element_type=jnp.float32)
                  + b_ref[...])


def matmul_bias(a, w, bias, *, tile_cap=512):
    """(M,K)@(K,N)+bias(1,N); M tiled (parallel), weight resident, no padding."""
    M, K = a.shape
    N = w.shape[1]
    tm = M if M <= tile_cap else tile_cap
    return pl.pallas_call(
        _matmul_bias_kernel,
        grid=(pl.cdiv(M, tm),),
        in_specs=[pl.BlockSpec((tm, K), lambda i: (i, 0)),
                  pl.BlockSpec((K, N), lambda i: (0, 0)),
                  pl.BlockSpec((1, N), lambda i: (0, 0))],
        out_specs=pl.BlockSpec((tm, N), lambda i: (i, 0)),
        out_shape=jax.ShapeDtypeStruct((M, N), jnp.float32),
        compiler_params=pltpu.CompilerParams(dimension_semantics=("parallel",),
                                             vmem_limit_bytes=_VMEM_LIMIT),
    )(a, w, bias)


# ----------------------------------------------------------------------------
# Fused (bi)directional LSTM layer: grid=(1,), in-kernel time loop, h/c in VMEM
# ----------------------------------------------------------------------------

def _make_lstm_kernel(T, B, H, D):
    G = 4 * H

    def kernel(xg_ref, whh_ref, *refs):
        if D == 2:
            hf_ref, hr_ref, cfin_ref, hs, cs = refs
            row_fwd = jax.lax.broadcasted_iota(jnp.int32, (2 * B, 1), 0) < B
        else:
            hf_ref, cfin_ref, hs, cs = refs
        hs[...] = jnp.zeros_like(hs)
        cs[...] = jnp.zeros_like(cs)

        def step(t, carry):
            if D == 2:
                xf = xg_ref[t]           # (B, 2G): fwd-dir gates at time t
                xr = xg_ref[T - 1 - t]   # (B, 2G): rev-dir gates at time T-1-t
                xgt = jnp.concatenate([xf[:, :G], xr[:, G:]], axis=0)  # (2B, G)
            else:
                xgt = xg_ref[t]          # (B, G)
            # Single recurrence matmul for both directions (N = D*4H lanes).
            rec = jnp.dot(hs[...], whh_ref[...], preferred_element_type=jnp.float32)
            if D == 2:
                rec = jnp.where(row_fwd, rec[:, :G], rec[:, G:])
            gates = xgt + rec            # gate order: i, f, g, o (PyTorch)
            gi = jax.nn.sigmoid(gates[:, 0:H])
            gf = jax.nn.sigmoid(gates[:, H:2 * H])
            gg = jnp.tanh(gates[:, 2 * H:3 * H])
            go = jax.nn.sigmoid(gates[:, 3 * H:4 * H])
            c = gf * cs[...] + gi * gg
            h = go * jnp.tanh(c)
            cs[...] = c
            hs[...] = h
            hf_ref[t] = h[0:B]
            if D == 2:
                hr_ref[T - 1 - t] = h[B:2 * B]
            return carry

        if T <= 32:                      # small static T: unroll at trace time
            for t in range(T):
                step(t, 0)
        else:
            jax.lax.fori_loop(0, T, step, 0)
        cfin_ref[...] = cs[...]          # only the final cell state is emitted

    return kernel


def lstm_layer(xg, whh_cat, B, H, T, D):
    """xg: (T, B, D*4H) input-projected gates; whh_cat: (H, D*4H)."""
    out_shape = [jax.ShapeDtypeStruct((T, B, H), jnp.float32)]
    out_specs = [pl.BlockSpec((T, B, H), lambda i: (0, 0, 0))]
    if D == 2:
        out_shape.append(jax.ShapeDtypeStruct((T, B, H), jnp.float32))
        out_specs.append(pl.BlockSpec((T, B, H), lambda i: (0, 0, 0)))
    out_shape.append(jax.ShapeDtypeStruct((D * B, H), jnp.float32))
    out_specs.append(pl.BlockSpec((D * B, H), lambda i: (0, 0)))

    outs = pl.pallas_call(
        _make_lstm_kernel(T, B, H, D),
        grid=(1,),
        in_specs=[pl.BlockSpec((T, B, D * 4 * H), lambda i: (0, 0, 0)),
                  pl.BlockSpec((H, D * 4 * H), lambda i: (0, 0))],
        out_specs=out_specs,
        out_shape=out_shape,
        scratch_shapes=[pltpu.VMEM((D * B, H), jnp.float32),
                        pltpu.VMEM((D * B, H), jnp.float32)],
        compiler_params=pltpu.CompilerParams(dimension_semantics=("arbitrary",),
                                             vmem_limit_bytes=_VMEM_LIMIT),
    )(xg, whh_cat)
    if D == 2:
        hf, hr, cfin = outs
        return hf, hr, cfin
    hf, cfin = outs
    return hf, None, cfin


# ----------------------------------------------------------------------------
# Glue (plain JAX): im2col patch extraction, parameter setup, layer wiring
# ----------------------------------------------------------------------------

def im2col(x, kh, kw, sh, sw, ph, pw):
    """x: (B, C, H, W) NCHW -> patches (B, Ho, Wo, C*kh*kw), channel-major."""
    B, C, H, W = x.shape
    xp = jnp.pad(x, ((0, 0), (0, 0), (ph, ph), (pw, pw)))
    Ho = (H + 2 * ph - kh) // sh + 1
    Wo = (W + 2 * pw - kw) // sw + 1
    hi = (jnp.arange(Ho) * sh)[:, None] + jnp.arange(kh)[None, :]      # (Ho, kh)
    wi = (jnp.arange(Wo) * sw)[:, None] + jnp.arange(kw)[None, :]      # (Wo, kw)
    p = xp[:, :, hi[:, :, None, None], wi[None, None, :, :]]           # (B,C,Ho,kh,Wo,kw)
    p = p.transpose(0, 2, 4, 1, 3, 5).reshape(B, Ho, Wo, C * kh * kw)  # (C,kh,kw) order
    return p, Ho, Wo


def init_params(key, num_layers, bidirectional, rnn_size, sample_rate, window_size):
    num_directions = 2 if bidirectional else 1
    input_size = int(math.floor(sample_rate * window_size / 2) + 1)
    input_size = int(math.floor(input_size - 41) / 2 + 1)
    input_size = int(math.floor(input_size - 21) / 2 + 1)
    input_size *= 32

    def uniform(k, shape, bound):
        return jax.random.uniform(k, shape, jnp.float32, -bound, bound)

    keys = iter(jax.random.split(key, 64))
    params = {}
    k1 = 1.0 / math.sqrt(1 * 41 * 11)
    params["conv1_w"] = uniform(next(keys), (32, 1, 41, 11), k1)
    params["conv1_b"] = uniform(next(keys), (32,), k1)
    params["bn1_gamma"] = jnp.ones((32,), jnp.float32)
    params["bn1_beta"] = jnp.zeros((32,), jnp.float32)
    k2 = 1.0 / math.sqrt(32 * 21 * 11)
    params["conv2_w"] = uniform(next(keys), (32, 32, 21, 11), k2)
    params["conv2_b"] = uniform(next(keys), (32,), k2)
    params["bn2_gamma"] = jnp.ones((32,), jnp.float32)
    params["bn2_beta"] = jnp.zeros((32,), jnp.float32)

    H = rnn_size
    kl = 1.0 / math.sqrt(H)
    for layer in range(num_layers):
        in_l = input_size if layer == 0 else H * num_directions
        for d in range(num_directions):
            sfx = f"l{layer}" + ("_reverse" if d == 1 else "")
            params[f"w_ih_{sfx}"] = uniform(next(keys), (4 * H, in_l), kl)
            params[f"w_hh_{sfx}"] = uniform(next(keys), (4 * H, H), kl)
            params[f"b_ih_{sfx}"] = uniform(next(keys), (4 * H,), kl)
            params[f"b_hh_{sfx}"] = uniform(next(keys), (4 * H,), kl)
    return params, input_size


def audio_encoder_forward(params, x, num_layers, num_directions, rnn_size):
    """x: (B, 1, freq, time) NCHW f32.  Returns ((h_n, c_n), output) like PyTorch."""
    B = x.shape[0]

    # --- conv1 (1->32, k=(41,11), pad=(0,10), stride=(2,2)) + BN1 + hardtanh ---
    p1, H1, W1 = im2col(x, 41, 11, 2, 2, 0, 10)
    w1 = params["conv1_w"].reshape(32, -1).T                       # (451, 32)
    y1 = conv_bn_hardtanh(p1.reshape(-1, p1.shape[-1]), w1,
                          params["conv1_b"][None, :],
                          params["bn1_gamma"][None, :], params["bn1_beta"][None, :])
    y1 = y1.reshape(B, H1, W1, 32).transpose(0, 3, 1, 2)           # back to NCHW

    # --- conv2 (32->32, k=(21,11), pad=(0,0), stride=(2,1)) + BN2 + hardtanh ---
    p2, H2, W2 = im2col(y1, 21, 11, 2, 1, 0, 0)
    w2 = params["conv2_w"].reshape(32, -1).T                       # (7392, 32)
    y2 = conv_bn_hardtanh(p2.reshape(-1, p2.shape[-1]), w2,
                          params["conv2_b"][None, :],
                          params["bn2_gamma"][None, :], params["bn2_beta"][None, :])
    y2 = y2.reshape(B, H2, W2, 32)                                 # NHWC

    # PyTorch: NCHW -> view(B, C*H, W) -> (W, B, C*H)  (channel-major features)
    rnn_in = y2.transpose(2, 0, 3, 1).reshape(W2, B, 32 * H2)      # (T, B, C*H)

    # --- LSTM stack (dropout=0.0 -> inter-layer dropout is a no-op) ---
    H = rnn_size
    D = num_directions
    T = W2
    layer_in = rnn_in
    h_finals, c_finals = [], []
    for layer in range(num_layers):
        sfx = f"l{layer}"
        if D == 2:
            w_ih = jnp.concatenate(
                [params[f"w_ih_{sfx}"].T, params[f"w_ih_{sfx}_reverse"].T], axis=1)
            w_hh = jnp.concatenate(
                [params[f"w_hh_{sfx}"].T, params[f"w_hh_{sfx}_reverse"].T], axis=1)
            bias = jnp.concatenate(
                [params[f"b_ih_{sfx}"] + params[f"b_hh_{sfx}"],
                 params[f"b_ih_{sfx}_reverse"] + params[f"b_hh_{sfx}_reverse"]])[None, :]
        else:
            w_ih = params[f"w_ih_{sfx}"].T
            w_hh = params[f"w_hh_{sfx}"].T
            bias = (params[f"b_ih_{sfx}"] + params[f"b_hh_{sfx}"])[None, :]

        I = layer_in.shape[-1]
        xg = matmul_bias(layer_in.reshape(T * B, I), w_ih, bias)
        xg = xg.reshape(T, B, D * 4 * H)
        hf, hr, cfin = lstm_layer(xg, w_hh, B, H, T, D)

        if D == 2:
            layer_in = jnp.concatenate([hf, hr], axis=-1)          # (T, B, 2H)
            h_finals += [hf[T - 1], hr[0]]
            c_finals += [cfin[0:B], cfin[B:2 * B]]
        else:
            layer_in = hf
            h_finals.append(hf[T - 1])
            c_finals.append(cfin)

    output = layer_in                                  # (T, B, D*H)
    h_n = jnp.stack(h_finals, axis=0)                  # (num_layers*D, B, H)
    c_n = jnp.stack(c_finals, axis=0)
    return (h_n, c_n), output


# ----------------------------------------------------------------------------
if __name__ == "__main__":
    num_layers = 2
    bidirectional = True
    num_directions = 2 if bidirectional else 1
    rnn_size = 32
    dropout = 0.0          # deterministic; nn.LSTM dropout is inactive at p=0
    sample_rate = 160.0
    window_size = 1.0

    B, W0 = 2, 30
    F0 = int(math.floor(sample_rate * window_size / 2) + 1)  # 81 freq bins

    key = jax.random.PRNGKey(0)
    kx, kp = jax.random.split(key)
    x = jax.random.normal(kx, (B, 1, F0, W0), dtype=jnp.float32)
    params, input_size = init_params(
        kp, num_layers, bidirectional, rnn_size, sample_rate, window_size
    )
    assert input_size == 32  # 32 channels * 1 remaining freq bin

    fwd = jax.jit(audio_encoder_forward, static_argnums=(2, 3, 4))
    (h_n, c_n), output = fwd(params, x, num_layers, num_directions, rnn_size)
    jax.block_until_ready((h_n, c_n, output))

    # Shapes must match PyTorch nn.LSTM conventions; values must be finite.
    assert output.shape == (10, B, num_directions * rnn_size)
    assert h_n.shape == (num_layers * num_directions, B, rnn_size)
    assert c_n.shape == (num_layers * num_directions, B, rnn_size)
    assert bool(jnp.isfinite(output).all())
    assert bool(jnp.isfinite(h_n).all()) and bool(jnp.isfinite(c_n).all())
    print("KERNEL_OK")
</pallas_src>

<mosaic_0001>
module attributes {stable_mosaic.version = 11 : i64} {
  func.func @kernel(%arg0: i32, %arg1: memref<512x451xf32, #tpu.memory_space<vmem>>, %arg2: memref<451x32xf32, #tpu.memory_space<vmem>>, %arg3: memref<1x32xf32, #tpu.memory_space<vmem>>, %arg4: memref<1x32xf32, #tpu.memory_space<vmem>>, %arg5: memref<1x32xf32, #tpu.memory_space<vmem>>, %arg6: memref<840x32xf32, #tpu.memory_space<vmem>>, %arg7: memref<1024x32xf32, #tpu.memory_space<vmem>>) attributes {dimension_semantics = [#tpu.dimension_semantics<arbitrary>], iteration_bounds = array<i64: 2>, scalar_prefetch = 0 : i64, scratch_operands = 1 : i64, tpu.core_type = #tpu.core_type<tc>, window_params = [{transform_indices = @transform_0, window_bounds = array<i64: 512, 451>}, {pipeline_mode = #tpu.pipeline_mode<synchronous>, transform_indices = @transform_1, window_bounds = array<i64: 451, 32>}, {pipeline_mode = #tpu.pipeline_mode<synchronous>, transform_indices = @transform_2, window_bounds = array<i64: 1, 32>}, {pipeline_mode = #tpu.pipeline_mode<synchronous>, transform_indices = @transform_3, window_bounds = array<i64: 1, 32>}, {pipeline_mode = #tpu.pipeline_mode<synchronous>, transform_indices = @transform_4, window_bounds = array<i64: 1, 32>}, {pipeline_mode = #tpu.pipeline_mode<synchronous>, transform_indices = @transform_5, window_bounds = array<i64: 840, 32>}]} {
    %c0 = arith.constant 0 : index
    %c0_0 = arith.constant 0 : index
    %0 = vector.load %arg1[%c0, %c0_0] : memref<512x451xf32, #tpu.memory_space<vmem>>, vector<512x451xf32>
    %c0_1 = arith.constant 0 : index
    %c0_2 = arith.constant 0 : index
    %1 = vector.load %arg2[%c0_1, %c0_2] : memref<451x32xf32, #tpu.memory_space<vmem>>, vector<451x32xf32>
    %cst = arith.constant dense<0.000000e+00> : vector<512x32xf32>
    %2 = tpu.matmul %0, %1, %cst {dimension_numbers = #tpu.dot_dimension_numbers<[1], [0], [0], [1], [0, 0, 1, 1], [], []>} : vector<512x451xf32>, vector<451x32xf32>, vector<512x32xf32> -> vector<512x32xf32>
    %c0_3 = arith.constant 0 : index
    %c0_4 = arith.constant 0 : index
    %3 = vector.load %arg3[%c0_3, %c0_4] : memref<1x32xf32, #tpu.memory_space<vmem>>, vector<1x32xf32>
    %4 = vector.broadcast %3 : vector<1x32xf32> to vector<512x32xf32>
    %5 = arith.addf %2, %4 : vector<512x32xf32>
    %c512_i32 = arith.constant 512 : i32
    %6 = arith.muli %arg0, %c512_i32 : i32
    %7 = tpu.assume_multiple %6, 8 : i32
    %8 = arith.index_cast %7 : i32 to index
    %c0_5 = arith.constant 0 : index
    %9 = vector.load %arg7[%8, %c0_5] : memref<1024x32xf32, #tpu.memory_space<vmem>>, vector<512x32xf32>
    tpu.vector_store %arg7[%8, %c0_5], %5 {strides = array<i32>} : memref<1024x32xf32, #tpu.memory_space<vmem>>, vector<512x32xf32>,
    %c1_i32 = arith.constant 1 : i32
    %10 = arith.cmpi eq, %arg0, %c1_i32 : i32
    %11 = arith.extui %10 : i1 to i32
    %c0_i32 = arith.constant 0 : i32
    %12 = arith.cmpi ne, %11, %c0_i32 : i32
    scf.if %12 {
      %c0_6 = arith.constant 0 : index
      %c0_7 = arith.constant 0 : index
      %13 = vector.load %arg7[%c0_6, %c0_7] : memref<1024x32xf32, #tpu.memory_space<vmem>>, vector<1024x32xf32>
      %14 = tpu.iota {dimensions = array<i32: 0>} : vector<1024x1xi32>
      %c840_i32 = arith.constant 840 : i32
      %15 = vector.broadcast %c840_i32 : i32 to vector<1024x1xi32>
      %16 = arith.cmpi slt, %14, %15 : vector<1024x1xi32>
      %cst_8 = arith.constant 0.000000e+00 : f32
      %17 = vector.shape_cast %16 : vector<1024x1xi1> to vector<1024x1xi1>
      %18 = vector.broadcast %17 : vector<1024x1xi1> to vector<1024x32xi1>
      %19 = vector.broadcast %cst_8 : f32 to vector<1024x32xf32>
      %20 = arith.select %18, %13, %19 : vector<1024x32xi1>, vector<1024x32xf32>
      %cst_9 = arith.constant dense<0.000000e+00> : vector<32xf32>
      %21 = vector.multi_reduction <add>, %20, %cst_9 [0] : vector<1024x32xf32> to vector<32xf32>
      %22 = vector.shape_cast %21 : vector<32xf32> to vector<1x32xf32>
      %cst_10 = arith.constant 0.00119047624 : f32
      %23 = vector.broadcast %cst_10 : f32 to vector<1x32xf32>
      %24 = arith.mulf %22, %23 : vector<1x32xf32>
      %25 = vector.broadcast %24 : vector<1x32xf32> to vector<1024x32xf32>
      %26 = arith.subf %13, %25 : vector<1024x32xf32>
      %cst_11 = arith.constant 0.000000e+00 : f32
      %27 = vector.shape_cast %16 : vector<1024x1xi1> to vector<1024x1xi1>
      %28 = vector.broadcast %27 : vector<1024x1xi1> to vector<1024x32xi1>
      %29 = vector.broadcast %cst_11 : f32 to vector<1024x32xf32>
      %30 = arith.select %28, %26, %29 : vector<1024x32xi1>, vector<1024x32xf32>
      %31 = arith.mulf %30, %30 : vector<1024x32xf32>
      %cst_12 = arith.constant dense<0.000000e+00> : vector<32xf32>
      %32 = vector.multi_reduction <add>, %31, %cst_12 [0] : vector<1024x32xf32> to vector<32xf32>
      %33 = vector.shape_cast %32 : vector<32xf32> to vector<1x32xf32>
      %cst_13 = arith.constant 0.00119047624 : f32
      %34 = vector.broadcast %cst_13 : f32 to vector<1x32xf32>
      %35 = arith.mulf %33, %34 : vector<1x32xf32>
      %cst_14 = arith.constant 9.99999974E-6 : f32
      %36 = vector.broadcast %cst_14 : f32 to vector<1x32xf32>
      %37 = arith.addf %35, %36 : vector<1x32xf32>
      %38 = math.rsqrt %37 : vector<1x32xf32>
      %39 = vector.broadcast %24 : vector<1x32xf32> to vector<1024x32xf32>
      %40 = arith.subf %13, %39 : vector<1024x32xf32>
      %41 = vector.broadcast %38 : vector<1x32xf32> to vector<1024x32xf32>
      %42 = arith.mulf %40, %41 : vector<1024x32xf32>
      %c0_15 = arith.constant 0 : index
      %c0_16 = arith.constant 0 : index
      %43 = vector.load %arg4[%c0_15, %c0_16] : memref<1x32xf32, #tpu.memory_space<vmem>>, vector<1x32xf32>
      %44 = vector.broadcast %43 : vector<1x32xf32> to vector<1024x32xf32>
      %45 = arith.mulf %42, %44 : vector<1024x32xf32>
      %c0_17 = arith.constant 0 : index
      %c0_18 = arith.constant 0 : index
      %46 = vector.load %arg5[%c0_17, %c0_18] : memref<1x32xf32, #tpu.memory_space<vmem>>, vector<1x32xf32>
      %47 = vector.broadcast %46 : vector<1x32xf32> to vector<1024x32xf32>
      %48 = arith.addf %45, %47 : vector<1024x32xf32>
      %cst_19 = arith.constant 0.000000e+00 : f32
      %cst_20 = arith.constant 2.000000e+01 : f32
      %49 = vector.broadcast %cst_19 : f32 to vector<1024x32xf32>
      %50 = arith.maximumf %49, %48 : vector<1024x32xf32>
      %51 = vector.broadcast %cst_20 : f32 to vector<1024x32xf32>
      %52 = arith.minimumf %51, %50 : vector<1024x32xf32>
      %53 = vector.extract_strided_slice %52 {offsets = [0, 0], sizes = [840, 32], strides = [1, 1]} : vector<1024x32xf32> to vector<840x32xf32>
      %c0_21 = arith.constant 0 : index
      %c0_22 = arith.constant 0 : index
      %54 = vector.load %arg6[%c0_21, %c0_22] : memref<840x32xf32, #tpu.memory_space<vmem>>, vector<840x32xf32>
      tpu.vector_store %arg6[%c0_21, %c0_22], %53 {strides = array<i32>} : memref<840x32xf32, #tpu.memory_space<vmem>>, vector<840x32xf32>,
    } else {
    }
    return
  }
  func.func @transform_0(%arg0: i32) -> (i32, i32) {
    %c0_i32 = arith.constant 0 : i32
    %c0_i32_0 = arith.constant 0 : i32
    return %arg0, %c0_i32 : i32, i32
  }
  func.func @transform_1(%arg0: i32) -> (i32, i32) {
    %c0_i32 = arith.constant 0 : i32
    %c0_i32_0 = arith.constant 0 : i32
    %c0_i32_1 = arith.constant 0 : i32
    return %c0_i32, %c0_i32_0 : i32, i32
  }
  func.func @transform_2(%arg0: i32) -> (i32, i32) {
    %c0_i32 = arith.constant 0 : i32
    %c0_i32_0 = arith.constant 0 : i32
    %c0_i32_1 = arith.constant 0 : i32
    return %c0_i32, %c0_i32_0 : i32, i32
  }
  func.func @transform_3(%arg0: i32) -> (i32, i32) {
    %c0_i32 = arith.constant 0 : i32
    %c0_i32_0 = arith.constant 0 : i32
    %c0_i32_1 = arith.constant 0 : i32
    return %c0_i32, %c0_i32_0 : i32, i32
  }
  func.func @transform_4(%arg0: i32) -> (i32, i32) {
    %c0_i32 = arith.constant 0 : i32
    %c0_i32_0 = arith.constant 0 : i32
    %c0_i32_1 = arith.constant 0 : i32
    return %c0_i32, %c0_i32_0 : i32, i32
  }
  func.func @transform_5(%arg0: i32) -> (i32, i32) {
    %c0_i32 = arith.constant 0 : i32
    %c0_i32_0 = arith.constant 0 : i32
    %c0_i32_1 = arith.constant 0 : i32
    return %c0_i32, %c0_i32_0 : i32, i32
  }
}

module attributes {stable_mosaic.version = 11 : i64} {
  func.func @_conv_bn_single_kernel(%arg0: i32, %arg1: memref<20x7392xf32, #tpu.memory_space<vmem>>, %arg2: memref<7392x32xf32, #tpu.memory_space<vmem>>, %arg3: memref<1x32xf32, #tpu.memory_space<vmem>>, %arg4: memref<1x32xf32, #tpu.memory_space<vmem>>, %arg5: memref<1x32xf32, #tpu.memory_space<vmem>>, %arg6: memref<20x32xf32, #tpu.memory_space<vmem>>) attributes {dimension_semantics = [#tpu.dimension_semantics<arbitrary>], iteration_bounds = array<i64: 1>, scalar_prefetch = 0 : i64, scratch_operands = 0 : i64, tpu.core_type = #tpu.core_type<tc>, window_params = [{pipeline_mode = #tpu.pipeline_mode<synchronous>, transform_indices = @transform_0, window_bounds = array<i64: 20, 7392>}, {pipeline_mode = #tpu.pipeline_mode<synchronous>, transform_indices = @transform_1, window_bounds = array<i64: 7392, 32>}, {pipeline_mode = #tpu.pipeline_mode<synchronous>, transform_indices = @transform_2, window_bounds = array<i64: 1, 32>}, {pipeline_mode = #tpu.pipeline_mode<synchronous>, transform_indices = @transform_3, window_bounds = array<i64: 1, 32>}, {pipeline_mode = #tpu.pipeline_mode<synchronous>, transform_indices = @transform_4, window_bounds = array<i64: 1, 32>}, {pipeline_mode = #tpu.pipeline_mode<synchronous>, transform_indices = @transform_5, window_bounds = array<i64: 20, 32>}]} {
    %c0 = arith.constant 0 : index
    %c0_0 = arith.constant 0 : index
    %0 = vector.load %arg1[%c0, %c0_0] : memref<20x7392xf32, #tpu.memory_space<vmem>>, vector<20x7392xf32>
    %c0_1 = arith.constant 0 : index
    %c0_2 = arith.constant 0 : index
    %1 = vector.load %arg2[%c0_1, %c0_2] : memref<7392x32xf32, #tpu.memory_space<vmem>>, vector<7392x32xf32>
    %cst = arith.constant dense<0.000000e+00> : vector<20x32xf32>
    %2 = tpu.matmul %0, %1, %cst {dimension_numbers = #tpu.dot_dimension_numbers<[1], [0], [0], [1], [0, 0, 1, 1], [], []>} : vector<20x7392xf32>, vector<7392x32xf32>, vector<20x32xf32> -> vector<20x32xf32>
    %c0_3 = arith.constant 0 : index
    %c0_4 = arith.constant 0 : index
    %3 = vector.load %arg3[%c0_3, %c0_4] : memref<1x32xf32, #tpu.memory_space<vmem>>, vector<1x32xf32>
    %4 = vector.broadcast %3 : vector<1x32xf32> to vector<20x32xf32>
    %5 = arith.addf %2, %4 : vector<20x32xf32>
    %cst_5 = arith.constant dense<0.000000e+00> : vector<32xf32>
    %6 = vector.multi_reduction <add>, %5, %cst_5 [0] : vector<20x32xf32> to vector<32xf32>
    %7 = vector.shape_cast %6 : vector<32xf32> to vector<1x32xf32>
    %cst_6 = arith.constant 2.000000e+01 : f32
    %8 = vector.broadcast %cst_6 : f32 to vector<1x32xf32>
    %9 = arith.divf %7, %8 : vector<1x32xf32>
    %10 = vector.broadcast %9 : vector<1x32xf32> to vector<20x32xf32>
    %11 = arith.subf %5, %10 : vector<20x32xf32>
    %12 = arith.mulf %11, %11 : vector<20x32xf32>
    %cst_7 = arith.constant dense<0.000000e+00> : vector<32xf32>
    %13 = vector.multi_reduction <add>, %12, %cst_7 [0] : vector<20x32xf32> to vector<32xf32>
    %14 = vector.shape_cast %13 : vector<32xf32> to vector<1x32xf32>
    %cst_8 = arith.constant 2.000000e+01 : f32
    %15 = vector.broadcast %cst_8 : f32 to vector<1x32xf32>
    %16 = arith.divf %14, %15 : vector<1x32xf32>
    %cst_9 = arith.constant 9.99999974E-6 : f32
    %17 = vector.broadcast %cst_9 : f32 to vector<1x32xf32>
    %18 = arith.addf %16, %17 : vector<1x32xf32>
    %19 = math.rsqrt %18 : vector<1x32xf32>
    %20 = vector.broadcast %9 : vector<1x32xf32> to vector<20x32xf32>
    %21 = arith.subf %5, %20 : vector<20x32xf32>
    %22 = vector.broadcast %19 : vector<1x32xf32> to vector<20x32xf32>
    %23 = arith.mulf %21, %22 : vector<20x32xf32>
    %c0_10 = arith.constant 0 : index
    %c0_11 = arith.constant 0 : index
    %24 = vector.load %arg4[%c0_10, %c0_11] : memref<1x32xf32, #tpu.memory_space<vmem>>, vector<1x32xf32>
    %25 = vector.broadcast %24 : vector<1x32xf32> to vector<20x32xf32>
    %26 = arith.mulf %23, %25 : vector<20x32xf32>
    %c0_12 = arith.constant 0 : index
    %c0_13 = arith.constant 0 : index
    %27 = vector.load %arg5[%c0_12, %c0_13] : memref<1x32xf32, #tpu.memory_space<vmem>>, vector<1x32xf32>
    %28 = vector.broadcast %27 : vector<1x32xf32> to vector<20x32xf32>
    %29 = arith.addf %26, %28 : vector<20x32xf32>
    %cst_14 = arith.constant 0.000000e+00 : f32
    %cst_15 = arith.constant 2.000000e+01 : f32
    %30 = vector.broadcast %cst_14 : f32 to vector<20x32xf32>
    %31 = arith.maximumf %30, %29 : vector<20x32xf32>
    %32 = vector.broadcast %cst_15 : f32 to vector<20x32xf32>
    %33 = arith.minimumf %32, %31 : vector<20x32xf32>
    %c0_16 = arith.constant 0 : index
    %c0_17 = arith.constant 0 : index
    %34 = vector.load %arg6[%c0_16, %c0_17] : memref<20x32xf32, #tpu.memory_space<vmem>>, vector<20x32xf32>
    tpu.vector_store %arg6[%c0_16, %c0_17], %33 {strides = array<i32>} : memref<20x32xf32, #tpu.memory_space<vmem>>, vector<20x32xf32>,
    return
  }
  func.func @transform_0(%arg0: i32) -> (i32, i32) {
    %c0_i32 = arith.constant 0 : i32
    %c0_i32_0 = arith.constant 0 : i32
    %c0_i32_1 = arith.constant 0 : i32
    return %c0_i32, %c0_i32_0 : i32, i32
  }
  func.func @transform_1(%arg0: i32) -> (i32, i32) {
    %c0_i32 = arith.constant 0 : i32
    %c0_i32_0 = arith.constant 0 : i32
    %c0_i32_1 = arith.constant 0 : i32
    return %c0_i32, %c0_i32_0 : i32, i32
  }
  func.func @transform_2(%arg0: i32) -> (i32, i32) {
    %c0_i32 = arith.constant 0 : i32
    %c0_i32_0 = arith.constant 0 : i32
    %c0_i32_1 = arith.constant 0 : i32
    return %c0_i32, %c0_i32_0 : i32, i32
  }
  func.func @transform_3(%arg0: i32) -> (i32, i32) {
    %c0_i32 = arith.constant 0 : i32
    %c0_i32_0 = arith.constant 0 : i32
    %c0_i32_1 = arith.constant 0 : i32
    return %c0_i32, %c0_i32_0 : i32, i32
  }
  func.func @transform_4(%arg0: i32) -> (i32, i32) {
    %c0_i32 = arith.constant 0 : i32
    %c0_i32_0 = arith.constant 0 : i32
    %c0_i32_1 = arith.constant 0 : i32
    return %c0_i32, %c0_i32_0 : i32, i32
  }
  func.func @transform_5(%arg0: i32) -> (i32, i32) {
    %c0_i32 = arith.constant 0 : i32
    %c0_i32_0 = arith.constant 0 : i32
    %c0_i32_1 = arith.constant 0 : i32
    return %c0_i32, %c0_i32_0 : i32, i32
  }
}

module attributes {stable_mosaic.version = 11 : i64} {
  func.func @_matmul_bias_kernel(%arg0: i32, %arg1: memref<20x32xf32, #tpu.memory_space<vmem>>, %arg2: memref<32x256xf32, #tpu.memory_space<vmem>>, %arg3: memref<1x256xf32, #tpu.memory_space<vmem>>, %arg4: memref<20x256xf32, #tpu.memory_space<vmem>>) attributes {dimension_semantics = [#tpu.dimension_semantics<parallel>], iteration_bounds = array<i64: 1>, scalar_prefetch = 0 : i64, scratch_operands = 0 : i64, tpu.core_type = #tpu.core_type<tc>, window_params = [{transform_indices = @transform_0, window_bounds = array<i64: 20, 32>}, {pipeline_mode = #tpu.pipeline_mode<synchronous>, transform_indices = @transform_1, window_bounds = array<i64: 32, 256>}, {pipeline_mode = #tpu.pipeline_mode<synchronous>, transform_indices = @transform_2, window_bounds = array<i64: 1, 256>}, {transform_indices = @transform_3, window_bounds = array<i64: 20, 256>}]} {
    %c0 = arith.constant 0 : index
    %c0_0 = arith.constant 0 : index
    %0 = vector.load %arg1[%c0, %c0_0] : memref<20x32xf32, #tpu.memory_space<vmem>>, vector<20x32xf32>
    %c0_1 = arith.constant 0 : index
    %c0_2 = arith.constant 0 : index
    %1 = vector.load %arg2[%c0_1, %c0_2] : memref<32x256xf32, #tpu.memory_space<vmem>>, vector<32x256xf32>
    %cst = arith.constant dense<0.000000e+00> : vector<20x256xf32>
    %2 = tpu.matmul %0, %1, %cst {dimension_numbers = #tpu.dot_dimension_numbers<[1], [0], [0], [1], [0, 0, 1, 1], [], []>} : vector<20x32xf32>, vector<32x256xf32>, vector<20x256xf32> -> vector<20x256xf32>
    %c0_3 = arith.constant 0 : index
    %c0_4 = arith.constant 0 : index
    %3 = vector.load %arg3[%c0_3, %c0_4] : memref<1x256xf32, #tpu.memory_space<vmem>>, vector<1x256xf32>
    %4 = vector.broadcast %3 : vector<1x256xf32> to vector<20x256xf32>
    %5 = arith.addf %2, %4 : vector<20x256xf32>
    %c0_5 = arith.constant 0 : index
    %c0_6 = arith.constant 0 : index
    %6 = vector.load %arg4[%c0_5, %c0_6] : memref<20x256xf32, #tpu.memory_space<vmem>>, vector<20x256xf32>
    tpu.vector_store %arg4[%c0_5, %c0_6], %5 {strides = array<i32>} : memref<20x256xf32, #tpu.memory_space<vmem>>, vector<20x256xf32>,
    return
  }
  func.func @transform_0(%arg0: i32) -> (i32, i32) {
    %c0_i32 = arith.constant 0 : i32
    %c0_i32_0 = arith.constant 0 : i32
    return %arg0, %c0_i32 : i32, i32
  }
  func.func @transform_1(%arg0: i32) -> (i32, i32) {
    %c0_i32 = arith.constant 0 : i32
    %c0_i32_0 = arith.constant 0 : i32
    %c0_i32_1 = arith.constant 0 : i32
    return %c0_i32, %c0_i32_0 : i32, i32
  }
  func.func @transform_2(%arg0: i32) -> (i32, i32) {
    %c0_i32 = arith.constant 0 : i32
    %c0_i32_0 = arith.constant 0 : i32
    %c0_i32_1 = arith.constant 0 : i32
    return %c0_i32, %c0_i32_0 : i32, i32
  }
  func.func @transform_3(%arg0: i32) -> (i32, i32) {
    %c0_i32 = arith.constant 0 : i32
    %c0_i32_0 = arith.constant 0 : i32
    return %arg0, %c0_i32 : i32, i32
  }
}

module attributes {stable_mosaic.version = 11 : i64} {
  func.func @kernel(%arg0: i32, %arg1: memref<10x2x256xf32, #tpu.memory_space<vmem>>, %arg2: memref<32x256xf32, #tpu.memory_space<vmem>>, %arg3: memref<10x2x32xf32, #tpu.memory_space<vmem>>, %arg4: memref<10x2x32xf32, #tpu.memory_space<vmem>>, %arg5: memref<4x32xf32, #tpu.memory_space<vmem>>, %arg6: memref<4x32xf32, #tpu.memory_space<vmem>>, %arg7: memref<4x32xf32, #tpu.memory_space<vmem>>) attributes {dimension_semantics = [#tpu.dimension_semantics<arbitrary>], iteration_bounds = array<i64: 1>, scalar_prefetch = 0 : i64, scratch_operands = 2 : i64, tpu.core_type = #tpu.core_type<tc>, window_params = [{pipeline_mode = #tpu.pipeline_mode<synchronous>, transform_indices = @transform_0, window_bounds = array<i64: 10, 2, 256>}, {pipeline_mode = #tpu.pipeline_mode<synchronous>, transform_indices = @transform_1, window_bounds = array<i64: 32, 256>}, {pipeline_mode = #tpu.pipeline_mode<synchronous>, transform_indices = @transform_2, window_bounds = array<i64: 10, 2, 32>}, {pipeline_mode = #tpu.pipeline_mode<synchronous>, transform_indices = @transform_3, window_bounds = array<i64: 10, 2, 32>}, {pipeline_mode = #tpu.pipeline_mode<synchronous>, transform_indices = @transform_4, window_bounds = array<i64: 4, 32>}]} {
    %0 = tpu.iota {dimensions = array<i32: 0>} : vector<4x1xi32>
    %c2_i32 = arith.constant 2 : i32
    %1 = vector.broadcast %c2_i32 : i32 to vector<4x1xi32>
    %2 = arith.cmpi slt, %0, %1 : vector<4x1xi32>
    %cst = arith.constant 0.000000e+00 : f32
    %3 = vector.broadcast %cst : f32 to vector<4x32xf32>
    %c0 = arith.constant 0 : index
    %c0_0 = arith.constant 0 : index
    %4 = vector.load %arg6[%c0, %c0_0] : memref<4x32xf32, #tpu.memory_space<vmem>>, vector<4x32xf32>
    tpu.vector_store %arg6[%c0, %c0_0], %3 {strides = array<i32>} : memref<4x32xf32, #tpu.memory_space<vmem>>, vector<4x32xf32>,
    %cst_1 = arith.constant 0.000000e+00 : f32
    %5 = vector.broadcast %cst_1 : f32 to vector<4x32xf32>
    %c0_2 = arith.constant 0 : index
    %c0_3 = arith.constant 0 : index
    %6 = vector.load %arg7[%c0_2, %c0_3] : memref<4x32xf32, #tpu.memory_space<vmem>>, vector<4x32xf32>
    tpu.vector_store %arg7[%c0_2, %c0_3], %5 {strides = array<i32>} : memref<4x32xf32, #tpu.memory_space<vmem>>, vector<4x32xf32>,
    %c0_4 = arith.constant 0 : index
    %c0_5 = arith.constant 0 : index
    %c0_6 = arith.constant 0 : index
    %7 = vector.load %arg1[%c0_4, %c0_5, %c0_6] : memref<10x2x256xf32, #tpu.memory_space<vmem>>, vector<1x2x256xf32>
    %8 = vector.shape_cast %7 : vector<1x2x256xf32> to vector<2x256xf32>
    %c9 = arith.constant 9 : index
    %c0_7 = arith.constant 0 : index
    %c0_8 = arith.constant 0 : index
    %9 = vector.load %arg1[%c9, %c0_7, %c0_8] : memref<10x2x256xf32, #tpu.memory_space<vmem>>, vector<1x2x256xf32>
    %10 = vector.shape_cast %9 : vector<1x2x256xf32> to vector<2x256xf32>
    %11 = vector.extract_strided_slice %8 {offsets = [0, 0], sizes = [2, 128], strides = [1, 1]} : vector<2x256xf32> to vector<2x128xf32>
    %12 = vector.extract_strided_slice %10 {offsets = [0, 128], sizes = [2, 128], strides = [1, 1]} : vector<2x256xf32> to vector<2x128xf32>
    %13 = tpu.concatenate %11, %12 in 0 : vector<2x128xf32>, vector<2x128xf32> -> vector<4x128xf32>
    %c0_9 = arith.constant 0 : index
    %c0_10 = arith.constant 0 : index
    %14 = vector.load %arg6[%c0_9, %c0_10] : memref<4x32xf32, #tpu.memory_space<vmem>>, vector<4x32xf32>
    %c0_11 = arith.constant 0 : index
    %c0_12 = arith.constant 0 : index
    %15 = vector.load %arg2[%c0_11, %c0_12] : memref<32x256xf32, #tpu.memory_space<vmem>>, vector<32x256xf32>
    %cst_13 = arith.constant dense<0.000000e+00> : vector<4x256xf32>
    %16 = tpu.matmul %14, %15, %cst_13 {dimension_numbers = #tpu.dot_dimension_numbers<[1], [0], [0], [1], [0, 0, 1, 1], [], []>} : vector<4x32xf32>, vector<32x256xf32>, vector<4x256xf32> -> vector<4x256xf32>
    %17 = vector.extract_strided_slice %16 {offsets = [0, 0], sizes = [4, 128], strides = [1, 1]} : vector<4x256xf32> to vector<4x128xf32>
    %18 = vector.extract_strided_slice %16 {offsets = [0, 128], sizes = [4, 128], strides = [1, 1]} : vector<4x256xf32> to vector<4x128xf32>
    %19 = vector.shape_cast %2 : vector<4x1xi1> to vector<4x1xi1>
    %20 = vector.broadcast %19 : vector<4x1xi1> to vector<4x128xi1>
    %21 = arith.select %20, %17, %18 : vector<4x128xi1>, vector<4x128xf32>
    %22 = arith.addf %13, %21 : vector<4x128xf32>
    %23 = vector.extract_strided_slice %22 {offsets = [0, 0], sizes = [4, 32], strides = [1, 1]} : vector<4x128xf32> to vector<4x32xf32>
    %24 = arith.negf %23 : vector<4x32xf32>
    %25 = math.exp %24 : vector<4x32xf32>
    %cst_14 = arith.constant 1.000000e+00 : f32
    %26 = vector.broadcast %cst_14 : f32 to vector<4x32xf32>
    %27 = arith.addf %26, %25 : vector<4x32xf32>
    %28 = arith.divf %26, %27 : vector<4x32xf32>
    %29 = vector.extract_strided_slice %22 {offsets = [0, 32], sizes = [4, 32], strides = [1, 1]} : vector<4x128xf32> to vector<4x32xf32>
    %30 = arith.negf %29 : vector<4x32xf32>
    %31 = math.exp %30 : vector<4x32xf32>
    %cst_15 = arith.constant 1.000000e+00 : f32
    %32 = vector.broadcast %cst_15 : f32 to vector<4x32xf32>
    %33 = arith.addf %32, %31 : vector<4x32xf32>
    %34 = arith.divf %32, %33 : vector<4x32xf32>
    %35 = vector.extract_strided_slice %22 {offsets = [0, 64], sizes = [4, 32], strides = [1, 1]} : vector<4x128xf32> to vector<4x32xf32>
    %36 = math.tanh %35 : vector<4x32xf32>
    %37 = vector.extract_strided_slice %22 {offsets = [0, 96], sizes = [4, 32], strides = [1, 1]} : vector<4x128xf32> to vector<4x32xf32>
    %38 = arith.negf %37 : vector<4x32xf32>
    %39 = math.exp %38 : vector<4x32xf32>
    %cst_16 = arith.constant 1.000000e+00 : f32
    %40 = vector.broadcast %cst_16 : f32 to vector<4x32xf32>
    %41 = arith.addf %40, %39 : vector<4x32xf32>
    %42 = arith.divf %40, %41 : vector<4x32xf32>
    %c0_17 = arith.constant 0 : index
    %c0_18 = arith.constant 0 : index
    %43 = vector.load %arg7[%c0_17, %c0_18] : memref<4x32xf32, #tpu.memory_space<vmem>>, vector<4x32xf32>
    %44 = arith.mulf %34, %43 : vector<4x32xf32>
    %45 = arith.mulf %28, %36 : vector<4x32xf32>
    %46 = arith.addf %44, %45 : vector<4x32xf32>
    %47 = math.tanh %46 : vector<4x32xf32>
    %48 = arith.mulf %42, %47 : vector<4x32xf32>
    %c0_19 = arith.constant 0 : index
    %c0_20 = arith.constant 0 : index
    %49 = vector.load %arg7[%c0_19, %c0_20] : memref<4x32xf32, #tpu.memory_space<vmem>>, vector<4x32xf32>
    tpu.vector_store %arg7[%c0_19, %c0_20], %46 {strides = array<i32>} : memref<4x32xf32, #tpu.memory_space<vmem>>, vector<4x32xf32>,
    %c0_21 = arith.constant 0 : index
    %c0_22 = arith.constant 0 : index
    %50 = vector.load %arg6[%c0_21, %c0_22] : memref<4x32xf32, #tpu.memory_space<vmem>>, vector<4x32xf32>
    tpu.vector_store %arg6[%c0_21, %c0_22], %48 {strides = array<i32>} : memref<4x32xf32, #tpu.memory_space<vmem>>, vector<4x32xf32>,
    %51 = vector.extract_strided_slice %48 {offsets = [0, 0], sizes = [2, 32], strides = [1, 1]} : vector<4x32xf32> to vector<2x32xf32>
    %c0_23 = arith.constant 0 : index
    %c0_24 = arith.constant 0 : index
    %c0_25 = arith.constant 0 : index
    %52 = vector.load %arg3[%c0_23, %c0_24, %c0_25] : memref<10x2x32xf32, #tpu.memory_space<vmem>>, vector<1x2x32xf32>
    %53 = vector.shape_cast %52 : vector<1x2x32xf32> to vector<2x32xf32>
    %54 = vector.shape_cast %51 : vector<2x32xf32> to vector<1x2x32xf32>
    tpu.vector_store %arg3[%c0_23, %c0_24, %c0_25], %54 {strides = array<i32>} : memref<10x2x32xf32, #tpu.memory_space<vmem>>, vector<1x2x32xf32>,
    %55 = vector.extract_strided_slice %48 {offsets = [2, 0], sizes = [2, 32], strides = [1, 1]} : vector<4x32xf32> to vector<2x32xf32>
    %c9_26 = arith.constant 9 : index
    %c0_27 = arith.constant 0 : index
    %c0_28 = arith.constant 0 : index
    %56 = vector.load %arg4[%c9_26, %c0_27, %c0_28] : memref<10x2x32xf32, #tpu.memory_space<vmem>>, vector<1x2x32xf32>
    %57 = vector.shape_cast %56 : vector<1x2x32xf32> to vector<2x32xf32>
    %58 = vector.shape_cast %55 : vector<2x32xf32> to vector<1x2x32xf32>
    tpu.vector_store %arg4[%c9_26, %c0_27, %c0_28], %58 {strides = array<i32>} : memref<10x2x32xf32, #tpu.memory_space<vmem>>, vector<1x2x32xf32>,
    %c1 = arith.constant 1 : index
    %c0_29 = arith.constant 0 : index
    %c0_30 = arith.constant 0 : index
    %59 = vector.load %arg1[%c1, %c0_29, %c0_30] : memref<10x2x256xf32, #tpu.memory_space<vmem>>, vector<1x2x256xf32>
    %60 = vector.shape_cast %59 : vector<1x2x256xf32> to vector<2x256xf32>
    %c8 = arith.constant 8 : index
    %c0_31 = arith.constant 0 : index
    %c0_32 = arith.constant 0 : index
    %61 = vector.load %arg1[%c8, %c0_31, %c0_32] : memref<10x2x256xf32, #tpu.memory_space<vmem>>, vector<1x2x256xf32>
    %62 = vector.shape_cast %61 : vector<1x2x256xf32> to vector<2x256xf32>
    %63 = vector.extract_strided_slice %60 {offsets = [0, 0], sizes = [2, 128], strides = [1, 1]} : vector<2x256xf32> to vector<2x128xf32>
    %64 = vector.extract_strided_slice %62 {offsets = [0, 128], sizes = [2, 128], strides = [1, 1]} : vector<2x256xf32> to vector<2x128xf32>
    %65 = tpu.concatenate %63, %64 in 0 : vector<2x128xf32>, vector<2x128xf32> -> vector<4x128xf32>
    %c0_33 = arith.constant 0 : index
    %c0_34 = arith.constant 0 : index
    %66 = vector.load %arg6[%c0_33, %c0_34] : memref<4x32xf32, #tpu.memory_space<vmem>>, vector<4x32xf32>
    %c0_35 = arith.constant 0 : index
    %c0_36 = arith.constant 0 : index
    %67 = vector.load %arg2[%c0_35, %c0_36] : memref<32x256xf32, #tpu.memory_space<vmem>>, vector<32x256xf32>
    %cst_37 = arith.constant dense<0.000000e+00> : vector<4x256xf32>
    %68 = tpu.matmul %66, %67, %cst_37 {dimension_numbers = #tpu.dot_dimension_numbers<[1], [0], [0], [1], [0, 0, 1, 1], [], []>} : vector<4x32xf32>, vector<32x256xf32>, vector<4x256xf32> -> vector<4x256xf32>
    %69 = vector.extract_strided_slice %68 {offsets = [0, 0], sizes = [4, 128], strides = [1, 1]} : vector<4x256xf32> to vector<4x128xf32>
    %70 = vector.extract_strided_slice %68 {offsets = [0, 128], sizes = [4, 128], strides = [1, 1]} : vector<4x256xf32> to vector<4x128xf32>
    %71 = vector.shape_cast %2 : vector<4x1xi1> to vector<4x1xi1>
    %72 = vector.broadcast %71 : vector<4x1xi1> to vector<4x128xi1>
    %73 = arith.select %72, %69, %70 : vector<4x128xi1>, vector<4x128xf32>
    %74 = arith.addf %65, %73 : vector<4x128xf32>
    %75 = vector.extract_strided_slice %74 {offsets = [0, 0], sizes = [4, 32], strides = [1, 1]} : vector<4x128xf32> to vector<4x32xf32>
    %76 = arith.negf %75 : vector<4x32xf32>
    %77 = math.exp %76 : vector<4x32xf32>
    %cst_38 = arith.constant 1.000000e+00 : f32
    %78 = vector.broadcast %cst_38 : f32 to vector<4x32xf32>
    %79 = arith.addf %78, %77 : vector<4x32xf32>
    %80 = arith.divf %78, %79 : vector<4x32xf32>
    %81 = vector.extract_strided_slice %74 {offsets = [0, 32], sizes = [4, 32], strides = [1, 1]} : vector<4x128xf32> to vector<4x32xf32>
    %82 = arith.negf %81 : vector<4x32xf32>
    %83 = math.exp %82 : vector<4x32xf32>
    %cst_39 = arith.constant 1.000000e+00 : f32
    %84 = vector.broadcast %cst_39 : f32 to vector<4x32xf32>
    %85 = arith.addf %84, %83 : vector<4x32xf32>
    %86 = arith.divf %84, %85 : vector<4x32xf32>
    %87 = vector.extract_strided_slice %74 {offsets = [0, 64], sizes = [4, 32], strides = [1, 1]} : vector<4x128xf32> to vector<4x32xf32>
    %88 = math.tanh %87 : vector<4x32xf32>
    %89 = vector.extract_strided_slice %74 {offsets = [0, 96], sizes = [4, 32], strides = [1, 1]} : vector<4x128xf32> to vector<4x32xf32>
    %90 = arith.negf %89 : vector<4x32xf32>
    %91 = math.exp %90 : vector<4x32xf32>
    %cst_40 = arith.constant 1.000000e+00 : f32
    %92 = vector.broadcast %cst_40 : f32 to vector<4x32xf32>
    %93 = arith.addf %92, %91 : vector<4x32xf32>
    %94 = arith.divf %92, %93 : vector<4x32xf32>
    %c0_41 = arith.constant 0 : index
    %c0_42 = arith.constant 0 : index
    %95 = vector.load %arg7[%c0_41, %c0_42] : memref<4x32xf32, #tpu.memory_space<vmem>>, vector<4x32xf32>
    %96 = arith.mulf %86, %95 : vector<4x32xf32>
    %97 = arith.mulf %80, %88 : vector<4x32xf32>
    %98 = arith.addf %96, %97 : vector<4x32xf32>
    %99 = math.tanh %98 : vector<4x32xf32>
    %100 = arith.mulf %94, %99 : vector<4x32xf32>
    %c0_43 = arith.constant 0 : index
    %c0_44 = arith.constant 0 : index
    %101 = vector.load %arg7[%c0_43, %c0_44] : memref<4x32xf32, #tpu.memory_space<vmem>>, vector<4x32xf32>
    tpu.vector_store %arg7[%c0_43, %c0_44], %98 {strides = array<i32>} : memref<4x32xf32, #tpu.memory_space<vmem>>, vector<4x32xf32>,
    %c0_45 = arith.constant 0 : index
    %c0_46 = arith.constant 0 : index
    %102 = vector.load %arg6[%c0_45, %c0_46] : memref<4x32xf32, #tpu.memory_space<vmem>>, vector<4x32xf32>
    tpu.vector_store %arg6[%c0_45, %c0_46], %100 {strides = array<i32>} : memref<4x32xf32, #tpu.memory_space<vmem>>, vector<4x32xf32>,
    %103 = vector.extract_strided_slice %100 {offsets = [0, 0], sizes = [2, 32], strides = [1, 1]} : vector<4x32xf32> to vector<2x32xf32>
    %c1_47 = arith.constant 1 : index
    %c0_48 = arith.constant 0 : index
    %c0_49 = arith.constant 0 : index
    %104 = vector.load %arg3[%c1_47, %c0_48, %c0_49] : memref<10x2x32xf32, #tpu.memory_space<vmem>>, vector<1x2x32xf32>
    %105 = vector.shape_cast %104 : vector<1x2x32xf32> to vector<2x32xf32>
    %106 = vector.shape_cast %103 : vector<2x32xf32> to vector<1x2x32xf32>
    tpu.vector_store %arg3[%c1_47, %c0_48, %c0_49], %106 {strides = array<i32>} : memref<10x2x32xf32, #tpu.memory_space<vmem>>, vector<1x2x32xf32>,
    %107 = vector.extract_strided_slice %100 {offsets = [2, 0], sizes = [2, 32], strides = [1, 1]} : vector<4x32xf32> to vector<2x32xf32>
    %c8_50 = arith.constant 8 : index
    %c0_51 = arith.constant 0 : index
    %c0_52 = arith.constant 0 : index
    %108 = vector.load %arg4[%c8_50, %c0_51, %c0_52] : memref<10x2x32xf32, #tpu.memory_space<vmem>>, vector<1x2x32xf32>
    %109 = vector.shape_cast %108 : vector<1x2x32xf32> to vector<2x32xf32>
    %110 = vector.shape_cast %107 : vector<2x32xf32> to vector<1x2x32xf32>
    tpu.vector_store %arg4[%c8_50, %c0_51, %c0_52], %110 {strides = array<i32>} : memref<10x2x32xf32, #tpu.memory_space<vmem>>, vector<1x2x32xf32>,
    %c2 = arith.constant 2 : index
    %c0_53 = arith.constant 0 : index
    %c0_54 = arith.constant 0 : index
    %111 = vector.load %arg1[%c2, %c0_53, %c0_54] : memref<10x2x256xf32, #tpu.memory_space<vmem>>, vector<1x2x256xf32>
    %112 = vector.shape_cast %111 : vector<1x2x256xf32> to vector<2x256xf32>
    %c7 = arith.constant 7 : index
    %c0_55 = arith.constant 0 : index
    %c0_56 = arith.constant 0 : index
    %113 = vector.load %arg1[%c7, %c0_55, %c0_56] : memref<10x2x256xf32, #tpu.memory_space<vmem>>, vector<1x2x256xf32>
    %114 = vector.shape_cast %113 : vector<1x2x256xf32> to vector<2x256xf32>
    %115 = vector.extract_strided_slice %112 {offsets = [0, 0], sizes = [2, 128], strides = [1, 1]} : vector<2x256xf32> to vector<2x128xf32>
    %116 = vector.extract_strided_slice %114 {offsets = [0, 128], sizes = [2, 128], strides = [1, 1]} : vector<2x256xf32> to vector<2x128xf32>
    %117 = tpu.concatenate %115, %116 in 0 : vector<2x128xf32>, vector<2x128xf32> -> vector<4x128xf32>
    %c0_57 = arith.constant 0 : index
    %c0_58 = arith.constant 0 : index
    %118 = vector.load %arg6[%c0_57, %c0_58] : memref<4x32xf32, #tpu.memory_space<vmem>>, vector<4x32xf32>
    %c0_59 = arith.constant 0 : index
    %c0_60 = arith.constant 0 : index
    %119 = vector.load %arg2[%c0_59, %c0_60] : memref<32x256xf32, #tpu.memory_space<vmem>>, vector<32x256xf32>
    %cst_61 = arith.constant dense<0.000000e+00> : vector<4x256xf32>
    %120 = tpu.matmul %118, %119, %cst_61 {dimension_numbers = #tpu.dot_dimension_numbers<[1], [0], [0], [1], [0, 0, 1, 1], [], []>} : vector<4x32xf32>, vector<32x256xf32>, vector<4x256xf32> -> vector<4x256xf32>
    %121 = vector.extract_strided_slice %120 {offsets = [0, 0], sizes = [4, 128], strides = [1, 1]} : vector<4x256xf32> to vector<4x128xf32>
    %122 = vector.extract_strided_slice %120 {offsets = [0, 128], sizes = [4, 128], strides = [1, 1]} : vector<4x256xf32> to vector<4x128xf32>
    %123 = vector.shape_cast %2 : vector<4x1xi1> to vector<4x1xi1>
    %124 = vector.broadcast %123 : vector<4x1xi1> to vector<4x128xi1>
    %125 = arith.select %124, %121, %122 : vector<4x128xi1>, vector<4x128xf32>
    %126 = arith.addf %117, %125 : vector<4x128xf32>
    %127 = vector.extract_strided_slice %126 {offsets = [0, 0], sizes = [4, 32], strides = [1, 1]} : vector<4x128xf32> to vector<4x32xf32>
    %128 = arith.negf %127 : vector<4x32xf32>
    %129 = math.exp %128 : vector<4x32xf32>
    %cst_62 = arith.constant 1.000000e+00 : f32
    %130 = vector.broadcast %cst_62 : f32 to vector<4x32xf32>
    %131 = arith.addf %130, %129 : vector<4x32xf32>
    %132 = arith.divf %130, %131 : vector<4x32xf32>
    %133 = vector.extract_strided_slice %126 {offsets = [0, 32], sizes = [4, 32], strides = [1, 1]} : vector<4x128xf32> to vector<4x32xf32>
    %134 = arith.negf %133 : vector<4x32xf32>
    %135 = math.exp %134 : vector<4x32xf32>
    %cst_63 = arith.constant 1.000000e+00 : f32
    %136 = vector.broadcast %cst_63 : f32 to vector<4x32xf32>
    %137 = arith.addf %136, %135 : vector<4x32xf32>
    %138 = arith.divf %136, %137 : vector<4x32xf32>
    %139 = vector.extract_strided_slice %126 {offsets = [0, 64], sizes = [4, 32], strides = [1, 1]} : vector<4x128xf32> to vector<4x32xf32>
    %140 = math.tanh %139 : vector<4x32xf32>
    %141 = vector.extract_strided_slice %126 {offsets = [0, 96], sizes = [4, 32], strides = [1, 1]} : vector<4x128xf32> to vector<4x32xf32>
    %142 = arith.negf %141 : vector<4x32xf32>
    %143 = math.exp %142 : vector<4x32xf32>
    %cst_64 = arith.constant 1.000000e+00 : f32
    %144 = vector.broadcast %cst_64 : f32 to vector<4x32xf32>
    %145 = arith.addf %144, %143 : vector<4x32xf32>
    %146 = arith.divf %144, %145 : vector<4x32xf32>
    %c0_65 = arith.constant 0 : index
    %c0_66 = arith.constant 0 : index
    %147 = vector.load %arg7[%c0_65, %c0_66] : memref<4x32xf32, #tpu.memory_space<vmem>>, vector<4x32xf32>
    %148 = arith.mulf %138, %147 : vector<4x32xf32>
    %149 = arith.mulf %132, %140 : vector<4x32xf32>
    %150 = arith.addf %148, %149 : vector<4x32xf32>
    %151 = math.tanh %150 : vector<4x32xf32>
    %152 = arith.mulf %146, %151 : vector<4x32xf32>
    %c0_67 = arith.constant 0 : index
    %c0_68 = arith.constant 0 : index
    %153 = vector.load %arg7[%c0_67, %c0_68] : memref<4x32xf32, #tpu.memory_space<vmem>>, vector<4x32xf32>
    tpu.vector_store %arg7[%c0_67, %c0_68], %150 {strides = array<i32>} : memref<4x32xf32, #tpu.memory_space<vmem>>, vector<4x32xf32>,
    %c0_69 = arith.constant 0 : index
    %c0_70 = arith.constant 0 : index
    %154 = vector.load %arg6[%c0_69, %c0_70] : memref<4x32xf32, #tpu.memory_space<vmem>>, vector<4x32xf32>
    tpu.vector_store %arg6[%c0_69, %c0_70], %152 {strides = array<i32>} : memref<4x32xf32, #tpu.memory_space<vmem>>, vector<4x32xf32>,
    %155 = vector.extract_strided_slice %152 {offsets = [0, 0], sizes = [2, 32], strides = [1, 1]} : vector<4x32xf32> to vector<2x32xf32>
    %c2_71 = arith.constant 2 : index
    %c0_72 = arith.constant 0 : index
    %c0_73 = arith.constant 0 : index
    %156 = vector.load %arg3[%c2_71, %c0_72, %c0_73] : memref<10x2x32xf32, #tpu.memory_space<vmem>>, vector<1x2x32xf32>
    %157 = vector.shape_cast %156 : vector<1x2x32xf32> to vector<2x32xf32>
    %158 = vector.shape_cast %155 : vector<2x32xf32> to vector<1x2x32xf32>
    tpu.vector_store %arg3[%c2_71, %c0_72, %c0_73], %158 {strides = array<i32>} : memref<10x2x32xf32, #tpu.memory_space<vmem>>, vector<1x2x32xf32>,
    %159 = vector.extract_strided_slice %152 {offsets = [2, 0], sizes = [2, 32], strides = [1, 1]} : vector<4x32xf32> to vector<2x32xf32>
    %c7_74 = arith.constant 7 : index
    %c0_75 = arith.constant 0 : index
    %c0_76 = arith.constant 0 : index
    %160 = vector.load %arg4[%c7_74, %c0_75, %c0_76] : memref<10x2x32xf32, #tpu.memory_space<vmem>>, vector<1x2x32xf32>
    %161 = vector.shape_cast %160 : vector<1x2x32xf32> to vector<2x32xf32>
    %162 = vector.shape_cast %159 : vector<2x32xf32> to vector<1x2x32xf32>
    tpu.vector_store %arg4[%c7_74, %c0_75, %c0_76], %162 {strides = array<i32>} : memref<10x2x32xf32, #tpu.memory_space<vmem>>, vector<1x2x32xf32>,
    %c3 = arith.constant 3 : index
    %c0_77 = arith.constant 0 : index
    %c0_78 = arith.constant 0 : index
    %163 = vector.load %arg1[%c3, %c0_77, %c0_78] : memref<10x2x256xf32, #tpu.memory_space<vmem>>, vector<1x2x256xf32>
    %164 = vector.shape_cast %163 : vector<1x2x256xf32> to vector<2x256xf32>
    %c6 = arith.constant 6 : index
    %c0_79 = arith.constant 0 : index
    %c0_80 = arith.constant 0 : index
    %165 = vector.load %arg1[%c6, %c0_79, %c0_80] : memref<10x2x256xf32, #tpu.memory_space<vmem>>, vector<1x2x256xf32>
    %166 = vector.shape_cast %165 : vector<1x2x256xf32> to vector<2x256xf32>
    %167 = vector.extract_strided_slice %164 {offsets = [0, 0], sizes = [2, 128], strides = [1, 1]} : vector<2x256xf32> to vector<2x128xf32>
    %168 = vector.extract_strided_slice %166 {offsets = [0, 128], sizes = [2, 128], strides = [1, 1]} : vector<2x256xf32> to vector<2x128xf32>
    %169 = tpu.concatenate %167, %168 in 0 : vector<2x128xf32>, vector<2x128xf32> -> vector<4x128xf32>
    %c0_81 = arith.constant 0 : index
    %c0_82 = arith.constant 0 : index
    %170 = vector.load %arg6[%c0_81, %c0_82] : memref<4x32xf32, #tpu.memory_space<vmem>>, vector<4x32xf32>
    %c0_83 = arith.constant 0 : index
    %c0_84 = arith.constant 0 : index
    %171 = vector.load %arg2[%c0_83, %c0_84] : memref<32x256xf32, #tpu.memory_space<vmem>>, vector<32x256xf32>
    %cst_85 = arith.constant dense<0.000000e+00> : vector<4x256xf32>
    %172 = tpu.matmul %170, %171, %cst_85 {dimension_numbers = #tpu.dot_dimension_numbers<[1], [0], [0], [1], [0, 0, 1, 1], [], []>} : vector<4x32xf32>, vector<32x256xf32>, vector<4x256xf32> -> vector<4x256xf32>
    %173 = vector.extract_strided_slice %172 {offsets = [0, 0], sizes = [4, 128], strides = [1, 1]} : vector<4x256xf32> to vector<4x128xf32>
    %174 = vector.extract_strided_slice %172 {offsets = [0, 128], sizes = [4, 128], strides = [1, 1]} : vector<4x256xf32> to vector<4x128xf32>
    %175 = vector.shape_cast %2 : vector<4x1xi1> to vector<4x1xi1>
    %176 = vector.broadcast %175 : vector<4x1xi1> to vector<4x128xi1>
    %177 = arith.select %176, %173, %174 : vector<4x128xi1>, vector<4x128xf32>
    %178 = arith.addf %169, %177 : vector<4x128xf32>
    %179 = vector.extract_strided_slice %178 {offsets = [0, 0], sizes = [4, 32], strides = [1, 1]} : vector<4x128xf32> to vector<4x32xf32>
    %180 = arith.negf %179 : vector<4x32xf32>
    %181 = math.exp %180 : vector<4x32xf32>
    %cst_86 = arith.constant 1.000000e+00 : f32
    %182 = vector.broadcast %cst_86 : f32 to vector<4x32xf32>
    %183 = arith.addf %182, %181 : vector<4x32xf32>
    %184 = arith.divf %182, %183 : vector<4x32xf32>
    %185 = vector.extract_strided_slice %178 {offsets = [0, 32], sizes = [4, 32], strides = [1, 1]} : vector<4x128xf32> to vector<4x32xf32>
    %186 = arith.negf %185 : vector<4x32xf32>
    %187 = math.exp %186 : vector<4x32xf32>
    %cst_87 = arith.constant 1.000000e+00 : f32
    %188 = vector.broadcast %cst_87 : f32 to vector<4x32xf32>
    %189 = arith.addf %188, %187 : vector<4x32xf32>
    %190 = arith.divf %188, %189 : vector<4x32xf32>
    %191 = vector.extract_strided_slice %178 {offsets = [0, 64], sizes = [4, 32], strides = [1, 1]} : vector<4x128xf32> to vector<4x32xf32>
    %192 = math.tanh %191 : vector<4x32xf32>
    %193 = vector.extract_strided_slice %178 {offsets = [0, 96], sizes = [4, 32], strides = [1, 1]} : vector<4x128xf32> to vector<4x32xf32>
    %194 = arith.negf %193 : vector<4x32xf32>
    %195 = math.exp %194 : vector<4x32xf32>
    %cst_88 = arith.constant 1.000000e+00 : f32
    %196 = vector.broadcast %cst_88 : f32 to vector<4x32xf32>
    %197 = arith.addf %196, %195 : vector<4x32xf32>
    %198 = arith.divf %196, %197 : vector<4x32xf32>
    %c0_89 = arith.constant 0 : index
    %c0_90 = arith.constant 0 : index
    %199 = vector.load %arg7[%c0_89, %c0_90] : memref<4x32xf32, #tpu.memory_space<vmem>>, vector<4x32xf32>
    %200 = arith.mulf %190, %199 : vector<4x32xf32>
    %201 = arith.mulf %184, %192 : vector<4x32xf32>
    %202 = arith.addf %200, %201 : vector<4x32xf32>
    %203 = math.tanh %202 : vector<4x32xf32>
    %204 = arith.mulf %198, %203 : vector<4x32xf32>
    %c0_91 = arith.constant 0 : index
    %c0_92 = arith.constant 0 : index
    %205 = vector.load %arg7[%c0_91, %c0_92] : memref<4x32xf32, #tpu.memory_space<vmem>>, vector<4x32xf32>
    tpu.vector_store %arg7[%c0_91, %c0_92], %202 {strides = array<i32>} : memref<4x32xf32, #tpu.memory_space<vmem>>, vector<4x32xf32>,
    %c0_93 = arith.constant 0 : index
    %c0_94 = arith.constant 0 : index
    %206 = vector.load %arg6[%c0_93, %c0_94] : memref<4x32xf32, #tpu.memory_space<vmem>>, vector<4x32xf32>
    tpu.vector_store %arg6[%c0_93, %c0_94], %204 {strides = array<i32>} : memref<4x32xf32, #tpu.memory_space<vmem>>, vector<4x32xf32>,
    %207 = vector.extract_strided_slice %204 {offsets = [0, 0], sizes = [2, 32], strides = [1, 1]} : vector<4x32xf32> to vector<2x32xf32>
    %c3_95 = arith.constant 3 : index
    %c0_96 = arith.constant 0 : index
    %c0_97 = arith.constant 0 : index
    %208 = vector.load %arg3[%c3_95, %c0_96, %c0_97] : memref<10x2x32xf32, #tpu.memory_space<vmem>>, vector<1x2x32xf32>
    %209 = vector.shape_cast %208 : vector<1x2x32xf32> to vector<2x32xf32>
    %210 = vector.shape_cast %207 : vector<2x32xf32> to vector<1x2x32xf32>
    tpu.vector_store %arg3[%c3_95, %c0_96, %c0_97], %210 {strides = array<i32>} : memref<10x2x32xf32, #tpu.memory_space<vmem>>, vector<1x2x32xf32>,
    %211 = vector.extract_strided_slice %204 {offsets = [2, 0], sizes = [2, 32], strides = [1, 1]} : vector<4x32xf32> to vector<2x32xf32>
    %c6_98 = arith.constant 6 : index
    %c0_99 = arith.constant 0 : index
    %c0_100 = arith.constant 0 : index
    %212 = vector.load %arg4[%c6_98, %c0_99, %c0_100] : memref<10x2x32xf32, #tpu.memory_space<vmem>>, vector<1x2x32xf32>
    %213 = vector.shape_cast %212 : vector<1x2x32xf32> to vector<2x32xf32>
    %214 = vector.shape_cast %211 : vector<2x32xf32> to vector<1x2x32xf32>
    tpu.vector_store %arg4[%c6_98, %c0_99, %c0_100], %214 {strides = array<i32>} : memref<10x2x32xf32, #tpu.memory_space<vmem>>, vector<1x2x32xf32>,
    %c4 = arith.constant 4 : index
    %c0_101 = arith.constant 0 : index
    %c0_102 = arith.constant 0 : index
    %215 = vector.load %arg1[%c4, %c0_101, %c0_102] : memref<10x2x256xf32, #tpu.memory_space<vmem>>, vector<1x2x256xf32>
    %216 = vector.shape_cast %215 : vector<1x2x256xf32> to vector<2x256xf32>
    %c5 = arith.constant 5 : index
    %c0_103 = arith.constant 0 : index
    %c0_104 = arith.constant 0 : index
    %217 = vector.load %arg1[%c5, %c0_103, %c0_104] : memref<10x2x256xf32, #tpu.memory_space<vmem>>, vector<1x2x256xf32>
    %218 = vector.shape_cast %217 : vector<1x2x256xf32> to vector<2x256xf32>
    %219 = vector.extract_strided_slice %216 {offsets = [0, 0], sizes = [2, 128], strides = [1, 1]} : vector<2x256xf32> to vector<2x128xf32>
    %220 = vector.extract_strided_slice %218 {offsets = [0, 128], sizes = [2, 128], strides = [1, 1]} : vector<2x256xf32> to vector<2x128xf32>
    %221 = tpu.concatenate %219, %220 in 0 : vector<2x128xf32>, vector<2x128xf32> -> vector<4x128xf32>
    %c0_105 = arith.constant 0 : index
    %c0_106 = arith.constant 0 : index
    %222 = vector.load %arg6[%c0_105, %c0_106] : memref<4x32xf32, #tpu.memory_space<vmem>>, vector<4x32xf32>
    %c0_107 = arith.constant 0 : index
    %c0_108 = arith.constant 0 : index
    %223 = vector.load %arg2[%c0_107, %c0_108] : memref<32x256xf32, #tpu.memory_space<vmem>>, vector<32x256xf32>
    %cst_109 = arith.constant dense<0.000000e+00> : vector<4x256xf32>
    %224 = tpu.matmul %222, %223, %cst_109 {dimension_numbers = #tpu.dot_dimension_numbers<[1], [0], [0], [1], [0, 0, 1, 1], [], []>} : vector<4x32xf32>, vector<32x256xf32>, vector<4x256xf32> -> vector<4x256xf32>
    %225 = vector.extract_strided_slice %224 {offsets = [0, 0], sizes = [4, 128], strides = [1, 1]} : vector<4x256xf32> to vector<4x128xf32>
    %226 = vector.extract_strided_slice %224 {offsets = [0, 128], sizes = [4, 128], strides = [1, 1]} : vector<4x256xf32> to vector<4x128xf32>
    %227 = vector.shape_cast %2 : vector<4x1xi1> to vector<4x1xi1>
    %228 = vector.broadcast %227 : vector<4x1xi1> to vector<4x128xi1>
    %229 = arith.select %228, %225, %226 : vector<4x128xi1>, vector<4x128xf32>
    %230 = arith.addf %221, %229 : vector<4x128xf32>
    %231 = vector.extract_strided_slice %230 {offsets = [0, 0], sizes = [4, 32], strides = [1, 1]} : vector<4x128xf32> to vector<4x32xf32>
    %232 = arith.negf %231 : vector<4x32xf32>
    %233 = math.exp %232 : vector<4x32xf32>
    %cst_110 = arith.constant 1.000000e+00 : f32
    %234 = vector.broadcast %cst_110 : f32 to vector<4x32xf32>
    %235 = arith.addf %234, %233 : vector<4x32xf32>
    %236 = arith.divf %234, %235 : vector<4x32xf32>
    %237 = vector.extract_strided_slice %230 {offsets = [0, 32], sizes = [4, 32], strides = [1, 1]} : vector<4x128xf32> to vector<4x32xf32>
    %238 = arith.negf %237 : vector<4x32xf32>
    %239 = math.exp %238 : vector<4x32xf32>
    %cst_111 = arith.constant 1.000000e+00 : f32
    %240 = vector.broadcast %cst_111 : f32 to vector<4x32xf32>
    %241 = arith.addf %240, %239 : vector<4x32xf32>
    %242 = arith.divf %240, %241 : vector<4x32xf32>
    %243 = vector.extract_strided_slice %230 {offsets = [0, 64], sizes = [4, 32], strides = [1, 1]} : vector<4x128xf32> to vector<4x32xf32>
    %244 = math.tanh %243 : vector<4x32xf32>
    %245 = vector.extract_strided_slice %230 {offsets = [0, 96], sizes = [4, 32], strides = [1, 1]} : vector<4x128xf32> to vector<4x32xf32>
    %246 = arith.negf %245 : vector<4x32xf32>
    %247 = math.exp %246 : vector<4x32xf32>
    %cst_112 = arith.constant 1.000000e+00 : f32
    %248 = vector.broadcast %cst_112 : f32 to vector<4x32xf32>
    %249 = arith.addf %248, %247 : vector<4x32xf32>
    %250 = arith.divf %248, %249 : vector<4x32xf32>
    %c0_113 = arith.constant 0 : index
    %c0_114 = arith.constant 0 : index
    %251 = vector.load %arg7[%c0_113, %c0_114] : memref<4x32xf32, #tpu.memory_space<vmem>>, vector<4x32xf32>
    %252 = arith.mulf %242, %251 : vector<4x32xf32>
    %253 = arith.mulf %236, %244 : vector<4x32xf32>
    %254 = arith.addf %252, %253 : vector<4x32xf32>
    %255 = math.tanh %254 : vector<4x32xf32>
    %256 = arith.mulf %250, %255 : vector<4x32xf32>
    %c0_115 = arith.constant 0 : index
    %c0_116 = arith.constant 0 : index
    %257 = vector.load %arg7[%c0_115, %c0_116] : memref<4x32xf32, #tpu.memory_space<vmem>>, vector<4x32xf32>
    tpu.vector_store %arg7[%c0_115, %c0_116], %254 {strides = array<i32>} : memref<4x32xf32, #tpu.memory_space<vmem>>, vector<4x32xf32>,
    %c0_117 = arith.constant 0 : index
    %c0_118 = arith.constant 0 : index
    %258 = vector.load %arg6[%c0_117, %c0_118] : memref<4x32xf32, #tpu.memory_space<vmem>>, vector<4x32xf32>
    tpu.vector_store %arg6[%c0_117, %c0_118], %256 {strides = array<i32>} : memref<4x32xf32, #tpu.memory_space<vmem>>, vector<4x32xf32>,
    %259 = vector.extract_strided_slice %256 {offsets = [0, 0], sizes = [2, 32], strides = [1, 1]} : vector<4x32xf32> to vector<2x32xf32>
    %c4_119 = arith.constant 4 : index
    %c0_120 = arith.constant 0 : index
    %c0_121 = arith.constant 0 : index
    %260 = vector.load %arg3[%c4_119, %c0_120, %c0_121] : memref<10x2x32xf32, #tpu.memory_space<vmem>>, vector<1x2x32xf32>
    %261 = vector.shape_cast %260 : vector<1x2x32xf32> to vector<2x32xf32>
    %262 = vector.shape_cast %259 : vector<2x32xf32> to vector<1x2x32xf32>
    tpu.vector_store %arg3[%c4_119, %c0_120, %c0_121], %262 {strides = array<i32>} : memref<10x2x32xf32, #tpu.memory_space<vmem>>, vector<1x2x32xf32>,
    %263 = vector.extract_strided_slice %256 {offsets = [2, 0], sizes = [2, 32], strides = [1, 1]} : vector<4x32xf32> to vector<2x32xf32>
    %c5_122 = arith.constant 5 : index
    %c0_123 = arith.constant 0 : index
    %c0_124 = arith.constant 0 : index
    %264 = vector.load %arg4[%c5_122, %c0_123, %c0_124] : memref<10x2x32xf32, #tpu.memory_space<vmem>>, vector<1x2x32xf32>
    %265 = vector.shape_cast %264 : vector<1x2x32xf32> to vector<2x32xf32>
    %266 = vector.shape_cast %263 : vector<2x32xf32> to vector<1x2x32xf32>
    tpu.vector_store %arg4[%c5_122, %c0_123, %c0_124], %266 {strides = array<i32>} : memref<10x2x32xf32, #tpu.memory_space<vmem>>, vector<1x2x32xf32>,
    %c5_125 = arith.constant 5 : index
    %c0_126 = arith.constant 0 : index
    %c0_127 = arith.constant 0 : index
    %267 = vector.load %arg1[%c5_125, %c0_126, %c0_127] : memref<10x2x256xf32, #tpu.memory_space<vmem>>, vector<1x2x256xf32>
    %268 = vector.shape_cast %267 : vector<1x2x256xf32> to vector<2x256xf32>
    %c4_128 = arith.constant 4 : index
    %c0_129 = arith.constant 0 : index
    %c0_130 = arith.constant 0 : index
    %269 = vector.load %arg1[%c4_128, %c0_129, %c0_130] : memref<10x2x256xf32, #tpu.memory_space<vmem>>, vector<1x2x256xf32>
    %270 = vector.shape_cast %269 : vector<1x2x256xf32> to vector<2x256xf32>
    %271 = vector.extract_strided_slice %268 {offsets = [0, 0], sizes = [2, 128], strides = [1, 1]} : vector<2x256xf32> to vector<2x128xf32>
    %272 = vector.extract_strided_slice %270 {offsets = [0, 128], sizes = [2, 128], strides = [1, 1]} : vector<2x256xf32> to vector<2x128xf32>
    %273 = tpu.concatenate %271, %272 in 0 : vector<2x128xf32>, vector<2x128xf32> -> vector<4x128xf32>
    %c0_131 = arith.constant 0 : index
    %c0_132 = arith.constant 0 : index
    %274 = vector.load %arg6[%c0_131, %c0_132] : memref<4x32xf32, #tpu.memory_space<vmem>>, vector<4x32xf32>
    %c0_133 = arith.constant 0 : index
    %c0_134 = arith.constant 0 : index
    %275 = vector.load %arg2[%c0_133, %c0_134] : memref<32x256xf32, #tpu.memory_space<vmem>>, vector<32x256xf32>
    %cst_135 = arith.constant dense<0.000000e+00> : vector<4x256xf32>
    %276 = tpu.matmul %274, %275, %cst_135 {dimension_numbers = #tpu.dot_dimension_numbers<[1], [0], [0], [1], [0, 0, 1, 1], [], []>} : vector<4x32xf32>, vector<32x256xf32>, vector<4x256xf32> -> vector<4x256xf32>
    %277 = vector.extract_strided_slice %276 {offsets = [0, 0], sizes = [4, 128], strides = [1, 1]} : vector<4x256xf32> to vector<4x128xf32>
    %278 = vector.extract_strided_slice %276 {offsets = [0, 128], sizes = [4, 128], strides = [1, 1]} : vector<4x256xf32> to vector<4x128xf32>
    %279 = vector.shape_cast %2 : vector<4x1xi1> to vector<4x1xi1>
    %280 = vector.broadcast %279 : vector<4x1xi1> to vector<4x128xi1>
    %281 = arith.select %280, %277, %278 : vector<4x128xi1>, vector<4x128xf32>
    %282 = arith.addf %273, %281 : vector<4x128xf32>
    %283 = vector.extract_strided_slice %282 {offsets = [0, 0], sizes = [4, 32], strides = [1, 1]} : vector<4x128xf32> to vector<4x32xf32>
    %284 = arith.negf %283 : vector<4x32xf32>
    %285 = math.exp %284 : vector<4x32xf32>
    %cst_136 = arith.constant 1.000000e+00 : f32
    %286 = vector.broadcast %cst_136 : f32 to vector<4x32xf32>
    %287 = arith.addf %286, %285 : vector<4x32xf32>
    %288 = arith.divf %286, %287 : vector<4x32xf32>
    %289 = vector.extract_strided_slice %282 {offsets = [0, 32], sizes = [4, 32], strides = [1, 1]} : vector<4x128xf32> to vector<4x32xf32>
    %290 = arith.negf %289 : vector<4x32xf32>
    %291 = math.exp %290 : vector<4x32xf32>
    %cst_137 = arith.constant 1.000000e+00 : f32
    %292 = vector.broadcast %cst_137 : f32 to vector<4x32xf32>
    %293 = arith.addf %292, %291 : vector<4x32xf32>
    %294 = arith.divf %292, %293 : vector<4x32xf32>
    %295 = vector.extract_strided_slice %282 {offsets = [0, 64], sizes = [4, 32], strides = [1, 1]} : vector<4x128xf32> to vector<4x32xf32>
    %296 = math.tanh %295 : vector<4x32xf32>
    %297 = vector.extract_strided_slice %282 {offsets = [0, 96], sizes = [4, 32], strides = [1, 1]} : vector<4x128xf32> to vector<4x32xf32>
    %298 = arith.negf %297 : vector<4x32xf32>
    %299 = math.exp %298 : vector<4x32xf32>
    %cst_138 = arith.constant 1.000000e+00 : f32
    %300 = vector.broadcast %cst_138 : f32 to vector<4x32xf32>
    %301 = arith.addf %300, %299 : vector<4x32xf32>
    %302 = arith.divf %300, %301 : vector<4x32xf32>
    %c0_139 = arith.constant 0 : index
    %c0_140 = arith.constant 0 : index
    %303 = vector.load %arg7[%c0_139, %c0_140] : memref<4x32xf32, #tpu.memory_space<vmem>>, vector<4x32xf32>
    %304 = arith.mulf %294, %303 : vector<4x32xf32>
    %305 = arith.mulf %288, %296 : vector<4x32xf32>
    %306 = arith.addf %304, %305 : vector<4x32xf32>
    %307 = math.tanh %306 : vector<4x32xf32>
    %308 = arith.mulf %302, %307 : vector<4x32xf32>
    %c0_141 = arith.constant 0 : index
    %c0_142 = arith.constant 0 : index
    %309 = vector.load %arg7[%c0_141, %c0_142] : memref<4x32xf32, #tpu.memory_space<vmem>>, vector<4x32xf32>
    tpu.vector_store %arg7[%c0_141, %c0_142], %306 {strides = array<i32>} : memref<4x32xf32, #tpu.memory_space<vmem>>, vector<4x32xf32>,
    %c0_143 = arith.constant 0 : index
    %c0_144 = arith.constant 0 : index
    %310 = vector.load %arg6[%c0_143, %c0_144] : memref<4x32xf32, #tpu.memory_space<vmem>>, vector<4x32xf32>
    tpu.vector_store %arg6[%c0_143, %c0_144], %308 {strides = array<i32>} : memref<4x32xf32, #tpu.memory_space<vmem>>, vector<4x32xf32>,
    %311 = vector.extract_strided_slice %308 {offsets = [0, 0], sizes = [2, 32], strides = [1, 1]} : vector<4x32xf32> to vector<2x32xf32>
    %c5_145 = arith.constant 5 : index
    %c0_146 = arith.constant 0 : index
    %c0_147 = arith.constant 0 : index
    %312 = vector.load %arg3[%c5_145, %c0_146, %c0_147] : memref<10x2x32xf32, #tpu.memory_space<vmem>>, vector<1x2x32xf32>
    %313 = vector.shape_cast %312 : vector<1x2x32xf32> to vector<2x32xf32>
    %314 = vector.shape_cast %311 : vector<2x32xf32> to vector<1x2x32xf32>
    tpu.vector_store %arg3[%c5_145, %c0_146, %c0_147], %314 {strides = array<i32>} : memref<10x2x32xf32, #tpu.memory_space<vmem>>, vector<1x2x32xf32>,
    %315 = vector.extract_strided_slice %308 {offsets = [2, 0], sizes = [2, 32], strides = [1, 1]} : vector<4x32xf32> to vector<2x32xf32>
    %c4_148 = arith.constant 4 : index
    %c0_149 = arith.constant 0 : index
    %c0_150 = arith.constant 0 : index
    %316 = vector.load %arg4[%c4_148, %c0_149, %c0_150] : memref<10x2x32xf32, #tpu.memory_space<vmem>>, vector<1x2x32xf32>
    %317 = vector.shape_cast %316 : vector<1x2x32xf32> to vector<2x32xf32>
    %318 = vector.shape_cast %315 : vector<2x32xf32> to vector<1x2x32xf32>
    tpu.vector_store %arg4[%c4_148, %c0_149, %c0_150], %318 {strides = array<i32>} : memref<10x2x32xf32, #tpu.memory_space<vmem>>, vector<1x2x32xf32>,
    %c6_151 = arith.constant 6 : index
    %c0_152 = arith.constant 0 : index
    %c0_153 = arith.constant 0 : index
    %319 = vector.load %arg1[%c6_151, %c0_152, %c0_153] : memref<10x2x256xf32, #tpu.memory_space<vmem>>, vector<1x2x256xf32>
    %320 = vector.shape_cast %319 : vector<1x2x256xf32> to vector<2x256xf32>
    %c3_154 = arith.constant 3 : index
    %c0_155 = arith.constant 0 : index
    %c0_156 = arith.constant 0 : index
    %321 = vector.load %arg1[%c3_154, %c0_155, %c0_156] : memref<10x2x256xf32, #tpu.memory_space<vmem>>, vector<1x2x256xf32>
    %322 = vector.shape_cast %321 : vector<1x2x256xf32> to vector<2x256xf32>
    %323 = vector.extract_strided_slice %320 {offsets = [0, 0], sizes = [2, 128], strides = [1, 1]} : vector<2x256xf32> to vector<2x128xf32>
    %324 = vector.extract_strided_slice %322 {offsets = [0, 128], sizes = [2, 128], strides = [1, 1]} : vector<2x256xf32> to vector<2x128xf32>
    %325 = tpu.concatenate %323, %324 in 0 : vector<2x128xf32>, vector<2x128xf32> -> vector<4x128xf32>
    %c0_157 = arith.constant 0 : index
    %c0_158 = arith.constant 0 : index
    %326 = vector.load %arg6[%c0_157, %c0_158] : memref<4x32xf32, #tpu.memory_space<vmem>>, vector<4x32xf32>
    %c0_159 = arith.constant 0 : index
    %c0_160 = arith.constant 0 : index
    %327 = vector.load %arg2[%c0_159, %c0_160] : memref<32x256xf32, #tpu.memory_space<vmem>>, vector<32x256xf32>
    %cst_161 = arith.constant dense<0.000000e+00> : vector<4x256xf32>
    %328 = tpu.matmul %326, %327, %cst_161 {dimension_numbers = #tpu.dot_dimension_numbers<[1], [0], [0], [1], [0, 0, 1, 1], [], []>} : vector<4x32xf32>, vector<32x256xf32>, vector<4x256xf32> -> vector<4x256xf32>
    %329 = vector.extract_strided_slice %328 {offsets = [0, 0], sizes = [4, 128], strides = [1, 1]} : vector<4x256xf32> to vector<4x128xf32>
    %330 = vector.extract_strided_slice %328 {offsets = [0, 128], sizes = [4, 128], strides = [1, 1]} : vector<4x256xf32> to vector<4x128xf32>
    %331 = vector.shape_cast %2 : vector<4x1xi1> to vector<4x1xi1>
    %332 = vector.broadcast %331 : vector<4x1xi1> to vector<4x128xi1>
    %333 = arith.select %332, %329, %330 : vector<4x128xi1>, vector<4x128xf32>
    %334 = arith.addf %325, %333 : vector<4x128xf32>
    %335 = vector.extract_strided_slice %334 {offsets = [0, 0], sizes = [4, 32], strides = [1, 1]} : vector<4x128xf32> to vector<4x32xf32>
    %336 = arith.negf %335 : vector<4x32xf32>
    %337 = math.exp %336 : vector<4x32xf32>
    %cst_162 = arith.constant 1.000000e+00 : f32
    %338 = vector.broadcast %cst_162 : f32 to vector<4x32xf32>
    %339 = arith.addf %338, %337 : vector<4x32xf32>
    %340 = arith.divf %338, %339 : vector<4x32xf32>
    %341 = vector.extract_strided_slice %334 {offsets = [0, 32], sizes = [4, 32], strides = [1, 1]} : vector<4x128xf32> to vector<4x32xf32>
    %342 = arith.negf %341 : vector<4x32xf32>
    %343 = math.exp %342 : vector<4x32xf32>
    %cst_163 = arith.constant 1.000000e+00 : f32
    %344 = vector.broadcast %cst_163 : f32 to vector<4x32xf32>
    %345 = arith.addf %344, %343 : vector<4x32xf32>
    %346 = arith.divf %344, %345 : vector<4x32xf32>
    %347 = vector.extract_strided_slice %334 {offsets = [0, 64], sizes = [4, 32], strides = [1, 1]} : vector<4x128xf32> to vector<4x32xf32>
    %348 = math.tanh %347 : vector<4x32xf32>
    %349 = vector.extract_strided_slice %334 {offsets = [0, 96], sizes = [4, 32], strides = [1, 1]} : vector<4x128xf32> to vector<4x32xf32>
    %350 = arith.negf %349 : vector<4x32xf32>
    %351 = math.exp %350 : vector<4x32xf32>
    %cst_164 = arith.constant 1.000000e+00 : f32
    %352 = vector.broadcast %cst_164 : f32 to vector<4x32xf32>
    %353 = arith.addf %352, %351 : vector<4x32xf32>
    %354 = arith.divf %352, %353 : vector<4x32xf32>
    %c0_165 = arith.constant 0 : index
    %c0_166 = arith.constant 0 : index
    %355 = vector.load %arg7[%c0_165, %c0_166] : memref<4x32xf32, #tpu.memory_space<vmem>>, vector<4x32xf32>
    %356 = arith.mulf %346, %355 : vector<4x32xf32>
    %357 = arith.mulf %340, %348 : vector<4x32xf32>
    %358 = arith.addf %356, %357 : vector<4x32xf32>
    %359 = math.tanh %358 : vector<4x32xf32>
    %360 = arith.mulf %354, %359 : vector<4x32xf32>
    %c0_167 = arith.constant 0 : index
    %c0_168 = arith.constant 0 : index
    %361 = vector.load %arg7[%c0_167, %c0_168] : memref<4x32xf32, #tpu.memory_space<vmem>>, vector<4x32xf32>
    tpu.vector_store %arg7[%c0_167, %c0_168], %358 {strides = array<i32>} : memref<4x32xf32, #tpu.memory_space<vmem>>, vector<4x32xf32>,
    %c0_169 = arith.constant 0 : index
    %c0_170 = arith.constant 0 : index
    %362 = vector.load %arg6[%c0_169, %c0_170] : memref<4x32xf32, #tpu.memory_space<vmem>>, vector<4x32xf32>
    tpu.vector_store %arg6[%c0_169, %c0_170], %360 {strides = array<i32>} : memref<4x32xf32, #tpu.memory_space<vmem>>, vector<4x32xf32>,
    %363 = vector.extract_strided_slice %360 {offsets = [0, 0], sizes = [2, 32], strides = [1, 1]} : vector<4x32xf32> to vector<2x32xf32>
    %c6_171 = arith.constant 6 : index
    %c0_172 = arith.constant 0 : index
    %c0_173 = arith.constant 0 : index
    %364 = vector.load %arg3[%c6_171, %c0_172, %c0_173] : memref<10x2x32xf32, #tpu.memory_space<vmem>>, vector<1x2x32xf32>
    %365 = vector.shape_cast %364 : vector<1x2x32xf32> to vector<2x32xf32>
    %366 = vector.shape_cast %363 : vector<2x32xf32> to vector<1x2x32xf32>
    tpu.vector_store %arg3[%c6_171, %c0_172, %c0_173], %366 {strides = array<i32>} : memref<10x2x32xf32, #tpu.memory_space<vmem>>, vector<1x2x32xf32>,
    %367 = vector.extract_strided_slice %360 {offsets = [2, 0], sizes = [2, 32], strides = [1, 1]} : vector<4x32xf32> to vector<2x32xf32>
    %c3_174 = arith.constant 3 : index
    %c0_175 = arith.constant 0 : index
    %c0_176 = arith.constant 0 : index
    %368 = vector.load %arg4[%c3_174, %c0_175, %c0_176] : memref<10x2x32xf32, #tpu.memory_space<vmem>>, vector<1x2x32xf32>
    %369 = vector.shape_cast %368 : vector<1x2x32xf32> to vector<2x32xf32>
    %370 = vector.shape_cast %367 : vector<2x32xf32> to vector<1x2x32xf32>
    tpu.vector_store %arg4[%c3_174, %c0_175, %c0_176], %370 {strides = array<i32>} : memref<10x2x32xf32, #tpu.memory_space<vmem>>, vector<1x2x32xf32>,
    %c7_177 = arith.constant 7 : index
    %c0_178 = arith.constant 0 : index
    %c0_179 = arith.constant 0 : index
    %371 = vector.load %arg1[%c7_177, %c0_178, %c0_179] : memref<10x2x256xf32, #tpu.memory_space<vmem>>, vector<1x2x256xf32>
    %372 = vector.shape_cast %371 : vector<1x2x256xf32> to vector<2x256xf32>
    %c2_180 = arith.constant 2 : index
    %c0_181 = arith.constant 0 : index
    %c0_182 = arith.constant 0 : index
    %373 = vector.load %arg1[%c2_180, %c0_181, %c0_182] : memref<10x2x256xf32, #tpu.memory_space<vmem>>, vector<1x2x256xf32>
    %374 = vector.shape_cast %373 : vector<1x2x256xf32> to vector<2x256xf32>
    %375 = vector.extract_strided_slice %372 {offsets = [0, 0], sizes = [2, 128], strides = [1, 1]} : vector<2x256xf32> to vector<2x128xf32>
    %376 = vector.extract_strided_slice %374 {offsets = [0, 128], sizes = [2, 128], strides = [1, 1]} : vector<2x256xf32> to vector<2x128xf32>
    %377 = tpu.concatenate %375, %376 in 0 : vector<2x128xf32>, vector<2x128xf32> -> vector<4x128xf32>
    %c0_183 = arith.constant 0 : index
    %c0_184 = arith.constant 0 : index
    %378 = vector.load %arg6[%c0_183, %c0_184] : memref<4x32xf32, #tpu.memory_space<vmem>>, vector<4x32xf32>
    %c0_185 = arith.constant 0 : index
    %c0_186 = arith.constant 0 : index
    %379 = vector.load %arg2[%c0_185, %c0_186] : memref<32x256xf32, #tpu.memory_space<vmem>>, vector<32x256xf32>
    %cst_187 = arith.constant dense<0.000000e+00> : vector<4x256xf32>
    %380 = tpu.matmul %378, %379, %cst_187 {dimension_numbers = #tpu.dot_dimension_numbers<[1], [0], [0], [1], [0, 0, 1, 1], [], []>} : vector<4x32xf32>, vector<32x256xf32>, vector<4x256xf32> -> vector<4x256xf32>
    %381 = vector.extract_strided_slice %380 {offsets = [0, 0], sizes = [4, 128], strides = [1, 1]} : vector<4x256xf32> to vector<4x128xf32>
    %382 = vector.extract_strided_slice %380 {offsets = [0, 128], sizes = [4, 128], strides = [1, 1]} : vector<4x256xf32> to vector<4x128xf32>
    %383 = vector.shape_cast %2 : vector<4x1xi1> to vector<4x1xi1>
    %384 = vector.broadcast %383 : vector<4x1xi1> to vector<4x128xi1>
    %385 = arith.select %384, %381, %382 : vector<4x128xi1>, vector<4x128xf32>
    %386 = arith.addf %377, %385 : vector<4x128xf32>
    %387 = vector.extract_strided_slice %386 {offsets = [0, 0], sizes = [4, 32], strides = [1, 1]} : vector<4x128xf32> to vector<4x32xf32>
    %388 = arith.negf %387 : vector<4x32xf32>
    %389 = math.exp %388 : vector<4x32xf32>
    %cst_188 = arith.constant 1.000000e+00 : f32
    %390 = vector.broadcast %cst_188 : f32 to vector<4x32xf32>
    %391 = arith.addf %390, %389 : vector<4x32xf32>
    %392 = arith.divf %390, %391 : vector<4x32xf32>
    %393 = vector.extract_strided_slice %386 {offsets = [0, 32], sizes = [4, 32], strides = [1, 1]} : vector<4x128xf32> to vector<4x32xf32>
    %394 = arith.negf %393 : vector<4x32xf32>
    %395 = math.exp %394 : vector<4x32xf32>
    %cst_189 = arith.constant 1.000000e+00 : f32
    %396 = vector.broadcast %cst_189 : f32 to vector<4x32xf32>
    %397 = arith.addf %396, %395 : vector<4x32xf32>
    %398 = arith.divf %396, %397 : vector<4x32xf32>
    %399 = vector.extract_strided_slice %386 {offsets = [0, 64], sizes = [4, 32], strides = [1, 1]} : vector<4x128xf32> to vector<4x32xf32>
    %400 = math.tanh %399 : vector<4x32xf32>
    %401 = vector.extract_strided_slice %386 {offsets = [0, 96], sizes = [4, 32], strides = [1, 1]} : vector<4x128xf32> to vector<4x32xf32>
    %402 = arith.negf %401 : vector<4x32xf32>
    %403 = math.exp %402 : vector<4x32xf32>
    %cst_190 = arith.constant 1.000000e+00 : f32
    %404 = vector.broadcast %cst_190 : f32 to vector<4x32xf32>
    %405 = arith.addf %404, %403 : vector<4x32xf32>
    %406 = arith.divf %404, %405 : vector<4x32xf32>
    %c0_191 = arith.constant 0 : index
    %c0_192 = arith.constant 0 : index
    %407 = vector.load %arg7[%c0_191, %c0_192] : memref<4x32xf32, #tpu.memory_space<vmem>>, vector<4x32xf32>
    %408 = arith.mulf %398, %407 : vector<4x32xf32>
    %409 = arith.mulf %392, %400 : vector<4x32xf32>
    %410 = arith.addf %408, %409 : vector<4x32xf32>
    %411 = math.tanh %410 : vector<4x32xf32>
    %412 = arith.mulf %406, %411 : vector<4x32xf32>
    %c0_193 = arith.constant 0 : index
    %c0_194 = arith.constant 0 : index
    %413 = vector.load %arg7[%c0_193, %c0_194] : memref<4x32xf32, #tpu.memory_space<vmem>>, vector<4x32xf32>
    tpu.vector_store %arg7[%c0_193, %c0_194], %410 {strides = array<i32>} : memref<4x32xf32, #tpu.memory_space<vmem>>, vector<4x32xf32>,
    %c0_195 = arith.constant 0 : index
    %c0_196 = arith.constant 0 : index
    %414 = vector.load %arg6[%c0_195, %c0_196] : memref<4x32xf32, #tpu.memory_space<vmem>>, vector<4x32xf32>
    tpu.vector_store %arg6[%c0_195, %c0_196], %412 {strides = array<i32>} : memref<4x32xf32, #tpu.memory_space<vmem>>, vector<4x32xf32>,
    %415 = vector.extract_strided_slice %412 {offsets = [0, 0], sizes = [2, 32], strides = [1, 1]} : vector<4x32xf32> to vector<2x32xf32>
    %c7_197 = arith.constant 7 : index
    %c0_198 = arith.constant 0 : index
    %c0_199 = arith.constant 0 : index
    %416 = vector.load %arg3[%c7_197, %c0_198, %c0_199] : memref<10x2x32xf32, #tpu.memory_space<vmem>>, vector<1x2x32xf32>
    %417 = vector.shape_cast %416 : vector<1x2x32xf32> to vector<2x32xf32>
    %418 = vector.shape_cast %415 : vector<2x32xf32> to vector<1x2x32xf32>
    tpu.vector_store %arg3[%c7_197, %c0_198, %c0_199], %418 {strides = array<i32>} : memref<10x2x32xf32, #tpu.memory_space<vmem>>, vector<1x2x32xf32>,
    %419 = vector.extract_strided_slice %412 {offsets = [2, 0], sizes = [2, 32], strides = [1, 1]} : vector<4x32xf32> to vector<2x32xf32>
    %c2_200 = arith.constant 2 : index
    %c0_201 = arith.constant 0 : index
    %c0_202 = arith.constant 0 : index
    %420 = vector.load %arg4[%c2_200, %c0_201, %c0_202] : memref<10x2x32xf32, #tpu.memory_space<vmem>>, vector<1x2x32xf32>
    %421 = vector.shape_cast %420 : vector<1x2x32xf32> to vector<2x32xf32>
    %422 = vector.shape_cast %419 : vector<2x32xf32> to vector<1x2x32xf32>
    tpu.vector_store %arg4[%c2_200, %c0_201, %c0_202], %422 {strides = array<i32>} : memref<10x2x32xf32, #tpu.memory_space<vmem>>, vector<1x2x32xf32>,
    %c8_203 = arith.constant 8 : index
    %c0_204 = arith.constant 0 : index
    %c0_205 = arith.constant 0 : index
    %423 = vector.load %arg1[%c8_203, %c0_204, %c0_205] : memref<10x2x256xf32, #tpu.memory_space<vmem>>, vector<1x2x256xf32>
    %424 = vector.shape_cast %423 : vector<1x2x256xf32> to vector<2x256xf32>
    %c1_206 = arith.constant 1 : index
    %c0_207 = arith.constant 0 : index
    %c0_208 = arith.constant 0 : index
    %425 = vector.load %arg1[%c1_206, %c0_207, %c0_208] : memref<10x2x256xf32, #tpu.memory_space<vmem>>, vector<1x2x256xf32>
    %426 = vector.shape_cast %425 : vector<1x2x256xf32> to vector<2x256xf32>
    %427 = vector.extract_strided_slice %424 {offsets = [0, 0], sizes = [2, 128], strides = [1, 1]} : vector<2x256xf32> to vector<2x128xf32>
    %428 = vector.extract_strided_slice %426 {offsets = [0, 128], sizes = [2, 128], strides = [1, 1]} : vector<2x256xf32> to vector<2x128xf32>
    %429 = tpu.concatenate %427, %428 in 0 : vector<2x128xf32>, vector<2x128xf32> -> vector<4x128xf32>
    %c0_209 = arith.constant 0 : index
    %c0_210 = arith.constant 0 : index
    %430 = vector.load %arg6[%c0_209, %c0_210] : memref<4x32xf32, #tpu.memory_space<vmem>>, vector<4x32xf32>
    %c0_211 = arith.constant 0 : index
    %c0_212 = arith.constant 0 : index
    %431 = vector.load %arg2[%c0_211, %c0_212] : memref<32x256xf32, #tpu.memory_space<vmem>>, vector<32x256xf32>
    %cst_213 = arith.constant dense<0.000000e+00> : vector<4x256xf32>
    %432 = tpu.matmul %430, %431, %cst_213 {dimension_numbers = #tpu.dot_dimension_numbers<[1], [0], [0], [1], [0, 0, 1, 1], [], []>} : vector<4x32xf32>, vector<32x256xf32>, vector<4x256xf32> -> vector<4x256xf32>
    %433 = vector.extract_strided_slice %432 {offsets = [0, 0], sizes = [4, 128], strides = [1, 1]} : vector<4x256xf32> to vector<4x128xf32>
    %434 = vector.extract_strided_slice %432 {offsets = [0, 128], sizes = [4, 128], strides = [1, 1]} : vector<4x256xf32> to vector<4x128xf32>
    %435 = vector.shape_cast %2 : vector<4x1xi1> to vector<4x1xi1>
    %436 = vector.broadcast %435 : vector<4x1xi1> to vector<4x128xi1>
    %437 = arith.select %436, %433, %434 : vector<4x128xi1>, vector<4x128xf32>
    %438 = arith.addf %429, %437 : vector<4x128xf32>
    %439 = vector.extract_strided_slice %438 {offsets = [0, 0], sizes = [4, 32], strides = [1, 1]} : vector<4x128xf32> to vector<4x32xf32>
    %440 = arith.negf %439 : vector<4x32xf32>
    %441 = math.exp %440 : vector<4x32xf32>
    %cst_214 = arith.constant 1.000000e+00 : f32
    %442 = vector.broadcast %cst_214 : f32 to vector<4x32xf32>
    %443 = arith.addf %442, %441 : vector<4x32xf32>
    %444 = arith.divf %442, %443 : vector<4x32xf32>
    %445 = vector.extract_strided_slice %438 {offsets = [0, 32], sizes = [4, 32], strides = [1, 1]} : vector<4x128xf32> to vector<4x32xf32>
    %446 = arith.negf %445 : vector<4x32xf32>
    %447 = math.exp %446 : vector<4x32xf32>
    %cst_215 = arith.constant 1.000000e+00 : f32
    %448 = vector.broadcast %cst_215 : f32 to vector<4x32xf32>
    %449 = arith.addf %448, %447 : vector<4x32xf32>
    %450 = arith.divf %448, %449 : vector<4x32xf32>
    %451 = vector.extract_strided_slice %438 {offsets = [0, 64], sizes = [4, 32], strides = [1, 1]} : vector<4x128xf32> to vector<4x32xf32>
    %452 = math.tanh %451 : vector<4x32xf32>
    %453 = vector.extract_strided_slice %438 {offsets = [0, 96], sizes = [4, 32], strides = [1, 1]} : vector<4x128xf32> to vector<4x32xf32>
    %454 = arith.negf %453 : vector<4x32xf32>
    %455 = math.exp %454 : vector<4x32xf32>
    %cst_216 = arith.constant 1.000000e+00 : f32
    %456 = vector.broadcast %cst_216 : f32 to vector<4x32xf32>
    %457 = arith.addf %456, %455 : vector<4x32xf32>
    %458 = arith.divf %456, %457 : vector<4x32xf32>
    %c0_217 = arith.constant 0 : index
    %c0_218 = arith.constant 0 : index
    %459 = vector.load %arg7[%c0_217, %c0_218] : memref<4x32xf32, #tpu.memory_space<vmem>>, vector<4x32xf32>
    %460 = arith.mulf %450, %459 : vector<4x32xf32>
    %461 = arith.mulf %444, %452 : vector<4x32xf32>
    %462 = arith.addf %460, %461 : vector<4x32xf32>
    %463 = math.tanh %462 : vector<4x32xf32>
    %464 = arith.mulf %458, %463 : vector<4x32xf32>
    %c0_219 = arith.constant 0 : index
    %c0_220 = arith.constant 0 : index
    %465 = vector.load %arg7[%c0_219, %c0_220] : memref<4x32xf32, #tpu.memory_space<vmem>>, vector<4x32xf32>
    tpu.vector_store %arg7[%c0_219, %c0_220], %462 {strides = array<i32>} : memref<4x32xf32, #tpu.memory_space<vmem>>, vector<4x32xf32>,
    %c0_221 = arith.constant 0 : index
    %c0_222 = arith.constant 0 : index
    %466 = vector.load %arg6[%c0_221, %c0_222] : memref<4x32xf32, #tpu.memory_space<vmem>>, vector<4x32xf32>
    tpu.vector_store %arg6[%c0_221, %c0_222], %464 {strides = array<i32>} : memref<4x32xf32, #tpu.memory_space<vmem>>, vector<4x32xf32>,
    %467 = vector.extract_strided_slice %464 {offsets = [0, 0], sizes = [2, 32], strides = [1, 1]} : vector<4x32xf32> to vector<2x32xf32>
    %c8_223 = arith.constant 8 : index
    %c0_224 = arith.constant 0 : index
    %c0_225 = arith.constant 0 : index
    %468 = vector.load %arg3[%c8_223, %c0_224, %c0_225] : memref<10x2x32xf32, #tpu.memory_space<vmem>>, vector<1x2x32xf32>
    %469 = vector.shape_cast %468 : vector<1x2x32xf32> to vector<2x32xf32>
    %470 = vector.shape_cast %467 : vector<2x32xf32> to vector<1x2x32xf32>
    tpu.vector_store %arg3[%c8_223, %c0_224, %c0_225], %470 {strides = array<i32>} : memref<10x2x32xf32, #tpu.memory_space<vmem>>, vector<1x2x32xf32>,
    %471 = vector.extract_strided_slice %464 {offsets = [2, 0], sizes = [2, 32], strides = [1, 1]} : vector<4x32xf32> to vector<2x32xf32>
    %c1_226 = arith.constant 1 : index
    %c0_227 = arith.constant 0 : index
    %c0_228 = arith.constant 0 : index
    %472 = vector.load %arg4[%c1_226, %c0_227, %c0_228] : memref<10x2x32xf32, #tpu.memory_space<vmem>>, vector<1x2x32xf32>
    %473 = vector.shape_cast %472 : vector<1x2x32xf32> to vector<2x32xf32>
    %474 = vector.shape_cast %471 : vector<2x32xf32> to vector<1x2x32xf32>
    tpu.vector_store %arg4[%c1_226, %c0_227, %c0_228], %474 {strides = array<i32>} : memref<10x2x32xf32, #tpu.memory_space<vmem>>, vector<1x2x32xf32>,
    %c9_229 = arith.constant 9 : index
    %c0_230 = arith.constant 0 : index
    %c0_231 = arith.constant 0 : index
    %475 = vector.load %arg1[%c9_229, %c0_230, %c0_231] : memref<10x2x256xf32, #tpu.memory_space<vmem>>, vector<1x2x256xf32>
    %476 = vector.shape_cast %475 : vector<1x2x256xf32> to vector<2x256xf32>
    %c0_232 = arith.constant 0 : index
    %c0_233 = arith.constant 0 : index
    %c0_234 = arith.constant 0 : index
    %477 = vector.load %arg1[%c0_232, %c0_233, %c0_234] : memref<10x2x256xf32, #tpu.memory_space<vmem>>, vector<1x2x256xf32>
    %478 = vector.shape_cast %477 : vector<1x2x256xf32> to vector<2x256xf32>
    %479 = vector.extract_strided_slice %476 {offsets = [0, 0], sizes = [2, 128], strides = [1, 1]} : vector<2x256xf32> to vector<2x128xf32>
    %480 = vector.extract_strided_slice %478 {offsets = [0, 128], sizes = [2, 128], strides = [1, 1]} : vector<2x256xf32> to vector<2x128xf32>
    %481 = tpu.concatenate %479, %480 in 0 : vector<2x128xf32>, vector<2x128xf32> -> vector<4x128xf32>
    %c0_235 = arith.constant 0 : index
    %c0_236 = arith.constant 0 : index
    %482 = vector.load %arg6[%c0_235, %c0_236] : memref<4x32xf32, #tpu.memory_space<vmem>>, vector<4x32xf32>
    %c0_237 = arith.constant 0 : index
    %c0_238 = arith.constant 0 : index
    %483 = vector.load %arg2[%c0_237, %c0_238] : memref<32x256xf32, #tpu.memory_space<vmem>>, vector<32x256xf32>
    %cst_239 = arith.constant dense<0.000000e+00> : vector<4x256xf32>
    %484 = tpu.matmul %482, %483, %cst_239 {dimension_numbers = #tpu.dot_dimension_numbers<[1], [0], [0], [1], [0, 0, 1, 1], [], []>} : vector<4x32xf32>, vector<32x256xf32>, vector<4x256xf32> -> vector<4x256xf32>
    %485 = vector.extract_strided_slice %484 {offsets = [0, 0], sizes = [4, 128], strides = [1, 1]} : vector<4x256xf32> to vector<4x128xf32>
    %486 = vector.extract_strided_slice %484 {offsets = [0, 128], sizes = [4, 128], strides = [1, 1]} : vector<4x256xf32> to vector<4x128xf32>
    %487 = vector.shape_cast %2 : vector<4x1xi1> to vector<4x1xi1>
    %488 = vector.broadcast %487 : vector<4x1xi1> to vector<4x128xi1>
    %489 = arith.select %488, %485, %486 : vector<4x128xi1>, vector<4x128xf32>
    %490 = arith.addf %481, %489 : vector<4x128xf32>
    %491 = vector.extract_strided_slice %490 {offsets = [0, 0], sizes = [4, 32], strides = [1, 1]} : vector<4x128xf32> to vector<4x32xf32>
    %492 = arith.negf %491 : vector<4x32xf32>
    %493 = math.exp %492 : vector<4x32xf32>
    %cst_240 = arith.constant 1.000000e+00 : f32
    %494 = vector.broadcast %cst_240 : f32 to vector<4x32xf32>
    %495 = arith.addf %494, %493 : vector<4x32xf32>
    %496 = arith.divf %494, %495 : vector<4x32xf32>
    %497 = vector.extract_strided_slice %490 {offsets = [0, 32], sizes = [4, 32], strides = [1, 1]} : vector<4x128xf32> to vector<4x32xf32>
    %498 = arith.negf %497 : vector<4x32xf32>
    %499 = math.exp %498 : vector<4x32xf32>
    %cst_241 = arith.constant 1.000000e+00 : f32
    %500 = vector.broadcast %cst_241 : f32 to vector<4x32xf32>
    %501 = arith.addf %500, %499 : vector<4x32xf32>
    %502 = arith.divf %500, %501 : vector<4x32xf32>
    %503 = vector.extract_strided_slice %490 {offsets = [0, 64], sizes = [4, 32], strides = [1, 1]} : vector<4x128xf32> to vector<4x32xf32>
    %504 = math.tanh %503 : vector<4x32xf32>
    %505 = vector.extract_strided_slice %490 {offsets = [0, 96], sizes = [4, 32], strides = [1, 1]} : vector<4x128xf32> to vector<4x32xf32>
    %506 = arith.negf %505 : vector<4x32xf32>
    %507 = math.exp %506 : vector<4x32xf32>
    %cst_242 = arith.constant 1.000000e+00 : f32
    %508 = vector.broadcast %cst_242 : f32 to vector<4x32xf32>
    %509 = arith.addf %508, %507 : vector<4x32xf32>
    %510 = arith.divf %508, %509 : vector<4x32xf32>
    %c0_243 = arith.constant 0 : index
    %c0_244 = arith.constant 0 : index
    %511 = vector.load %arg7[%c0_243, %c0_244] : memref<4x32xf32, #tpu.memory_space<vmem>>, vector<4x32xf32>
    %512 = arith.mulf %502, %511 : vector<4x32xf32>
    %513 = arith.mulf %496, %504 : vector<4x32xf32>
    %514 = arith.addf %512, %513 : vector<4x32xf32>
    %515 = math.tanh %514 : vector<4x32xf32>
    %516 = arith.mulf %510, %515 : vector<4x32xf32>
    %c0_245 = arith.constant 0 : index
    %c0_246 = arith.constant 0 : index
    %517 = vector.load %arg7[%c0_245, %c0_246] : memref<4x32xf32, #tpu.memory_space<vmem>>, vector<4x32xf32>
    tpu.vector_store %arg7[%c0_245, %c0_246], %514 {strides = array<i32>} : memref<4x32xf32, #tpu.memory_space<vmem>>, vector<4x32xf32>,
    %c0_247 = arith.constant 0 : index
    %c0_248 = arith.constant 0 : index
    %518 = vector.load %arg6[%c0_247, %c0_248] : memref<4x32xf32, #tpu.memory_space<vmem>>, vector<4x32xf32>
    tpu.vector_store %arg6[%c0_247, %c0_248], %516 {strides = array<i32>} : memref<4x32xf32, #tpu.memory_space<vmem>>, vector<4x32xf32>,
    %519 = vector.extract_strided_slice %516 {offsets = [0, 0], sizes = [2, 32], strides = [1, 1]} : vector<4x32xf32> to vector<2x32xf32>
    %c9_249 = arith.constant 9 : index
    %c0_250 = arith.constant 0 : index
    %c0_251 = arith.constant 0 : index
    %520 = vector.load %arg3[%c9_249, %c0_250, %c0_251] : memref<10x2x32xf32, #tpu.memory_space<vmem>>, vector<1x2x32xf32>
    %521 = vector.shape_cast %520 : vector<1x2x32xf32> to vector<2x32xf32>
    %522 = vector.shape_cast %519 : vector<2x32xf32> to vector<1x2x32xf32>
    tpu.vector_store %arg3[%c9_249, %c0_250, %c0_251], %522 {strides = array<i32>} : memref<10x2x32xf32, #tpu.memory_space<vmem>>, vector<1x2x32xf32>,
    %523 = vector.extract_strided_slice %516 {offsets = [2, 0], sizes = [2, 32], strides = [1, 1]} : vector<4x32xf32> to vector<2x32xf32>
    %c0_252 = arith.constant 0 : index
    %c0_253 = arith.constant 0 : index
    %c0_254 = arith.constant 0 : index
    %524 = vector.load %arg4[%c0_252, %c0_253, %c0_254] : memref<10x2x32xf32, #tpu.memory_space<vmem>>, vector<1x2x32xf32>
    %525 = vector.shape_cast %524 : vector<1x2x32xf32> to vector<2x32xf32>
    %526 = vector.shape_cast %523 : vector<2x32xf32> to vector<1x2x32xf32>
    tpu.vector_store %arg4[%c0_252, %c0_253, %c0_254], %526 {strides = array<i32>} : memref<10x2x32xf32, #tpu.memory_space<vmem>>, vector<1x2x32xf32>,
    %c0_255 = arith.constant 0 : index
    %c0_256 = arith.constant 0 : index
    %527 = vector.load %arg7[%c0_255, %c0_256] : memref<4x32xf32, #tpu.memory_space<vmem>>, vector<4x32xf32>
    %c0_257 = arith.constant 0 : index
    %c0_258 = arith.constant 0 : index
    %528 = vector.load %arg5[%c0_257, %c0_258] : memref<4x32xf32, #tpu.memory_space<vmem>>, vector<4x32xf32>
    tpu.vector_store %arg5[%c0_257, %c0_258], %527 {strides = array<i32>} : memref<4x32xf32, #tpu.memory_space<vmem>>, vector<4x32xf32>,
    return
  }
  func.func @transform_0(%arg0: i32) -> (i32, i32, i32) {
    %c0_i32 = arith.constant 0 : i32
    %c0_i32_0 = arith.constant 0 : i32
    %c0_i32_1 = arith.constant 0 : i32
    %c0_i32_2 = arith.constant 0 : i32
    return %c0_i32, %c0_i32_0, %c0_i32_1 : i32, i32, i32
  }
  func.func @transform_1(%arg0: i32) -> (i32, i32) {
    %c0_i32 = arith.constant 0 : i32
    %c0_i32_0 = arith.constant 0 : i32
    %c0_i32_1 = arith.constant 0 : i32
    return %c0_i32, %c0_i32_0 : i32, i32
  }
  func.func @transform_2(%arg0: i32) -> (i32, i32, i32) {
    %c0_i32 = arith.constant 0 : i32
    %c0_i32_0 = arith.constant 0 : i32
    %c0_i32_1 = arith.constant 0 : i32
    %c0_i32_2 = arith.constant 0 : i32
    return %c0_i32, %c0_i32_0, %c0_i32_1 : i32, i32, i32
  }
  func.func @transform_3(%arg0: i32) -> (i32, i32, i32) {
    %c0_i32 = arith.constant 0 : i32
    %c0_i32_0 = arith.constant 0 : i32
    %c0_i32_1 = arith.constant 0 : i32
    %c0_i32_2 = arith.constant 0 : i32
    return %c0_i32, %c0_i32_0, %c0_i32_1 : i32, i32, i32
  }
  func.func @transform_4(%arg0: i32) -> (i32, i32) {
    %c0_i32 = arith.constant 0 : i32
    %c0_i32_0 = arith.constant 0 : i32
    %c0_i32_1 = arith.constant 0 : i32
    return %c0_i32, %c0_i32_0 : i32, i32
  }
}

module attributes {stable_mosaic.version = 11 : i64} {
  func.func @_matmul_bias_kernel(%arg0: i32, %arg1: memref<20x64xf32, #tpu.memory_space<vmem>>, %arg2: memref<64x256xf32, #tpu.memory_space<vmem>>, %arg3: memref<1x256xf32, #tpu.memory_space<vmem>>, %arg4: memref<20x256xf32, #tpu.memory_space<vmem>>) attributes {dimension_semantics = [#tpu.dimension_semantics<parallel>], iteration_bounds = array<i64: 1>, scalar_prefetch = 0 : i64, scratch_operands = 0 : i64, tpu.core_type = #tpu.core_type<tc>, window_params = [{transform_indices = @transform_0, window_bounds = array<i64: 20, 64>}, {pipeline_mode = #tpu.pipeline_mode<synchronous>, transform_indices = @transform_1, window_bounds = array<i64: 64, 256>}, {pipeline_mode = #tpu.pipeline_mode<synchronous>, transform_indices = @transform_2, window_bounds = array<i64: 1, 256>}, {transform_indices = @transform_3, window_bounds = array<i64: 20, 256>}]} {
    %c0 = arith.constant 0 : index
    %c0_0 = arith.constant 0 : index
    %0 = vector.load %arg1[%c0, %c0_0] : memref<20x64xf32, #tpu.memory_space<vmem>>, vector<20x64xf32>
    %c0_1 = arith.constant 0 : index
    %c0_2 = arith.constant 0 : index
    %1 = vector.load %arg2[%c0_1, %c0_2] : memref<64x256xf32, #tpu.memory_space<vmem>>, vector<64x256xf32>
    %cst = arith.constant dense<0.000000e+00> : vector<20x256xf32>
    %2 = tpu.matmul %0, %1, %cst {dimension_numbers = #tpu.dot_dimension_numbers<[1], [0], [0], [1], [0, 0, 1, 1], [], []>} : vector<20x64xf32>, vector<64x256xf32>, vector<20x256xf32> -> vector<20x256xf32>
    %c0_3 = arith.constant 0 : index
    %c0_4 = arith.constant 0 : index
    %3 = vector.load %arg3[%c0_3, %c0_4] : memref<1x256xf32, #tpu.memory_space<vmem>>, vector<1x256xf32>
    %4 = vector.broadcast %3 : vector<1x256xf32> to vector<20x256xf32>
    %5 = arith.addf %2, %4 : vector<20x256xf32>
    %c0_5 = arith.constant 0 : index
    %c0_6 = arith.constant 0 : index
    %6 = vector.load %arg4[%c0_5, %c0_6] : memref<20x256xf32, #tpu.memory_space<vmem>>, vector<20x256xf32>
    tpu.vector_store %arg4[%c0_5, %c0_6], %5 {strides = array<i32>} : memref<20x256xf32, #tpu.memory_space<vmem>>, vector<20x256xf32>,
    return
  }
  func.func @transform_0(%arg0: i32) -> (i32, i32) {
    %c0_i32 = arith.constant 0 : i32
    %c0_i32_0 = arith.constant 0 : i32
    return %arg0, %c0_i32 : i32, i32
  }
  func.func @transform_1(%arg0: i32) -> (i32, i32) {
    %c0_i32 = arith.constant 0 : i32
    %c0_i32_0 = arith.constant 0 : i32
    %c0_i32_1 = arith.constant 0 : i32
    return %c0_i32, %c0_i32_0 : i32, i32
  }
  func.func @transform_2(%arg0: i32) -> (i32, i32) {
    %c0_i32 = arith.constant 0 : i32
    %c0_i32_0 = arith.constant 0 : i32
    %c0_i32_1 = arith.constant 0 : i32
    return %c0_i32, %c0_i32_0 : i32, i32
  }
  func.func @transform_3(%arg0: i32) -> (i32, i32) {
    %c0_i32 = arith.constant 0 : i32
    %c0_i32_0 = arith.constant 0 : i32
    return %arg0, %c0_i32 : i32, i32
  }
}

</mosaic_0001>

<llo_original>
// kernel: audio_encoder_forward.6
$region0: #{audio_encoder_forward.6}
  #allocation0 [shape = 'u32[]', space=smem, size = 0x4, offset = 0x4, fixed_abs, tag = 'smem constant byte address 0x4 - core index']
  #allocation1 [shape = 'u32[144,128]{1,0:T(1,128)}', space=vmem, size = 0x12000, scoped, tag = 'internal scratch']
  #allocation2 [shape = 'f32[1024,32]{1,0:T(8,128)}', space=vmem, size = 0x80000, scoped, tag = 'scratch operand']
  %s0 = inlined_call_operand.vmem [shape: f32[840,451], index: 0, kind: input, shape index: {}]
  %s1 = inlined_call_operand.vmem [shape: f32[451,32], index: 1, kind: input, shape index: {}]
  %s2 = inlined_call_operand.vmem [shape: f32[1,32], index: 2, kind: input, shape index: {}]
  %s3 = inlined_call_operand.vmem [shape: f32[1,32], index: 3, kind: input, shape index: {}]
  %s4 = inlined_call_operand.vmem [shape: f32[1,32], index: 4, kind: input, shape index: {}]
  %s5 = inlined_call_operand.vmem [shape: f32[840,32], index: 5, kind: output, shape index: {}]
  %s6 = sld [smem:[#allocation0]]
  $region57: #{audio_encoder_forward.6} parent=0
    _
  %s8 = ssub.s32 1, %s6
  %s9 = scalar_select 0, %s8, %s6
  loop: start=0, step=1, limit=4
  $region2: #{audio_encoder_forward.6} parent=0 // loop_pre_header
    _
  $region3: #{audio_encoder_forward.6} parent=0 // loop_header
    %s11 = sphi 0, %s15
    %p12 = scmp.ge.s32.totalorder %s11, 4
    %s21 = sphi 0, %s23
    %s24 = sphi 0, %s21
    %s25 = sphi 0, %s24
    %s41 = sphi 0, %s25
    %s45 = sphi 0, %s45
    %s47 = sphi 0, %s45
    %s48 = sphi 0, %s47
    %s62 = sphi 0, %s48
    %s66 = sphi 0, %s66
    %s68 = sphi 0, %s66
    %s69 = sphi 0, %s68
    %s83 = sphi 0, %s69
    %s87 = sphi 0, %s87
    %s89 = sphi 0, %s87
    %s90 = sphi 0, %s89
    %s104 = sphi 0, %s90
    %s108 = sphi 0, %s108
    %s110 = sphi 0, %s108
    %s111 = sphi 0, %s110
    %s125 = sphi 0, %s111
    %s129 = sphi 0, %s129
    %s131 = sphi 0, %s129
    %s132 = sphi 0, %s131
    %s146 = sphi 0, %s132
  $region4: #{audio_encoder_forward.6} parent=0 // loop_header_branch
    %14 = sbr.rel (%p12) target = $region8
  $region5: #{audio_encoder_forward.6} parent=0 // loop_body
    %s16 = ssub.s32 %s11, 1
    %s17 = ssub.s32 %s11, 2
    %s18 = sadd.s32 %s11, 1
    %s19 = ssub.s32 %s11, %s18
    %p20 = scmp.eq.s32.totalorder %s19, 0
    %s22 = sadd.s32 %s21, 1
    %s23 = scalar_select %p20, %s21, %s22
    %p26 = pneg %p20
    %p27 = scmp.eq.s32.totalorder %s11, 1
    %p28 = por %p26, %p27
    %p29 = scmp.ne.s32.totalorder %s21, %s24
    %p30 = scmp.eq.s32.totalorder %s11, 0
    %p31 = por %p29, %p30
    %p32 = scmp.ne.s32.totalorder %s21, %s24
    %p33 = scmp.eq.s32.totalorder %s16, 1
    %p34 = por %p32, %p33
    %p35 = scmp.ne.s32.totalorder %s24, %s25
    %p36 = scmp.eq.s32.totalorder %s16, 0
    %p37 = por %p35, %p36
    %p38 = scmp.ne.s32.totalorder %s24, %s25
    %p39 = scmp.eq.s32.totalorder %s17, 1
    %p40 = por %p38, %p39
    %p42 = scmp.ne.s32.totalorder %s25, %s41
    %p43 = scmp.eq.s32.totalorder %s17, 0
    %p44 = por %p42, %p43
    %s46 = sadd.s32 %s45, 1
    %p49 = scmp.eq.s32.totalorder %s11, 1
    %p50 = scmp.ne.s32.totalorder %s45, %s47
    %p51 = scmp.eq.s32.totalorder %s11, 0
    %p52 = por %p50, %p51
    %p53 = scmp.ne.s32.totalorder %s45, %s47
    %p54 = scmp.eq.s32.totalorder %s16, 1
    %p55 = por %p53, %p54
    %p56 = scmp.ne.s32.totalorder %s47, %s48
    %p57 = scmp.eq.s32.totalorder %s16, 0
    %p58 = por %p56, %p57
    %p59 = scmp.ne.s32.totalorder %s47, %s48
    %p60 = scmp.eq.s32.totalorder %s17, 1
    %p61 = por %p59, %p60
    %p63 = scmp.ne.s32.totalorder %s48, %s62
    %p64 = scmp.eq.s32.totalorder %s17, 0
    %p65 = por %p63, %p64
    %s67 = sadd.s32 %s66, 1
    %p70 = scmp.eq.s32.totalorder %s11, 1
    %p71 = scmp.ne.s32.totalorder %s66, %s68
    %p72 = scmp.eq.s32.totalorder %s11, 0
    %p73 = por %p71, %p72
    %p74 = scmp.ne.s32.totalorder %s66, %s68
    %p75 = scmp.eq.s32.totalorder %s16, 1
    %p76 = por %p74, %p75
    %p77 = scmp.ne.s32.totalorder %s68, %s69
    %p78 = scmp.eq.s32.totalorder %s16, 0
    %p79 = por %p77, %p78
    %p80 = scmp.ne.s32.totalorder %s68, %s69
    %p81 = scmp.eq.s32.totalorder %s17, 1
    %p82 = por %p80, %p81
    %p84 = scmp.ne.s32.totalorder %s69, %s83
    %p85 = scmp.eq.s32.totalorder %s17, 0
    %p86 = por %p84, %p85
    %s88 = sadd.s32 %s87, 1
    %p91 = scmp.eq.s32.totalorder %s11, 1
    %p92 = scmp.ne.s32.totalorder %s87, %s89
    %p93 = scmp.eq.s32.totalorder %s11, 0
    %p94 = por %p92, %p93
    %p95 = scmp.ne.s32.totalorder %s87, %s89
    %p96 = scmp.eq.s32.totalorder %s16, 1
    %p97 = por %p95, %p96
    %p98 = scmp.ne.s32.totalorder %s89, %s90
    %p99 = scmp.eq.s32.totalorder %s16, 0
    %p100 = por %p98, %p99
    %p101 = scmp.ne.s32.totalorder %s89, %s90
    %p102 = scmp.eq.s32.totalorder %s17, 1
    %p103 = por %p101, %p102
    %p105 = scmp.ne.s32.totalorder %s90, %s104
    %p106 = scmp.eq.s32.totalorder %s17, 0
    %p107 = por %p105, %p106
    %s109 = sadd.s32 %s108, 1
    %p112 = scmp.eq.s32.totalorder %s11, 1
    %p113 = scmp.ne.s32.totalorder %s108, %s110
    %p114 = scmp.eq.s32.totalorder %s11, 0
    %p115 = por %p113, %p114
    %p116 = scmp.ne.s32.totalorder %s108, %s110
    %p117 = scmp.eq.s32.totalorder %s16, 1
    %p118 = por %p116, %p117
    %p119 = scmp.ne.s32.totalorder %s110, %s111
    %p120 = scmp.eq.s32.totalorder %s16, 0
    %p121 = por %p119, %p120
    %p122 = scmp.ne.s32.totalorder %s110, %s111
    %p123 = scmp.eq.s32.totalorder %s17, 1
    %p124 = por %p122, %p123
    %p126 = scmp.ne.s32.totalorder %s111, %s125
    %p127 = scmp.eq.s32.totalorder %s17, 0
    %p128 = por %p126, %p127
    %s130 = sadd.s32 %s129, 1
    %p133 = scmp.eq.s32.totalorder %s11, 1
    %p134 = scmp.ne.s32.totalorder %s129, %s131
    %p135 = scmp.eq.s32.totalorder %s11, 0
    %p136 = por %p134, %p135
    %p137 = scmp.ne.s32.totalorder %s129, %s131
    %p138 = scmp.eq.s32.totalorder %s16, 1
    %p139 = por %p137, %p138
    %p140 = scmp.ne.s32.totalorder %s131, %s132
    %p141 = scmp.eq.s32.totalorder %s16, 0
    %p142 = por %p140, %p141
    %p143 = scmp.ne.s32.totalorder %s131, %s132
    %p144 = scmp.eq.s32.totalorder %s17, 1
    %p145 = por %p143, %p144
    %p147 = scmp.ne.s32.totalorder %s132, %s146
    %p148 = scmp.eq.s32.totalorder %s17, 0
    %p149 = por %p147, %p148
    %p150 = scmp.le.s32.totalorder 1, %s11
    %p151 = scmp.lt.s32.totalorder %s11, 3
    %p152 = pnand %p150, %p151
    %p153 = pneg %p152
    // Predicated region
    $region9: #{audio_encoder_forward.6} parent=5 // pred_check
      _
    $region10: #{audio_encoder_forward.6} parent=5 // pred_check_branch
      %155 = sbr.rel (%p152) target = $region12
    $region11: #{audio_encoder_forward.6} parent=5 // pred_region
      %s156 = ssub.s32 %s11, 1
      // Predicated region
      $region13: #{audio_encoder_forward.6} parent=11 // pred_check
        %p157 = pneg %p58
      $region14: #{audio_encoder_forward.6} parent=11 // pred_check_branch
        %159 = sbr.rel (%p157) target = $region16
      $region15: #{audio_encoder_forward.6} parent=11 // pred_region
        _
      $region16: #{audio_encoder_forward.6} parent=11 // pred_fallthru
        _
      // Predicated region
      $region17: #{audio_encoder_forward.6} parent=11 // pred_check
        %p160 = pneg %p79
      $region18: #{audio_encoder_forward.6} parent=11 // pred_check_branch
        %162 = sbr.rel (%p160) target = $region20
      $region19: #{audio_encoder_forward.6} parent=11 // pred_region
        _
      $region20: #{audio_encoder_forward.6} parent=11 // pred_fallthru
        _
      // Predicated region
      $region21: #{audio_encoder_forward.6} parent=11 // pred_check
        %p163 = pneg %p100
      $region22: #{audio_encoder_forward.6} parent=11 // pred_check_branch
        %165 = sbr.rel (%p163) target = $region24
      $region23: #{audio_encoder_forward.6} parent=11 // pred_region
        _
      $region24: #{audio_encoder_forward.6} parent=11 // pred_fallthru
        _
      // Predicated region
      $region25: #{audio_encoder_forward.6} parent=11 // pred_check
        %p166 = pneg %p121
      $region26: #{audio_encoder_forward.6} parent=11 // pred_check_branch
        %168 = sbr.rel (%p166) target = $region28
      $region27: #{audio_encoder_forward.6} parent=11 // pred_region
        _
      $region28: #{audio_encoder_forward.6} parent=11 // pred_fallthru
        _
    $region12: #{audio_encoder_forward.6} parent=5 // pred_fallthru
      _
    %p169 = scmp.lt.s32.totalorder %s11, 2
    // Predicated region
    $region29: #{audio_encoder_forward.6} parent=5 // pred_check
      %p170 = pneg %p169
    $region30: #{audio_encoder_forward.6} parent=5 // pred_check_branch
      %172 = sbr.rel (%p170) target = $region32
    $region31: #{audio_encoder_forward.6} parent=5 // pred_region
      // Predicated region
      $region33: #{audio_encoder_forward.6} parent=31 // pred_check
        %p173 = pneg %p31
      $region34: #{audio_encoder_forward.6} parent=31 // pred_check_branch
        %175 = sbr.rel (%p173) target = $region36
      $region35: #{audio_encoder_forward.6} parent=31 // pred_region
        %s176 = smul.u32 64, %s11
        %s177 = ssub.s32 105, %s176
        %p178 = scmp.lt.s32.totalorder %s177, 64
        %s179 = scalar_select %p178, %s177, 64
        %s180 = smul.u32 128, %s179
        %s181 = smul.u32 %s180, 4
        %p182 = scmp.lt.s32.totalorder %s176, 104
        %s183 = scalar_select %p182, %s176, 104
        %s184 = smul.addr %s183, 4
        %s185 = smul.addr %s184, 8
        %s186 = scalar_lea.vmem %s0, %s185
        %s187 = smul.u32 64, %s11
        %s188 = ssub.s32 105, %s187
        %p189 = scmp.lt.s32.totalorder %s188, 64
        %s190 = scalar_select %p189, %s188, 64
        %s191 = smul.u32 128, %s190
        %s192 = smul.u32 %s191, 4
      $region36: #{audio_encoder_forward.6} parent=31 // pred_fallthru
        _
    $region32: #{audio_encoder_forward.6} parent=5 // pred_fallthru
      _
    %p193 = scmp.le.s32.totalorder 1, %s11
    %p194 = scmp.lt.s32.totalorder %s11, 3
    %p195 = pnand %p193, %p194
    %p196 = pneg %p195
    // Predicated region
    $region37: #{audio_encoder_forward.6} parent=5 // pred_check
      _
    $region38: #{audio_encoder_forward.6} parent=5 // pred_check_branch
      %198 = sbr.rel (%p195) target = $region40
    $region39: #{audio_encoder_forward.6} parent=5 // pred_region
      %s199 = ssub.s32 %s11, 1
      %s200 = smul.u32 64, %s16
      %s201 = ssub.s32 105, %s200
      %p202 = scmp.lt.s32.totalorder %s201, 64
      %s203 = scalar_select %p202, %s201, 64
      %s204 = smul.u32 128, %s203
      %s205 = smul.u32 %s204, 4
      %p206 = scmp.lt.s32.totalorder %s200, 104
      %s207 = scalar_select %p206, %s200, 104
      %s208 = smul.addr %s207, 4
      %s209 = smul.addr %s208, 8
      %s210 = scalar_lea.vmem %s0, %s209
      %p211 = pneg %p37
      %p212 = pneg %p34
      %p213 = pneg %p58
      %p214 = pneg %p55
      %p215 = pneg %p79
      %p216 = pneg %p76
      %p217 = pneg %p100
      %p218 = pneg %p97
      %p219 = pneg %p121
      %p220 = pneg %p118
      %p221 = pneg %p142
      %p222 = pneg %p139
      %s223 = smul.u32 64, %s16
      %s224 = ssub.s32 105, %s223
      %p225 = scmp.lt.s32.totalorder %s224, 64
      %s226 = scalar_select %p225, %s224, 64
      %s227 = smul.u32 128, %s226
      %s228 = smul.u32 %s227, 4
      %p229 = scmp.lt.s32.totalorder %s223, 104
      %s230 = scalar_select %p229, %s223, 104
      %s231 = smul.addr %s230, 4
      %s232 = smul.addr %s231, 8
      %s233 = scalar_lea.vmem %s0, %s232
      %s234 = smul.u32 64, %s16
      %s235 = ssub.s32 105, %s234
      %p236 = scmp.lt.s32.totalorder %s235, 64
      %s237 = scalar_select %p236, %s235, 64
      %s238 = smul.u32 128, %s237
      %s239 = smul.u32 %s238, 4
      %v240 = vld [vmem:[%s233] sm:$0xff]
      %v241 = vld [vmem:[%s233 + $0x8] sm:$0xff]
      %v242 = vld [vmem:[%s233 + $0x10] sm:$0xff]
      %v243 = vld [vmem:[%s233 + $0x18] sm:$0xff]
      %v244 = vld [vmem:[%s233 + $0x20] sm:$0xff]
      %v245 = vld [vmem:[%s233 + $0x28] sm:$0xff]
      %v246 = vld [vmem:[%s233 + $0x30] sm:$0xff]
      %v247 = vld [vmem:[%s233 + $0x38] sm:$0xff]
      %v248 = vld [vmem:[%s233 + $0x40] sm:$0xff]
      %v249 = vld [vmem:[%s233 + $0x48] sm:$0xff]
      %v250 = vld [vmem:[%s233 + $0x50] sm:$0xff]
      %v251 = vld [vmem:[%s233 + $0x58] sm:$0xff]
      %v252 = vld [vmem:[%s233 + $0x60] sm:$0xff]
      %v253 = vld [vmem:[%s233 + $0x68] sm:$0xff]
      %v254 = vld [vmem:[%s233 + $0x70] sm:$0xff]
      %v255 = vld [vmem:[%s233 + $0x78] sm:$0xff]
      %v256 = vld [vmem:[%s233 + $0x80] sm:$0xff]
      %v257 = vld [vmem:[%s233 + $0x88] sm:$0xff]
      %v258 = vld [vmem:[%s233 + $0x90] sm:$0xff]
      %v259 = vld [vmem:[%s233 + $0x98] sm:$0xff]
      %v260 = vld [vmem:[%s233 + $0xa0] sm:$0xff]
      %v261 = vld [vmem:[%s233 + $0xa8] sm:$0xff]
      %v262 = vld [vmem:[%s233 + $0xb0] sm:$0xff]
      %v263 = vld [vmem:[%s233 + $0xb8] sm:$0xff]
      %v264 = vld [vmem:[%s233 + $0xc0] sm:$0xff]
      %v265 = vld [vmem:[%s233 + $0xc8] sm:$0xff]
      %v266 = vld [vmem:[%s233 + $0xd0] sm:$0xff]
      %v267 = vld [vmem:[%s233 + $0xd8] sm:$0xff]
      %v268 = vld [vmem:[%s233 + $0xe0] sm:$0xff]
      %v269 = vld [vmem:[%s233 + $0xe8] sm:$0xff]
      %v270 = vld [vmem:[%s233 + $0xf0] sm:$0xff]
      %v271 = vld [vmem:[%s233 + $0xf8] sm:$0xff]
      %v272 = vld [vmem:[%s233 + $0x100] sm:$0xff]
      %v273 = vld [vmem:[%s233 + $0x108] sm:$0xff]
      %v274 = vld [vmem:[%s233 + $0x110] sm:$0xff]
      %v275 = vld [vmem:[%s233 + $0x118] sm:$0xff]
      %v276 = vld [vmem:[%s233 + $0x120] sm:$0xff]
      %v277 = vld [vmem:[%s233 + $0x128] sm:$0xff]
      %v278 = vld [vmem:[%s233 + $0x130] sm:$0xff]
      %v279 = vld [vmem:[%s233 + $0x138] sm:$0xff]
      %v280 = vld [vmem:[%s233 + $0x140] sm:$0xff]
      %v281 = vld [vmem:[%s233 + $0x148] sm:$0xff]
      %v282 = vld [vmem:[%s233 + $0x150] sm:$0xff]
      %v283 = vld [vmem:[%s233 + $0x158] sm:$0xff]
      %v284 = vld [vmem:[%s233 + $0x160] sm:$0xff]
      %v285 = vld [vmem:[%s233 + $0x168] sm:$0xff]
      %v286 = vld [vmem:[%s233 + $0x170] sm:$0xff]
      %v287 = vld [vmem:[%s233 + $0x178] sm:$0xff]
      %v288 = vld [vmem:[%s233 + $0x180] sm:$0xff]
      %v289 = vld [vmem:[%s233 + $0x188] sm:$0xff]
      %v290 = vld [vmem:[%s233 + $0x190] sm:$0xff]
      %v291 = vld [vmem:[%s233 + $0x198] sm:$0xff]
      %v292 = vld [vmem:[%s233 + $0x1a0] sm:$0xff]
      %v293 = vld [vmem:[%s233 + $0x1a8] sm:$0xff]
      %v294 = vld [vmem:[%s233 + $0x1b0] sm:$0xff]
      %v295 = vld [vmem:[%s233 + $0x1b8] sm:$0xff]
      %v296 = vld [vmem:[%s233 + $0x1c0] sm:$0xff]
      %v297 = vld [vmem:[%s233 + $0x1c8] sm:$0xff]
      %v298 = vld [vmem:[%s233 + $0x1d0] sm:$0xff]
      %v299 = vld [vmem:[%s233 + $0x1d8] sm:$0xff]
      %v300 = vld [vmem:[%s233 + $0x1e0] sm:$0xff]
      %v301 = vld [vmem:[%s233 + $0x1e8] sm:$0xff]
      %v302 = vld [vmem:[%s233 + $0x1f0] sm:$0xff]
      %v303 = vld [vmem:[%s233 + $0x1f8] sm:$0xff]
      %v304 = vld [vmem:[%s233 + $0x200] sm:$0xff]
      %v305 = vld [vmem:[%s233 + $0x208] sm:$0xff]
      %v306 = vld [vmem:[%s233 + $0x210] sm:$0xff]
      %v307 = vld [vmem:[%s233 + $0x218] sm:$0xff]
      %v308 = vld [vmem:[%s233 + $0x220] sm:$0xff]
      %v309 = vld [vmem:[%s233 + $0x228] sm:$0xff]
      %v310 = vld [vmem:[%s233 + $0x230] sm:$0xff]
      %v311 = vld [vmem:[%s233 + $0x238] sm:$0xff]
      %v312 = vld [vmem:[%s233 + $0x240] sm:$0xff]
      %v313 = vld [vmem:[%s233 + $0x248] sm:$0xff]
      %v314 = vld [vmem:[%s233 + $0x250] sm:$0xff]
      %v315 = vld [vmem:[%s233 + $0x258] sm:$0xff]
      %v316 = vld [vmem:[%s233 + $0x260] sm:$0xff]
      %v317 = vld [vmem:[%s233 + $0x268] sm:$0xff]
      %v318 = vld [vmem:[%s233 + $0x270] sm:$0xff]
      %v319 = vld [vmem:[%s233 + $0x278] sm:$0xff]
      %v320 = vld [vmem:[%s233 + $0x280] sm:$0xff]
      %v321 = vld [vmem:[%s233 + $0x288] sm:$0xff]
      %v322 = vld [vmem:[%s233 + $0x290] sm:$0xff]
      %v323 = vld [vmem:[%s233 + $0x298] sm:$0xff]
      %v324 = vld [vmem:[%s233 + $0x2a0] sm:$0xff]
      %v325 = vld [vmem:[%s233 + $0x2a8] sm:$0xff]
      %v326 = vld [vmem:[%s233 + $0x2b0] sm:$0xff]
      %v327 = vld [vmem:[%s233 + $0x2b8] sm:$0xff]
      %v328 = vld [vmem:[%s233 + $0x2c0] sm:$0xff]
      %v329 = vld [vmem:[%s233 + $0x2c8] sm:$0xff]
      %v330 = vld [vmem:[%s233 + $0x2d0] sm:$0xff]
      %v331 = vld [vmem:[%s233 + $0x2d8] sm:$0xff]
      %v332 = vld [vmem:[%s233 + $0x2e0] sm:$0xff]
      %v333 = vld [vmem:[%s233 + $0x2e8] sm:$0xff]
      %v334 = vld [vmem:[%s233 + $0x2f0] sm:$0xff]
      %v335 = vld [vmem:[%s233 + $0x2f8] sm:$0xff]
      %v336 = vld [vmem:[%s233 + $0x300] sm:$0xff]
      %v337 = vld [vmem:[%s233 + $0x308] sm:$0xff]
      %v338 = vld [vmem:[%s233 + $0x310] sm:$0xff]
      %v339 = vld [vmem:[%s233 + $0x318] sm:$0xff]
      %v340 = vld [vmem:[%s233 + $0x320] sm:$0xff]
      %v341 = vld [vmem:[%s233 + $0x328] sm:$0xff]
      %v342 = vld [vmem:[%s233 + $0x330] sm:$0xff]
      %v343 = vld [vmem:[%s233 + $0x338] sm:$0xff]
      %v344 = vld [vmem:[%s233 + $0x340] sm:$0xff]
      %v345 = vld [vmem:[%s233 + $0x348] sm:$0xff]
      %v346 = vld [vmem:[%s233 + $0x350] sm:$0xff]
      %v347 = vld [vmem:[%s233 + $0x358] sm:$0xff]
      %v348 = vld [vmem:[%s233 + $0x360] sm:$0xff]
      %v349 = vld [vmem:[%s233 + $0x368] sm:$0xff]
      %v350 = vld [vmem:[%s233 + $0x370] sm:$0xff]
      %v351 = vld [vmem:[%s233 + $0x378] sm:$0xff]
      %v352 = vld [vmem:[%s233 + $0x380] sm:$0xff]
      %v353 = vld [vmem:[%s233 + $0x388] sm:$0xff]
      %v354 = vld [vmem:[%s233 + $0x390] sm:$0xff]
      %v355 = vld [vmem:[%s233 + $0x398] sm:$0xff]
      %v356 = vld [vmem:[%s233 + $0x3a0] sm:$0xff]
      %v357 = vld [vmem:[%s233 + $0x3a8] sm:$0xff]
      %v358 = vld [vmem:[%s233 + $0x3b0] sm:$0xff]
      %v359 = vld [vmem:[%s233 + $0x3b8] sm:$0xff]
      %v360 = vld [vmem:[%s233 + $0x3c0] sm:$0xff]
      %v361 = vld [vmem:[%s233 + $0x3c8] sm:$0xff]
      %v362 = vld [vmem:[%s233 + $0x3d0] sm:$0xff]
      %v363 = vld [vmem:[%s233 + $0x3d8] sm:$0xff]
      %v364 = vld [vmem:[%s233 + $0x3e0] sm:$0xff]
      %v365 = vld [vmem:[%s233 + $0x3e8] sm:$0xff]
      %v366 = vld [vmem:[%s233 + $0x3f0] sm:$0xff]
      %v367 = vld [vmem:[%s233 + $0x3f8] sm:$0xff]
      %v368 = vld [vmem:[%s233 + $0x400] sm:$0xff]
      %v369 = vld [vmem:[%s233 + $0x408] sm:$0xff]
      %v370 = vld [vmem:[%s233 + $0x410] sm:$0xff]
      %v371 = vld [vmem:[%s233 + $0x418] sm:$0xff]
      %v372 = vld [vmem:[%s233 + $0x420] sm:$0xff]
      %v373 = vld [vmem:[%s233 + $0x428] sm:$0xff]
      %v374 = vld [vmem:[%s233 + $0x430] sm:$0xff]
      %v375 = vld [vmem:[%s233 + $0x438] sm:$0xff]
      %v376 = vld [vmem:[%s233 + $0x440] sm:$0xff]
      %v377 = vld [vmem:[%s233 + $0x448] sm:$0xff]
      %v378 = vld [vmem:[%s233 + $0x450] sm:$0xff]
      %v379 = vld [vmem:[%s233 + $0x458] sm:$0xff]
      %v380 = vld [vmem:[%s233 + $0x460] sm:$0xff]
      %v381 = vld [vmem:[%s233 + $0x468] sm:$0xff]
      %v382 = vld [vmem:[%s233 + $0x470] sm:$0xff]
      %v383 = vld [vmem:[%s233 + $0x478] sm:$0xff]
      %v384 = vld [vmem:[%s233 + $0x480] sm:$0xff]
      %v385 = vld [vmem:[%s233 + $0x488] sm:$0xff]
      %v386 = vld [vmem:[%s233 + $0x490] sm:$0xff]
      %v387 = vld [vmem:[%s233 + $0x498] sm:$0xff]
      %v388 = vld [vmem:[%s233 + $0x4a0] sm:$0xff]
      %v389 = vld [vmem:[%s233 + $0x4a8] sm:$0xff]
      %v390 = vld [vmem:[%s233 + $0x4b0] sm:$0xff]
      %v391 = vld [vmem:[%s233 + $0x4b8] sm:$0xff]
      %v392 = vld [vmem:[%s233 + $0x4c0] sm:$0xff]
      %v393 = vld [vmem:[%s233 + $0x4c8] sm:$0xff]
      %v394 = vld [vmem:[%s233 + $0x4d0] sm:$0xff]
      %v395 = vld [vmem:[%s233 + $0x4d8] sm:$0xff]
      %v396 = vld [vmem:[%s233 + $0x4e0] sm:$0xff]
      %v397 = vld [vmem:[%s233 + $0x4e8] sm:$0xff]
      %v398 = vld [vmem:[%s233 + $0x4f0] sm:$0xff]
      %v399 = vld [vmem:[%s233 + $0x4f8] sm:$0xff]
      %v400 = vld [vmem:[%s233 + $0x500] sm:$0xff]
      %v401 = vld [vmem:[%s233 + $0x508] sm:$0xff]
      %v402 = vld [vmem:[%s233 + $0x510] sm:$0xff]
      %v403 = vld [vmem:[%s233 + $0x518] sm:$0xff]
      %v404 = vld [vmem:[%s233 + $0x520] sm:$0xff]
      %v405 = vld [vmem:[%s233 + $0x528] sm:$0xff]
      %v406 = vld [vmem:[%s233 + $0x530] sm:$0xff]
      %v407 = vld [vmem:[%s233 + $0x538] sm:$0xff]
      %v408 = vld [vmem:[%s233 + $0x540] sm:$0xff]
      %v409 = vld [vmem:[%s233 + $0x548] sm:$0xff]
      %v410 = vld [vmem:[%s233 + $0x550] sm:$0xff]
      %v411 = vld [vmem:[%s233 + $0x558] sm:$0xff]
      %v412 = vld [vmem:[%s233 + $0x560] sm:$0xff]
      %v413 = vld [vmem:[%s233 + $0x568] sm:$0xff]
      %v414 = vld [vmem:[%s233 + $0x570] sm:$0xff]
      %v415 = vld [vmem:[%s233 + $0x578] sm:$0xff]
      %v416 = vld [vmem:[%s233 + $0x580] sm:$0xff]
      %v417 = vld [vmem:[%s233 + $0x588] sm:$0xff]
      %v418 = vld [vmem:[%s233 + $0x590] sm:$0xff]
      %v419 = vld [vmem:[%s233 + $0x598] sm:$0xff]
      %v420 = vld [vmem:[%s233 + $0x5a0] sm:$0xff]
      %v421 = vld [vmem:[%s233 + $0x5a8] sm:$0xff]
      %v422 = vld [vmem:[%s233 + $0x5b0] sm:$0xff]
      %v423 = vld [vmem:[%s233 + $0x5b8] sm:$0xff]
      %v424 = vld [vmem:[%s233 + $0x5c0] sm:$0xff]
      %v425 = vld [vmem:[%s233 + $0x5c8] sm:$0xff]
      %v426 = vld [vmem:[%s233 + $0x5d0] sm:$0xff]
      %v427 = vld [vmem:[%s233 + $0x5d8] sm:$0xff]
      %v428 = vld [vmem:[%s233 + $0x5e0] sm:$0xff]
      %v429 = vld [vmem:[%s233 + $0x5e8] sm:$0xff]
      %v430 = vld [vmem:[%s233 + $0x5f0] sm:$0xff]
      %v431 = vld [vmem:[%s233 + $0x5f8] sm:$0xff]
      %v432 = vld [vmem:[%s233 + $0x600] sm:$0xff]
      %v433 = vld [vmem:[%s233 + $0x608] sm:$0xff]
      %v434 = vld [vmem:[%s233 + $0x610] sm:$0xff]
      %v435 = vld [vmem:[%s233 + $0x618] sm:$0xff]
      %v436 = vld [vmem:[%s233 + $0x620] sm:$0xff]
      %v437 = vld [vmem:[%s233 + $0x628] sm:$0xff]
      %v438 = vld [vmem:[%s233 + $0x630] sm:$0xff]
      %v439 = vld [vmem:[%s233 + $0x638] sm:$0xff]
      %v440 = vld [vmem:[%s233 + $0x640] sm:$0xff]
      %v441 = vld [vmem:[%s233 + $0x648] sm:$0xff]
      %v442 = vld [vmem:[%s233 + $0x650] sm:$0xff]
      %v443 = vld [vmem:[%s233 + $0x658] sm:$0xff]
      %v444 = vld [vmem:[%s233 + $0x660] sm:$0xff]
      %v445 = vld [vmem:[%s233 + $0x668] sm:$0xff]
      %v446 = vld [vmem:[%s233 + $0x670] sm:$0xff]
      %v447 = vld [vmem:[%s233 + $0x678] sm:$0xff]
      %v448 = vld [vmem:[%s233 + $0x680] sm:$0xff]
      %v449 = vld [vmem:[%s233 + $0x688] sm:$0xff]
      %v450 = vld [vmem:[%s233 + $0x690] sm:$0xff]
      %v451 = vld [vmem:[%s233 + $0x698] sm:$0xff]
      %v452 = vld [vmem:[%s233 + $0x6a0] sm:$0xff]
      %v453 = vld [vmem:[%s233 + $0x6a8] sm:$0xff]
      %v454 = vld [vmem:[%s233 + $0x6b0] sm:$0xff]
      %v455 = vld [vmem:[%s233 + $0x6b8] sm:$0xff]
      %v456 = vld [vmem:[%s233 + $0x6c0] sm:$0xff]
      %v457 = vld [vmem:[%s233 + $0x6c8] sm:$0xff]
      %v458 = vld [vmem:[%s233 + $0x6d0] sm:$0xff]
      %v459 = vld [vmem:[%s233 + $0x6d8] sm:$0xff]
      %v460 = vld [vmem:[%s233 + $0x6e0] sm:$0xff]
      %v461 = vld [vmem:[%s233 + $0x6e8] sm:$0xff]
      %v462 = vld [vmem:[%s233 + $0x6f0] sm:$0xff]
      %v463 = vld [vmem:[%s233 + $0x6f8] sm:$0xff]
      %v464 = vld [vmem:[%s233 + $0x700] sm:$0xff]
      %v465 = vld [vmem:[%s233 + $0x708] sm:$0xff]
      %v466 = vld [vmem:[%s233 + $0x710] sm:$0xff]
      %v467 = vld [vmem:[%s233 + $0x718] sm:$0xff]
      %v468 = vld [vmem:[%s233 + $0x720] sm:$0xff]
      %v469 = vld [vmem:[%s233 + $0x728] sm:$0xff]
      %v470 = vld [vmem:[%s233 + $0x730] sm:$0xff]
      %v471 = vld [vmem:[%s233 + $0x738] sm:$0xff]
      %v472 = vld [vmem:[%s233 + $0x740] sm:$0xff]
      %v473 = vld [vmem:[%s233 + $0x748] sm:$0xff]
      %v474 = vld [vmem:[%s233 + $0x750] sm:$0xff]
      %v475 = vld [vmem:[%s233 + $0x758] sm:$0xff]
      %v476 = vld [vmem:[%s233 + $0x760] sm:$0xff]
      %v477 = vld [vmem:[%s233 + $0x768] sm:$0xff]
      %v478 = vld [vmem:[%s233 + $0x770] sm:$0xff]
      %v479 = vld [vmem:[%s233 + $0x778] sm:$0xff]
      %v480 = vld [vmem:[%s233 + $0x780] sm:$0xff]
      %v481 = vld [vmem:[%s233 + $0x788] sm:$0xff]
      %v482 = vld [vmem:[%s233 + $0x790] sm:$0xff]
      %v483 = vld [vmem:[%s233 + $0x798] sm:$0xff]
      %v484 = vld [vmem:[%s233 + $0x7a0] sm:$0xff]
      %v485 = vld [vmem:[%s233 + $0x7a8] sm:$0xff]
      %v486 = vld [vmem:[%s233 + $0x7b0] sm:$0xff]
      %v487 = vld [vmem:[%s233 + $0x7b8] sm:$0xff]
      %v488 = vld [vmem:[%s233 + $0x7c0] sm:$0xff]
      %v489 = vld [vmem:[%s233 + $0x7c8] sm:$0xff]
      %v490 = vld [vmem:[%s233 + $0x7d0] sm:$0xff]
      %v491 = vld [vmem:[%s233 + $0x7d8] sm:$0xff]
      %v492 = vld [vmem:[%s233 + $0x7e0] sm:$0xff]
      %v493 = vld [vmem:[%s233 + $0x7e8] sm:$0xff]
      %v494 = vld [vmem:[%s233 + $0x7f0] sm:$0xff]
      %v495 = vld [vmem:[%s233 + $0x7f8] sm:$0xff]
      %v496 = vld [vmem:[%s1] sm:$0xff]
      %v497 = vld [vmem:[%s1 + $0x8] sm:$0xff]
      %v498 = vld [vmem:[%s1 + $0x10] sm:$0xff]
      %v499 = vld [vmem:[%s1 + $0x18] sm:$0xff]
      %v500 = vld [vmem:[%s1 + $0x20] sm:$0xff]
      %v501 = vld [vmem:[%s1 + $0x28] sm:$0xff]
      %v502 = vld [vmem:[%s1 + $0x30] sm:$0xff]
      %v503 = vld [vmem:[%s1 + $0x38] sm:$0xff]
      %v504 = vld [vmem:[%s1 + $0x40] sm:$0xff]
      %v505 = vld [vmem:[%s1 + $0x48] sm:$0xff]
      %v506 = vld [vmem:[%s1 + $0x50] sm:$0xff]
      %v507 = vld [vmem:[%s1 + $0x58] sm:$0xff]
      %v508 = vld [vmem:[%s1 + $0x60] sm:$0xff]
      %v509 = vld [vmem:[%s1 + $0x68] sm:$0xff]
      %v510 = vld [vmem:[%s1 + $0x70] sm:$0xff]
      %v511 = vld [vmem:[%s1 + $0x78] sm:$0xff]
      %v512 = vld [vmem:[%s1 + $0x80] sm:$0xff]
      %v513 = vld [vmem:[%s1 + $0x88] sm:$0xff]
      %v514 = vld [vmem:[%s1 + $0x90] sm:$0xff]
      %v515 = vld [vmem:[%s1 + $0x98] sm:$0xff]
      %v516 = vld [vmem:[%s1 + $0xa0] sm:$0xff]
      %v517 = vld [vmem:[%s1 + $0xa8] sm:$0xff]
      %v518 = vld [vmem:[%s1 + $0xb0] sm:$0xff]
      %v519 = vld [vmem:[%s1 + $0xb8] sm:$0xff]
      %v520 = vld [vmem:[%s1 + $0xc0] sm:$0xff]
      %v521 = vld [vmem:[%s1 + $0xc8] sm:$0xff]
      %v522 = vld [vmem:[%s1 + $0xd0] sm:$0xff]
      %v523 = vld [vmem:[%s1 + $0xd8] sm:$0xff]
      %v524 = vld [vmem:[%s1 + $0xe0] sm:$0xff]
      %v525 = vld [vmem:[%s1 + $0xe8] sm:$0xff]
      %v526 = vld [vmem:[%s1 + $0xf0] sm:$0xff]
      %v527 = vld [vmem:[%s1 + $0xf8] sm:$0xff]
      %v528 = vld [vmem:[%s1 + $0x100] sm:$0xff]
      %v529 = vld [vmem:[%s1 + $0x108] sm:$0xff]
      %v530 = vld [vmem:[%s1 + $0x110] sm:$0xff]
      %v531 = vld [vmem:[%s1 + $0x118] sm:$0xff]
      %v532 = vld [vmem:[%s1 + $0x120] sm:$0xff]
      %v533 = vld [vmem:[%s1 + $0x128] sm:$0xff]
      %v534 = vld [vmem:[%s1 + $0x130] sm:$0xff]
      %v535 = vld [vmem:[%s1 + $0x138] sm:$0xff]
      %v536 = vld [vmem:[%s1 + $0x140] sm:$0xff]
      %v537 = vld [vmem:[%s1 + $0x148] sm:$0xff]
      %v538 = vld [vmem:[%s1 + $0x150] sm:$0xff]
      %v539 = vld [vmem:[%s1 + $0x158] sm:$0xff]
      %v540 = vld [vmem:[%s1 + $0x160] sm:$0xff]
      %v541 = vld [vmem:[%s1 + $0x168] sm:$0xff]
      %v542 = vld [vmem:[%s1 + $0x170] sm:$0xff]
      %v543 = vld [vmem:[%s1 + $0x178] sm:$0xff]
      %v544 = vld [vmem:[%s1 + $0x180] sm:$0xff]
      %v545 = vld [vmem:[%s1 + $0x188] sm:$0xff]
      %v546 = vld [vmem:[%s1 + $0x190] sm:$0xff]
      %v547 = vld [vmem:[%s1 + $0x198] sm:$0xff]
      %v548 = vld [vmem:[%s1 + $0x1a0] sm:$0xff]
      %v549 = vld [vmem:[%s1 + $0x1a8] sm:$0xff]
      %v550 = vld [vmem:[%s1 + $0x1b0] sm:$0xff]
      %v551 = vld [vmem:[%s1 + $0x1b8] sm:$0xff]
      %v552 = vld [vmem:[%s1 + $0x1c0] sm:$0x7]
      %v553 = vld [vmem:[%s2] sm:$0x1]
      %v555 = vlaneseq
      %v556 = vshrl.u32 %v555, 7
      %v557 = vsub.s32 0, %v556
      %v558 = vrot.slane %v553, %v557
      %vm560 = vcmask 547840
      %v562 = vsel %vm560, %v243, 0
      %v565 = vsel %vm560, %v247, 0
      %v568 = vsel %vm560, %v251, 0
      %v571 = vsel %vm560, %v255, 0
      %v574 = vsel %vm560, %v259, 0
      %v577 = vsel %vm560, %v263, 0
      %v580 = vsel %vm560, %v267, 0
      %v583 = vsel %vm560, %v271, 0
      %v586 = vsel %vm560, %v275, 0
      %v589 = vsel %vm560, %v279, 0
      %v592 = vsel %vm560, %v283, 0
      %v595 = vsel %vm560, %v287, 0
      %v598 = vsel %vm560, %v291, 0
      %v601 = vsel %vm560, %v295, 0
      %v604 = vsel %vm560, %v299, 0
      %v607 = vsel %vm560, %v303, 0
      %v610 = vsel %vm560, %v307, 0
      %v613 = vsel %vm560, %v311, 0
      %v616 = vsel %vm560, %v315, 0
      %v619 = vsel %vm560, %v319, 0
      %v622 = vsel %vm560, %v323, 0
      %v625 = vsel %vm560, %v327, 0
      %v628 = vsel %vm560, %v331, 0
      %v631 = vsel %vm560, %v335, 0
      %v634 = vsel %vm560, %v339, 0
      %v637 = vsel %vm560, %v343, 0
      %v640 = vsel %vm560, %v347, 0
      %v643 = vsel %vm560, %v351, 0
      %v646 = vsel %vm560, %v355, 0
      %v649 = vsel %vm560, %v359, 0
      %v652 = vsel %vm560, %v363, 0
      %v655 = vsel %vm560, %v367, 0
      %v658 = vsel %vm560, %v371, 0
      %v661 = vsel %vm560, %v375, 0
      %v664 = vsel %vm560, %v379, 0
      %v667 = vsel %vm560, %v383, 0
      %v670 = vsel %vm560, %v387, 0
      %v673 = vsel %vm560, %v391, 0
      %v676 = vsel %vm560, %v395, 0
      %v679 = vsel %vm560, %v399, 0
      %v682 = vsel %vm560, %v403, 0
      %v685 = vsel %vm560, %v407, 0
      %v688 = vsel %vm560, %v411, 0
      %v691 = vsel %vm560, %v415, 0
      %v694 = vsel %vm560, %v419, 0
      %v697 = vsel %vm560, %v423, 0
      %v700 = vsel %vm560, %v427, 0
      %v703 = vsel %vm560, %v431, 0
      %v706 = vsel %vm560, %v435, 0
      %v709 = vsel %vm560, %v439, 0
      %v712 = vsel %vm560, %v443, 0
      %v715 = vsel %vm560, %v447, 0
      %v718 = vsel %vm560, %v451, 0
      %v721 = vsel %vm560, %v455, 0
      %v724 = vsel %vm560, %v459, 0
      %v727 = vsel %vm560, %v463, 0
      %v730 = vsel %vm560, %v467, 0
      %v733 = vsel %vm560, %v471, 0
      %v736 = vsel %vm560, %v475, 0
      %v739 = vsel %vm560, %v479, 0
      %v742 = vsel %vm560, %v483, 0
      %v745 = vsel %vm560, %v487, 0
      %v748 = vsel %vm560, %v491, 0
      %v751 = vsel %vm560, %v495, 0
      %vm753 = vcmask 1042432
      %v755 = vsel %vm753, %v552, 0
      %757 = vmatprep.subr.mxu0 0.0
      %758 = vmatpush1.msra.mxu0 %v496
      %759 = vmatprep.subr.mxu0 0.0
      %760 = vmatpush1.msra.mxu0 %v497
      %761 = vmatprep.subr.mxu0 0.0
      %762 = vmatpush1.msra.mxu0 %v498
      %763 = vmatprep.subr.mxu0 0.0
      %764 = vmatpush1.msra.mxu0 %v499
      %765 = vmatprep.subr.mxu0 0.0
      %766 = vmatpush1.msra.mxu0 %v500
      %767 = vmatprep.subr.mxu0 0.0
      %768 = vmatpush1.msra.mxu0 %v501
      %769 = vmatprep.subr.mxu0 0.0
      %770 = vmatpush1.msra.mxu0 %v502
      %771 = vmatprep.subr.mxu0 0.0
      %772 = vmatpush1.msra.mxu0 %v503
      %773 = vmatprep.subr.mxu0 0.0
      %774 = vmatpush1.msra.mxu0 %v504
      %775 = vmatprep.subr.mxu0 0.0
      %776 = vmatpush1.msra.mxu0 %v505
      %777 = vmatprep.subr.mxu0 0.0
      %778 = vmatpush1.msra.mxu0 %v506
      %779 = vmatprep.subr.mxu0 0.0
      %780 = vmatpush1.msra.mxu0 %v507
      %781 = vmatprep.subr.mxu0 0.0
      %782 = vmatpush1.msra.mxu0 %v508
      %783 = vmatprep.subr.mxu0 0.0
      %784 = vmatpush1.msra.mxu0 %v509
      %785 = vmatprep.subr.mxu0 0.0
      %786 = vmatpush1.msra.mxu0 %v510
      %787 = vmatprep.subr.mxu0 0.0
      %788 = vmatpush1.msra.mxu0 %v511
      %789 = vmatprep.subr.mxu0 0.0
      %790 = vmatpush1.msra.mxu0 %v512
      %791 = vmatprep.subr.mxu0 0.0
      %792 = vmatpush1.msra.mxu0 %v513
      %793 = vmatprep.subr.mxu0 0.0
      %794 = vmatpush1.msra.mxu0 %v514
      %795 = vmatprep.subr.mxu0 0.0
      %796 = vmatpush1.msra.mxu0 %v515
      %797 = vmatprep.subr.mxu0 0.0
      %798 = vmatpush1.msra.mxu0 %v516
      %799 = vmatprep.subr.mxu0 0.0
      %800 = vmatpush1.msra.mxu0 %v517
      %801 = vmatprep.subr.mxu0 0.0
      %802 = vmatpush1.msra.mxu0 %v518
      %803 = vmatprep.subr.mxu0 0.0
      %804 = vmatpush1.msra.mxu0 %v519
      %805 = vmatprep.subr.mxu0 0.0
      %806 = vmatpush1.msra.mxu0 %v520
      %807 = vmatprep.subr.mxu0 0.0
      %808 = vmatpush1.msra.mxu0 %v521
      %809 = vmatprep.subr.mxu0 0.0
      %810 = vmatpush1.msra.mxu0 %v522
      %811 = vmatprep.subr.mxu0 0.0
      %812 = vmatpush1.msra.mxu0 %v523
      %813 = vmatprep.subr.mxu0 0.0
      %814 = vmatpush1.msra.mxu0 %v524
      %815 = vmatprep.subr.mxu0 0.0
      %816 = vmatpush1.msra.mxu0 %v525
      %817 = vmatprep.subr.mxu0 0.0
      %818 = vmatpush1.msra.mxu0 %v526
      %819 = vmatprep.subr.mxu0 0.0
      %820 = vmatpush1.msra.mxu0 %v527
      %821 = vmatprep.mubr.f32.mxu0 %v241
      %822 = vmatmul.mubr.f32.gmra.mrb[0].mxu0 %v240
      %v823 = vpop.f32.mrb[0].mxu0
      %v824 = vadd.f32 %v558, %v823
      %v825 = vpop.f32.mrb[0].mxu0
      %826 = vmatprep.mubr.f32.mxu0 %v245
      %827 = vmatmul.mubr.f32.gmra.mrb[0].mxu0 %v244
      %v828 = vpop.f32.mrb[0].mxu0
      %v829 = vadd.f32 %v558, %v828
      %v830 = vpop.f32.mrb[0].mxu0
      %831 = vmatprep.mubr.f32.mxu0 %v249
      %832 = vmatmul.mubr.f32.gmra.mrb[0].mxu0 %v248
      %v833 = vpop.f32.mrb[0].mxu0
      %v834 = vadd.f32 %v558, %v833
      %v835 = vpop.f32.mrb[0].mxu0
      %836 = vmatprep.mubr.f32.mxu0 %v253
      %837 = vmatmul.mubr.f32.gmra.mrb[0].mxu0 %v252
      %v838 = vpop.f32.mrb[0].mxu0
      %v839 = vadd.f32 %v558, %v838
      %v840 = vpop.f32.mrb[0].mxu0
      %841 = vmatprep.mubr.f32.mxu0 %v257
      %842 = vmatmul.mubr.f32.gmra.mrb[0].mxu0 %v256
      %v843 = vpop.f32.mrb[0].mxu0
      %v844 = vadd.f32 %v558, %v843
      %v845 = vpop.f32.mrb[0].mxu0
      %846 = vmatprep.mubr.f32.mxu0 %v261
      %847 = vmatmul.mubr.f32.gmra.mrb[0].mxu0 %v260
      %v848 = vpop.f32.mrb[0].mxu0
      %v849 = vadd.f32 %v558, %v848
      %v850 = vpop.f32.mrb[0].mxu0
      %851 = vmatprep.mubr.f32.mxu0 %v265
      %852 = vmatmul.mubr.f32.gmra.mrb[0].mxu0 %v264
      %v853 = vpop.f32.mrb[0].mxu0
      %v854 = vadd.f32 %v558, %v853
      %v855 = vpop.f32.mrb[0].mxu0
      %856 = vmatprep.mubr.f32.mxu0 %v269
      %857 = vmatmul.mubr.f32.gmra.mrb[0].mxu0 %v268
      %v858 = vpop.f32.mrb[0].mxu0
      %v859 = vadd.f32 %v558, %v858
      %v860 = vpop.f32.mrb[0].mxu0
      %861 = vmatprep.mubr.f32.mxu0 %v273
      %862 = vmatmul.mubr.f32.gmra.mrb[0].mxu0 %v272
      %v863 = vpop.f32.mrb[0].mxu0
      %v864 = vadd.f32 %v558, %v863
      %v865 = vpop.f32.mrb[0].mxu0
      %866 = vmatprep.mubr.f32.mxu0 %v277
      %867 = vmatmul.mubr.f32.gmra.mrb[0].mxu0 %v276
      %v868 = vpop.f32.mrb[0].mxu0
      %v869 = vadd.f32 %v558, %v868
      %v870 = vpop.f32.mrb[0].mxu0
      %871 = vmatprep.mubr.f32.mxu0 %v281
      %872 = vmatmul.mubr.f32.gmra.mrb[0].mxu0 %v280
      %v873 = vpop.f32.mrb[0].mxu0
      %v874 = vadd.f32 %v558, %v873
      %v875 = vpop.f32.mrb[0].mxu0
      %876 = vmatprep.mubr.f32.mxu0 %v285
      %877 = vmatmul.mubr.f32.gmra.mrb[0].mxu0 %v284
      %v878 = vpop.f32.mrb[0].mxu0
      %v879 = vadd.f32 %v558, %v878
      %v880 = vpop.f32.mrb[0].mxu0
      %881 = vmatprep.mubr.f32.mxu0 %v289
      %882 = vmatmul.mubr.f32.gmra.mrb[0].mxu0 %v288
      %v883 = vpop.f32.mrb[0].mxu0
      %v884 = vadd.f32 %v558, %v883
      %v885 = vpop.f32.mrb[0].mxu0
      %886 = vmatprep.mubr.f32.mxu0 %v293
      %887 = vmatmul.mubr.f32.gmra.mrb[0].mxu0 %v292
      %v888 = vpop.f32.mrb[0].mxu0
      %v889 = vadd.f32 %v558, %v888
      %v890 = vpop.f32.mrb[0].mxu0
      %891 = vmatprep.mubr.f32.mxu0 %v297
      %892 = vmatmul.mubr.f32.gmra.mrb[0].mxu0 %v296
      %v893 = vpop.f32.mrb[0].mxu0
      %v894 = vadd.f32 %v558, %v893
      %v895 = vpop.f32.mrb[0].mxu0
      %896 = vmatprep.mubr.f32.mxu0 %v301
      %897 = vmatmul.mubr.f32.gmra.mrb[0].mxu0 %v300
      %v898 = vpop.f32.mrb[0].mxu0
      %v899 = vadd.f32 %v558, %v898
      %v900 = vpop.f32.mrb[0].mxu0
      %901 = vmatprep.mubr.f32.mxu0 %v305
      %902 = vmatmul.mubr.f32.gmra.mrb[0].mxu0 %v304
      %v903 = vpop.f32.mrb[0].mxu0
      %v904 = vadd.f32 %v558, %v903
      %v905 = vpop.f32.mrb[0].mxu0
      %906 = vmatprep.mubr.f32.mxu0 %v309
      %907 = vmatmul.mubr.f32.gmra.mrb[0].mxu0 %v308
      %v908 = vpop.f32.mrb[0].mxu0
      %v909 = vadd.f32 %v558, %v908
      %v910 = vpop.f32.mrb[0].mxu0
      %911 = vmatprep.mubr.f32.mxu0 %v313
      %912 = vmatmul.mubr.f32.gmra.mrb[0].mxu0 %v312
      %v913 = vpop.f32.mrb[0].mxu0
      %v914 = vadd.f32 %v558, %v913
      %v915 = vpop.f32.mrb[0].mxu0
      %916 = vmatprep.mubr.f32.mxu0 %v317
      %917 = vmatmul.mubr.f32.gmra.mrb[0].mxu0 %v316
      %v918 = vpop.f32.mrb[0].mxu0
      %v919 = vadd.f32 %v558, %v918
      %v920 = vpop.f32.mrb[0].mxu0
      %921 = vmatprep.mubr.f32.mxu0 %v321
      %922 = vmatmul.mubr.f32.gmra.mrb[0].mxu0 %v320
      %v923 = vpop.f32.mrb[0].mxu0
      %v924 = vadd.f32 %v558, %v923
      %v925 = vpop.f32.mrb[0].mxu0
      %926 = vmatprep.mubr.f32.mxu0 %v325
      %927 = vmatmul.mubr.f32.gmra.mrb[0].mxu0 %v324
      %v928 = vpop.f32.mrb[0].mxu0
      %v929 = vadd.f32 %v558, %v928
      %v930 = vpop.f32.mrb[0].mxu0
      %931 = vmatprep.mubr.f32.mxu0 %v329
      %932 = vmatmul.mubr.f32.gmra.mrb[0].mxu0 %v328
      %v933 = vpop.f32.mrb[0].mxu0
      %v934 = vadd.f32 %v558, %v933
      %v935 = vpop.f32.mrb[0].mxu0
      %936 = vmatprep.mubr.f32.mxu0 %v333
      %937 = vmatmul.mubr.f32.gmra.mrb[0].mxu0 %v332
      %v938 = vpop.f32.mrb[0].mxu0
      %v939 = vadd.f32 %v558, %v938
      %v940 = vpop.f32.mrb[0].mxu0
      %941 = vmatprep.mubr.f32.mxu0 %v337
      %942 = vmatmul.mubr.f32.gmra.mrb[0].mxu0 %v336
      %v943 = vpop.f32.mrb[0].mxu0
      %v944 = vadd.f32 %v558, %v943
      %v945 = vpop.f32.mrb[0].mxu0
      %946 = vmatprep.mubr.f32.mxu0 %v341
      %947 = vmatmul.mubr.f32.gmra.mrb[0].mxu0 %v340
      %v948 = vpop.f32.mrb[0].mxu0
      %v949 = vadd.f32 %v558, %v948
      %v950 = vpop.f32.mrb[0].mxu0
      %951 = vmatprep.mubr.f32.mxu0 %v345
      %952 = vmatmul.mubr.f32.gmra.mrb[0].mxu0 %v344
      %v953 = vpop.f32.mrb[0].mxu0
      %v954 = vadd.f32 %v558, %v953
      %v955 = vpop.f32.mrb[0].mxu0
      %956 = vmatprep.mubr.f32.mxu0 %v349
      %957 = vmatmul.mubr.f32.gmra.mrb[0].mxu0 %v348
      %v958 = vpop.f32.mrb[0].mxu0
      %v959 = vadd.f32 %v558, %v958
      %v960 = vpop.f32.mrb[0].mxu0
      %961 = vmatprep.mubr.f32.mxu0 %v353
      %962 = vmatmul.mubr.f32.gmra.mrb[0].mxu0 %v352
      %v963 = vpop.f32.mrb[0].mxu0
      %v964 = vadd.f32 %v558, %v963
      %v965 = vpop.f32.mrb[0].mxu0
      %966 = vmatprep.mubr.f32.mxu0 %v357
      %967 = vmatmul.mubr.f32.gmra.mrb[0].mxu0 %v356
      %v968 = vpop.f32.mrb[0].mxu0
      %v969 = vadd.f32 %v558, %v968
      %v970 = vpop.f32.mrb[0].mxu0
      %971 = vmatprep.mubr.f32.mxu0 %v361
      %972 = vmatmul.mubr.f32.gmra.mrb[0].mxu0 %v360
      %v973 = vpop.f32.mrb[0].mxu0
      %v974 = vadd.f32 %v558, %v973
      %v975 = vpop.f32.mrb[0].mxu0
      %976 = vmatprep.mubr.f32.mxu0 %v365
      %977 = vmatmul.mubr.f32.gmra.mrb[0].mxu0 %v364
      %v978 = vpop.f32.mrb[0].mxu0
      %v979 = vadd.f32 %v558, %v978
      %v980 = vpop.f32.mrb[0].mxu0
      %981 = vmatprep.mubr.f32.mxu0 %v369
      %982 = vmatmul.mubr.f32.gmra.mrb[0].mxu0 %v368
      %v983 = vpop.f32.mrb[0].mxu0
      %v984 = vadd.f32 %v558, %v983
      %v985 = vpop.f32.mrb[0].mxu0
      %986 = vmatprep.mubr.f32.mxu0 %v373
      %987 = vmatmul.mubr.f32.gmra.mrb[0].mxu0 %v372
      %v988 = vpop.f32.mrb[0].mxu0
      %v989 = vadd.f32 %v558, %v988
      %v990 = vpop.f32.mrb[0].mxu0
      %991 = vmatprep.mubr.f32.mxu0 %v377
      %992 = vmatmul.mubr.f32.gmra.mrb[0].mxu0 %v376
      %v993 = vpop.f32.mrb[0].mxu0
      %v994 = vadd.f32 %v558, %v993
      %v995 = vpop.f32.mrb[0].mxu0
      %996 = vmatprep.mubr.f32.mxu0 %v381
      %997 = vmatmul.mubr.f32.gmra.mrb[0].mxu0 %v380
      %v998 = vpop.f32.mrb[0].mxu0
      %v999 = vadd.f32 %v558, %v998
      %v1000 = vpop.f32.mrb[0].mxu0
      %1001 = vmatprep.mubr.f32.mxu0 %v385
      %1002 = vmatmul.mubr.f32.gmra.mrb[0].mxu0 %v384
      %v1003 = vpop.f32.mrb[0].mxu0
      %v1004 = vadd.f32 %v558, %v1003
      %v1005 = vpop.f32.mrb[0].mxu0
      %1006 = vmatprep.mubr.f32.mxu0 %v389
      %1007 = vmatmul.mubr.f32.gmra.mrb[0].mxu0 %v388
      %v1008 = vpop.f32.mrb[0].mxu0
      %v1009 = vadd.f32 %v558, %v1008
      %v1010 = vpop.f32.mrb[0].mxu0
      %1011 = vmatprep.mubr.f32.mxu0 %v393
      %1012 = vmatmul.mubr.f32.gmra.mrb[0].mxu0 %v392
      %v1013 = vpop.f32.mrb[0].mxu0
      %v1014 = vadd.f32 %v558, %v1013
      %v1015 = vpop.f32.mrb[0].mxu0
      %1016 = vmatprep.mubr.f32.mxu0 %v397
      %1017 = vmatmul.mubr.f32.gmra.mrb[0].mxu0 %v396
      %v1018 = vpop.f32.mrb[0].mxu0
      %v1019 = vadd.f32 %v558, %v1018
      %v1020 = vpop.f32.mrb[0].mxu0
      %1021 = vmatprep.mubr.f32.mxu0 %v401
      %1022 = vmatmul.mubr.f32.gmra.mrb[0].mxu0 %v400
      %v1023 = vpop.f32.mrb[0].mxu0
      %v1024 = vadd.f32 %v558, %v1023
      %v1025 = vpop.f32.mrb[0].mxu0
      %1026 = vmatprep.mubr.f32.mxu0 %v405
      %1027 = vmatmul.mubr.f32.gmra.mrb[0].mxu0 %v404
      %v1028 = vpop.f32.mrb[0].mxu0
      %v1029 = vadd.f32 %v558, %v1028
      %v1030 = vpop.f32.mrb[0].mxu0
      %1031 = vmatprep.mubr.f32.mxu0 %v409
      %1032 = vmatmul.mubr.f32.gmra.mrb[0].mxu0 %v408
      %v1033 = vpop.f32.mrb[0].mxu0
      %v1034 = vadd.f32 %v558, %v1033
      %v1035 = vpop.f32.mrb[0].mxu0
      %1036 = vmatprep.mubr.f32.mxu0 %v413
      %1037 = vmatmul.mubr.f32.gmra.mrb[0].mxu0 %v412
      %v1038 = vpop.f32.mrb[0].mxu0
      %v1039 = vadd.f32 %v558, %v1038
      %v1040 = vpop.f32.mrb[0].mxu0
      %1041 = vmatprep.mubr.f32.mxu0 %v417
      %1042 = vmatmul.mubr.f32.gmra.mrb[0].mxu0 %v416
      %v1043 = vpop.f32.mrb[0].mxu0
      %v1044 = vadd.f32 %v558, %v1043
      %v1045 = vpop.f32.mrb[0].mxu0
      %1046 = vmatprep.mubr.f32.mxu0 %v421
      %1047 = vmatmul.mubr.f32.gmra.mrb[0].mxu0 %v420
      %v1048 = vpop.f32.mrb[0].mxu0
      %v1049 = vadd.f32 %v558, %v1048
      %v1050 = vpop.f32.mrb[0].mxu0
      %1051 = vmatprep.mubr.f32.mxu0 %v425
      %1052 = vmatmul.mubr.f32.gmra.mrb[0].mxu0 %v424
      %v1053 = vpop.f32.mrb[0].mxu0
      %v1054 = vadd.f32 %v558, %v1053
      %v1055 = vpop.f32.mrb[0].mxu0
      %1056 = vmatprep.mubr.f32.mxu0 %v429
      %1057 = vmatmul.mubr.f32.gmra.mrb[0].mxu0 %v428
      %v1058 = vpop.f32.mrb[0].mxu0
      %v1059 = vadd.f32 %v558, %v1058
      %v1060 = vpop.f32.mrb[0].mxu0
      %1061 = vmatprep.mubr.f32.mxu0 %v433
      %1062 = vmatmul.mubr.f32.gmra.mrb[0].mxu0 %v432
      %v1063 = vpop.f32.mrb[0].mxu0
      %v1064 = vadd.f32 %v558, %v1063
      %v1065 = vpop.f32.mrb[0].mxu0
      %1066 = vmatprep.mubr.f32.mxu0 %v437
      %1067 = vmatmul.mubr.f32.gmra.mrb[0].mxu0 %v436
      %v1068 = vpop.f32.mrb[0].mxu0
      %v1069 = vadd.f32 %v558, %v1068
      %v1070 = vpop.f32.mrb[0].mxu0
      %1071 = vmatprep.mubr.f32.mxu0 %v441
      %1072 = vmatmul.mubr.f32.gmra.mrb[0].mxu0 %v440
      %v1073 = vpop.f32.mrb[0].mxu0
      %v1074 = vadd.f32 %v558, %v1073
      %v1075 = vpop.f32.mrb[0].mxu0
      %1076 = vmatprep.mubr.f32.mxu0 %v445
      %1077 = vmatmul.mubr.f32.gmra.mrb[0].mxu0 %v444
      %v1078 = vpop.f32.mrb[0].mxu0
      %v1079 = vadd.f32 %v558, %v1078
      %v1080 = vpop.f32.mrb[0].mxu0
      %1081 = vmatprep.mubr.f32.mxu0 %v449
      %1082 = vmatmul.mubr.f32.gmra.mrb[0].mxu0 %v448
      %v1083 = vpop.f32.mrb[0].mxu0
      %v1084 = vadd.f32 %v558, %v1083
      %v1085 = vpop.f32.mrb[0].mxu0
      %1086 = vmatprep.mubr.f32.mxu0 %v453
      %1087 = vmatmul.mubr.f32.gmra.mrb[0].mxu0 %v452
      %v1088 = vpop.f32.mrb[0].mxu0
      %v1089 = vadd.f32 %v558, %v1088
      %v1090 = vpop.f32.mrb[0].mxu0
      %1091 = vmatprep.mubr.f32.mxu0 %v457
      %1092 = vmatmul.mubr.f32.gmra.mrb[0].mxu0 %v456
      %v1093 = vpop.f32.mrb[0].mxu0
      %v1094 = vadd.f32 %v558, %v1093
      %v1095 = vpop.f32.mrb[0].mxu0
      %1096 = vmatprep.mubr.f32.mxu0 %v461
      %1097 = vmatmul.mubr.f32.gmra.mrb[0].mxu0 %v460
      %v1098 = vpop.f32.mrb[0].mxu0
      %v1099 = vadd.f32 %v558, %v1098
      %v1100 = vpop.f32.mrb[0].mxu0
      %1101 = vmatprep.mubr.f32.mxu0 %v465
      %1102 = vmatmul.mubr.f32.gmra.mrb[0].mxu0 %v464
      %v1103 = vpop.f32.mrb[0].mxu0
      %v1104 = vadd.f32 %v558, %v1103
      %v1105 = vpop.f32.mrb[0].mxu0
      %1106 = vmatprep.mubr.f32.mxu0 %v469
      %1107 = vmatmul.mubr.f32.gmra.mrb[0].mxu0 %v468
      %v1108 = vpop.f32.mrb[0].mxu0
      %v1109 = vadd.f32 %v558, %v1108
      %v1110 = vpop.f32.mrb[0].mxu0
      %1111 = vmatprep.mubr.f32.mxu0 %v473
      %1112 = vmatmul.mubr.f32.gmra.mrb[0].mxu0 %v472
      %v1113 = vpop.f32.mrb[0].mxu0
      %v1114 = vadd.f32 %v558, %v1113
      %v1115 = vpop.f32.mrb[0].mxu0
      %1116 = vmatprep.mubr.f32.mxu0 %v477
      %1117 = vmatmul.mubr.f32.gmra.mrb[0].mxu0 %v476
      %v1118 = vpop.f32.mrb[0].mxu0
      %v1119 = vadd.f32 %v558, %v1118
      %v1120 = vpop.f32.mrb[0].mxu0
      %1121 = vmatprep.mubr.f32.mxu0 %v481
      %1122 = vmatmul.mubr.f32.gmra.mrb[0].mxu0 %v480
      %v1123 = vpop.f32.mrb[0].mxu0
      %v1124 = vadd.f32 %v558, %v1123
      %v1125 = vpop.f32.mrb[0].mxu0
      %1126 = vmatprep.mubr.f32.mxu0 %v485
      %1127 = vmatmul.mubr.f32.gmra.mrb[0].mxu0 %v484
      %v1128 = vpop.f32.mrb[0].mxu0
      %v1129 = vadd.f32 %v558, %v1128
      %v1130 = vpop.f32.mrb[0].mxu0
      %1131 = vmatprep.mubr.f32.mxu0 %v489
      %1132 = vmatmul.mubr.f32.gmra.mrb[0].mxu0 %v488
      %v1133 = vpop.f32.mrb[0].mxu0
      %v1134 = vadd.f32 %v558, %v1133
      %v1135 = vpop.f32.mrb[0].mxu0
      %1136 = vmatprep.mubr.f32.mxu0 %v493
      %1137 = vmatmul.mubr.f32.gmra.mrb[0].mxu0 %v492
      %v1138 = vpop.f32.mrb[0].mxu0
      %v1139 = vadd.f32 %v558, %v1138
      %v1140 = vpop.f32.mrb[0].mxu0
      %1141 = vdwg.mxu0
      %1142 = vmatprep.subr.mxu0 0.0
      %1143 = vmatpush1.msra.mxu0 %v528
      %1144 = vmatprep.subr.mxu0 0.0
      %1145 = vmatpush1.msra.mxu0 %v529
      %1146 = vmatprep.subr.mxu0 0.0
      %1147 = vmatpush1.msra.mxu0 %v530
      %1148 = vmatprep.subr.mxu0 0.0
      %1149 = vmatpush1.msra.mxu0 %v531
      %1150 = vmatprep.subr.mxu0 0.0
      %1151 = vmatpush1.msra.mxu0 %v532
      %1152 = vmatprep.subr.mxu0 0.0
      %1153 = vmatpush1.msra.mxu0 %v533
      %1154 = vmatprep.subr.mxu0 0.0
      %1155 = vmatpush1.msra.mxu0 %v534
      %1156 = vmatprep.subr.mxu0 0.0
      %1157 = vmatpush1.msra.mxu0 %v535
      %1158 = vmatprep.subr.mxu0 0.0
      %1159 = vmatpush1.msra.mxu0 %v536
      %1160 = vmatprep.subr.mxu0 0.0
      %1161 = vmatpush1.msra.mxu0 %v537
      %1162 = vmatprep.subr.mxu0 0.0
      %1163 = vmatpush1.msra.mxu0 %v538
      %1164 = vmatprep.subr.mxu0 0.0
      %1165 = vmatpush1.msra.mxu0 %v539
      %1166 = vmatprep.subr.mxu0 0.0
      %1167 = vmatpush1.msra.mxu0 %v540
      %1168 = vmatprep.subr.mxu0 0.0
      %1169 = vmatpush1.msra.mxu0 %v541
      %1170 = vmatprep.subr.mxu0 0.0
      %1171 = vmatpush1.msra.mxu0 %v542
      %1172 = vmatprep.subr.mxu0 0.0
      %1173 = vmatpush1.msra.mxu0 %v543
      %1174 = vmatprep.subr.mxu0 0.0
      %1175 = vmatpush1.msra.mxu0 %v544
      %1176 = vmatprep.subr.mxu0 0.0
      %1177 = vmatpush1.msra.mxu0 %v545
      %1178 = vmatprep.subr.mxu0 0.0
      %1179 = vmatpush1.msra.mxu0 %v546
      %1180 = vmatprep.subr.mxu0 0.0
      %1181 = vmatpush1.msra.mxu0 %v547
      %1182 = vmatprep.subr.mxu0 0.0
      %1183 = vmatpush1.msra.mxu0 %v548
      %1184 = vmatprep.subr.mxu0 0.0
      %1185 = vmatpush1.msra.mxu0 %v549
      %1186 = vmatprep.subr.mxu0 0.0
      %1187 = vmatpush1.msra.mxu0 %v550
      %1188 = vmatprep.subr.mxu0 0.0
      %1189 = vmatpush1.msra.mxu0 %v551
      %1190 = vmatprep.subr.mxu0 0.0
      %1191 = vmatpush1.msra.mxu0 %v755
      %1192 = vmatprep.subr.mxu0 0.0
      %1193 = vmatpush1.msra.mxu0 0.0
      %1194 = vmatprep.subr.mxu0 0.0
      %1195 = vmatpush1.msra.mxu0 0.0
      %1196 = vmatprep.subr.mxu0 0.0
      %1197 = vmatpush1.msra.mxu0 0.0
      %1198 = vmatprep.subr.mxu0 0.0
      %1199 = vmatpush1.msra.mxu0 0.0
      %1200 = vmatprep.subr.mxu0 0.0
      %1201 = vmatpush1.msra.mxu0 0.0
      %1202 = vmatprep.subr.mxu0 0.0
      %1203 = vmatpush1.msra.mxu0 0.0
      %1204 = vmatprep.subr.mxu0 0.0
      %1205 = vmatpush1.msra.mxu0 0.0
      %1206 = vmatprep.mubr.f32.mxu0 %v562
      %1207 = vmatmul.mubr.f32.gmra.mrb[0].mxu0 %v242
      %v1208 = vpop.f32.mrb[0].mxu0
      %v1209 = vadd.f32 %v824, %v1208
      %v1210 = vpop.f32.mrb[0].mxu0
      %1211 = vmatprep.mubr.f32.mxu0 %v565
      %1212 = vmatmul.mubr.f32.gmra.mrb[0].mxu0 %v246
      %v1213 = vpop.f32.mrb[0].mxu0
      %v1214 = vadd.f32 %v829, %v1213
      %v1215 = vpop.f32.mrb[0].mxu0
      %1216 = vmatprep.mubr.f32.mxu0 %v568
      %1217 = vmatmul.mubr.f32.gmra.mrb[0].mxu0 %v250
      %v1218 = vpop.f32.mrb[0].mxu0
      %v1219 = vadd.f32 %v834, %v1218
      %v1220 = vpop.f32.mrb[0].mxu0
      %1221 = vmatprep.mubr.f32.mxu0 %v571
      %1222 = vmatmul.mubr.f32.gmra.mrb[0].mxu0 %v254
      %v1223 = vpop.f32.mrb[0].mxu0
      %v1224 = vadd.f32 %v839, %v1223
      %v1225 = vpop.f32.mrb[0].mxu0
      %1226 = vmatprep.mubr.f32.mxu0 %v574
      %1227 = vmatmul.mubr.f32.gmra.mrb[0].mxu0 %v258
      %v1228 = vpop.f32.mrb[0].mxu0
      %v1229 = vadd.f32 %v844, %v1228
      %v1230 = vpop.f32.mrb[0].mxu0
      %1231 = vmatprep.mubr.f32.mxu0 %v577
      %1232 = vmatmul.mubr.f32.gmra.mrb[0].mxu0 %v262
      %v1233 = vpop.f32.mrb[0].mxu0
      %v1234 = vadd.f32 %v849, %v1233
      %v1235 = vpop.f32.mrb[0].mxu0
      %1236 = vmatprep.mubr.f32.mxu0 %v580
      %1237 = vmatmul.mubr.f32.gmra.mrb[0].mxu0 %v266
      %v1238 = vpop.f32.mrb[0].mxu0
      %v1239 = vadd.f32 %v854, %v1238
      %v1240 = vpop.f32.mrb[0].mxu0
      %1241 = vmatprep.mubr.f32.mxu0 %v583
      %1242 = vmatmul.mubr.f32.gmra.mrb[0].mxu0 %v270
      %v1243 = vpop.f32.mrb[0].mxu0
      %v1244 = vadd.f32 %v859, %v1243
      %v1245 = vpop.f32.mrb[0].mxu0
      %1246 = vmatprep.mubr.f32.mxu0 %v586
      %1247 = vmatmul.mubr.f32.gmra.mrb[0].mxu0 %v274
      %v1248 = vpop.f32.mrb[0].mxu0
      %v1249 = vadd.f32 %v864, %v1248
      %v1250 = vpop.f32.mrb[0].mxu0
      %1251 = vmatprep.mubr.f32.mxu0 %v589
      %1252 = vmatmul.mubr.f32.gmra.mrb[0].mxu0 %v278
      %v1253 = vpop.f32.mrb[0].mxu0
      %v1254 = vadd.f32 %v869, %v1253
      %v1255 = vpop.f32.mrb[0].mxu0
      %1256 = vmatprep.mubr.f32.mxu0 %v592
      %1257 = vmatmul.mubr.f32.gmra.mrb[0].mxu0 %v282
      %v1258 = vpop.f32.mrb[0].mxu0
      %v1259 = vadd.f32 %v874, %v1258
      %v1260 = vpop.f32.mrb[0].mxu0
      %1261 = vmatprep.mubr.f32.mxu0 %v595
      %1262 = vmatmul.mubr.f32.gmra.mrb[0].mxu0 %v286
      %v1263 = vpop.f32.mrb[0].mxu0
      %v1264 = vadd.f32 %v879, %v1263
      %v1265 = vpop.f32.mrb[0].mxu0
      %1266 = vmatprep.mubr.f32.mxu0 %v598
      %1267 = vmatmul.mubr.f32.gmra.mrb[0].mxu0 %v290
      %v1268 = vpop.f32.mrb[0].mxu0
      %v1269 = vadd.f32 %v884, %v1268
      %v1270 = vpop.f32.mrb[0].mxu0
      %1271 = vmatprep.mubr.f32.mxu0 %v601
      %1272 = vmatmul.mubr.f32.gmra.mrb[0].mxu0 %v294
      %v1273 = vpop.f32.mrb[0].mxu0
      %v1274 = vadd.f32 %v889, %v1273
      %v1275 = vpop.f32.mrb[0].mxu0
      %1276 = vmatprep.mubr.f32.mxu0 %v604
      %1277 = vmatmul.mubr.f32.gmra.mrb[0].mxu0 %v298
      %v1278 = vpop.f32.mrb[0].mxu0
      %v1279 = vadd.f32 %v894, %v1278
      %v1280 = vpop.f32.mrb[0].mxu0
      %1281 = vmatprep.mubr.f32.mxu0 %v607
      %1282 = vmatmul.mubr.f32.gmra.mrb[0].mxu0 %v302
      %v1283 = vpop.f32.mrb[0].mxu0
      %v1284 = vadd.f32 %v899, %v1283
      %v1285 = vpop.f32.mrb[0].mxu0
      %1286 = vmatprep.mubr.f32.mxu0 %v610
      %1287 = vmatmul.mubr.f32.gmra.mrb[0].mxu0 %v306
      %v1288 = vpop.f32.mrb[0].mxu0
      %v1289 = vadd.f32 %v904, %v1288
      %v1290 = vpop.f32.mrb[0].mxu0
      %1291 = vmatprep.mubr.f32.mxu0 %v613
      %1292 = vmatmul.mubr.f32.gmra.mrb[0].mxu0 %v310
      %v1293 = vpop.f32.mrb[0].mxu0
      %v1294 = vadd.f32 %v909, %v1293
      %v1295 = vpop.f32.mrb[0].mxu0
      %1296 = vmatprep.mubr.f32.mxu0 %v616
      %1297 = vmatmul.mubr.f32.gmra.mrb[0].mxu0 %v314
      %v1298 = vpop.f32.mrb[0].mxu0
      %v1299 = vadd.f32 %v914, %v1298
      %v1300 = vpop.f32.mrb[0].mxu0
      %1301 = vmatprep.mubr.f32.mxu0 %v619
      %1302 = vmatmul.mubr.f32.gmra.mrb[0].mxu0 %v318
      %v1303 = vpop.f32.mrb[0].mxu0
      %v1304 = vadd.f32 %v919, %v1303
      %v1305 = vpop.f32.mrb[0].mxu0
      %1306 = vmatprep.mubr.f32.mxu0 %v622
      %1307 = vmatmul.mubr.f32.gmra.mrb[0].mxu0 %v322
      %v1308 = vpop.f32.mrb[0].mxu0
      %v1309 = vadd.f32 %v924, %v1308
      %v1310 = vpop.f32.mrb[0].mxu0
      %1311 = vmatprep.mubr.f32.mxu0 %v625
      %1312 = vmatmul.mubr.f32.gmra.mrb[0].mxu0 %v326
      %v1313 = vpop.f32.mrb[0].mxu0
      %v1314 = vadd.f32 %v929, %v1313
      %v1315 = vpop.f32.mrb[0].mxu0
      %1316 = vmatprep.mubr.f32.mxu0 %v628
      %1317 = vmatmul.mubr.f32.gmra.mrb[0].mxu0 %v330
      %v1318 = vpop.f32.mrb[0].mxu0
      %v1319 = vadd.f32 %v934, %v1318
      %v1320 = vpop.f32.mrb[0].mxu0
      %1321 = vmatprep.mubr.f32.mxu0 %v631
      %1322 = vmatmul.mubr.f32.gmra.mrb[0].mxu0 %v334
      %v1323 = vpop.f32.mrb[0].mxu0
      %v1324 = vadd.f32 %v939, %v1323
      %v1325 = vpop.f32.mrb[0].mxu0
      %1326 = vmatprep.mubr.f32.mxu0 %v634
      %1327 = vmatmul.mubr.f32.gmra.mrb[0].mxu0 %v338
      %v1328 = vpop.f32.mrb[0].mxu0
      %v1329 = vadd.f32 %v944, %v1328
      %v1330 = vpop.f32.mrb[0].mxu0
      %1331 = vmatprep.mubr.f32.mxu0 %v637
      %1332 = vmatmul.mubr.f32.gmra.mrb[0].mxu0 %v342
      %v1333 = vpop.f32.mrb[0].mxu0
      %v1334 = vadd.f32 %v949, %v1333
      %v1335 = vpop.f32.mrb[0].mxu0
      %1336 = vmatprep.mubr.f32.mxu0 %v640
      %1337 = vmatmul.mubr.f32.gmra.mrb[0].mxu0 %v346
      %v1338 = vpop.f32.mrb[0].mxu0
      %v1339 = vadd.f32 %v954, %v1338
      %v1340 = vpop.f32.mrb[0].mxu0
      %1341 = vmatprep.mubr.f32.mxu0 %v643
      %1342 = vmatmul.mubr.f32.gmra.mrb[0].mxu0 %v350
      %v1343 = vpop.f32.mrb[0].mxu0
      %v1344 = vadd.f32 %v959, %v1343
      %v1345 = vpop.f32.mrb[0].mxu0
      %1346 = vmatprep.mubr.f32.mxu0 %v646
      %1347 = vmatmul.mubr.f32.gmra.mrb[0].mxu0 %v354
      %v1348 = vpop.f32.mrb[0].mxu0
      %v1349 = vadd.f32 %v964, %v1348
      %v1350 = vpop.f32.mrb[0].mxu0
      %1351 = vmatprep.mubr.f32.mxu0 %v649
      %1352 = vmatmul.mubr.f32.gmra.mrb[0].mxu0 %v358
      %v1353 = vpop.f32.mrb[0].mxu0
      %v1354 = vadd.f32 %v969, %v1353
      %v1355 = vpop.f32.mrb[0].mxu0
      %1356 = vmatprep.mubr.f32.mxu0 %v652
      %1357 = vmatmul.mubr.f32.gmra.mrb[0].mxu0 %v362
      %v1358 = vpop.f32.mrb[0].mxu0
      %v1359 = vadd.f32 %v974, %v1358
      %v1360 = vpop.f32.mrb[0].mxu0
      %1361 = vmatprep.mubr.f32.mxu0 %v655
      %1362 = vmatmul.mubr.f32.gmra.mrb[0].mxu0 %v366
      %v1363 = vpop.f32.mrb[0].mxu0
      %v1364 = vadd.f32 %v979, %v1363
      %v1365 = vpop.f32.mrb[0].mxu0
      %1366 = vmatprep.mubr.f32.mxu0 %v658
      %1367 = vmatmul.mubr.f32.gmra.mrb[0].mxu0 %v370
      %v1368 = vpop.f32.mrb[0].mxu0
      %v1369 = vadd.f32 %v984, %v1368
      %v1370 = vpop.f32.mrb[0].mxu0
      %1371 = vmatprep.mubr.f32.mxu0 %v661
      %1372 = vmatmul.mubr.f32.gmra.mrb[0].mxu0 %v374
      %v1373 = vpop.f32.mrb[0].mxu0
      %v1374 = vadd.f32 %v989, %v1373
      %v1375 = vpop.f32.mrb[0].mxu0
      %1376 = vmatprep.mubr.f32.mxu0 %v664
      %1377 = vmatmul.mubr.f32.gmra.mrb[0].mxu0 %v378
      %v1378 = vpop.f32.mrb[0].mxu0
      %v1379 = vadd.f32 %v994, %v1378
      %v1380 = vpop.f32.mrb[0].mxu0
      %1381 = vmatprep.mubr.f32.mxu0 %v667
      %1382 = vmatmul.mubr.f32.gmra.mrb[0].mxu0 %v382
      %v1383 = vpop.f32.mrb[0].mxu0
      %v1384 = vadd.f32 %v999, %v1383
      %v1385 = vpop.f32.mrb[0].mxu0
      %1386 = vmatprep.mubr.f32.mxu0 %v670
      %1387 = vmatmul.mubr.f32.gmra.mrb[0].mxu0 %v386
      %v1388 = vpop.f32.mrb[0].mxu0
      %v1389 = vadd.f32 %v1004, %v1388
      %v1390 = vpop.f32.mrb[0].mxu0
      %1391 = vmatprep.mubr.f32.mxu0 %v673
      %1392 = vmatmul.mubr.f32.gmra.mrb[0].mxu0 %v390
      %v1393 = vpop.f32.mrb[0].mxu0
      %v1394 = vadd.f32 %v1009, %v1393
      %v1395 = vpop.f32.mrb[0].mxu0
      %1396 = vmatprep.mubr.f32.mxu0 %v676
      %1397 = vmatmul.mubr.f32.gmra.mrb[0].mxu0 %v394
      %v1398 = vpop.f32.mrb[0].mxu0
      %v1399 = vadd.f32 %v1014, %v1398
      %v1400 = vpop.f32.mrb[0].mxu0
      %1401 = vmatprep.mubr.f32.mxu0 %v679
      %1402 = vmatmul.mubr.f32.gmra.mrb[0].mxu0 %v398
      %v1403 = vpop.f32.mrb[0].mxu0
      %v1404 = vadd.f32 %v1019, %v1403
      %v1405 = vpop.f32.mrb[0].mxu0
      %1406 = vmatprep.mubr.f32.mxu0 %v682
      %1407 = vmatmul.mubr.f32.gmra.mrb[0].mxu0 %v402
      %v1408 = vpop.f32.mrb[0].mxu0
      %v1409 = vadd.f32 %v1024, %v1408
      %v1410 = vpop.f32.mrb[0].mxu0
      %1411 = vmatprep.mubr.f32.mxu0 %v685
      %1412 = vmatmul.mubr.f32.gmra.mrb[0].mxu0 %v406
      %v1413 = vpop.f32.mrb[0].mxu0
      %v1414 = vadd.f32 %v1029, %v1413
      %v1415 = vpop.f32.mrb[0].mxu0
      %1416 = vmatprep.mubr.f32.mxu0 %v688
      %1417 = vmatmul.mubr.f32.gmra.mrb[0].mxu0 %v410
      %v1418 = vpop.f32.mrb[0].mxu0
      %v1419 = vadd.f32 %v1034, %v1418
      %v1420 = vpop.f32.mrb[0].mxu0
      %1421 = vmatprep.mubr.f32.mxu0 %v691
      %1422 = vmatmul.mubr.f32.gmra.mrb[0].mxu0 %v414
      %v1423 = vpop.f32.mrb[0].mxu0
      %v1424 = vadd.f32 %v1039, %v1423
      %v1425 = vpop.f32.mrb[0].mxu0
      %1426 = vmatprep.mubr.f32.mxu0 %v694
      %1427 = vmatmul.mubr.f32.gmra.mrb[0].mxu0 %v418
      %v1428 = vpop.f32.mrb[0].mxu0
      %v1429 = vadd.f32 %v1044, %v1428
      %v1430 = vpop.f32.mrb[0].mxu0
      %1431 = vmatprep.mubr.f32.mxu0 %v697
      %1432 = vmatmul.mubr.f32.gmra.mrb[0].mxu0 %v422
      %v1433 = vpop.f32.mrb[0].mxu0
      %v1434 = vadd.f32 %v1049, %v1433
      %v1435 = vpop.f32.mrb[0].mxu0
      %1436 = vmatprep.mubr.f32.mxu0 %v700
      %1437 = vmatmul.mubr.f32.gmra.mrb[0].mxu0 %v426
      %v1438 = vpop.f32.mrb[0].mxu0
      %v1439 = vadd.f32 %v1054, %v1438
      %v1440 = vpop.f32.mrb[0].mxu0
      %1441 = vmatprep.mubr.f32.mxu0 %v703
      %1442 = vmatmul.mubr.f32.gmra.mrb[0].mxu0 %v430
      %v1443 = vpop.f32.mrb[0].mxu0
      %v1444 = vadd.f32 %v1059, %v1443
      %v1445 = vpop.f32.mrb[0].mxu0
      %1446 = vmatprep.mubr.f32.mxu0 %v706
      %1447 = vmatmul.mubr.f32.gmra.mrb[0].mxu0 %v434
      %v1448 = vpop.f32.mrb[0].mxu0
      %v1449 = vadd.f32 %v1064, %v1448
      %v1450 = vpop.f32.mrb[0].mxu0
      %1451 = vmatprep.mubr.f32.mxu0 %v709
      %1452 = vmatmul.mubr.f32.gmra.mrb[0].mxu0 %v438
      %v1453 = vpop.f32.mrb[0].mxu0
      %v1454 = vadd.f32 %v1069, %v1453
      %v1455 = vpop.f32.mrb[0].mxu0
      %1456 = vmatprep.mubr.f32.mxu0 %v712
      %1457 = vmatmul.mubr.f32.gmra.mrb[0].mxu0 %v442
      %v1458 = vpop.f32.mrb[0].mxu0
      %v1459 = vadd.f32 %v1074, %v1458
      %v1460 = vpop.f32.mrb[0].mxu0
      %1461 = vmatprep.mubr.f32.mxu0 %v715
      %1462 = vmatmul.mubr.f32.gmra.mrb[0].mxu0 %v446
      %v1463 = vpop.f32.mrb[0].mxu0
      %v1464 = vadd.f32 %v1079, %v1463
      %v1465 = vpop.f32.mrb[0].mxu0
      %1466 = vmatprep.mubr.f32.mxu0 %v718
      %1467 = vmatmul.mubr.f32.gmra.mrb[0].mxu0 %v450
      %v1468 = vpop.f32.mrb[0].mxu0
      %v1469 = vadd.f32 %v1084, %v1468
      %v1470 = vpop.f32.mrb[0].mxu0
      %1471 = vmatprep.mubr.f32.mxu0 %v721
      %1472 = vmatmul.mubr.f32.gmra.mrb[0].mxu0 %v454
      %v1473 = vpop.f32.mrb[0].mxu0
      %v1474 = vadd.f32 %v1089, %v1473
      %v1475 = vpop.f32.mrb[0].mxu0
      %1476 = vmatprep.mubr.f32.mxu0 %v724
      %1477 = vmatmul.mubr.f32.gmra.mrb[0].mxu0 %v458
      %v1478 = vpop.f32.mrb[0].mxu0
      %v1479 = vadd.f32 %v1094, %v1478
      %v1480 = vpop.f32.mrb[0].mxu0
      %1481 = vmatprep.mubr.f32.mxu0 %v727
      %1482 = vmatmul.mubr.f32.gmra.mrb[0].mxu0 %v462
      %v1483 = vpop.f32.mrb[0].mxu0
      %v1484 = vadd.f32 %v1099, %v1483
      %v1485 = vpop.f32.mrb[0].mxu0
      %1486 = vmatprep.mubr.f32.mxu0 %v730
      %1487 = vmatmul.mubr.f32.gmra.mrb[0].mxu0 %v466
      %v1488 = vpop.f32.mrb[0].mxu0
      %v1489 = vadd.f32 %v1104, %v1488
      %v1490 = vpop.f32.mrb[0].mxu0
      %1491 = vmatprep.mubr.f32.mxu0 %v733
      %1492 = vmatmul.mubr.f32.gmra.mrb[0].mxu0 %v470
      %v1493 = vpop.f32.mrb[0].mxu0
      %v1494 = vadd.f32 %v1109, %v1493
      %v1495 = vpop.f32.mrb[0].mxu0
      %1496 = vmatprep.mubr.f32.mxu0 %v736
      %1497 = vmatmul.mubr.f32.gmra.mrb[0].mxu0 %v474
      %v1498 = vpop.f32.mrb[0].mxu0
      %v1499 = vadd.f32 %v1114, %v1498
      %v1500 = vpop.f32.mrb[0].mxu0
      %1501 = vmatprep.mubr.f32.mxu0 %v739
      %1502 = vmatmul.mubr.f32.gmra.mrb[0].mxu0 %v478
      %v1503 = vpop.f32.mrb[0].mxu0
      %v1504 = vadd.f32 %v1119, %v1503
      %v1505 = vpop.f32.mrb[0].mxu0
      %1506 = vmatprep.mubr.f32.mxu0 %v742
      %1507 = vmatmul.mubr.f32.gmra.mrb[0].mxu0 %v482
      %v1508 = vpop.f32.mrb[0].mxu0
      %v1509 = vadd.f32 %v1124, %v1508
      %v1510 = vpop.f32.mrb[0].mxu0
      %1511 = vmatprep.mubr.f32.mxu0 %v745
      %1512 = vmatmul.mubr.f32.gmra.mrb[0].mxu0 %v486
      %v1513 = vpop.f32.mrb[0].mxu0
      %v1514 = vadd.f32 %v1129, %v1513
      %v1515 = vpop.f32.mrb[0].mxu0
      %1516 = vmatprep.mubr.f32.mxu0 %v748
      %1517 = vmatmul.mubr.f32.gmra.mrb[0].mxu0 %v490
      %v1518 = vpop.f32.mrb[0].mxu0
      %v1519 = vadd.f32 %v1134, %v1518
      %v1520 = vpop.f32.mrb[0].mxu0
      %1521 = vmatprep.mubr.f32.mxu0 %v751
      %1522 = vmatmul.mubr.f32.gmra.mrb[0].mxu0 %v494
      %v1523 = vpop.f32.mrb[0].mxu0
      %v1524 = vadd.f32 %v1139, %v1523
      %v1525 = vpop.f32.mrb[0].mxu0
      %1526 = vdwg.mxu0
      %s1527 = smul.u32 %s16, 512
      %s1528 = scalar_lea.vmem [#allocation2], %s1527
      %vm1529 = vcmask 261120
      %1530 = vst.msk [vmem:[%s1528] sm:$0xff] %vm1529, %v1209
      %1531 = vst.msk [vmem:[%s1528 + $0x8] sm:$0xff] %vm1529, %v1214
      %1532 = vst.msk [vmem:[%s1528 + $0x10] sm:$0xff] %vm1529, %v1219
      %1533 = vst.msk [vmem:[%s1528 + $0x18] sm:$0xff] %vm1529, %v1224
      %1534 = vst.msk [vmem:[%s1528 + $0x20] sm:$0xff] %vm1529, %v1229
      %1535 = vst.msk [vmem:[%s1528 + $0x28] sm:$0xff] %vm1529, %v1234
      %1536 = vst.msk [vmem:[%s1528 + $0x30] sm:$0xff] %vm1529, %v1239
      %1537 = vst.msk [vmem:[%s1528 + $0x38] sm:$0xff] %vm1529, %v1244
      %1538 = vst.msk [vmem:[%s1528 + $0x40] sm:$0xff] %vm1529, %v1249
      %1539 = vst.msk [vmem:[%s1528 + $0x48] sm:$0xff] %vm1529, %v1254
      %1540 = vst.msk [vmem:[%s1528 + $0x50] sm:$0xff] %vm1529, %v1259
      %1541 = vst.msk [vmem:[%s1528 + $0x58] sm:$0xff] %vm1529, %v1264
      %1542 = vst.msk [vmem:[%s1528 + $0x60] sm:$0xff] %vm1529, %v1269
      %1543 = vst.msk [vmem:[%s1528 + $0x68] sm:$0xff] %vm1529, %v1274
      %1544 = vst.msk [vmem:[%s1528 + $0x70] sm:$0xff] %vm1529, %v1279
      %1545 = vst.msk [vmem:[%s1528 + $0x78] sm:$0xff] %vm1529, %v1284
      %1546 = vst.msk [vmem:[%s1528 + $0x80] sm:$0xff] %vm1529, %v1289
      %1547 = vst.msk [vmem:[%s1528 + $0x88] sm:$0xff] %vm1529, %v1294
      %1548 = vst.msk [vmem:[%s1528 + $0x90] sm:$0xff] %vm1529, %v1299
      %1549 = vst.msk [vmem:[%s1528 + $0x98] sm:$0xff] %vm1529, %v1304
      %1550 = vst.msk [vmem:[%s1528 + $0xa0] sm:$0xff] %vm1529, %v1309
      %1551 = vst.msk [vmem:[%s1528 + $0xa8] sm:$0xff] %vm1529, %v1314
      %1552 = vst.msk [vmem:[%s1528 + $0xb0] sm:$0xff] %vm1529, %v1319
      %1553 = vst.msk [vmem:[%s1528 + $0xb8] sm:$0xff] %vm1529, %v1324
      %1554 = vst.msk [vmem:[%s1528 + $0xc0] sm:$0xff] %vm1529, %v1329
      %1555 = vst.msk [vmem:[%s1528 + $0xc8] sm:$0xff] %vm1529, %v1334
      %1556 = vst.msk [vmem:[%s1528 + $0xd0] sm:$0xff] %vm1529, %v1339
      %1557 = vst.msk [vmem:[%s1528 + $0xd8] sm:$0xff] %vm1529, %v1344
      %1558 = vst.msk [vmem:[%s1528 + $0xe0] sm:$0xff] %vm1529, %v1349
      %1559 = vst.msk [vmem:[%s1528 + $0xe8] sm:$0xff] %vm1529, %v1354
      %1560 = vst.msk [vmem:[%s1528 + $0xf0] sm:$0xff] %vm1529, %v1359
      %1561 = vst.msk [vmem:[%s1528 + $0xf8] sm:$0xff] %vm1529, %v1364
      %1562 = vst.msk [vmem:[%s1528 + $0x100] sm:$0xff] %vm1529, %v1369
      %1563 = vst.msk [vmem:[%s1528 + $0x108] sm:$0xff] %vm1529, %v1374
      %1564 = vst.msk [vmem:[%s1528 + $0x110] sm:$0xff] %vm1529, %v1379
      %1565 = vst.msk [vmem:[%s1528 + $0x118] sm:$0xff] %vm1529, %v1384
      %1566 = vst.msk [vmem:[%s1528 + $0x120] sm:$0xff] %vm1529, %v1389
      %1567 = vst.msk [vmem:[%s1528 + $0x128] sm:$0xff] %vm1529, %v1394
      %1568 = vst.msk [vmem:[%s1528 + $0x130] sm:$0xff] %vm1529, %v1399
      %1569 = vst.msk [vmem:[%s1528 + $0x138] sm:$0xff] %vm1529, %v1404
      %1570 = vst.msk [vmem:[%s1528 + $0x140] sm:$0xff] %vm1529, %v1409
      %1571 = vst.msk [vmem:[%s1528 + $0x148] sm:$0xff] %vm1529, %v1414
      %1572 = vst.msk [vmem:[%s1528 + $0x150] sm:$0xff] %vm1529, %v1419
      %1573 = vst.msk [vmem:[%s1528 + $0x158] sm:$0xff] %vm1529, %v1424
      %1574 = vst.msk [vmem:[%s1528 + $0x160] sm:$0xff] %vm1529, %v1429
      %1575 = vst.msk [vmem:[%s1528 + $0x168] sm:$0xff] %vm1529, %v1434
      %1576 = vst.msk [vmem:[%s1528 + $0x170] sm:$0xff] %vm1529, %v1439
      %1577 = vst.msk [vmem:[%s1528 + $0x178] sm:$0xff] %vm1529, %v1444
      %1578 = vst.msk [vmem:[%s1528 + $0x180] sm:$0xff] %vm1529, %v1449
      %1579 = vst.msk [vmem:[%s1528 + $0x188] sm:$0xff] %vm1529, %v1454
      %1580 = vst.msk [vmem:[%s1528 + $0x190] sm:$0xff] %vm1529, %v1459
      %1581 = vst.msk [vmem:[%s1528 + $0x198] sm:$0xff] %vm1529, %v1464
      %1582 = vst.msk [vmem:[%s1528 + $0x1a0] sm:$0xff] %vm1529, %v1469
      %1583 = vst.msk [vmem:[%s1528 + $0x1a8] sm:$0xff] %vm1529, %v1474
      %1584 = vst.msk [vmem:[%s1528 + $0x1b0] sm:$0xff] %vm1529, %v1479
      %1585 = vst.msk [vmem:[%s1528 + $0x1b8] sm:$0xff] %vm1529, %v1484
      %1586 = vst.msk [vmem:[%s1528 + $0x1c0] sm:$0xff] %vm1529, %v1489
      %1587 = vst.msk [vmem:[%s1528 + $0x1c8] sm:$0xff] %vm1529, %v1494
      %1588 = vst.msk [vmem:[%s1528 + $0x1d0] sm:$0xff] %vm1529, %v1499
      %1589 = vst.msk [vmem:[%s1528 + $0x1d8] sm:$0xff] %vm1529, %v1504
      %1590 = vst.msk [vmem:[%s1528 + $0x1e0] sm:$0xff] %vm1529, %v1509
      %1591 = vst.msk [vmem:[%s1528 + $0x1e8] sm:$0xff] %vm1529, %v1514
      %1592 = vst.msk [vmem:[%s1528 + $0x1f0] sm:$0xff] %vm1529, %v1519
      %1593 = vst.msk [vmem:[%s1528 + $0x1f8] sm:$0xff] %vm1529, %v1524
      %p1594 = scmp.eq.s32.totalorder %s16, 1
      // Predicated region
      $region41: #{audio_encoder_forward.6} parent=39 // pred_check
        %p1595 = pneg %p1594
      $region42: #{audio_encoder_forward.6} parent=39 // pred_check_branch
        %1597 = sbr.rel (%p1595) target = $region44
      $region43: #{audio_encoder_forward.6} parent=39 // pred_region
        %v1598 = vld [vmem:[#allocation2] sm:$0xff]
        %v1599 = vld [vmem:[#allocation2 + $0x8] sm:$0xff]
        %v1600 = vld [vmem:[#allocation2 + $0x10] sm:$0xff]
        %v1601 = vld [vmem:[#allocation2 + $0x18] sm:$0xff]
        %v1602 = vld [vmem:[#allocation2 + $0x20] sm:$0xff]
        %v1603 = vld [vmem:[#allocation2 + $0x28] sm:$0xff]
        %v1604 = vld [vmem:[#allocation2 + $0x30] sm:$0xff]
        %v1605 = vld [vmem:[#allocation2 + $0x38] sm:$0xff]
        %v1606 = vld [vmem:[#allocation2 + $0x40] sm:$0xff]
        %v1607 = vld [vmem:[#allocation2 + $0x48] sm:$0xff]
        %v1608 = vld [vmem:[#allocation2 + $0x50] sm:$0xff]
        %v1609 = vld [vmem:[#allocation2 + $0x58] sm:$0xff]
        %v1610 = vld [vmem:[#allocation2 + $0x60] sm:$0xff]
        %v1611 = vld [vmem:[#allocation2 + $0x68] sm:$0xff]
        %v1612 = vld [vmem:[#allocation2 + $0x70] sm:$0xff]
        %v1613 = vld [vmem:[#allocation2 + $0x78] sm:$0xff]
        %v1614 = vld [vmem:[#allocation2 + $0x80] sm:$0xff]
        %v1615 = vld [vmem:[#allocation2 + $0x88] sm:$0xff]
        %v1616 = vld [vmem:[#allocation2 + $0x90] sm:$0xff]
        %v1617 = vld [vmem:[#allocation2 + $0x98] sm:$0xff]
        %v1618 = vld [vmem:[#allocation2 + $0xa0] sm:$0xff]
        %v1619 = vld [vmem:[#allocation2 + $0xa8] sm:$0xff]
        %v1620 = vld [vmem:[#allocation2 + $0xb0] sm:$0xff]
        %v1621 = vld [vmem:[#allocation2 + $0xb8] sm:$0xff]
        %v1622 = vld [vmem:[#allocation2 + $0xc0] sm:$0xff]
        %v1623 = vld [vmem:[#allocation2 + $0xc8] sm:$0xff]
        %v1624 = vld [vmem:[#allocation2 + $0xd0] sm:$0xff]
        %v1625 = vld [vmem:[#allocation2 + $0xd8] sm:$0xff]
        %v1626 = vld [vmem:[#allocation2 + $0xe0] sm:$0xff]
        %v1627 = vld [vmem:[#allocation2 + $0xe8] sm:$0xff]
        %v1628 = vld [vmem:[#allocation2 + $0xf0] sm:$0xff]
        %v1629 = vld [vmem:[#allocation2 + $0xf8] sm:$0xff]
        %v1630 = vld [vmem:[#allocation2 + $0x100] sm:$0xff]
        %v1631 = vld [vmem:[#allocation2 + $0x108] sm:$0xff]
        %v1632 = vld [vmem:[#allocation2 + $0x110] sm:$0xff]
        %v1633 = vld [vmem:[#allocation2 + $0x118] sm:$0xff]
        %v1634 = vld [vmem:[#allocation2 + $0x120] sm:$0xff]
        %v1635 = vld [vmem:[#allocation2 + $0x128] sm:$0xff]
        %v1636 = vld [vmem:[#allocation2 + $0x130] sm:$0xff]
        %v1637 = vld [vmem:[#allocation2 + $0x138] sm:$0xff]
        %v1638 = vld [vmem:[#allocation2 + $0x140] sm:$0xff]
        %v1639 = vld [vmem:[#allocation2 + $0x148] sm:$0xff]
        %v1640 = vld [vmem:[#allocation2 + $0x150] sm:$0xff]
        %v1641 = vld [vmem:[#allocation2 + $0x158] sm:$0xff]
        %v1642 = vld [vmem:[#allocation2 + $0x160] sm:$0xff]
        %v1643 = vld [vmem:[#allocation2 + $0x168] sm:$0xff]
        %v1644 = vld [vmem:[#allocation2 + $0x170] sm:$0xff]
        %v1645 = vld [vmem:[#allocation2 + $0x178] sm:$0xff]
        %v1646 = vld [vmem:[#allocation2 + $0x180] sm:$0xff]
        %v1647 = vld [vmem:[#allocation2 + $0x188] sm:$0xff]
        %v1648 = vld [vmem:[#allocation2 + $0x190] sm:$0xff]
        %v1649 = vld [vmem:[#allocation2 + $0x198] sm:$0xff]
        %v1650 = vld [vmem:[#allocation2 + $0x1a0] sm:$0xff]
        %v1651 = vld [vmem:[#allocation2 + $0x1a8] sm:$0xff]
        %v1652 = vld [vmem:[#allocation2 + $0x1b0] sm:$0xff]
        %v1653 = vld [vmem:[#allocation2 + $0x1b8] sm:$0xff]
        %v1654 = vld [vmem:[#allocation2 + $0x1c0] sm:$0xff]
        %v1655 = vld [vmem:[#allocation2 + $0x1c8] sm:$0xff]
        %v1656 = vld [vmem:[#allocation2 + $0x1d0] sm:$0xff]
        %v1657 = vld [vmem:[#allocation2 + $0x1d8] sm:$0xff]
        %v1658 = vld [vmem:[#allocation2 + $0x1e0] sm:$0xff]
        %v1659 = vld [vmem:[#allocation2 + $0x1e8] sm:$0xff]
        %v1660 = vld [vmem:[#allocation2 + $0x1f0] sm:$0xff]
        %v1661 = vld [vmem:[#allocation2 + $0x1f8] sm:$0xff]
        %v1662 = vld [vmem:[#allocation2 + $0x200] sm:$0xff]
        %v1663 = vld [vmem:[#allocation2 + $0x208] sm:$0xff]
        %v1664 = vld [vmem:[#allocation2 + $0x210] sm:$0xff]
        %v1665 = vld [vmem:[#allocation2 + $0x218] sm:$0xff]
        %v1666 = vld [vmem:[#allocation2 + $0x220] sm:$0xff]
        %v1667 = vld [vmem:[#allocation2 + $0x228] sm:$0xff]
        %v1668 = vld [vmem:[#allocation2 + $0x230] sm:$0xff]
        %v1669 = vld [vmem:[#allocation2 + $0x238] sm:$0xff]
        %v1670 = vld [vmem:[#allocation2 + $0x240] sm:$0xff]
        %v1671 = vld [vmem:[#allocation2 + $0x248] sm:$0xff]
        %v1672 = vld [vmem:[#allocation2 + $0x250] sm:$0xff]
        %v1673 = vld [vmem:[#allocation2 + $0x258] sm:$0xff]
        %v1674 = vld [vmem:[#allocation2 + $0x260] sm:$0xff]
        %v1675 = vld [vmem:[#allocation2 + $0x268] sm:$0xff]
        %v1676 = vld [vmem:[#allocation2 + $0x270] sm:$0xff]
        %v1677 = vld [vmem:[#allocation2 + $0x278] sm:$0xff]
        %v1678 = vld [vmem:[#allocation2 + $0x280] sm:$0xff]
        %v1679 = vld [vmem:[#allocation2 + $0x288] sm:$0xff]
        %v1680 = vld [vmem:[#allocation2 + $0x290] sm:$0xff]
        %v1681 = vld [vmem:[#allocation2 + $0x298] sm:$0xff]
        %v1682 = vld [vmem:[#allocation2 + $0x2a0] sm:$0xff]
        %v1683 = vld [vmem:[#allocation2 + $0x2a8] sm:$0xff]
        %v1684 = vld [vmem:[#allocation2 + $0x2b0] sm:$0xff]
        %v1685 = vld [vmem:[#allocation2 + $0x2b8] sm:$0xff]
        %v1686 = vld [vmem:[#allocation2 + $0x2c0] sm:$0xff]
        %v1687 = vld [vmem:[#allocation2 + $0x2c8] sm:$0xff]
        %v1688 = vld [vmem:[#allocation2 + $0x2d0] sm:$0xff]
        %v1689 = vld [vmem:[#allocation2 + $0x2d8] sm:$0xff]
        %v1690 = vld [vmem:[#allocation2 + $0x2e0] sm:$0xff]
        %v1691 = vld [vmem:[#allocation2 + $0x2e8] sm:$0xff]
        %v1692 = vld [vmem:[#allocation2 + $0x2f0] sm:$0xff]
        %v1693 = vld [vmem:[#allocation2 + $0x2f8] sm:$0xff]
        %v1694 = vld [vmem:[#allocation2 + $0x300] sm:$0xff]
        %v1695 = vld [vmem:[#allocation2 + $0x308] sm:$0xff]
        %v1696 = vld [vmem:[#allocation2 + $0x310] sm:$0xff]
        %v1697 = vld [vmem:[#allocation2 + $0x318] sm:$0xff]
        %v1698 = vld [vmem:[#allocation2 + $0x320] sm:$0xff]
        %v1699 = vld [vmem:[#allocation2 + $0x328] sm:$0xff]
        %v1700 = vld [vmem:[#allocation2 + $0x330] sm:$0xff]
        %v1701 = vld [vmem:[#allocation2 + $0x338] sm:$0xff]
        %v1702 = vld [vmem:[#allocation2 + $0x340] sm:$0xff]
        %v1703 = vld [vmem:[#allocation2 + $0x348] sm:$0xff]
        %v1704 = vld [vmem:[#allocation2 + $0x350] sm:$0xff]
        %v1705 = vld [vmem:[#allocation2 + $0x358] sm:$0xff]
        %v1706 = vld [vmem:[#allocation2 + $0x360] sm:$0xff]
        %v1707 = vld [vmem:[#allocation2 + $0x368] sm:$0xff]
        %v1708 = vld [vmem:[#allocation2 + $0x370] sm:$0xff]
        %v1709 = vld [vmem:[#allocation2 + $0x378] sm:$0xff]
        %v1710 = vld [vmem:[#allocation2 + $0x380] sm:$0xff]
        %v1711 = vld [vmem:[#allocation2 + $0x388] sm:$0xff]
        %v1712 = vld [vmem:[#allocation2 + $0x390] sm:$0xff]
        %v1713 = vld [vmem:[#allocation2 + $0x398] sm:$0xff]
        %v1714 = vld [vmem:[#allocation2 + $0x3a0] sm:$0xff]
        %v1715 = vld [vmem:[#allocation2 + $0x3a8] sm:$0xff]
        %v1716 = vld [vmem:[#allocation2 + $0x3b0] sm:$0xff]
        %v1717 = vld [vmem:[#allocation2 + $0x3b8] sm:$0xff]
        %v1718 = vld [vmem:[#allocation2 + $0x3c0] sm:$0xff]
        %v1719 = vld [vmem:[#allocation2 + $0x3c8] sm:$0xff]
        %v1720 = vld [vmem:[#allocation2 + $0x3d0] sm:$0xff]
        %v1721 = vld [vmem:[#allocation2 + $0x3d8] sm:$0xff]
        %v1722 = vld [vmem:[#allocation2 + $0x3e0] sm:$0xff]
        %v1723 = vld [vmem:[#allocation2 + $0x3e8] sm:$0xff]
        %v1724 = vld [vmem:[#allocation2 + $0x3f0] sm:$0xff]
        %v1725 = vld [vmem:[#allocation2 + $0x3f8] sm:$0xff]
        %v1726 = vlaneseq
        %v1727 = vshrl.u32 %v1726, 7
        %v1728 = vadd.s32 %v1727, 8
        %v1729 = vadd.s32 %v1727, 16
        %v1730 = vadd.s32 %v1727, 24
        %v1731 = vadd.s32 %v1727, 32
        %v1732 = vadd.s32 %v1727, 40
        %v1733 = vadd.s32 %v1727, 48
        %v1734 = vadd.s32 %v1727, 56
        %v1735 = vadd.s32 %v1727, 64
        %v1736 = vadd.s32 %v1727, 72
        %v1737 = vadd.s32 %v1727, 80
        %v1738 = vadd.s32 %v1727, 88
        %v1739 = vadd.s32 %v1727, 96
        %v1740 = vadd.s32 %v1727, 104
        %v1741 = vadd.s32 %v1727, 112
        %v1742 = vadd.s32 %v1727, 120
        %v1743 = vadd.s32 %v1727, 128
        %v1744 = vadd.s32 %v1727, 136
        %v1745 = vadd.s32 %v1727, 144
        %v1746 = vadd.s32 %v1727, 152
        %v1747 = vadd.s32 %v1727, 160
        %v1748 = vadd.s32 %v1727, 168
        %v1749 = vadd.s32 %v1727, 176
        %v1750 = vadd.s32 %v1727, 184
        %v1751 = vadd.s32 %v1727, 192
        %v1752 = vadd.s32 %v1727, 200
        %v1753 = vadd.s32 %v1727, 208
        %v1754 = vadd.s32 %v1727, 216
        %v1755 = vadd.s32 %v1727, 224
        %v1756 = vadd.s32 %v1727, 232
        %v1757 = vadd.s32 %v1727, 240
        %v1758 = vadd.s32 %v1727, 248
        %v1759 = vadd.s32 %v1727, 256
        %v1760 = vadd.s32 %v1727, 264
        %v1761 = vadd.s32 %v1727, 272
        %v1762 = vadd.s32 %v1727, 280
        %v1763 = vadd.s32 %v1727, 288
        %v1764 = vadd.s32 %v1727, 296
        %v1765 = vadd.s32 %v1727, 304
        %v1766 = vadd.s32 %v1727, 312
        %v1767 = vadd.s32 %v1727, 320
        %v1768 = vadd.s32 %v1727, 328
        %v1769 = vadd.s32 %v1727, 336
        %v1770 = vadd.s32 %v1727, 344
        %v1771 = vadd.s32 %v1727, 352
        %v1772 = vadd.s32 %v1727, 360
        %v1773 = vadd.s32 %v1727, 368
        %v1774 = vadd.s32 %v1727, 376
        %v1775 = vadd.s32 %v1727, 384
        %v1776 = vadd.s32 %v1727, 392
        %v1777 = vadd.s32 %v1727, 400
        %v1778 = vadd.s32 %v1727, 408
        %v1779 = vadd.s32 %v1727, 416
        %v1780 = vadd.s32 %v1727, 424
        %v1781 = vadd.s32 %v1727, 432
        %v1782 = vadd.s32 %v1727, 440
        %v1783 = vadd.s32 %v1727, 448
        %v1784 = vadd.s32 %v1727, 456
        %v1785 = vadd.s32 %v1727, 464
        %v1786 = vadd.s32 %v1727, 472
        %v1787 = vadd.s32 %v1727, 480
        %v1788 = vadd.s32 %v1727, 488
        %v1789 = vadd.s32 %v1727, 496
        %v1790 = vadd.s32 %v1727, 504
        %v1791 = vadd.s32 %v1727, 512
        %v1792 = vadd.s32 %v1727, 520
        %v1793 = vadd.s32 %v1727, 528
        %v1794 = vadd.s32 %v1727, 536
        %v1795 = vadd.s32 %v1727, 544
        %v1796 = vadd.s32 %v1727, 552
        %v1797 = vadd.s32 %v1727, 560
        %v1798 = vadd.s32 %v1727, 568
        %v1799 = vadd.s32 %v1727, 576
        %v1800 = vadd.s32 %v1727, 584
        %v1801 = vadd.s32 %v1727, 592
        %v1802 = vadd.s32 %v1727, 600
        %v1803 = vadd.s32 %v1727, 608
        %v1804 = vadd.s32 %v1727, 616
        %v1805 = vadd.s32 %v1727, 624
        %v1806 = vadd.s32 %v1727, 632
        %v1807 = vadd.s32 %v1727, 640
        %v1808 = vadd.s32 %v1727, 648
        %v1809 = vadd.s32 %v1727, 656
        %v1810 = vadd.s32 %v1727, 664
        %v1811 = vadd.s32 %v1727, 672
        %v1812 = vadd.s32 %v1727, 680
        %v1813 = vadd.s32 %v1727, 688
        %v1814 = vadd.s32 %v1727, 696
        %v1815 = vadd.s32 %v1727, 704
        %v1816 = vadd.s32 %v1727, 712
        %v1817 = vadd.s32 %v1727, 720
        %v1818 = vadd.s32 %v1727, 728
        %v1819 = vadd.s32 %v1727, 736
        %v1820 = vadd.s32 %v1727, 744
        %v1821 = vadd.s32 %v1727, 752
        %v1822 = vadd.s32 %v1727, 760
        %v1823 = vadd.s32 %v1727, 768
        %v1824 = vadd.s32 %v1727, 776
        %v1825 = vadd.s32 %v1727, 784
        %v1826 = vadd.s32 %v1727, 792
        %v1827 = vadd.s32 %v1727, 800
        %v1828 = vadd.s32 %v1727, 808
        %v1829 = vadd.s32 %v1727, 816
        %v1830 = vadd.s32 %v1727, 824
        %v1831 = vadd.s32 %v1727, 832
        %v1832 = vadd.s32 %v1727, 840
        %v1833 = vadd.s32 %v1727, 848
        %v1834 = vadd.s32 %v1727, 856
        %v1835 = vadd.s32 %v1727, 864
        %v1836 = vadd.s32 %v1727, 872
        %v1837 = vadd.s32 %v1727, 880
        %v1838 = vadd.s32 %v1727, 888
        %v1839 = vadd.s32 %v1727, 896
        %v1840 = vadd.s32 %v1727, 904
        %v1841 = vadd.s32 %v1727, 912
        %v1842 = vadd.s32 %v1727, 920
        %v1843 = vadd.s32 %v1727, 928
        %v1844 = vadd.s32 %v1727, 936
        %v1845 = vadd.s32 %v1727, 944
        %v1846 = vadd.s32 %v1727, 952
        %v1847 = vadd.s32 %v1727, 960
        %v1848 = vadd.s32 %v1727, 968
        %v1849 = vadd.s32 %v1727, 976
        %v1850 = vadd.s32 %v1727, 984
        %v1851 = vadd.s32 %v1727, 992
        %v1852 = vadd.s32 %v1727, 1000
        %v1853 = vadd.s32 %v1727, 1008
        %v1854 = vadd.s32 %v1727, 1016
        %vm1855 = vcmp.lt.s32.totalorder %v1727, 840
        %vm1856 = vcmp.lt.s32.totalorder %v1728, 840
        %vm1857 = vcmp.lt.s32.totalorder %v1729, 840
        %vm1858 = vcmp.lt.s32.totalorder %v1730, 840
        %vm1859 = vcmp.lt.s32.totalorder %v1731, 840
        %vm1860 = vcmp.lt.s32.totalorder %v1732, 840
        %vm1861 = vcmp.lt.s32.totalorder %v1733, 840
        %vm1862 = vcmp.lt.s32.totalorder %v1734, 840
        %vm1863 = vcmp.lt.s32.totalorder %v1735, 840
        %vm1864 = vcmp.lt.s32.totalorder %v1736, 840
        %vm1865 = vcmp.lt.s32.totalorder %v1737, 840
        %vm1866 = vcmp.lt.s32.totalorder %v1738, 840
        %vm1867 = vcmp.lt.s32.totalorder %v1739, 840
        %vm1868 = vcmp.lt.s32.totalorder %v1740, 840
        %vm1869 = vcmp.lt.s32.totalorder %v1741, 840
        %vm1870 = vcmp.lt.s32.totalorder %v1742, 840
        %vm1871 = vcmp.lt.s32.totalorder %v1743, 840
        %vm1872 = vcmp.lt.s32.totalorder %v1744, 840
        %vm1873 = vcmp.lt.s32.totalorder %v1745, 840
        %vm1874 = vcmp.lt.s32.totalorder %v1746, 840
        %vm1875 = vcmp.lt.s32.totalorder %v1747, 840
        %vm1876 = vcmp.lt.s32.totalorder %v1748, 840
        %vm1877 = vcmp.lt.s32.totalorder %v1749, 840
        %vm1878 = vcmp.lt.s32.totalorder %v1750, 840
        %vm1879 = vcmp.lt.s32.totalorder %v1751, 840
        %vm1880 = vcmp.lt.s32.totalorder %v1752, 840
        %vm1881 = vcmp.lt.s32.totalorder %v1753, 840
        %vm1882 = vcmp.lt.s32.totalorder %v1754, 840
        %vm1883 = vcmp.lt.s32.totalorder %v1755, 840
        %vm1884 = vcmp.lt.s32.totalorder %v1756, 840
        %vm1885 = vcmp.lt.s32.totalorder %v1757, 840
        %vm1886 = vcmp.lt.s32.totalorder %v1758, 840
        %vm1887 = vcmp.lt.s32.totalorder %v1759, 840
        %vm1888 = vcmp.lt.s32.totalorder %v1760, 840
        %vm1889 = vcmp.lt.s32.totalorder %v1761, 840
        %vm1890 = vcmp.lt.s32.totalorder %v1762, 840
        %vm1891 = vcmp.lt.s32.totalorder %v1763, 840
        %vm1892 = vcmp.lt.s32.totalorder %v1764, 840
        %vm1893 = vcmp.lt.s32.totalorder %v1765, 840
        %vm1894 = vcmp.lt.s32.totalorder %v1766, 840
        %vm1895 = vcmp.lt.s32.totalorder %v1767, 840
        %vm1896 = vcmp.lt.s32.totalorder %v1768, 840
        %vm1897 = vcmp.lt.s32.totalorder %v1769, 840
        %vm1898 = vcmp.lt.s32.totalorder %v1770, 840
        %vm1899 = vcmp.lt.s32.totalorder %v1771, 840
        %vm1900 = vcmp.lt.s32.totalorder %v1772, 840
        %vm1901 = vcmp.lt.s32.totalorder %v1773, 840
        %vm1902 = vcmp.lt.s32.totalorder %v1774, 840
        %vm1903 = vcmp.lt.s32.totalorder %v1775, 840
        %vm1904 = vcmp.lt.s32.totalorder %v1776, 840
        %vm1905 = vcmp.lt.s32.totalorder %v1777, 840
        %vm1906 = vcmp.lt.s32.totalorder %v1778, 840
        %vm1907 = vcmp.lt.s32.totalorder %v1779, 840
        %vm1908 = vcmp.lt.s32.totalorder %v1780, 840
        %vm1909 = vcmp.lt.s32.totalorder %v1781, 840
        %vm1910 = vcmp.lt.s32.totalorder %v1782, 840
        %vm1911 = vcmp.lt.s32.totalorder %v1783, 840
        %vm1912 = vcmp.lt.s32.totalorder %v1784, 840
        %vm1913 = vcmp.lt.s32.totalorder %v1785, 840
        %vm1914 = vcmp.lt.s32.totalorder %v1786, 840
        %vm1915 = vcmp.lt.s32.totalorder %v1787, 840
        %vm1916 = vcmp.lt.s32.totalorder %v1788, 840
        %vm1917 = vcmp.lt.s32.totalorder %v1789, 840
        %vm1918 = vcmp.lt.s32.totalorder %v1790, 840
        %vm1919 = vcmp.lt.s32.totalorder %v1791, 840
        %vm1920 = vcmp.lt.s32.totalorder %v1792, 840
        %vm1921 = vcmp.lt.s32.totalorder %v1793, 840
        %vm1922 = vcmp.lt.s32.totalorder %v1794, 840
        %vm1923 = vcmp.lt.s32.totalorder %v1795, 840
        %vm1924 = vcmp.lt.s32.totalorder %v1796, 840
        %vm1925 = vcmp.lt.s32.totalorder %v1797, 840
        %vm1926 = vcmp.lt.s32.totalorder %v1798, 840
        %vm1927 = vcmp.lt.s32.totalorder %v1799, 840
        %vm1928 = vcmp.lt.s32.totalorder %v1800, 840
        %vm1929 = vcmp.lt.s32.totalorder %v1801, 840
        %vm1930 = vcmp.lt.s32.totalorder %v1802, 840
        %vm1931 = vcmp.lt.s32.totalorder %v1803, 840
        %vm1932 = vcmp.lt.s32.totalorder %v1804, 840
        %vm1933 = vcmp.lt.s32.totalorder %v1805, 840
        %vm1934 = vcmp.lt.s32.totalorder %v1806, 840
        %vm1935 = vcmp.lt.s32.totalorder %v1807, 840
        %vm1936 = vcmp.lt.s32.totalorder %v1808, 840
        %vm1937 = vcmp.lt.s32.totalorder %v1809, 840
        %vm1938 = vcmp.lt.s32.totalorder %v1810, 840
        %vm1939 = vcmp.lt.s32.totalorder %v1811, 840
        %vm1940 = vcmp.lt.s32.totalorder %v1812, 840
        %vm1941 = vcmp.lt.s32.totalorder %v1813, 840
        %vm1942 = vcmp.lt.s32.totalorder %v1814, 840
        %vm1943 = vcmp.lt.s32.totalorder %v1815, 840
        %vm1944 = vcmp.lt.s32.totalorder %v1816, 840
        %vm1945 = vcmp.lt.s32.totalorder %v1817, 840
        %vm1946 = vcmp.lt.s32.totalorder %v1818, 840
        %vm1947 = vcmp.lt.s32.totalorder %v1819, 840
        %vm1948 = vcmp.lt.s32.totalorder %v1820, 840
        %vm1949 = vcmp.lt.s32.totalorder %v1821, 840
        %vm1950 = vcmp.lt.s32.totalorder %v1822, 840
        %vm1951 = vcmp.lt.s32.totalorder %v1823, 840
        %vm1952 = vcmp.lt.s32.totalorder %v1824, 840
        %vm1953 = vcmp.lt.s32.totalorder %v1825, 840
        %vm1954 = vcmp.lt.s32.totalorder %v1826, 840
        %vm1955 = vcmp.lt.s32.totalorder %v1827, 840
        %vm1956 = vcmp.lt.s32.totalorder %v1828, 840
        %vm1957 = vcmp.lt.s32.totalorder %v1829, 840
        %vm1958 = vcmp.lt.s32.totalorder %v1830, 840
        %vm1959 = vcmp.lt.s32.totalorder %v1831, 840
        %vm1960 = vcmp.lt.s32.totalorder %v1832, 840
        %vm1961 = vcmp.lt.s32.totalorder %v1833, 840
        %vm1962 = vcmp.lt.s32.totalorder %v1834, 840
        %vm1963 = vcmp.lt.s32.totalorder %v1835, 840
        %vm1964 = vcmp.lt.s32.totalorder %v1836, 840
        %vm1965 = vcmp.lt.s32.totalorder %v1837, 840
        %vm1966 = vcmp.lt.s32.totalorder %v1838, 840
        %vm1967 = vcmp.lt.s32.totalorder %v1839, 840
        %vm1968 = vcmp.lt.s32.totalorder %v1840, 840
        %vm1969 = vcmp.lt.s32.totalorder %v1841, 840
        %vm1970 = vcmp.lt.s32.totalorder %v1842, 840
        %vm1971 = vcmp.lt.s32.totalorder %v1843, 840
        %vm1972 = vcmp.lt.s32.totalorder %v1844, 840
        %vm1973 = vcmp.lt.s32.totalorder %v1845, 840
        %vm1974 = vcmp.lt.s32.totalorder %v1846, 840
        %vm1975 = vcmp.lt.s32.totalorder %v1847, 840
        %vm1976 = vcmp.lt.s32.totalorder %v1848, 840
        %vm1977 = vcmp.lt.s32.totalorder %v1849, 840
        %vm1978 = vcmp.lt.s32.totalorder %v1850, 840
        %vm1979 = vcmp.lt.s32.totalorder %v1851, 840
        %vm1980 = vcmp.lt.s32.totalorder %v1852, 840
        %vm1981 = vcmp.lt.s32.totalorder %v1853, 840
        %vm1982 = vcmp.lt.s32.totalorder %v1854, 840
        %v1983 = vsel %vm1855, 1, 0
        %v1984 = vsel %vm1856, 1, 0
        %v1985 = vsel %vm1857, 1, 0
        %v1986 = vsel %vm1858, 1, 0
        %v1987 = vsel %vm1859, 1, 0
        %v1988 = vsel %vm1860, 1, 0
        %v1989 = vsel %vm1861, 1, 0
        %v1990 = vsel %vm1862, 1, 0
        %v1991 = vsel %vm1863, 1, 0
        %v1992 = vsel %vm1864, 1, 0
        %v1993 = vsel %vm1865, 1, 0
        %v1994 = vsel %vm1866, 1, 0
        %v1995 = vsel %vm1867, 1, 0
        %v1996 = vsel %vm1868, 1, 0
        %v1997 = vsel %vm1869, 1, 0
        %v1998 = vsel %vm1870, 1, 0
        %v1999 = vsel %vm1871, 1, 0
        %v2000 = vsel %vm1872, 1, 0
        %v2001 = vsel %vm1873, 1, 0
        %v2002 = vsel %vm1874, 1, 0
        %v2003 = vsel %vm1875, 1, 0
        %v2004 = vsel %vm1876, 1, 0
        %v2005 = vsel %vm1877, 1, 0
        %v2006 = vsel %vm1878, 1, 0
        %v2007 = vsel %vm1879, 1, 0
        %v2008 = vsel %vm1880, 1, 0
        %v2009 = vsel %vm1881, 1, 0
        %v2010 = vsel %vm1882, 1, 0
        %v2011 = vsel %vm1883, 1, 0
        %v2012 = vsel %vm1884, 1, 0
        %v2013 = vsel %vm1885, 1, 0
        %v2014 = vsel %vm1886, 1, 0
        %v2015 = vsel %vm1887, 1, 0
        %v2016 = vsel %vm1888, 1, 0
        %v2017 = vsel %vm1889, 1, 0
        %v2018 = vsel %vm1890, 1, 0
        %v2019 = vsel %vm1891, 1, 0
        %v2020 = vsel %vm1892, 1, 0
        %v2021 = vsel %vm1893, 1, 0
        %v2022 = vsel %vm1894, 1, 0
        %v2023 = vsel %vm1895, 1, 0
        %v2024 = vsel %vm1896, 1, 0
        %v2025 = vsel %vm1897, 1, 0
        %v2026 = vsel %vm1898, 1, 0
        %v2027 = vsel %vm1899, 1, 0
        %v2028 = vsel %vm1900, 1, 0
        %v2029 = vsel %vm1901, 1, 0
        %v2030 = vsel %vm1902, 1, 0
        %v2031 = vsel %vm1903, 1, 0
        %v2032 = vsel %vm1904, 1, 0
        %v2033 = vsel %vm1905, 1, 0
        %v2034 = vsel %vm1906, 1, 0
        %v2035 = vsel %vm1907, 1, 0
        %v2036 = vsel %vm1908, 1, 0
        %v2037 = vsel %vm1909, 1, 0
        %v2038 = vsel %vm1910, 1, 0
        %v2039 = vsel %vm1911, 1, 0
        %v2040 = vsel %vm1912, 1, 0
        %v2041 = vsel %vm1913, 1, 0
        %v2042 = vsel %vm1914, 1, 0
        %v2043 = vsel %vm1915, 1, 0
        %v2044 = vsel %vm1916, 1, 0
        %v2045 = vsel %vm1917, 1, 0
        %v2046 = vsel %vm1918, 1, 0
        %v2047 = vsel %vm1919, 1, 0
        %v2048 = vsel %vm1920, 1, 0
        %v2049 = vsel %vm1921, 1, 0
        %v2050 = vsel %vm1922, 1, 0
        %v2051 = vsel %vm1923, 1, 0
        %v2052 = vsel %vm1924, 1, 0
        %v2053 = vsel %vm1925, 1, 0
        %v2054 = vsel %vm1926, 1, 0
        %v2055 = vsel %vm1927, 1, 0
        %v2056 = vsel %vm1928, 1, 0
        %v2057 = vsel %vm1929, 1, 0
        %v2058 = vsel %vm1930, 1, 0
        %v2059 = vsel %vm1931, 1, 0
        %v2060 = vsel %vm1932, 1, 0
        %v2061 = vsel %vm1933, 1, 0
        %v2062 = vsel %vm1934, 1, 0
        %v2063 = vsel %vm1935, 1, 0
        %v2064 = vsel %vm1936, 1, 0
        %v2065 = vsel %vm1937, 1, 0
        %v2066 = vsel %vm1938, 1, 0
        %v2067 = vsel %vm1939, 1, 0
        %v2068 = vsel %vm1940, 1, 0
        %v2069 = vsel %vm1941, 1, 0
        %v2070 = vsel %vm1942, 1, 0
        %v2071 = vsel %vm1943, 1, 0
        %v2072 = vsel %vm1944, 1, 0
        %v2073 = vsel %vm1945, 1, 0
        %v2074 = vsel %vm1946, 1, 0
        %v2075 = vsel %vm1947, 1, 0
        %v2076 = vsel %vm1948, 1, 0
        %v2077 = vsel %vm1949, 1, 0
        %v2078 = vsel %vm1950, 1, 0
        %v2079 = vsel %vm1951, 1, 0
        %v2080 = vsel %vm1952, 1, 0
        %v2081 = vsel %vm1953, 1, 0
        %v2082 = vsel %vm1954, 1, 0
        %v2083 = vsel %vm1955, 1, 0
        %v2084 = vsel %vm1956, 1, 0
        %v2085 = vsel %vm1957, 1, 0
        %v2086 = vsel %vm1958, 1, 0
        %v2087 = vsel %vm1959, 1, 0
        %v2088 = vsel %vm1960, 1, 0
        %v2089 = vsel %vm1961, 1, 0
        %v2090 = vsel %vm1962, 1, 0
        %v2091 = vsel %vm1963, 1, 0
        %v2092 = vsel %vm1964, 1, 0
        %v2093 = vsel %vm1965, 1, 0
        %v2094 = vsel %vm1966, 1, 0
        %v2095 = vsel %vm1967, 1, 0
        %v2096 = vsel %vm1968, 1, 0
        %v2097 = vsel %vm1969, 1, 0
        %v2098 = vsel %vm1970, 1, 0
        %v2099 = vsel %vm1971, 1, 0
        %v2100 = vsel %vm1972, 1, 0
        %v2101 = vsel %vm1973, 1, 0
        %v2102 = vsel %vm1974, 1, 0
        %v2103 = vsel %vm1975, 1, 0
        %v2104 = vsel %vm1976, 1, 0
        %v2105 = vsel %vm1977, 1, 0
        %v2106 = vsel %vm1978, 1, 0
        %v2107 = vsel %vm1979, 1, 0
        %v2108 = vsel %vm1980, 1, 0
        %v2109 = vsel %vm1981, 1, 0
        %v2110 = vsel %vm1982, 1, 0
        %vm2111 = vcmp.eq.s32.totalorder %v1983, 1
        %vm2112 = vcmp.eq.s32.totalorder %v1984, 1
        %vm2113 = vcmp.eq.s32.totalorder %v1985, 1
        %vm2114 = vcmp.eq.s32.totalorder %v1986, 1
        %vm2115 = vcmp.eq.s32.totalorder %v1987, 1
        %vm2116 = vcmp.eq.s32.totalorder %v1988, 1
        %vm2117 = vcmp.eq.s32.totalorder %v1989, 1
        %vm2118 = vcmp.eq.s32.totalorder %v1990, 1
        %vm2119 = vcmp.eq.s32.totalorder %v1991, 1
        %vm2120 = vcmp.eq.s32.totalorder %v1992, 1
        %vm2121 = vcmp.eq.s32.totalorder %v1993, 1
        %vm2122 = vcmp.eq.s32.totalorder %v1994, 1
        %vm2123 = vcmp.eq.s32.totalorder %v1995, 1
        %vm2124 = vcmp.eq.s32.totalorder %v1996, 1
        %vm2125 = vcmp.eq.s32.totalorder %v1997, 1
        %vm2126 = vcmp.eq.s32.totalorder %v1998, 1
        %vm2127 = vcmp.eq.s32.totalorder %v1999, 1
        %vm2128 = vcmp.eq.s32.totalorder %v2000, 1
        %vm2129 = vcmp.eq.s32.totalorder %v2001, 1
        %vm2130 = vcmp.eq.s32.totalorder %v2002, 1
        %vm2131 = vcmp.eq.s32.totalorder %v2003, 1
        %vm2132 = vcmp.eq.s32.totalorder %v2004, 1
        %vm2133 = vcmp.eq.s32.totalorder %v2005, 1
        %vm2134 = vcmp.eq.s32.totalorder %v2006, 1
        %vm2135 = vcmp.eq.s32.totalorder %v2007, 1
        %vm2136 = vcmp.eq.s32.totalorder %v2008, 1
        %vm2137 = vcmp.eq.s32.totalorder %v2009, 1
        %vm2138 = vcmp.eq.s32.totalorder %v2010, 1
        %vm2139 = vcmp.eq.s32.totalorder %v2011, 1
        %vm2140 = vcmp.eq.s32.totalorder %v2012, 1
        %vm2141 = vcmp.eq.s32.totalorder %v2013, 1
        %vm2142 = vcmp.eq.s32.totalorder %v2014, 1
        %vm2143 = vcmp.eq.s32.totalorder %v2015, 1
        %vm2144 = vcmp.eq.s32.totalorder %v2016, 1
        %vm2145 = vcmp.eq.s32.totalorder %v2017, 1
        %vm2146 = vcmp.eq.s32.totalorder %v2018, 1
        %vm2147 = vcmp.eq.s32.totalorder %v2019, 1
        %vm2148 = vcmp.eq.s32.totalorder %v2020, 1
        %vm2149 = vcmp.eq.s32.totalorder %v2021, 1
        %vm2150 = vcmp.eq.s32.totalorder %v2022, 1
        %vm2151 = vcmp.eq.s32.totalorder %v2023, 1
        %vm2152 = vcmp.eq.s32.totalorder %v2024, 1
        %vm2153 = vcmp.eq.s32.totalorder %v2025, 1
        %vm2154 = vcmp.eq.s32.totalorder %v2026, 1
        %vm2155 = vcmp.eq.s32.totalorder %v2027, 1
        %vm2156 = vcmp.eq.s32.totalorder %v2028, 1
        %vm2157 = vcmp.eq.s32.totalorder %v2029, 1
        %vm2158 = vcmp.eq.s32.totalorder %v2030, 1
        %vm2159 = vcmp.eq.s32.totalorder %v2031, 1
        %vm2160 = vcmp.eq.s32.totalorder %v2032, 1
        %vm2161 = vcmp.eq.s32.totalorder %v2033, 1
        %vm2162 = vcmp.eq.s32.totalorder %v2034, 1
        %vm2163 = vcmp.eq.s32.totalorder %v2035, 1
        %vm2164 = vcmp.eq.s32.totalorder %v2036, 1
        %vm2165 = vcmp.eq.s32.totalorder %v2037, 1
        %vm2166 = vcmp.eq.s32.totalorder %v2038, 1
        %vm2167 = vcmp.eq.s32.totalorder %v2039, 1
        %vm2168 = vcmp.eq.s32.totalorder %v2040, 1
        %vm2169 = vcmp.eq.s32.totalorder %v2041, 1
        %vm2170 = vcmp.eq.s32.totalorder %v2042, 1
        %vm2171 = vcmp.eq.s32.totalorder %v2043, 1
        %vm2172 = vcmp.eq.s32.totalorder %v2044, 1
        %vm2173 = vcmp.eq.s32.totalorder %v2045, 1
        %vm2174 = vcmp.eq.s32.totalorder %v2046, 1
        %vm2175 = vcmp.eq.s32.totalorder %v2047, 1
        %vm2176 = vcmp.eq.s32.totalorder %v2048, 1
        %vm2177 = vcmp.eq.s32.totalorder %v2049, 1
        %vm2178 = vcmp.eq.s32.totalorder %v2050, 1
        %vm2179 = vcmp.eq.s32.totalorder %v2051, 1
        %vm2180 = vcmp.eq.s32.totalorder %v2052, 1
        %vm2181 = vcmp.eq.s32.totalorder %v2053, 1
        %vm2182 = vcmp.eq.s32.totalorder %v2054, 1
        %vm2183 = vcmp.eq.s32.totalorder %v2055, 1
        %vm2184 = vcmp.eq.s32.totalorder %v2056, 1
        %vm2185 = vcmp.eq.s32.totalorder %v2057, 1
        %vm2186 = vcmp.eq.s32.totalorder %v2058, 1
        %vm2187 = vcmp.eq.s32.totalorder %v2059, 1
        %vm2188 = vcmp.eq.s32.totalorder %v2060, 1
        %vm2189 = vcmp.eq.s32.totalorder %v2061, 1
        %vm2190 = vcmp.eq.s32.totalorder %v2062, 1
        %vm2191 = vcmp.eq.s32.totalorder %v2063, 1
        %vm2192 = vcmp.eq.s32.totalorder %v2064, 1
        %vm2193 = vcmp.eq.s32.totalorder %v2065, 1
        %vm2194 = vcmp.eq.s32.totalorder %v2066, 1
        %vm2195 = vcmp.eq.s32.totalorder %v2067, 1
        %vm2196 = vcmp.eq.s32.totalorder %v2068, 1
        %vm2197 = vcmp.eq.s32.totalorder %v2069, 1
        %vm2198 = vcmp.eq.s32.totalorder %v2070, 1
        %vm2199 = vcmp.eq.s32.totalorder %v2071, 1
        %vm2200 = vcmp.eq.s32.totalorder %v2072, 1
        %vm2201 = vcmp.eq.s32.totalorder %v2073, 1
        %vm2202 = vcmp.eq.s32.totalorder %v2074, 1
        %vm2203 = vcmp.eq.s32.totalorder %v2075, 1
        %vm2204 = vcmp.eq.s32.totalorder %v2076, 1
        %vm2205 = vcmp.eq.s32.totalorder %v2077, 1
        %vm2206 = vcmp.eq.s32.totalorder %v2078, 1
        %vm2207 = vcmp.eq.s32.totalorder %v2079, 1
        %vm2208 = vcmp.eq.s32.totalorder %v2080, 1
        %vm2209 = vcmp.eq.s32.totalorder %v2081, 1
        %vm2210 = vcmp.eq.s32.totalorder %v2082, 1
        %vm2211 = vcmp.eq.s32.totalorder %v2083, 1
        %vm2212 = vcmp.eq.s32.totalorder %v2084, 1
        %vm2213 = vcmp.eq.s32.totalorder %v2085, 1
        %vm2214 = vcmp.eq.s32.totalorder %v2086, 1
        %vm2215 = vcmp.eq.s32.totalorder %v2087, 1
        %vm2216 = vcmp.eq.s32.totalorder %v2088, 1
        %vm2217 = vcmp.eq.s32.totalorder %v2089, 1
        %vm2218 = vcmp.eq.s32.totalorder %v2090, 1
        %vm2219 = vcmp.eq.s32.totalorder %v2091, 1
        %vm2220 = vcmp.eq.s32.totalorder %v2092, 1
        %vm2221 = vcmp.eq.s32.totalorder %v2093, 1
        %vm2222 = vcmp.eq.s32.totalorder %v2094, 1
        %vm2223 = vcmp.eq.s32.totalorder %v2095, 1
        %vm2224 = vcmp.eq.s32.totalorder %v2096, 1
        %vm2225 = vcmp.eq.s32.totalorder %v2097, 1
        %vm2226 = vcmp.eq.s32.totalorder %v2098, 1
        %vm2227 = vcmp.eq.s32.totalorder %v2099, 1
        %vm2228 = vcmp.eq.s32.totalorder %v2100, 1
        %vm2229 = vcmp.eq.s32.totalorder %v2101, 1
        %vm2230 = vcmp.eq.s32.totalorder %v2102, 1
        %vm2231 = vcmp.eq.s32.totalorder %v2103, 1
        %vm2232 = vcmp.eq.s32.totalorder %v2104, 1
        %vm2233 = vcmp.eq.s32.totalorder %v2105, 1
        %vm2234 = vcmp.eq.s32.totalorder %v2106, 1
        %vm2235 = vcmp.eq.s32.totalorder %v2107, 1
        %vm2236 = vcmp.eq.s32.totalorder %v2108, 1
        %vm2237 = vcmp.eq.s32.totalorder %v2109, 1
        %vm2238 = vcmp.eq.s32.totalorder %v2110, 1
        %v2239 = vsel %vm2111, %v1598, 0.0
        %v2240 = vsel %vm2112, %v1599, 0.0
        %v2241 = vsel %vm2113, %v1600, 0.0
        %v2242 = vsel %vm2114, %v1601, 0.0
        %v2243 = vsel %vm2115, %v1602, 0.0
        %v2244 = vsel %vm2116, %v1603, 0.0
        %v2245 = vsel %vm2117, %v1604, 0.0
        %v2246 = vsel %vm2118, %v1605, 0.0
        %v2247 = vsel %vm2119, %v1606, 0.0
        %v2248 = vsel %vm2120, %v1607, 0.0
        %v2249 = vsel %vm2121, %v1608, 0.0
        %v2250 = vsel %vm2122, %v1609, 0.0
        %v2251 = vsel %vm2123, %v1610, 0.0
        %v2252 = vsel %vm2124, %v1611, 0.0
        %v2253 = vsel %vm2125, %v1612, 0.0
        %v2254 = vsel %vm2126, %v1613, 0.0
        %v2255 = vsel %vm2127, %v1614, 0.0
        %v2256 = vsel %vm2128, %v1615, 0.0
        %v2257 = vsel %vm2129, %v1616, 0.0
        %v2258 = vsel %vm2130, %v1617, 0.0
        %v2259 = vsel %vm2131, %v1618, 0.0
        %v2260 = vsel %vm2132, %v1619, 0.0
        %v2261 = vsel %vm2133, %v1620, 0.0
        %v2262 = vsel %vm2134, %v1621, 0.0
        %v2263 = vsel %vm2135, %v1622, 0.0
        %v2264 = vsel %vm2136, %v1623, 0.0
        %v2265 = vsel %vm2137, %v1624, 0.0
        %v2266 = vsel %vm2138, %v1625, 0.0
        %v2267 = vsel %vm2139, %v1626, 0.0
        %v2268 = vsel %vm2140, %v1627, 0.0
        %v2269 = vsel %vm2141, %v1628, 0.0
        %v2270 = vsel %vm2142, %v1629, 0.0
        %v2271 = vsel %vm2143, %v1630, 0.0
        %v2272 = vsel %vm2144, %v1631, 0.0
        %v2273 = vsel %vm2145, %v1632, 0.0
        %v2274 = vsel %vm2146, %v1633, 0.0
        %v2275 = vsel %vm2147, %v1634, 0.0
        %v2276 = vsel %vm2148, %v1635, 0.0
        %v2277 = vsel %vm2149, %v1636, 0.0
        %v2278 = vsel %vm2150, %v1637, 0.0
        %v2279 = vsel %vm2151, %v1638, 0.0
        %v2280 = vsel %vm2152, %v1639, 0.0
        %v2281 = vsel %vm2153, %v1640, 0.0
        %v2282 = vsel %vm2154, %v1641, 0.0
        %v2283 = vsel %vm2155, %v1642, 0.0
        %v2284 = vsel %vm2156, %v1643, 0.0
        %v2285 = vsel %vm2157, %v1644, 0.0
        %v2286 = vsel %vm2158, %v1645, 0.0
        %v2287 = vsel %vm2159, %v1646, 0.0
        %v2288 = vsel %vm2160, %v1647, 0.0
        %v2289 = vsel %vm2161, %v1648, 0.0
        %v2290 = vsel %vm2162, %v1649, 0.0
        %v2291 = vsel %vm2163, %v1650, 0.0
        %v2292 = vsel %vm2164, %v1651, 0.0
        %v2293 = vsel %vm2165, %v1652, 0.0
        %v2294 = vsel %vm2166, %v1653, 0.0
        %v2295 = vsel %vm2167, %v1654, 0.0
        %v2296 = vsel %vm2168, %v1655, 0.0
        %v2297 = vsel %vm2169, %v1656, 0.0
        %v2298 = vsel %vm2170, %v1657, 0.0
        %v2299 = vsel %vm2171, %v1658, 0.0
        %v2300 = vsel %vm2172, %v1659, 0.0
        %v2301 = vsel %vm2173, %v1660, 0.0
        %v2302 = vsel %vm2174, %v1661, 0.0
        %v2303 = vsel %vm2175, %v1662, 0.0
        %v2304 = vsel %vm2176, %v1663, 0.0
        %v2305 = vsel %vm2177, %v1664, 0.0
        %v2306 = vsel %vm2178, %v1665, 0.0
        %v2307 = vsel %vm2179, %v1666, 0.0
        %v2308 = vsel %vm2180, %v1667, 0.0
        %v2309 = vsel %vm2181, %v1668, 0.0
        %v2310 = vsel %vm2182, %v1669, 0.0
        %v2311 = vsel %vm2183, %v1670, 0.0
        %v2312 = vsel %vm2184, %v1671, 0.0
        %v2313 = vsel %vm2185, %v1672, 0.0
        %v2314 = vsel %vm2186, %v1673, 0.0
        %v2315 = vsel %vm2187, %v1674, 0.0
        %v2316 = vsel %vm2188, %v1675, 0.0
        %v2317 = vsel %vm2189, %v1676, 0.0
        %v2318 = vsel %vm2190, %v1677, 0.0
        %v2319 = vsel %vm2191, %v1678, 0.0
        %v2320 = vsel %vm2192, %v1679, 0.0
        %v2321 = vsel %vm2193, %v1680, 0.0
        %v2322 = vsel %vm2194, %v1681, 0.0
        %v2323 = vsel %vm2195, %v1682, 0.0
        %v2324 = vsel %vm2196, %v1683, 0.0
        %v2325 = vsel %vm2197, %v1684, 0.0
        %v2326 = vsel %vm2198, %v1685, 0.0
        %v2327 = vsel %vm2199, %v1686, 0.0
        %v2328 = vsel %vm2200, %v1687, 0.0
        %v2329 = vsel %vm2201, %v1688, 0.0
        %v2330 = vsel %vm2202, %v1689, 0.0
        %v2331 = vsel %vm2203, %v1690, 0.0
        %v2332 = vsel %vm2204, %v1691, 0.0
        %v2333 = vsel %vm2205, %v1692, 0.0
        %v2334 = vsel %vm2206, %v1693, 0.0
        %v2335 = vsel %vm2207, %v1694, 0.0
        %v2336 = vsel %vm2208, %v1695, 0.0
        %v2337 = vsel %vm2209, %v1696, 0.0
        %v2338 = vsel %vm2210, %v1697, 0.0
        %v2339 = vsel %vm2211, %v1698, 0.0
        %v2340 = vsel %vm2212, %v1699, 0.0
        %v2341 = vsel %vm2213, %v1700, 0.0
        %v2342 = vsel %vm2214, %v1701, 0.0
        %v2343 = vsel %vm2215, %v1702, 0.0
        %v2344 = vsel %vm2216, %v1703, 0.0
        %v2345 = vsel %vm2217, %v1704, 0.0
        %v2346 = vsel %vm2218, %v1705, 0.0
        %v2347 = vsel %vm2219, %v1706, 0.0
        %v2348 = vsel %vm2220, %v1707, 0.0
        %v2349 = vsel %vm2221, %v1708, 0.0
        %v2350 = vsel %vm2222, %v1709, 0.0
        %v2351 = vsel %vm2223, %v1710, 0.0
        %v2352 = vsel %vm2224, %v1711, 0.0
        %v2353 = vsel %vm2225, %v1712, 0.0
        %v2354 = vsel %vm2226, %v1713, 0.0
        %v2355 = vsel %vm2227, %v1714, 0.0
        %v2356 = vsel %vm2228, %v1715, 0.0
        %v2357 = vsel %vm2229, %v1716, 0.0
        %v2358 = vsel %vm2230, %v1717, 0.0
        %v2359 = vsel %vm2231, %v1718, 0.0
        %v2360 = vsel %vm2232, %v1719, 0.0
        %v2361 = vsel %vm2233, %v1720, 0.0
        %v2362 = vsel %vm2234, %v1721, 0.0
        %v2363 = vsel %vm2235, %v1722, 0.0
        %v2364 = vsel %vm2236, %v1723, 0.0
        %v2365 = vsel %vm2237, %v1724, 0.0
        %v2366 = vsel %vm2238, %v1725, 0.0
        %v2367 = vsel %vm1529, %v2239, 0.0
        %v2368 = vsel %vm1529, %v2240, 0.0
        %v2369 = vadd.f32 %v2367, %v2368
        %v2370 = vsel %vm1529, %v2241, 0.0
        %v2371 = vadd.f32 %v2369, %v2370
        %v2372 = vsel %vm1529, %v2242, 0.0
        %v2373 = vadd.f32 %v2371, %v2372
        %v2374 = vsel %vm1529, %v2243, 0.0
        %v2375 = vadd.f32 %v2373, %v2374
        %v2376 = vsel %vm1529, %v2244, 0.0
        %v2377 = vadd.f32 %v2375, %v2376
        %v2378 = vsel %vm1529, %v2245, 0.0
        %v2379 = vadd.f32 %v2377, %v2378
        %v2380 = vsel %vm1529, %v2246, 0.0
        %v2381 = vadd.f32 %v2379, %v2380
        %v2382 = vsel %vm1529, %v2247, 0.0
        %v2383 = vadd.f32 %v2381, %v2382
        %v2384 = vsel %vm1529, %v2248, 0.0
        %v2385 = vadd.f32 %v2383, %v2384
        %v2386 = vsel %vm1529, %v2249, 0.0
        %v2387 = vadd.f32 %v2385, %v2386
        %v2388 = vsel %vm1529, %v2250, 0.0
        %v2389 = vadd.f32 %v2387, %v2388
        %v2390 = vsel %vm1529, %v2251, 0.0
        %v2391 = vadd.f32 %v2389, %v2390
        %v2392 = vsel %vm1529, %v2252, 0.0
        %v2393 = vadd.f32 %v2391, %v2392
        %v2394 = vsel %vm1529, %v2253, 0.0
        %v2395 = vadd.f32 %v2393, %v2394
        %v2396 = vsel %vm1529, %v2254, 0.0
        %v2397 = vadd.f32 %v2395, %v2396
        %v2398 = vsel %vm1529, %v2255, 0.0
        %v2399 = vadd.f32 %v2397, %v2398
        %v2400 = vsel %vm1529, %v2256, 0.0
        %v2401 = vadd.f32 %v2399, %v2400
        %v2402 = vsel %vm1529, %v2257, 0.0
        %v2403 = vadd.f32 %v2401, %v2402
        %v2404 = vsel %vm1529, %v2258, 0.0
        %v2405 = vadd.f32 %v2403, %v2404
        %v2406 = vsel %vm1529, %v2259, 0.0
        %v2407 = vadd.f32 %v2405, %v2406
        %v2408 = vsel %vm1529, %v2260, 0.0
        %v2409 = vadd.f32 %v2407, %v2408
        %v2410 = vsel %vm1529, %v2261, 0.0
        %v2411 = vadd.f32 %v2409, %v2410
        %v2412 = vsel %vm1529, %v2262, 0.0
        %v2413 = vadd.f32 %v2411, %v2412
        %v2414 = vsel %vm1529, %v2263, 0.0
        %v2415 = vadd.f32 %v2413, %v2414
        %v2416 = vsel %vm1529, %v2264, 0.0
        %v2417 = vadd.f32 %v2415, %v2416
        %v2418 = vsel %vm1529, %v2265, 0.0
        %v2419 = vadd.f32 %v2417, %v2418
        %v2420 = vsel %vm1529, %v2266, 0.0
        %v2421 = vadd.f32 %v2419, %v2420
        %v2422 = vsel %vm1529, %v2267, 0.0
        %v2423 = vadd.f32 %v2421, %v2422
        %v2424 = vsel %vm1529, %v2268, 0.0
        %v2425 = vadd.f32 %v2423, %v2424
        %v2426 = vsel %vm1529, %v2269, 0.0
        %v2427 = vadd.f32 %v2425, %v2426
        %v2428 = vsel %vm1529, %v2270, 0.0
        %v2429 = vadd.f32 %v2427, %v2428
        %v2430 = vsel %vm1529, %v2271, 0.0
        %v2431 = vadd.f32 %v2429, %v2430
        %v2432 = vsel %vm1529, %v2272, 0.0
        %v2433 = vadd.f32 %v2431, %v2432
        %v2434 = vsel %vm1529, %v2273, 0.0
        %v2435 = vadd.f32 %v2433, %v2434
        %v2436 = vsel %vm1529, %v2274, 0.0
        %v2437 = vadd.f32 %v2435, %v2436
        %v2438 = vsel %vm1529, %v2275, 0.0
        %v2439 = vadd.f32 %v2437, %v2438
        %v2440 = vsel %vm1529, %v2276, 0.0
        %v2441 = vadd.f32 %v2439, %v2440
        %v2442 = vsel %vm1529, %v2277, 0.0
        %v2443 = vadd.f32 %v2441, %v2442
        %v2444 = vsel %vm1529, %v2278, 0.0
        %v2445 = vadd.f32 %v2443, %v2444
        %v2446 = vsel %vm1529, %v2279, 0.0
        %v2447 = vadd.f32 %v2445, %v2446
        %v2448 = vsel %vm1529, %v2280, 0.0
        %v2449 = vadd.f32 %v2447, %v2448
        %v2450 = vsel %vm1529, %v2281, 0.0
        %v2451 = vadd.f32 %v2449, %v2450
        %v2452 = vsel %vm1529, %v2282, 0.0
        %v2453 = vadd.f32 %v2451, %v2452
        %v2454 = vsel %vm1529, %v2283, 0.0
        %v2455 = vadd.f32 %v2453, %v2454
        %v2456 = vsel %vm1529, %v2284, 0.0
        %v2457 = vadd.f32 %v2455, %v2456
        %v2458 = vsel %vm1529, %v2285, 0.0
        %v2459 = vadd.f32 %v2457, %v2458
        %v2460 = vsel %vm1529, %v2286, 0.0
        %v2461 = vadd.f32 %v2459, %v2460
        %v2462 = vsel %vm1529, %v2287, 0.0
        %v2463 = vadd.f32 %v2461, %v2462
        %v2464 = vsel %vm1529, %v2288, 0.0
        %v2465 = vadd.f32 %v2463, %v2464
        %v2466 = vsel %vm1529, %v2289, 0.0
        %v2467 = vadd.f32 %v2465, %v2466
        %v2468 = vsel %vm1529, %v2290, 0.0
        %v2469 = vadd.f32 %v2467, %v2468
        %v2470 = vsel %vm1529, %v2291, 0.0
        %v2471 = vadd.f32 %v2469, %v2470
        %v2472 = vsel %vm1529, %v2292, 0.0
        %v2473 = vadd.f32 %v2471, %v2472
        %v2474 = vsel %vm1529, %v2293, 0.0
        %v2475 = vadd.f32 %v2473, %v2474
        %v2476 = vsel %vm1529, %v2294, 0.0
        %v2477 = vadd.f32 %v2475, %v2476
        %v2478 = vsel %vm1529, %v2295, 0.0
        %v2479 = vadd.f32 %v2477, %v2478
        %v2480 = vsel %vm1529, %v2296, 0.0
        %v2481 = vadd.f32 %v2479, %v2480
        %v2482 = vsel %vm1529, %v2297, 0.0
        %v2483 = vadd.f32 %v2481, %v2482
        %v2484 = vsel %vm1529, %v2298, 0.0
        %v2485 = vadd.f32 %v2483, %v2484
        %v2486 = vsel %vm1529, %v2299, 0.0
        %v2487 = vadd.f32 %v2485, %v2486
        %v2488 = vsel %vm1529, %v2300, 0.0
        %v2489 = vadd.f32 %v2487, %v2488
        %v2490 = vsel %vm1529, %v2301, 0.0
        %v2491 = vadd.f32 %v2489, %v2490
        %v2492 = vsel %vm1529, %v2302, 0.0
        %v2493 = vadd.f32 %v2491, %v2492
        %v2494 = vsel %vm1529, %v2303, 0.0
        %v2495 = vadd.f32 %v2493, %v2494
        %v2496 = vsel %vm1529, %v2304, 0.0
        %v2497 = vadd.f32 %v2495, %v2496
        %v2498 = vsel %vm1529, %v2305, 0.0
        %v2499 = vadd.f32 %v2497, %v2498
        %v2500 = vsel %vm1529, %v2306, 0.0
        %v2501 = vadd.f32 %v2499, %v2500
        %v2502 = vsel %vm1529, %v2307, 0.0
        %v2503 = vadd.f32 %v2501, %v2502
        %v2504 = vsel %vm1529, %v2308, 0.0
        %v2505 = vadd.f32 %v2503, %v2504
        %v2506 = vsel %vm1529, %v2309, 0.0
        %v2507 = vadd.f32 %v2505, %v2506
        %v2508 = vsel %vm1529, %v2310, 0.0
        %v2509 = vadd.f32 %v2507, %v2508
        %v2510 = vsel %vm1529, %v2311, 0.0
        %v2511 = vadd.f32 %v2509, %v2510
        %v2512 = vsel %vm1529, %v2312, 0.0
        %v2513 = vadd.f32 %v2511, %v2512
        %v2514 = vsel %vm1529, %v2313, 0.0
        %v2515 = vadd.f32 %v2513, %v2514
        %v2516 = vsel %vm1529, %v2314, 0.0
        %v2517 = vadd.f32 %v2515, %v2516
        %v2518 = vsel %vm1529, %v2315, 0.0
        %v2519 = vadd.f32 %v2517, %v2518
        %v2520 = vsel %vm1529, %v2316, 0.0
        %v2521 = vadd.f32 %v2519, %v2520
        %v2522 = vsel %vm1529, %v2317, 0.0
        %v2523 = vadd.f32 %v2521, %v2522
        %v2524 = vsel %vm1529, %v2318, 0.0
        %v2525 = vadd.f32 %v2523, %v2524
        %v2526 = vsel %vm1529, %v2319, 0.0
        %v2527 = vadd.f32 %v2525, %v2526
        %v2528 = vsel %vm1529, %v2320, 0.0
        %v2529 = vadd.f32 %v2527, %v2528
        %v2530 = vsel %vm1529, %v2321, 0.0
        %v2531 = vadd.f32 %v2529, %v2530
        %v2532 = vsel %vm1529, %v2322, 0.0
        %v2533 = vadd.f32 %v2531, %v2532
        %v2534 = vsel %vm1529, %v2323, 0.0
        %v2535 = vadd.f32 %v2533, %v2534
        %v2536 = vsel %vm1529, %v2324, 0.0
        %v2537 = vadd.f32 %v2535, %v2536
        %v2538 = vsel %vm1529, %v2325, 0.0
        %v2539 = vadd.f32 %v2537, %v2538
        %v2540 = vsel %vm1529, %v2326, 0.0
        %v2541 = vadd.f32 %v2539, %v2540
        %v2542 = vsel %vm1529, %v2327, 0.0
        %v2543 = vadd.f32 %v2541, %v2542
        %v2544 = vsel %vm1529, %v2328, 0.0
        %v2545 = vadd.f32 %v2543, %v2544
        %v2546 = vsel %vm1529, %v2329, 0.0
        %v2547 = vadd.f32 %v2545, %v2546
        %v2548 = vsel %vm1529, %v2330, 0.0
        %v2549 = vadd.f32 %v2547, %v2548
        %v2550 = vsel %vm1529, %v2331, 0.0
        %v2551 = vadd.f32 %v2549, %v2550
        %v2552 = vsel %vm1529, %v2332, 0.0
        %v2553 = vadd.f32 %v2551, %v2552
        %v2554 = vsel %vm1529, %v2333, 0.0
        %v2555 = vadd.f32 %v2553, %v2554
        %v2556 = vsel %vm1529, %v2334, 0.0
        %v2557 = vadd.f32 %v2555, %v2556
        %v2558 = vsel %vm1529, %v2335, 0.0
        %v2559 = vadd.f32 %v2557, %v2558
        %v2560 = vsel %vm1529, %v2336, 0.0
        %v2561 = vadd.f32 %v2559, %v2560
        %v2562 = vsel %vm1529, %v2337, 0.0
        %v2563 = vadd.f32 %v2561, %v2562
        %v2564 = vsel %vm1529, %v2338, 0.0
        %v2565 = vadd.f32 %v2563, %v2564
        %v2566 = vsel %vm1529, %v2339, 0.0
        %v2567 = vadd.f32 %v2565, %v2566
        %v2568 = vsel %vm1529, %v2340, 0.0
        %v2569 = vadd.f32 %v2567, %v2568
        %v2570 = vsel %vm1529, %v2341, 0.0
        %v2571 = vadd.f32 %v2569, %v2570
        %v2572 = vsel %vm1529, %v2342, 0.0
        %v2573 = vadd.f32 %v2571, %v2572
        %v2574 = vsel %vm1529, %v2343, 0.0
        %v2575 = vadd.f32 %v2573, %v2574
        %v2576 = vsel %vm1529, %v2344, 0.0
        %v2577 = vadd.f32 %v2575, %v2576
        %v2578 = vsel %vm1529, %v2345, 0.0
        %v2579 = vadd.f32 %v2577, %v2578
        %v2580 = vsel %vm1529, %v2346, 0.0
        %v2581 = vadd.f32 %v2579, %v2580
        %v2582 = vsel %vm1529, %v2347, 0.0
        %v2583 = vadd.f32 %v2581, %v2582
        %v2584 = vsel %vm1529, %v2348, 0.0
        %v2585 = vadd.f32 %v2583, %v2584
        %v2586 = vsel %vm1529, %v2349, 0.0
        %v2587 = vadd.f32 %v2585, %v2586
        %v2588 = vsel %vm1529, %v2350, 0.0
        %v2589 = vadd.f32 %v2587, %v2588
        %v2590 = vsel %vm1529, %v2351, 0.0
        %v2591 = vadd.f32 %v2589, %v2590
        %v2592 = vsel %vm1529, %v2352, 0.0
        %v2593 = vadd.f32 %v2591, %v2592
        %v2594 = vsel %vm1529, %v2353, 0.0
        %v2595 = vadd.f32 %v2593, %v2594
        %v2596 = vsel %vm1529, %v2354, 0.0
        %v2597 = vadd.f32 %v2595, %v2596
        %v2598 = vsel %vm1529, %v2355, 0.0
        %v2599 = vadd.f32 %v2597, %v2598
        %v2600 = vsel %vm1529, %v2356, 0.0
        %v2601 = vadd.f32 %v2599, %v2600
        %v2602 = vsel %vm1529, %v2357, 0.0
        %v2603 = vadd.f32 %v2601, %v2602
        %v2604 = vsel %vm1529, %v2358, 0.0
        %v2605 = vadd.f32 %v2603, %v2604
        %v2606 = vsel %vm1529, %v2359, 0.0
        %v2607 = vadd.f32 %v2605, %v2606
        %v2608 = vsel %vm1529, %v2360, 0.0
        %v2609 = vadd.f32 %v2607, %v2608
        %v2610 = vsel %vm1529, %v2361, 0.0
        %v2611 = vadd.f32 %v2609, %v2610
        %v2612 = vsel %vm1529, %v2362, 0.0
        %v2613 = vadd.f32 %v2611, %v2612
        %v2614 = vsel %vm1529, %v2363, 0.0
        %v2615 = vadd.f32 %v2613, %v2614
        %v2616 = vsel %vm1529, %v2364, 0.0
        %v2617 = vadd.f32 %v2615, %v2616
        %v2618 = vsel %vm1529, %v2365, 0.0
        %v2619 = vadd.f32 %v2617, %v2618
        %v2620 = vsel %vm1529, %v2366, 0.0
        %v2621 = vadd.f32 %v2619, %v2620
        %v2622 = vrot.slane %v2621, 4
        %v2623 = vadd.f32 %v2621, %v2622
        %v2624 = vrot.slane %v2623, 2
        %v2625 = vadd.f32 %v2623, %v2624
        %v2626 = vrot.slane %v2625, 1
        %v2627 = vadd.f32 %v2625, %v2626
        %v2628 = vmul.f32 %v2627, 0.0011904762
        %v2629 = vsub.f32 %v1598, %v2628
        %v2630 = vsub.f32 %v1599, %v2628
        %v2631 = vsub.f32 %v1600, %v2628
        %v2632 = vsub.f32 %v1601, %v2628
        %v2633 = vsub.f32 %v1602, %v2628
        %v2634 = vsub.f32 %v1603, %v2628
        %v2635 = vsub.f32 %v1604, %v2628
        %v2636 = vsub.f32 %v1605, %v2628
        %v2637 = vsub.f32 %v1606, %v2628
        %v2638 = vsub.f32 %v1607, %v2628
        %v2639 = vsub.f32 %v1608, %v2628
        %v2640 = vsub.f32 %v1609, %v2628
        %v2641 = vsub.f32 %v1610, %v2628
        %v2642 = vsub.f32 %v1611, %v2628
        %v2643 = vsub.f32 %v1612, %v2628
        %v2644 = vsub.f32 %v1613, %v2628
        %v2645 = vsub.f32 %v1614, %v2628
        %v2646 = vsub.f32 %v1615, %v2628
        %v2647 = vsub.f32 %v1616, %v2628
        %v2648 = vsub.f32 %v1617, %v2628
        %v2649 = vsub.f32 %v1618, %v2628
        %v2650 = vsub.f32 %v1619, %v2628
        %v2651 = vsub.f32 %v1620, %v2628
        %v2652 = vsub.f32 %v1621, %v2628
        %v2653 = vsub.f32 %v1622, %v2628
        %v2654 = vsub.f32 %v1623, %v2628
        %v2655 = vsub.f32 %v1624, %v2628
        %v2656 = vsub.f32 %v1625, %v2628
        %v2657 = vsub.f32 %v1626, %v2628
        %v2658 = vsub.f32 %v1627, %v2628
        %v2659 = vsub.f32 %v1628, %v2628
        %v2660 = vsub.f32 %v1629, %v2628
        %v2661 = vsub.f32 %v1630, %v2628
        %v2662 = vsub.f32 %v1631, %v2628
        %v2663 = vsub.f32 %v1632, %v2628
        %v2664 = vsub.f32 %v1633, %v2628
        %v2665 = vsub.f32 %v1634, %v2628
        %v2666 = vsub.f32 %v1635, %v2628
        %v2667 = vsub.f32 %v1636, %v2628
        %v2668 = vsub.f32 %v1637, %v2628
        %v2669 = vsub.f32 %v1638, %v2628
        %v2670 = vsub.f32 %v1639, %v2628
        %v2671 = vsub.f32 %v1640, %v2628
        %v2672 = vsub.f32 %v1641, %v2628
        %v2673 = vsub.f32 %v1642, %v2628
        %v2674 = vsub.f32 %v1643, %v2628
        %v2675 = vsub.f32 %v1644, %v2628
        %v2676 = vsub.f32 %v1645, %v2628
        %v2677 = vsub.f32 %v1646, %v2628
        %v2678 = vsub.f32 %v1647, %v2628
        %v2679 = vsub.f32 %v1648, %v2628
        %v2680 = vsub.f32 %v1649, %v2628
        %v2681 = vsub.f32 %v1650, %v2628
        %v2682 = vsub.f32 %v1651, %v2628
        %v2683 = vsub.f32 %v1652, %v2628
        %v2684 = vsub.f32 %v1653, %v2628
        %v2685 = vsub.f32 %v1654, %v2628
        %v2686 = vsub.f32 %v1655, %v2628
        %v2687 = vsub.f32 %v1656, %v2628
        %v2688 = vsub.f32 %v1657, %v2628
        %v2689 = vsub.f32 %v1658, %v2628
        %v2690 = vsub.f32 %v1659, %v2628
        %v2691 = vsub.f32 %v1660, %v2628
        %v2692 = vsub.f32 %v1661, %v2628
        %v2693 = vsub.f32 %v1662, %v2628
        %v2694 = vsub.f32 %v1663, %v2628
        %v2695 = vsub.f32 %v1664, %v2628
        %v2696 = vsub.f32 %v1665, %v2628
        %v2697 = vsub.f32 %v1666, %v2628
        %v2698 = vsub.f32 %v1667, %v2628
        %v2699 = vsub.f32 %v1668, %v2628
        %v2700 = vsub.f32 %v1669, %v2628
        %v2701 = vsub.f32 %v1670, %v2628
        %v2702 = vsub.f32 %v1671, %v2628
        %v2703 = vsub.f32 %v1672, %v2628
        %v2704 = vsub.f32 %v1673, %v2628
        %v2705 = vsub.f32 %v1674, %v2628
        %v2706 = vsub.f32 %v1675, %v2628
        %v2707 = vsub.f32 %v1676, %v2628
        %v2708 = vsub.f32 %v1677, %v2628
        %v2709 = vsub.f32 %v1678, %v2628
        %v2710 = vsub.f32 %v1679, %v2628
        %v2711 = vsub.f32 %v1680, %v2628
        %v2712 = vsub.f32 %v1681, %v2628
        %v2713 = vsub.f32 %v1682, %v2628
        %v2714 = vsub.f32 %v1683, %v2628
        %v2715 = vsub.f32 %v1684, %v2628
        %v2716 = vsub.f32 %v1685, %v2628
        %v2717 = vsub.f32 %v1686, %v2628
        %v2718 = vsub.f32 %v1687, %v2628
        %v2719 = vsub.f32 %v1688, %v2628
        %v2720 = vsub.f32 %v1689, %v2628
        %v2721 = vsub.f32 %v1690, %v2628
        %v2722 = vsub.f32 %v1691, %v2628
        %v2723 = vsub.f32 %v1692, %v2628
        %v2724 = vsub.f32 %v1693, %v2628
        %v2725 = vsub.f32 %v1694, %v2628
        %v2726 = vsub.f32 %v1695, %v2628
        %v2727 = vsub.f32 %v1696, %v2628
        %v2728 = vsub.f32 %v1697, %v2628
        %v2729 = vsub.f32 %v1698, %v2628
        %v2730 = vsub.f32 %v1699, %v2628
        %v2731 = vsub.f32 %v1700, %v2628
        %v2732 = vsub.f32 %v1701, %v2628
        %v2733 = vsub.f32 %v1702, %v2628
        %v2734 = vsub.f32 %v1703, %v2628
        %v2735 = vsub.f32 %v1704, %v2628
        %v2736 = vsub.f32 %v1705, %v2628
        %v2737 = vsub.f32 %v1706, %v2628
        %v2738 = vsub.f32 %v1707, %v2628
        %v2739 = vsub.f32 %v1708, %v2628
        %v2740 = vsub.f32 %v1709, %v2628
        %v2741 = vsub.f32 %v1710, %v2628
        %v2742 = vsub.f32 %v1711, %v2628
        %v2743 = vsub.f32 %v1712, %v2628
        %v2744 = vsub.f32 %v1713, %v2628
        %v2745 = vsub.f32 %v1714, %v2628
        %v2746 = vsub.f32 %v1715, %v2628
        %v2747 = vsub.f32 %v1716, %v2628
        %v2748 = vsub.f32 %v1717, %v2628
        %v2749 = vsub.f32 %v1718, %v2628
        %v2750 = vsub.f32 %v1719, %v2628
        %v2751 = vsub.f32 %v1720, %v2628
        %v2752 = vsub.f32 %v1721, %v2628
        %v2753 = vsub.f32 %v1722, %v2628
        %v2754 = vsub.f32 %v1723, %v2628
        %v2755 = vsub.f32 %v1724, %v2628
        %v2756 = vsub.f32 %v1725, %v2628
        %v2757 = vsel %vm2111, %v2629, 0.0
        %v2758 = vsel %vm2112, %v2630, 0.0
        %v2759 = vsel %vm2113, %v2631, 0.0
        %v2760 = vsel %vm2114, %v2632, 0.0
        %v2761 = vsel %vm2115, %v2633, 0.0
        %v2762 = vsel %vm2116, %v2634, 0.0
        %v2763 = vsel %vm2117, %v2635, 0.0
        %v2764 = vsel %vm2118, %v2636, 0.0
        %v2765 = vsel %vm2119, %v2637, 0.0
        %v2766 = vsel %vm2120, %v2638, 0.0
        %v2767 = vsel %vm2121, %v2639, 0.0
        %v2768 = vsel %vm2122, %v2640, 0.0
        %v2769 = vsel %vm2123, %v2641, 0.0
        %v2770 = vsel %vm2124, %v2642, 0.0
        %v2771 = vsel %vm2125, %v2643, 0.0
        %v2772 = vsel %vm2126, %v2644, 0.0
        %v2773 = vsel %vm2127, %v2645, 0.0
        %v2774 = vsel %vm2128, %v2646, 0.0
        %v2775 = vsel %vm2129, %v2647, 0.0
        %v2776 = vsel %vm2130, %v2648, 0.0
        %v2777 = vsel %vm2131, %v2649, 0.0
        %v2778 = vsel %vm2132, %v2650, 0.0
        %v2779 = vsel %vm2133, %v2651, 0.0
        %v2780 = vsel %vm2134, %v2652, 0.0
        %v2781 = vsel %vm2135, %v2653, 0.0
        %v2782 = vsel %vm2136, %v2654, 0.0
        %v2783 = vsel %vm2137, %v2655, 0.0
        %v2784 = vsel %vm2138, %v2656, 0.0
        %v2785 = vsel %vm2139, %v2657, 0.0
        %v2786 = vsel %vm2140, %v2658, 0.0
        %v2787 = vsel %vm2141, %v2659, 0.0
        %v2788 = vsel %vm2142, %v2660, 0.0
        %v2789 = vsel %vm2143, %v2661, 0.0
        %v2790 = vsel %vm2144, %v2662, 0.0
        %v2791 = vsel %vm2145, %v2663, 0.0
        %v2792 = vsel %vm2146, %v2664, 0.0
        %v2793 = vsel %vm2147, %v2665, 0.0
        %v2794 = vsel %vm2148, %v2666, 0.0
        %v2795 = vsel %vm2149, %v2667, 0.0
        %v2796 = vsel %vm2150, %v2668, 0.0
        %v2797 = vsel %vm2151, %v2669, 0.0
        %v2798 = vsel %vm2152, %v2670, 0.0
        %v2799 = vsel %vm2153, %v2671, 0.0
        %v2800 = vsel %vm2154, %v2672, 0.0
        %v2801 = vsel %vm2155, %v2673, 0.0
        %v2802 = vsel %vm2156, %v2674, 0.0
        %v2803 = vsel %vm2157, %v2675, 0.0
        %v2804 = vsel %vm2158, %v2676, 0.0
        %v2805 = vsel %vm2159, %v2677, 0.0
        %v2806 = vsel %vm2160, %v2678, 0.0
        %v2807 = vsel %vm2161, %v2679, 0.0
        %v2808 = vsel %vm2162, %v2680, 0.0
        %v2809 = vsel %vm2163, %v2681, 0.0
        %v2810 = vsel %vm2164, %v2682, 0.0
        %v2811 = vsel %vm2165, %v2683, 0.0
        %v2812 = vsel %vm2166, %v2684, 0.0
        %v2813 = vsel %vm2167, %v2685, 0.0
        %v2814 = vsel %vm2168, %v2686, 0.0
        %v2815 = vsel %vm2169, %v2687, 0.0
        %v2816 = vsel %vm2170, %v2688, 0.0
        %v2817 = vsel %vm2171, %v2689, 0.0
        %v2818 = vsel %vm2172, %v2690, 0.0
        %v2819 = vsel %vm2173, %v2691, 0.0
        %v2820 = vsel %vm2174, %v2692, 0.0
        %v2821 = vsel %vm2175, %v2693, 0.0
        %v2822 = vsel %vm2176, %v2694, 0.0
        %v2823 = vsel %vm2177, %v2695, 0.0
        %v2824 = vsel %vm2178, %v2696, 0.0
        %v2825 = vsel %vm2179, %v2697, 0.0
        %v2826 = vsel %vm2180, %v2698, 0.0
        %v2827 = vsel %vm2181, %v2699, 0.0
        %v2828 = vsel %vm2182, %v2700, 0.0
        %v2829 = vsel %vm2183, %v2701, 0.0
        %v2830 = vsel %vm2184, %v2702, 0.0
        %v2831 = vsel %vm2185, %v2703, 0.0
        %v2832 = vsel %vm2186, %v2704, 0.0
        %v2833 = vsel %vm2187, %v2705, 0.0
        %v2834 = vsel %vm2188, %v2706, 0.0
        %v2835 = vsel %vm2189, %v2707, 0.0
        %v2836 = vsel %vm2190, %v2708, 0.0
        %v2837 = vsel %vm2191, %v2709, 0.0
        %v2838 = vsel %vm2192, %v2710, 0.0
        %v2839 = vsel %vm2193, %v2711, 0.0
        %v2840 = vsel %vm2194, %v2712, 0.0
        %v2841 = vsel %vm2195, %v2713, 0.0
        %v2842 = vsel %vm2196, %v2714, 0.0
        %v2843 = vsel %vm2197, %v2715, 0.0
        %v2844 = vsel %vm2198, %v2716, 0.0
        %v2845 = vsel %vm2199, %v2717, 0.0
        %v2846 = vsel %vm2200, %v2718, 0.0
        %v2847 = vsel %vm2201, %v2719, 0.0
        %v2848 = vsel %vm2202, %v2720, 0.0
        %v2849 = vsel %vm2203, %v2721, 0.0
        %v2850 = vsel %vm2204, %v2722, 0.0
        %v2851 = vsel %vm2205, %v2723, 0.0
        %v2852 = vsel %vm2206, %v2724, 0.0
        %v2853 = vsel %vm2207, %v2725, 0.0
        %v2854 = vsel %vm2208, %v2726, 0.0
        %v2855 = vsel %vm2209, %v2727, 0.0
        %v2856 = vsel %vm2210, %v2728, 0.0
        %v2857 = vsel %vm2211, %v2729, 0.0
        %v2858 = vsel %vm2212, %v2730, 0.0
        %v2859 = vsel %vm2213, %v2731, 0.0
        %v2860 = vsel %vm2214, %v2732, 0.0
        %v2861 = vsel %vm2215, %v2733, 0.0
        %v2862 = vsel %vm2216, %v2734, 0.0
        %v2863 = vsel %vm2217, %v2735, 0.0
        %v2864 = vsel %vm2218, %v2736, 0.0
        %v2865 = vsel %vm2219, %v2737, 0.0
        %v2866 = vsel %vm2220, %v2738, 0.0
        %v2867 = vsel %vm2221, %v2739, 0.0
        %v2868 = vsel %vm2222, %v2740, 0.0
        %v2869 = vsel %vm2223, %v2741, 0.0
        %v2870 = vsel %vm2224, %v2742, 0.0
        %v2871 = vsel %vm2225, %v2743, 0.0
        %v2872 = vsel %vm2226, %v2744, 0.0
        %v2873 = vsel %vm2227, %v2745, 0.0
        %v2874 = vsel %vm2228, %v2746, 0.0
        %v2875 = vsel %vm2229, %v2747, 0.0
        %v2876 = vsel %vm2230, %v2748, 0.0
        %v2877 = vsel %vm2231, %v2749, 0.0
        %v2878 = vsel %vm2232, %v2750, 0.0
        %v2879 = vsel %vm2233, %v2751, 0.0
        %v2880 = vsel %vm2234, %v2752, 0.0
        %v2881 = vsel %vm2235, %v2753, 0.0
        %v2882 = vsel %vm2236, %v2754, 0.0
        %v2883 = vsel %vm2237, %v2755, 0.0
        %v2884 = vsel %vm2238, %v2756, 0.0
        %v2885 = vmul.f32 %v2757, %v2757
        %v2886 = vmul.f32 %v2758, %v2758
        %v2887 = vmul.f32 %v2759, %v2759
        %v2888 = vmul.f32 %v2760, %v2760
        %v2889 = vmul.f32 %v2761, %v2761
        %v2890 = vmul.f32 %v2762, %v2762
        %v2891 = vmul.f32 %v2763, %v2763
        %v2892 = vmul.f32 %v2764, %v2764
        %v2893 = vmul.f32 %v2765, %v2765
        %v2894 = vmul.f32 %v2766, %v2766
        %v2895 = vmul.f32 %v2767, %v2767
        %v2896 = vmul.f32 %v2768, %v2768
        %v2897 = vmul.f32 %v2769, %v2769
        %v2898 = vmul.f32 %v2770, %v2770
        %v2899 = vmul.f32 %v2771, %v2771
        %v2900 = vmul.f32 %v2772, %v2772
        %v2901 = vmul.f32 %v2773, %v2773
        %v2902 = vmul.f32 %v2774, %v2774
        %v2903 = vmul.f32 %v2775, %v2775
        %v2904 = vmul.f32 %v2776, %v2776
        %v2905 = vmul.f32 %v2777, %v2777
        %v2906 = vmul.f32 %v2778, %v2778
        %v2907 = vmul.f32 %v2779, %v2779
        %v2908 = vmul.f32 %v2780, %v2780
        %v2909 = vmul.f32 %v2781, %v2781
        %v2910 = vmul.f32 %v2782, %v2782
        %v2911 = vmul.f32 %v2783, %v2783
        %v2912 = vmul.f32 %v2784, %v2784
        %v2913 = vmul.f32 %v2785, %v2785
        %v2914 = vmul.f32 %v2786, %v2786
        %v2915 = vmul.f32 %v2787, %v2787
        %v2916 = vmul.f32 %v2788, %v2788
        %v2917 = vmul.f32 %v2789, %v2789
        %v2918 = vmul.f32 %v2790, %v2790
        %v2919 = vmul.f32 %v2791, %v2791
        %v2920 = vmul.f32 %v2792, %v2792
        %v2921 = vmul.f32 %v2793, %v2793
        %v2922 = vmul.f32 %v2794, %v2794
        %v2923 = vmul.f32 %v2795, %v2795
        %v2924 = vmul.f32 %v2796, %v2796
        %v2925 = vmul.f32 %v2797, %v2797
        %v2926 = vmul.f32 %v2798, %v2798
        %v2927 = vmul.f32 %v2799, %v2799
        %v2928 = vmul.f32 %v2800, %v2800
        %v2929 = vmul.f32 %v2801, %v2801
        %v2930 = vmul.f32 %v2802, %v2802
        %v2931 = vmul.f32 %v2803, %v2803
        %v2932 = vmul.f32 %v2804, %v2804
        %v2933 = vmul.f32 %v2805, %v2805
        %v2934 = vmul.f32 %v2806, %v2806
        %v2935 = vmul.f32 %v2807, %v2807
        %v2936 = vmul.f32 %v2808, %v2808
        %v2937 = vmul.f32 %v2809, %v2809
        %v2938 = vmul.f32 %v2810, %v2810
        %v2939 = vmul.f32 %v2811, %v2811
        %v2940 = vmul.f32 %v2812, %v2812
        %v2941 = vmul.f32 %v2813, %v2813
        %v2942 = vmul.f32 %v2814, %v2814
        %v2943 = vmul.f32 %v2815, %v2815
        %v2944 = vmul.f32 %v2816, %v2816
        %v2945 = vmul.f32 %v2817, %v2817
        %v2946 = vmul.f32 %v2818, %v2818
        %v2947 = vmul.f32 %v2819, %v2819
        %v2948 = vmul.f32 %v2820, %v2820
        %v2949 = vmul.f32 %v2821, %v2821
        %v2950 = vmul.f32 %v2822, %v2822
        %v2951 = vmul.f32 %v2823, %v2823
        %v2952 = vmul.f32 %v2824, %v2824
        %v2953 = vmul.f32 %v2825, %v2825
        %v2954 = vmul.f32 %v2826, %v2826
        %v2955 = vmul.f32 %v2827, %v2827
        %v2956 = vmul.f32 %v2828, %v2828
        %v2957 = vmul.f32 %v2829, %v2829
        %v2958 = vmul.f32 %v2830, %v2830
        %v2959 = vmul.f32 %v2831, %v2831
        %v2960 = vmul.f32 %v2832, %v2832
        %v2961 = vmul.f32 %v2833, %v2833
        %v2962 = vmul.f32 %v2834, %v2834
        %v2963 = vmul.f32 %v2835, %v2835
        %v2964 = vmul.f32 %v2836, %v2836
        %v2965 = vmul.f32 %v2837, %v2837
        %v2966 = vmul.f32 %v2838, %v2838
        %v2967 = vmul.f32 %v2839, %v2839
        %v2968 = vmul.f32 %v2840, %v2840
        %v2969 = vmul.f32 %v2841, %v2841
        %v2970 = vmul.f32 %v2842, %v2842
        %v2971 = vmul.f32 %v2843, %v2843
        %v2972 = vmul.f32 %v2844, %v2844
        %v2973 = vmul.f32 %v2845, %v2845
        %v2974 = vmul.f32 %v2846, %v2846
        %v2975 = vmul.f32 %v2847, %v2847
        %v2976 = vmul.f32 %v2848, %v2848
        %v2977 = vmul.f32 %v2849, %v2849
        %v2978 = vmul.f32 %v2850, %v2850
        %v2979 = vmul.f32 %v2851, %v2851
        %v2980 = vmul.f32 %v2852, %v2852
        %v2981 = vmul.f32 %v2853, %v2853
        %v2982 = vmul.f32 %v2854, %v2854
        %v2983 = vmul.f32 %v2855, %v2855
        %v2984 = vmul.f32 %v2856, %v2856
        %v2985 = vmul.f32 %v2857, %v2857
        %v2986 = vmul.f32 %v2858, %v2858
        %v2987 = vmul.f32 %v2859, %v2859
        %v2988 = vmul.f32 %v2860, %v2860
        %v2989 = vmul.f32 %v2861, %v2861
        %v2990 = vmul.f32 %v2862, %v2862
        %v2991 = vmul.f32 %v2863, %v2863
        %v2992 = vmul.f32 %v2864, %v2864
        %v2993 = vmul.f32 %v2865, %v2865
        %v2994 = vmul.f32 %v2866, %v2866
        %v2995 = vmul.f32 %v2867, %v2867
        %v2996 = vmul.f32 %v2868, %v2868
        %v2997 = vmul.f32 %v2869, %v2869
        %v2998 = vmul.f32 %v2870, %v2870
        %v2999 = vmul.f32 %v2871, %v2871
        %v3000 = vmul.f32 %v2872, %v2872
        %v3001 = vmul.f32 %v2873, %v2873
        %v3002 = vmul.f32 %v2874, %v2874
        %v3003 = vmul.f32 %v2875, %v2875
        %v3004 = vmul.f32 %v2876, %v2876
        %v3005 = vmul.f32 %v2877, %v2877
        %v3006 = vmul.f32 %v2878, %v2878
        %v3007 = vmul.f32 %v2879, %v2879
        %v3008 = vmul.f32 %v2880, %v2880
        %v3009 = vmul.f32 %v2881, %v2881
        %v3010 = vmul.f32 %v2882, %v2882
        %v3011 = vmul.f32 %v2883, %v2883
        %v3012 = vmul.f32 %v2884, %v2884
        %v3013 = vsel %vm1529, %v2885, 0.0
        %v3014 = vsel %vm1529, %v2886, 0.0
        %v3015 = vadd.f32 %v3013, %v3014
        %v3016 = vsel %vm1529, %v2887, 0.0
        %v3017 = vadd.f32 %v3015, %v3016
        %v3018 = vsel %vm1529, %v2888, 0.0
        %v3019 = vadd.f32 %v3017, %v3018
        %v3020 = vsel %vm1529, %v2889, 0.0
        %v3021 = vadd.f32 %v3019, %v3020
        %v3022 = vsel %vm1529, %v2890, 0.0
        %v3023 = vadd.f32 %v3021, %v3022
        %v3024 = vsel %vm1529, %v2891, 0.0
        %v3025 = vadd.f32 %v3023, %v3024
        %v3026 = vsel %vm1529, %v2892, 0.0
        %v3027 = vadd.f32 %v3025, %v3026
        %v3028 = vsel %vm1529, %v2893, 0.0
        %v3029 = vadd.f32 %v3027, %v3028
        %v3030 = vsel %vm1529, %v2894, 0.0
        %v3031 = vadd.f32 %v3029, %v3030
        %v3032 = vsel %vm1529, %v2895, 0.0
        %v3033 = vadd.f32 %v3031, %v3032
        %v3034 = vsel %vm1529, %v2896, 0.0
        %v3035 = vadd.f32 %v3033, %v3034
        %v3036 = vsel %vm1529, %v2897, 0.0
        %v3037 = vadd.f32 %v3035, %v3036
        %v3038 = vsel %vm1529, %v2898, 0.0
        %v3039 = vadd.f32 %v3037, %v3038
        %v3040 = vsel %vm1529, %v2899, 0.0
        %v3041 = vadd.f32 %v3039, %v3040
        %v3042 = vsel %vm1529, %v2900, 0.0
        %v3043 = vadd.f32 %v3041, %v3042
        %v3044 = vsel %vm1529, %v2901, 0.0
        %v3045 = vadd.f32 %v3043, %v3044
        %v3046 = vsel %vm1529, %v2902, 0.0
        %v3047 = vadd.f32 %v3045, %v3046
        %v3048 = vsel %vm1529, %v2903, 0.0
        %v3049 = vadd.f32 %v3047, %v3048
        %v3050 = vsel %vm1529, %v2904, 0.0
        %v3051 = vadd.f32 %v3049, %v3050
        %v3052 = vsel %vm1529, %v2905, 0.0
        %v3053 = vadd.f32 %v3051, %v3052
        %v3054 = vsel %vm1529, %v2906, 0.0
        %v3055 = vadd.f32 %v3053, %v3054
        %v3056 = vsel %vm1529, %v2907, 0.0
        %v3057 = vadd.f32 %v3055, %v3056
        %v3058 = vsel %vm1529, %v2908, 0.0
        %v3059 = vadd.f32 %v3057, %v3058
        %v3060 = vsel %vm1529, %v2909, 0.0
        %v3061 = vadd.f32 %v3059, %v3060
        %v3062 = vsel %vm1529, %v2910, 0.0
        %v3063 = vadd.f32 %v3061, %v3062
        %v3064 = vsel %vm1529, %v2911, 0.0
        %v3065 = vadd.f32 %v3063, %v3064
        %v3066 = vsel %vm1529, %v2912, 0.0
        %v3067 = vadd.f32 %v3065, %v3066
        %v3068 = vsel %vm1529, %v2913, 0.0
        %v3069 = vadd.f32 %v3067, %v3068
        %v3070 = vsel %vm1529, %v2914, 0.0
        %v3071 = vadd.f32 %v3069, %v3070
        %v3072 = vsel %vm1529, %v2915, 0.0
        %v3073 = vadd.f32 %v3071, %v3072
        %v3074 = vsel %vm1529, %v2916, 0.0
        %v3075 = vadd.f32 %v3073, %v3074
        %v3076 = vsel %vm1529, %v2917, 0.0
        %v3077 = vadd.f32 %v3075, %v3076
        %v3078 = vsel %vm1529, %v2918, 0.0
        %v3079 = vadd.f32 %v3077, %v3078
        %v3080 = vsel %vm1529, %v2919, 0.0
        %v3081 = vadd.f32 %v3079, %v3080
        %v3082 = vsel %vm1529, %v2920, 0.0
        %v3083 = vadd.f32 %v3081, %v3082
        %v3084 = vsel %vm1529, %v2921, 0.0
        %v3085 = vadd.f32 %v3083, %v3084
        %v3086 = vsel %vm1529, %v2922, 0.0
        %v3087 = vadd.f32 %v3085, %v3086
        %v3088 = vsel %vm1529, %v2923, 0.0
        %v3089 = vadd.f32 %v3087, %v3088
        %v3090 = vsel %vm1529, %v2924, 0.0
        %v3091 = vadd.f32 %v3089, %v3090
        %v3092 = vsel %vm1529, %v2925, 0.0
        %v3093 = vadd.f32 %v3091, %v3092
        %v3094 = vsel %vm1529, %v2926, 0.0
        %v3095 = vadd.f32 %v3093, %v3094
        %v3096 = vsel %vm1529, %v2927, 0.0
        %v3097 = vadd.f32 %v3095, %v3096
        %v3098 = vsel %vm1529, %v2928, 0.0
        %v3099 = vadd.f32 %v3097, %v3098
        %v3100 = vsel %vm1529, %v2929, 0.0
        %v3101 = vadd.f32 %v3099, %v3100
        %v3102 = vsel %vm1529, %v2930, 0.0
        %v3103 = vadd.f32 %v3101, %v3102
        %v3104 = vsel %vm1529, %v2931, 0.0
        %v3105 = vadd.f32 %v3103, %v3104
        %v3106 = vsel %vm1529, %v2932, 0.0
        %v3107 = vadd.f32 %v3105, %v3106
        %v3108 = vsel %vm1529, %v2933, 0.0
        %v3109 = vadd.f32 %v3107, %v3108
        %v3110 = vsel %vm1529, %v2934, 0.0
        %v3111 = vadd.f32 %v3109, %v3110
        %v3112 = vsel %vm1529, %v2935, 0.0
        %v3113 = vadd.f32 %v3111, %v3112
        %v3114 = vsel %vm1529, %v2936, 0.0
        %v3115 = vadd.f32 %v3113, %v3114
        %v3116 = vsel %vm1529, %v2937, 0.0
        %v3117 = vadd.f32 %v3115, %v3116
        %v3118 = vsel %vm1529, %v2938, 0.0
        %v3119 = vadd.f32 %v3117, %v3118
        %v3120 = vsel %vm1529, %v2939, 0.0
        %v3121 = vadd.f32 %v3119, %v3120
        %v3122 = vsel %vm1529, %v2940, 0.0
        %v3123 = vadd.f32 %v3121, %v3122
        %v3124 = vsel %vm1529, %v2941, 0.0
        %v3125 = vadd.f32 %v3123, %v3124
        %v3126 = vsel %vm1529, %v2942, 0.0
        %v3127 = vadd.f32 %v3125, %v3126
        %v3128 = vsel %vm1529, %v2943, 0.0
        %v3129 = vadd.f32 %v3127, %v3128
        %v3130 = vsel %vm1529, %v2944, 0.0
        %v3131 = vadd.f32 %v3129, %v3130
        %v3132 = vsel %vm1529, %v2945, 0.0
        %v3133 = vadd.f32 %v3131, %v3132
        %v3134 = vsel %vm1529, %v2946, 0.0
        %v3135 = vadd.f32 %v3133, %v3134
        %v3136 = vsel %vm1529, %v2947, 0.0
        %v3137 = vadd.f32 %v3135, %v3136
        %v3138 = vsel %vm1529, %v2948, 0.0
        %v3139 = vadd.f32 %v3137, %v3138
        %v3140 = vsel %vm1529, %v2949, 0.0
        %v3141 = vadd.f32 %v3139, %v3140
        %v3142 = vsel %vm1529, %v2950, 0.0
        %v3143 = vadd.f32 %v3141, %v3142
        %v3144 = vsel %vm1529, %v2951, 0.0
        %v3145 = vadd.f32 %v3143, %v3144
        %v3146 = vsel %vm1529, %v2952, 0.0
        %v3147 = vadd.f32 %v3145, %v3146
        %v3148 = vsel %vm1529, %v2953, 0.0
        %v3149 = vadd.f32 %v3147, %v3148
        %v3150 = vsel %vm1529, %v2954, 0.0
        %v3151 = vadd.f32 %v3149, %v3150
        %v3152 = vsel %vm1529, %v2955, 0.0
        %v3153 = vadd.f32 %v3151, %v3152
        %v3154 = vsel %vm1529, %v2956, 0.0
        %v3155 = vadd.f32 %v3153, %v3154
        %v3156 = vsel %vm1529, %v2957, 0.0
        %v3157 = vadd.f32 %v3155, %v3156
        %v3158 = vsel %vm1529, %v2958, 0.0
        %v3159 = vadd.f32 %v3157, %v3158
        %v3160 = vsel %vm1529, %v2959, 0.0
        %v3161 = vadd.f32 %v3159, %v3160
        %v3162 = vsel %vm1529, %v2960, 0.0
        %v3163 = vadd.f32 %v3161, %v3162
        %v3164 = vsel %vm1529, %v2961, 0.0
        %v3165 = vadd.f32 %v3163, %v3164
        %v3166 = vsel %vm1529, %v2962, 0.0
        %v3167 = vadd.f32 %v3165, %v3166
        %v3168 = vsel %vm1529, %v2963, 0.0
        %v3169 = vadd.f32 %v3167, %v3168
        %v3170 = vsel %vm1529, %v2964, 0.0
        %v3171 = vadd.f32 %v3169, %v3170
        %v3172 = vsel %vm1529, %v2965, 0.0
        %v3173 = vadd.f32 %v3171, %v3172
        %v3174 = vsel %vm1529, %v2966, 0.0
        %v3175 = vadd.f32 %v3173, %v3174
        %v3176 = vsel %vm1529, %v2967, 0.0
        %v3177 = vadd.f32 %v3175, %v3176
        %v3178 = vsel %vm1529, %v2968, 0.0
        %v3179 = vadd.f32 %v3177, %v3178
        %v3180 = vsel %vm1529, %v2969, 0.0
        %v3181 = vadd.f32 %v3179, %v3180
        %v3182 = vsel %vm1529, %v2970, 0.0
        %v3183 = vadd.f32 %v3181, %v3182
        %v3184 = vsel %vm1529, %v2971, 0.0
        %v3185 = vadd.f32 %v3183, %v3184
        %v3186 = vsel %vm1529, %v2972, 0.0
        %v3187 = vadd.f32 %v3185, %v3186
        %v3188 = vsel %vm1529, %v2973, 0.0
        %v3189 = vadd.f32 %v3187, %v3188
        %v3190 = vsel %vm1529, %v2974, 0.0
        %v3191 = vadd.f32 %v3189, %v3190
        %v3192 = vsel %vm1529, %v2975, 0.0
        %v3193 = vadd.f32 %v3191, %v3192
        %v3194 = vsel %vm1529, %v2976, 0.0
        %v3195 = vadd.f32 %v3193, %v3194
        %v3196 = vsel %vm1529, %v2977, 0.0
        %v3197 = vadd.f32 %v3195, %v3196
        %v3198 = vsel %vm1529, %v2978, 0.0
        %v3199 = vadd.f32 %v3197, %v3198
        %v3200 = vsel %vm1529, %v2979, 0.0
        %v3201 = vadd.f32 %v3199, %v3200
        %v3202 = vsel %vm1529, %v2980, 0.0
        %v3203 = vadd.f32 %v3201, %v3202
        %v3204 = vsel %vm1529, %v2981, 0.0
        %v3205 = vadd.f32 %v3203, %v3204
        %v3206 = vsel %vm1529, %v2982, 0.0
        %v3207 = vadd.f32 %v3205, %v3206
        %v3208 = vsel %vm1529, %v2983, 0.0
        %v3209 = vadd.f32 %v3207, %v3208
        %v3210 = vsel %vm1529, %v2984, 0.0
        %v3211 = vadd.f32 %v3209, %v3210
        %v3212 = vsel %vm1529, %v2985, 0.0
        %v3213 = vadd.f32 %v3211, %v3212
        %v3214 = vsel %vm1529, %v2986, 0.0
        %v3215 = vadd.f32 %v3213, %v3214
        %v3216 = vsel %vm1529, %v2987, 0.0
        %v3217 = vadd.f32 %v3215, %v3216
        %v3218 = vsel %vm1529, %v2988, 0.0
        %v3219 = vadd.f32 %v3217, %v3218
        %v3220 = vsel %vm1529, %v2989, 0.0
        %v3221 = vadd.f32 %v3219, %v3220
        %v3222 = vsel %vm1529, %v2990, 0.0
        %v3223 = vadd.f32 %v3221, %v3222
        %v3224 = vsel %vm1529, %v2991, 0.0
        %v3225 = vadd.f32 %v3223, %v3224
        %v3226 = vsel %vm1529, %v2992, 0.0
        %v3227 = vadd.f32 %v3225, %v3226
        %v3228 = vsel %vm1529, %v2993, 0.0
        %v3229 = vadd.f32 %v3227, %v3228
        %v3230 = vsel %vm1529, %v2994, 0.0
        %v3231 = vadd.f32 %v3229, %v3230
        %v3232 = vsel %vm1529, %v2995, 0.0
        %v3233 = vadd.f32 %v3231, %v3232
        %v3234 = vsel %vm1529, %v2996, 0.0
        %v3235 = vadd.f32 %v3233, %v3234
        %v3236 = vsel %vm1529, %v2997, 0.0
        %v3237 = vadd.f32 %v3235, %v3236
        %v3238 = vsel %vm1529, %v2998, 0.0
        %v3239 = vadd.f32 %v3237, %v3238
        %v3240 = vsel %vm1529, %v2999, 0.0
        %v3241 = vadd.f32 %v3239, %v3240
        %v3242 = vsel %vm1529, %v3000, 0.0
        %v3243 = vadd.f32 %v3241, %v3242
        %v3244 = vsel %vm1529, %v3001, 0.0
        %v3245 = vadd.f32 %v3243, %v3244
        %v3246 = vsel %vm1529, %v3002, 0.0
        %v3247 = vadd.f32 %v3245, %v3246
        %v3248 = vsel %vm1529, %v3003, 0.0
        %v3249 = vadd.f32 %v3247, %v3248
        %v3250 = vsel %vm1529, %v3004, 0.0
        %v3251 = vadd.f32 %v3249, %v3250
        %v3252 = vsel %vm1529, %v3005, 0.0
        %v3253 = vadd.f32 %v3251, %v3252
        %v3254 = vsel %vm1529, %v3006, 0.0
        %v3255 = vadd.f32 %v3253, %v3254
        %v3256 = vsel %vm1529, %v3007, 0.0
        %v3257 = vadd.f32 %v3255, %v3256
        %v3258 = vsel %vm1529, %v3008, 0.0
        %v3259 = vadd.f32 %v3257, %v3258
        %v3260 = vsel %vm1529, %v3009, 0.0
        %v3261 = vadd.f32 %v3259, %v3260
        %v3262 = vsel %vm1529, %v3010, 0.0
        %v3263 = vadd.f32 %v3261, %v3262
        %v3264 = vsel %vm1529, %v3011, 0.0
        %v3265 = vadd.f32 %v3263, %v3264
        %v3266 = vsel %vm1529, %v3012, 0.0
        %v3267 = vadd.f32 %v3265, %v3266
        %v3268 = vrot.slane %v3267, 4
        %v3269 = vadd.f32 %v3267, %v3268
        %v3270 = vrot.slane %v3269, 2
        %v3271 = vadd.f32 %v3269, %v3270
        %v3272 = vrot.slane %v3271, 1
        %v3273 = vadd.f32 %v3271, %v3272
        %v3274 = vmul.f32 %v3273, 0.0011904762
        %v3275 = vadd.f32 %v3274, 1e-05
        %v3276 = vrsqrt.pop %v3275
        %v3277 = vmul.f32 %v2629, %v3276
        %v3278 = vmul.f32 %v2630, %v3276
        %v3279 = vmul.f32 %v2631, %v3276
        %v3280 = vmul.f32 %v2632, %v3276
        %v3281 = vmul.f32 %v2633, %v3276
        %v3282 = vmul.f32 %v2634, %v3276
        %v3283 = vmul.f32 %v2635, %v3276
        %v3284 = vmul.f32 %v2636, %v3276
        %v3285 = vmul.f32 %v2637, %v3276
        %v3286 = vmul.f32 %v2638, %v3276
        %v3287 = vmul.f32 %v2639, %v3276
        %v3288 = vmul.f32 %v2640, %v3276
        %v3289 = vmul.f32 %v2641, %v3276
        %v3290 = vmul.f32 %v2642, %v3276
        %v3291 = vmul.f32 %v2643, %v3276
        %v3292 = vmul.f32 %v2644, %v3276
        %v3293 = vmul.f32 %v2645, %v3276
        %v3294 = vmul.f32 %v2646, %v3276
        %v3295 = vmul.f32 %v2647, %v3276
        %v3296 = vmul.f32 %v2648, %v3276
        %v3297 = vmul.f32 %v2649, %v3276
        %v3298 = vmul.f32 %v2650, %v3276
        %v3299 = vmul.f32 %v2651, %v3276
        %v3300 = vmul.f32 %v2652, %v3276
        %v3301 = vmul.f32 %v2653, %v3276
        %v3302 = vmul.f32 %v2654, %v3276
        %v3303 = vmul.f32 %v2655, %v3276
        %v3304 = vmul.f32 %v2656, %v3276
        %v3305 = vmul.f32 %v2657, %v3276
        %v3306 = vmul.f32 %v2658, %v3276
        %v3307 = vmul.f32 %v2659, %v3276
        %v3308 = vmul.f32 %v2660, %v3276
        %v3309 = vmul.f32 %v2661, %v3276
        %v3310 = vmul.f32 %v2662, %v3276
        %v3311 = vmul.f32 %v2663, %v3276
        %v3312 = vmul.f32 %v2664, %v3276
        %v3313 = vmul.f32 %v2665, %v3276
        %v3314 = vmul.f32 %v2666, %v3276
        %v3315 = vmul.f32 %v2667, %v3276
        %v3316 = vmul.f32 %v2668, %v3276
        %v3317 = vmul.f32 %v2669, %v3276
        %v3318 = vmul.f32 %v2670, %v3276
        %v3319 = vmul.f32 %v2671, %v3276
        %v3320 = vmul.f32 %v2672, %v3276
        %v3321 = vmul.f32 %v2673, %v3276
        %v3322 = vmul.f32 %v2674, %v3276
        %v3323 = vmul.f32 %v2675, %v3276
        %v3324 = vmul.f32 %v2676, %v3276
        %v3325 = vmul.f32 %v2677, %v3276
        %v3326 = vmul.f32 %v2678, %v3276
        %v3327 = vmul.f32 %v2679, %v3276
        %v3328 = vmul.f32 %v2680, %v3276
        %v3329 = vmul.f32 %v2681, %v3276
        %v3330 = vmul.f32 %v2682, %v3276
        %v3331 = vmul.f32 %v2683, %v3276
        %v3332 = vmul.f32 %v2684, %v3276
        %v3333 = vmul.f32 %v2685, %v3276
        %v3334 = vmul.f32 %v2686, %v3276
        %v3335 = vmul.f32 %v2687, %v3276
        %v3336 = vmul.f32 %v2688, %v3276
        %v3337 = vmul.f32 %v2689, %v3276
        %v3338 = vmul.f32 %v2690, %v3276
        %v3339 = vmul.f32 %v2691, %v3276
        %v3340 = vmul.f32 %v2692, %v3276
        %v3341 = vmul.f32 %v2693, %v3276
        %v3342 = vmul.f32 %v2694, %v3276
        %v3343 = vmul.f32 %v2695, %v3276
        %v3344 = vmul.f32 %v2696, %v3276
        %v3345 = vmul.f32 %v2697, %v3276
        %v3346 = vmul.f32 %v2698, %v3276
        %v3347 = vmul.f32 %v2699, %v3276
        %v3348 = vmul.f32 %v2700, %v3276
        %v3349 = vmul.f32 %v2701, %v3276
        %v3350 = vmul.f32 %v2702, %v3276
        %v3351 = vmul.f32 %v2703, %v3276
        %v3352 = vmul.f32 %v2704, %v3276
        %v3353 = vmul.f32 %v2705, %v3276
        %v3354 = vmul.f32 %v2706, %v3276
        %v3355 = vmul.f32 %v2707, %v3276
        %v3356 = vmul.f32 %v2708, %v3276
        %v3357 = vmul.f32 %v2709, %v3276
        %v3358 = vmul.f32 %v2710, %v3276
        %v3359 = vmul.f32 %v2711, %v3276
        %v3360 = vmul.f32 %v2712, %v3276
        %v3361 = vmul.f32 %v2713, %v3276
        %v3362 = vmul.f32 %v2714, %v3276
        %v3363 = vmul.f32 %v2715, %v3276
        %v3364 = vmul.f32 %v2716, %v3276
        %v3365 = vmul.f32 %v2717, %v3276
        %v3366 = vmul.f32 %v2718, %v3276
        %v3367 = vmul.f32 %v2719, %v3276
        %v3368 = vmul.f32 %v2720, %v3276
        %v3369 = vmul.f32 %v2721, %v3276
        %v3370 = vmul.f32 %v2722, %v3276
        %v3371 = vmul.f32 %v2723, %v3276
        %v3372 = vmul.f32 %v2724, %v3276
        %v3373 = vmul.f32 %v2725, %v3276
        %v3374 = vmul.f32 %v2726, %v3276
        %v3375 = vmul.f32 %v2727, %v3276
        %v3376 = vmul.f32 %v2728, %v3276
        %v3377 = vmul.f32 %v2729, %v3276
        %v3378 = vmul.f32 %v2730, %v3276
        %v3379 = vmul.f32 %v2731, %v3276
        %v3380 = vmul.f32 %v2732, %v3276
        %v3381 = vmul.f32 %v2733, %v3276
        %v3382 = vld [vmem:[%s3] sm:$0x1]
        %v3384 = vlaneseq
        %v3385 = vshrl.u32 %v3384, 7
        %v3386 = vsub.s32 0, %v3385
        %v3387 = vrot.slane %v3382, %v3386
        %v3389 = vmul.f32 %v3277, %v3387
        %v3390 = vmul.f32 %v3278, %v3387
        %v3391 = vmul.f32 %v3279, %v3387
        %v3392 = vmul.f32 %v3280, %v3387
        %v3393 = vmul.f32 %v3281, %v3387
        %v3394 = vmul.f32 %v3282, %v3387
        %v3395 = vmul.f32 %v3283, %v3387
        %v3396 = vmul.f32 %v3284, %v3387
        %v3397 = vmul.f32 %v3285, %v3387
        %v3398 = vmul.f32 %v3286, %v3387
        %v3399 = vmul.f32 %v3287, %v3387
        %v3400 = vmul.f32 %v3288, %v3387
        %v3401 = vmul.f32 %v3289, %v3387
        %v3402 = vmul.f32 %v3290, %v3387
        %v3403 = vmul.f32 %v3291, %v3387
        %v3404 = vmul.f32 %v3292, %v3387
        %v3405 = vmul.f32 %v3293, %v3387
        %v3406 = vmul.f32 %v3294, %v3387
        %v3407 = vmul.f32 %v3295, %v3387
        %v3408 = vmul.f32 %v3296, %v3387
        %v3409 = vmul.f32 %v3297, %v3387
        %v3410 = vmul.f32 %v3298, %v3387
        %v3411 = vmul.f32 %v3299, %v3387
        %v3412 = vmul.f32 %v3300, %v3387
        %v3413 = vmul.f32 %v3301, %v3387
        %v3414 = vmul.f32 %v3302, %v3387
        %v3415 = vmul.f32 %v3303, %v3387
        %v3416 = vmul.f32 %v3304, %v3387
        %v3417 = vmul.f32 %v3305, %v3387
        %v3418 = vmul.f32 %v3306, %v3387
        %v3419 = vmul.f32 %v3307, %v3387
        %v3420 = vmul.f32 %v3308, %v3387
        %v3421 = vmul.f32 %v3309, %v3387
        %v3422 = vmul.f32 %v3310, %v3387
        %v3423 = vmul.f32 %v3311, %v3387
        %v3424 = vmul.f32 %v3312, %v3387
        %v3425 = vmul.f32 %v3313, %v3387
        %v3426 = vmul.f32 %v3314, %v3387
        %v3427 = vmul.f32 %v3315, %v3387
        %v3428 = vmul.f32 %v3316, %v3387
        %v3429 = vmul.f32 %v3317, %v3387
        %v3430 = vmul.f32 %v3318, %v3387
        %v3431 = vmul.f32 %v3319, %v3387
        %v3432 = vmul.f32 %v3320, %v3387
        %v3433 = vmul.f32 %v3321, %v3387
        %v3434 = vmul.f32 %v3322, %v3387
        %v3435 = vmul.f32 %v3323, %v3387
        %v3436 = vmul.f32 %v3324, %v3387
        %v3437 = vmul.f32 %v3325, %v3387
        %v3438 = vmul.f32 %v3326, %v3387
        %v3439 = vmul.f32 %v3327, %v3387
        %v3440 = vmul.f32 %v3328, %v3387
        %v3441 = vmul.f32 %v3329, %v3387
        %v3442 = vmul.f32 %v3330, %v3387
        %v3443 = vmul.f32 %v3331, %v3387
        %v3444 = vmul.f32 %v3332, %v3387
        %v3445 = vmul.f32 %v3333, %v3387
        %v3446 = vmul.f32 %v3334, %v3387
        %v3447 = vmul.f32 %v3335, %v3387
        %v3448 = vmul.f32 %v3336, %v3387
        %v3449 = vmul.f32 %v3337, %v3387
        %v3450 = vmul.f32 %v3338, %v3387
        %v3451 = vmul.f32 %v3339, %v3387
        %v3452 = vmul.f32 %v3340, %v3387
        %v3453 = vmul.f32 %v3341, %v3387
        %v3454 = vmul.f32 %v3342, %v3387
        %v3455 = vmul.f32 %v3343, %v3387
        %v3456 = vmul.f32 %v3344, %v3387
        %v3457 = vmul.f32 %v3345, %v3387
        %v3458 = vmul.f32 %v3346, %v3387
        %v3459 = vmul.f32 %v3347, %v3387
        %v3460 = vmul.f32 %v3348, %v3387
        %v3461 = vmul.f32 %v3349, %v3387
        %v3462 = vmul.f32 %v3350, %v3387
        %v3463 = vmul.f32 %v3351, %v3387
        %v3464 = vmul.f32 %v3352, %v3387
        %v3465 = vmul.f32 %v3353, %v3387
        %v3466 = vmul.f32 %v3354, %v3387
        %v3467 = vmul.f32 %v3355, %v3387
        %v3468 = vmul.f32 %v3356, %v3387
        %v3469 = vmul.f32 %v3357, %v3387
        %v3470 = vmul.f32 %v3358, %v3387
        %v3471 = vmul.f32 %v3359, %v3387
        %v3472 = vmul.f32 %v3360, %v3387
        %v3473 = vmul.f32 %v3361, %v3387
        %v3474 = vmul.f32 %v3362, %v3387
        %v3475 = vmul.f32 %v3363, %v3387
        %v3476 = vmul.f32 %v3364, %v3387
        %v3477 = vmul.f32 %v3365, %v3387
        %v3478 = vmul.f32 %v3366, %v3387
        %v3479 = vmul.f32 %v3367, %v3387
        %v3480 = vmul.f32 %v3368, %v3387
        %v3481 = vmul.f32 %v3369, %v3387
        %v3482 = vmul.f32 %v3370, %v3387
        %v3483 = vmul.f32 %v3371, %v3387
        %v3484 = vmul.f32 %v3372, %v3387
        %v3485 = vmul.f32 %v3373, %v3387
        %v3486 = vmul.f32 %v3374, %v3387
        %v3487 = vmul.f32 %v3375, %v3387
        %v3488 = vmul.f32 %v3376, %v3387
        %v3489 = vmul.f32 %v3377, %v3387
        %v3490 = vmul.f32 %v3378, %v3387
        %v3491 = vmul.f32 %v3379, %v3387
        %v3492 = vmul.f32 %v3380, %v3387
        %v3493 = vmul.f32 %v3381, %v3387
        %v3494 = vld [vmem:[%s4] sm:$0x1]
        %v3496 = vlaneseq
        %v3497 = vshrl.u32 %v3496, 7
        %v3498 = vsub.s32 0, %v3497
        %v3499 = vrot.slane %v3494, %v3498
        %v3501 = vadd.f32 %v3389, %v3499
        %v3502 = vadd.f32 %v3390, %v3499
        %v3503 = vadd.f32 %v3391, %v3499
        %v3504 = vadd.f32 %v3392, %v3499
        %v3505 = vadd.f32 %v3393, %v3499
        %v3506 = vadd.f32 %v3394, %v3499
        %v3507 = vadd.f32 %v3395, %v3499
        %v3508 = vadd.f32 %v3396, %v3499
        %v3509 = vadd.f32 %v3397, %v3499
        %v3510 = vadd.f32 %v3398, %v3499
        %v3511 = vadd.f32 %v3399, %v3499
        %v3512 = vadd.f32 %v3400, %v3499
        %v3513 = vadd.f32 %v3401, %v3499
        %v3514 = vadd.f32 %v3402, %v3499
        %v3515 = vadd.f32 %v3403, %v3499
        %v3516 = vadd.f32 %v3404, %v3499
        %v3517 = vadd.f32 %v3405, %v3499
        %v3518 = vadd.f32 %v3406, %v3499
        %v3519 = vadd.f32 %v3407, %v3499
        %v3520 = vadd.f32 %v3408, %v3499
        %v3521 = vadd.f32 %v3409, %v3499
        %v3522 = vadd.f32 %v3410, %v3499
        %v3523 = vadd.f32 %v3411, %v3499
        %v3524 = vadd.f32 %v3412, %v3499
        %v3525 = vadd.f32 %v3413, %v3499
        %v3526 = vadd.f32 %v3414, %v3499
        %v3527 = vadd.f32 %v3415, %v3499
        %v3528 = vadd.f32 %v3416, %v3499
        %v3529 = vadd.f32 %v3417, %v3499
        %v3530 = vadd.f32 %v3418, %v3499
        %v3531 = vadd.f32 %v3419, %v3499
        %v3532 = vadd.f32 %v3420, %v3499
        %v3533 = vadd.f32 %v3421, %v3499
        %v3534 = vadd.f32 %v3422, %v3499
        %v3535 = vadd.f32 %v3423, %v3499
        %v3536 = vadd.f32 %v3424, %v3499
        %v3537 = vadd.f32 %v3425, %v3499
        %v3538 = vadd.f32 %v3426, %v3499
        %v3539 = vadd.f32 %v3427, %v3499
        %v3540 = vadd.f32 %v3428, %v3499
        %v3541 = vadd.f32 %v3429, %v3499
        %v3542 = vadd.f32 %v3430, %v3499
        %v3543 = vadd.f32 %v3431, %v3499
        %v3544 = vadd.f32 %v3432, %v3499
        %v3545 = vadd.f32 %v3433, %v3499
        %v3546 = vadd.f32 %v3434, %v3499
        %v3547 = vadd.f32 %v3435, %v3499
        %v3548 = vadd.f32 %v3436, %v3499
        %v3549 = vadd.f32 %v3437, %v3499
        %v3550 = vadd.f32 %v3438, %v3499
        %v3551 = vadd.f32 %v3439, %v3499
        %v3552 = vadd.f32 %v3440, %v3499
        %v3553 = vadd.f32 %v3441, %v3499
        %v3554 = vadd.f32 %v3442, %v3499
        %v3555 = vadd.f32 %v3443, %v3499
        %v3556 = vadd.f32 %v3444, %v3499
        %v3557 = vadd.f32 %v3445, %v3499
        %v3558 = vadd.f32 %v3446, %v3499
        %v3559 = vadd.f32 %v3447, %v3499
        %v3560 = vadd.f32 %v3448, %v3499
        %v3561 = vadd.f32 %v3449, %v3499
        %v3562 = vadd.f32 %v3450, %v3499
        %v3563 = vadd.f32 %v3451, %v3499
        %v3564 = vadd.f32 %v3452, %v3499
        %v3565 = vadd.f32 %v3453, %v3499
        %v3566 = vadd.f32 %v3454, %v3499
        %v3567 = vadd.f32 %v3455, %v3499
        %v3568 = vadd.f32 %v3456, %v3499
        %v3569 = vadd.f32 %v3457, %v3499
        %v3570 = vadd.f32 %v3458, %v3499
        %v3571 = vadd.f32 %v3459, %v3499
        %v3572 = vadd.f32 %v3460, %v3499
        %v3573 = vadd.f32 %v3461, %v3499
        %v3574 = vadd.f32 %v3462, %v3499
        %v3575 = vadd.f32 %v3463, %v3499
        %v3576 = vadd.f32 %v3464, %v3499
        %v3577 = vadd.f32 %v3465, %v3499
        %v3578 = vadd.f32 %v3466, %v3499
        %v3579 = vadd.f32 %v3467, %v3499
        %v3580 = vadd.f32 %v3468, %v3499
        %v3581 = vadd.f32 %v3469, %v3499
        %v3582 = vadd.f32 %v3470, %v3499
        %v3583 = vadd.f32 %v3471, %v3499
        %v3584 = vadd.f32 %v3472, %v3499
        %v3585 = vadd.f32 %v3473, %v3499
        %v3586 = vadd.f32 %v3474, %v3499
        %v3587 = vadd.f32 %v3475, %v3499
        %v3588 = vadd.f32 %v3476, %v3499
        %v3589 = vadd.f32 %v3477, %v3499
        %v3590 = vadd.f32 %v3478, %v3499
        %v3591 = vadd.f32 %v3479, %v3499
        %v3592 = vadd.f32 %v3480, %v3499
        %v3593 = vadd.f32 %v3481, %v3499
        %v3594 = vadd.f32 %v3482, %v3499
        %v3595 = vadd.f32 %v3483, %v3499
        %v3596 = vadd.f32 %v3484, %v3499
        %v3597 = vadd.f32 %v3485, %v3499
        %v3598 = vadd.f32 %v3486, %v3499
        %v3599 = vadd.f32 %v3487, %v3499
        %v3600 = vadd.f32 %v3488, %v3499
        %v3601 = vadd.f32 %v3489, %v3499
        %v3602 = vadd.f32 %v3490, %v3499
        %v3603 = vadd.f32 %v3491, %v3499
        %v3604 = vadd.f32 %v3492, %v3499
        %v3605 = vadd.f32 %v3493, %v3499
        %v3606 = vmax.f32 %v3501, 0.0
        %v3607 = vmax.f32 %v3502, 0.0
        %v3608 = vmax.f32 %v3503, 0.0
        %v3609 = vmax.f32 %v3504, 0.0
        %v3610 = vmax.f32 %v3505, 0.0
        %v3611 = vmax.f32 %v3506, 0.0
        %v3612 = vmax.f32 %v3507, 0.0
        %v3613 = vmax.f32 %v3508, 0.0
        %v3614 = vmax.f32 %v3509, 0.0
        %v3615 = vmax.f32 %v3510, 0.0
        %v3616 = vmax.f32 %v3511, 0.0
        %v3617 = vmax.f32 %v3512, 0.0
        %v3618 = vmax.f32 %v3513, 0.0
        %v3619 = vmax.f32 %v3514, 0.0
        %v3620 = vmax.f32 %v3515, 0.0
        %v3621 = vmax.f32 %v3516, 0.0
        %v3622 = vmax.f32 %v3517, 0.0
        %v3623 = vmax.f32 %v3518, 0.0
        %v3624 = vmax.f32 %v3519, 0.0
        %v3625 = vmax.f32 %v3520, 0.0
        %v3626 = vmax.f32 %v3521, 0.0
        %v3627 = vmax.f32 %v3522, 0.0
        %v3628 = vmax.f32 %v3523, 0.0
        %v3629 = vmax.f32 %v3524, 0.0
        %v3630 = vmax.f32 %v3525, 0.0
        %v3631 = vmax.f32 %v3526, 0.0
        %v3632 = vmax.f32 %v3527, 0.0
        %v3633 = vmax.f32 %v3528, 0.0
        %v3634 = vmax.f32 %v3529, 0.0
        %v3635 = vmax.f32 %v3530, 0.0
        %v3636 = vmax.f32 %v3531, 0.0
        %v3637 = vmax.f32 %v3532, 0.0
        %v3638 = vmax.f32 %v3533, 0.0
        %v3639 = vmax.f32 %v3534, 0.0
        %v3640 = vmax.f32 %v3535, 0.0
        %v3641 = vmax.f32 %v3536, 0.0
        %v3642 = vmax.f32 %v3537, 0.0
        %v3643 = vmax.f32 %v3538, 0.0
        %v3644 = vmax.f32 %v3539, 0.0
        %v3645 = vmax.f32 %v3540, 0.0
        %v3646 = vmax.f32 %v3541, 0.0
        %v3647 = vmax.f32 %v3542, 0.0
        %v3648 = vmax.f32 %v3543, 0.0
        %v3649 = vmax.f32 %v3544, 0.0
        %v3650 = vmax.f32 %v3545, 0.0
        %v3651 = vmax.f32 %v3546, 0.0
        %v3652 = vmax.f32 %v3547, 0.0
        %v3653 = vmax.f32 %v3548, 0.0
        %v3654 = vmax.f32 %v3549, 0.0
        %v3655 = vmax.f32 %v3550, 0.0
        %v3656 = vmax.f32 %v3551, 0.0
        %v3657 = vmax.f32 %v3552, 0.0
        %v3658 = vmax.f32 %v3553, 0.0
        %v3659 = vmax.f32 %v3554, 0.0
        %v3660 = vmax.f32 %v3555, 0.0
        %v3661 = vmax.f32 %v3556, 0.0
        %v3662 = vmax.f32 %v3557, 0.0
        %v3663 = vmax.f32 %v3558, 0.0
        %v3664 = vmax.f32 %v3559, 0.0
        %v3665 = vmax.f32 %v3560, 0.0
        %v3666 = vmax.f32 %v3561, 0.0
        %v3667 = vmax.f32 %v3562, 0.0
        %v3668 = vmax.f32 %v3563, 0.0
        %v3669 = vmax.f32 %v3564, 0.0
        %v3670 = vmax.f32 %v3565, 0.0
        %v3671 = vmax.f32 %v3566, 0.0
        %v3672 = vmax.f32 %v3567, 0.0
        %v3673 = vmax.f32 %v3568, 0.0
        %v3674 = vmax.f32 %v3569, 0.0
        %v3675 = vmax.f32 %v3570, 0.0
        %v3676 = vmax.f32 %v3571, 0.0
        %v3677 = vmax.f32 %v3572, 0.0
        %v3678 = vmax.f32 %v3573, 0.0
        %v3679 = vmax.f32 %v3574, 0.0
        %v3680 = vmax.f32 %v3575, 0.0
        %v3681 = vmax.f32 %v3576, 0.0
        %v3682 = vmax.f32 %v3577, 0.0
        %v3683 = vmax.f32 %v3578, 0.0
        %v3684 = vmax.f32 %v3579, 0.0
        %v3685 = vmax.f32 %v3580, 0.0
        %v3686 = vmax.f32 %v3581, 0.0
        %v3687 = vmax.f32 %v3582, 0.0
        %v3688 = vmax.f32 %v3583, 0.0
        %v3689 = vmax.f32 %v3584, 0.0
        %v3690 = vmax.f32 %v3585, 0.0
        %v3691 = vmax.f32 %v3586, 0.0
        %v3692 = vmax.f32 %v3587, 0.0
        %v3693 = vmax.f32 %v3588, 0.0
        %v3694 = vmax.f32 %v3589, 0.0
        %v3695 = vmax.f32 %v3590, 0.0
        %v3696 = vmax.f32 %v3591, 0.0
        %v3697 = vmax.f32 %v3592, 0.0
        %v3698 = vmax.f32 %v3593, 0.0
        %v3699 = vmax.f32 %v3594, 0.0
        %v3700 = vmax.f32 %v3595, 0.0
        %v3701 = vmax.f32 %v3596, 0.0
        %v3702 = vmax.f32 %v3597, 0.0
        %v3703 = vmax.f32 %v3598, 0.0
        %v3704 = vmax.f32 %v3599, 0.0
        %v3705 = vmax.f32 %v3600, 0.0
        %v3706 = vmax.f32 %v3601, 0.0
        %v3707 = vmax.f32 %v3602, 0.0
        %v3708 = vmax.f32 %v3603, 0.0
        %v3709 = vmax.f32 %v3604, 0.0
        %v3710 = vmax.f32 %v3605, 0.0
        %v3711 = vmin.f32 %v3606, 20.0
        %v3712 = vmin.f32 %v3607, 20.0
        %v3713 = vmin.f32 %v3608, 20.0
        %v3714 = vmin.f32 %v3609, 20.0
        %v3715 = vmin.f32 %v3610, 20.0
        %v3716 = vmin.f32 %v3611, 20.0
        %v3717 = vmin.f32 %v3612, 20.0
        %v3718 = vmin.f32 %v3613, 20.0
        %v3719 = vmin.f32 %v3614, 20.0
        %v3720 = vmin.f32 %v3615, 20.0
        %v3721 = vmin.f32 %v3616, 20.0
        %v3722 = vmin.f32 %v3617, 20.0
        %v3723 = vmin.f32 %v3618, 20.0
        %v3724 = vmin.f32 %v3619, 20.0
        %v3725 = vmin.f32 %v3620, 20.0
        %v3726 = vmin.f32 %v3621, 20.0
        %v3727 = vmin.f32 %v3622, 20.0
        %v3728 = vmin.f32 %v3623, 20.0
        %v3729 = vmin.f32 %v3624, 20.0
        %v3730 = vmin.f32 %v3625, 20.0
        %v3731 = vmin.f32 %v3626, 20.0
        %v3732 = vmin.f32 %v3627, 20.0
        %v3733 = vmin.f32 %v3628, 20.0
        %v3734 = vmin.f32 %v3629, 20.0
        %v3735 = vmin.f32 %v3630, 20.0
        %v3736 = vmin.f32 %v3631, 20.0
        %v3737 = vmin.f32 %v3632, 20.0
        %v3738 = vmin.f32 %v3633, 20.0
        %v3739 = vmin.f32 %v3634, 20.0
        %v3740 = vmin.f32 %v3635, 20.0
        %v3741 = vmin.f32 %v3636, 20.0
        %v3742 = vmin.f32 %v3637, 20.0
        %v3743 = vmin.f32 %v3638, 20.0
        %v3744 = vmin.f32 %v3639, 20.0
        %v3745 = vmin.f32 %v3640, 20.0
        %v3746 = vmin.f32 %v3641, 20.0
        %v3747 = vmin.f32 %v3642, 20.0
        %v3748 = vmin.f32 %v3643, 20.0
        %v3749 = vmin.f32 %v3644, 20.0
        %v3750 = vmin.f32 %v3645, 20.0
        %v3751 = vmin.f32 %v3646, 20.0
        %v3752 = vmin.f32 %v3647, 20.0
        %v3753 = vmin.f32 %v3648, 20.0
        %v3754 = vmin.f32 %v3649, 20.0
        %v3755 = vmin.f32 %v3650, 20.0
        %v3756 = vmin.f32 %v3651, 20.0
        %v3757 = vmin.f32 %v3652, 20.0
        %v3758 = vmin.f32 %v3653, 20.0
        %v3759 = vmin.f32 %v3654, 20.0
        %v3760 = vmin.f32 %v3655, 20.0
        %v3761 = vmin.f32 %v3656, 20.0
        %v3762 = vmin.f32 %v3657, 20.0
        %v3763 = vmin.f32 %v3658, 20.0
        %v3764 = vmin.f32 %v3659, 20.0
        %v3765 = vmin.f32 %v3660, 20.0
        %v3766 = vmin.f32 %v3661, 20.0
        %v3767 = vmin.f32 %v3662, 20.0
        %v3768 = vmin.f32 %v3663, 20.0
        %v3769 = vmin.f32 %v3664, 20.0
        %v3770 = vmin.f32 %v3665, 20.0
        %v3771 = vmin.f32 %v3666, 20.0
        %v3772 = vmin.f32 %v3667, 20.0
        %v3773 = vmin.f32 %v3668, 20.0
        %v3774 = vmin.f32 %v3669, 20.0
        %v3775 = vmin.f32 %v3670, 20.0
        %v3776 = vmin.f32 %v3671, 20.0
        %v3777 = vmin.f32 %v3672, 20.0
        %v3778 = vmin.f32 %v3673, 20.0
        %v3779 = vmin.f32 %v3674, 20.0
        %v3780 = vmin.f32 %v3675, 20.0
        %v3781 = vmin.f32 %v3676, 20.0
        %v3782 = vmin.f32 %v3677, 20.0
        %v3783 = vmin.f32 %v3678, 20.0
        %v3784 = vmin.f32 %v3679, 20.0
        %v3785 = vmin.f32 %v3680, 20.0
        %v3786 = vmin.f32 %v3681, 20.0
        %v3787 = vmin.f32 %v3682, 20.0
        %v3788 = vmin.f32 %v3683, 20.0
        %v3789 = vmin.f32 %v3684, 20.0
        %v3790 = vmin.f32 %v3685, 20.0
        %v3791 = vmin.f32 %v3686, 20.0
        %v3792 = vmin.f32 %v3687, 20.0
        %v3793 = vmin.f32 %v3688, 20.0
        %v3794 = vmin.f32 %v3689, 20.0
        %v3795 = vmin.f32 %v3690, 20.0
        %v3796 = vmin.f32 %v3691, 20.0
        %v3797 = vmin.f32 %v3692, 20.0
        %v3798 = vmin.f32 %v3693, 20.0
        %v3799 = vmin.f32 %v3694, 20.0
        %v3800 = vmin.f32 %v3695, 20.0
        %v3801 = vmin.f32 %v3696, 20.0
        %v3802 = vmin.f32 %v3697, 20.0
        %v3803 = vmin.f32 %v3698, 20.0
        %v3804 = vmin.f32 %v3699, 20.0
        %v3805 = vmin.f32 %v3700, 20.0
        %v3806 = vmin.f32 %v3701, 20.0
        %v3807 = vmin.f32 %v3702, 20.0
        %v3808 = vmin.f32 %v3703, 20.0
        %v3809 = vmin.f32 %v3704, 20.0
        %v3810 = vmin.f32 %v3705, 20.0
        %v3811 = vmin.f32 %v3706, 20.0
        %v3812 = vmin.f32 %v3707, 20.0
        %v3813 = vmin.f32 %v3708, 20.0
        %v3814 = vmin.f32 %v3709, 20.0
        %v3815 = vmin.f32 %v3710, 20.0
        %3816 = vst.msk [vmem:[%s5] sm:$0xff] %vm1529, %v3711
        %3817 = vst.msk [vmem:[%s5 + $0x8] sm:$0xff] %vm1529, %v3712
        %3818 = vst.msk [vmem:[%s5 + $0x10] sm:$0xff] %vm1529, %v3713
        %3819 = vst.msk [vmem:[%s5 + $0x18] sm:$0xff] %vm1529, %v3714
        %3820 = vst.msk [vmem:[%s5 + $0x20] sm:$0xff] %vm1529, %v3715
        %3821 = vst.msk [vmem:[%s5 + $0x28] sm:$0xff] %vm1529, %v3716
        %3822 = vst.msk [vmem:[%s5 + $0x30] sm:$0xff] %vm1529, %v3717
        %3823 = vst.msk [vmem:[%s5 + $0x38] sm:$0xff] %vm1529, %v3718
        %3824 = vst.msk [vmem:[%s5 + $0x40] sm:$0xff] %vm1529, %v3719
        %3825 = vst.msk [vmem:[%s5 + $0x48] sm:$0xff] %vm1529, %v3720
        %3826 = vst.msk [vmem:[%s5 + $0x50] sm:$0xff] %vm1529, %v3721
        %3827 = vst.msk [vmem:[%s5 + $0x58] sm:$0xff] %vm1529, %v3722
        %3828 = vst.msk [vmem:[%s5 + $0x60] sm:$0xff] %vm1529, %v3723
        %3829 = vst.msk [vmem:[%s5 + $0x68] sm:$0xff] %vm1529, %v3724
        %3830 = vst.msk [vmem:[%s5 + $0x70] sm:$0xff] %vm1529, %v3725
        %3831 = vst.msk [vmem:[%s5 + $0x78] sm:$0xff] %vm1529, %v3726
        %3832 = vst.msk [vmem:[%s5 + $0x80] sm:$0xff] %vm1529, %v3727
        %3833 = vst.msk [vmem:[%s5 + $0x88] sm:$0xff] %vm1529, %v3728
        %3834 = vst.msk [vmem:[%s5 + $0x90] sm:$0xff] %vm1529, %v3729
        %3835 = vst.msk [vmem:[%s5 + $0x98] sm:$0xff] %vm1529, %v3730
        %3836 = vst.msk [vmem:[%s5 + $0xa0] sm:$0xff] %vm1529, %v3731
        %3837 = vst.msk [vmem:[%s5 + $0xa8] sm:$0xff] %vm1529, %v3732
        %3838 = vst.msk [vmem:[%s5 + $0xb0] sm:$0xff] %vm1529, %v3733
        %3839 = vst.msk [vmem:[%s5 + $0xb8] sm:$0xff] %vm1529, %v3734
        %3840 = vst.msk [vmem:[%s5 + $0xc0] sm:$0xff] %vm1529, %v3735
        %3841 = vst.msk [vmem:[%s5 + $0xc8] sm:$0xff] %vm1529, %v3736
        %3842 = vst.msk [vmem:[%s5 + $0xd0] sm:$0xff] %vm1529, %v3737
        %3843 = vst.msk [vmem:[%s5 + $0xd8] sm:$0xff] %vm1529, %v3738
        %3844 = vst.msk [vmem:[%s5 + $0xe0] sm:$0xff] %vm1529, %v3739
        %3845 = vst.msk [vmem:[%s5 + $0xe8] sm:$0xff] %vm1529, %v3740
        %3846 = vst.msk [vmem:[%s5 + $0xf0] sm:$0xff] %vm1529, %v3741
        %3847 = vst.msk [vmem:[%s5 + $0xf8] sm:$0xff] %vm1529, %v3742
        %3848 = vst.msk [vmem:[%s5 + $0x100] sm:$0xff] %vm1529, %v3743
        %3849 = vst.msk [vmem:[%s5 + $0x108] sm:$0xff] %vm1529, %v3744
        %3850 = vst.msk [vmem:[%s5 + $0x110] sm:$0xff] %vm1529, %v3745
        %3851 = vst.msk [vmem:[%s5 + $0x118] sm:$0xff] %vm1529, %v3746
        %3852 = vst.msk [vmem:[%s5 + $0x120] sm:$0xff] %vm1529, %v3747
        %3853 = vst.msk [vmem:[%s5 + $0x128] sm:$0xff] %vm1529, %v3748
        %3854 = vst.msk [vmem:[%s5 + $0x130] sm:$0xff] %vm1529, %v3749
        %3855 = vst.msk [vmem:[%s5 + $0x138] sm:$0xff] %vm1529, %v3750
        %3856 = vst.msk [vmem:[%s5 + $0x140] sm:$0xff] %vm1529, %v3751
        %3857 = vst.msk [vmem:[%s5 + $0x148] sm:$0xff] %vm1529, %v3752
        %3858 = vst.msk [vmem:[%s5 + $0x150] sm:$0xff] %vm1529, %v3753
        %3859 = vst.msk [vmem:[%s5 + $0x158] sm:$0xff] %vm1529, %v3754
        %3860 = vst.msk [vmem:[%s5 + $0x160] sm:$0xff] %vm1529, %v3755
        %3861 = vst.msk [vmem:[%s5 + $0x168] sm:$0xff] %vm1529, %v3756
        %3862 = vst.msk [vmem:[%s5 + $0x170] sm:$0xff] %vm1529, %v3757
        %3863 = vst.msk [vmem:[%s5 + $0x178] sm:$0xff] %vm1529, %v3758
        %3864 = vst.msk [vmem:[%s5 + $0x180] sm:$0xff] %vm1529, %v3759
        %3865 = vst.msk [vmem:[%s5 + $0x188] sm:$0xff] %vm1529, %v3760
        %3866 = vst.msk [vmem:[%s5 + $0x190] sm:$0xff] %vm1529, %v3761
        %3867 = vst.msk [vmem:[%s5 + $0x198] sm:$0xff] %vm1529, %v3762
        %3868 = vst.msk [vmem:[%s5 + $0x1a0] sm:$0xff] %vm1529, %v3763
        %3869 = vst.msk [vmem:[%s5 + $0x1a8] sm:$0xff] %vm1529, %v3764
        %3870 = vst.msk [vmem:[%s5 + $0x1b0] sm:$0xff] %vm1529, %v3765
        %3871 = vst.msk [vmem:[%s5 + $0x1b8] sm:$0xff] %vm1529, %v3766
        %3872 = vst.msk [vmem:[%s5 + $0x1c0] sm:$0xff] %vm1529, %v3767
        %3873 = vst.msk [vmem:[%s5 + $0x1c8] sm:$0xff] %vm1529, %v3768
        %3874 = vst.msk [vmem:[%s5 + $0x1d0] sm:$0xff] %vm1529, %v3769
        %3875 = vst.msk [vmem:[%s5 + $0x1d8] sm:$0xff] %vm1529, %v3770
        %3876 = vst.msk [vmem:[%s5 + $0x1e0] sm:$0xff] %vm1529, %v3771
        %3877 = vst.msk [vmem:[%s5 + $0x1e8] sm:$0xff] %vm1529, %v3772
        %3878 = vst.msk [vmem:[%s5 + $0x1f0] sm:$0xff] %vm1529, %v3773
        %3879 = vst.msk [vmem:[%s5 + $0x1f8] sm:$0xff] %vm1529, %v3774
        %3880 = vst.msk [vmem:[%s5 + $0x200] sm:$0xff] %vm1529, %v3775
        %3881 = vst.msk [vmem:[%s5 + $0x208] sm:$0xff] %vm1529, %v3776
        %3882 = vst.msk [vmem:[%s5 + $0x210] sm:$0xff] %vm1529, %v3777
        %3883 = vst.msk [vmem:[%s5 + $0x218] sm:$0xff] %vm1529, %v3778
        %3884 = vst.msk [vmem:[%s5 + $0x220] sm:$0xff] %vm1529, %v3779
        %3885 = vst.msk [vmem:[%s5 + $0x228] sm:$0xff] %vm1529, %v3780
        %3886 = vst.msk [vmem:[%s5 + $0x230] sm:$0xff] %vm1529, %v3781
        %3887 = vst.msk [vmem:[%s5 + $0x238] sm:$0xff] %vm1529, %v3782
        %3888 = vst.msk [vmem:[%s5 + $0x240] sm:$0xff] %vm1529, %v3783
        %3889 = vst.msk [vmem:[%s5 + $0x248] sm:$0xff] %vm1529, %v3784
        %3890 = vst.msk [vmem:[%s5 + $0x250] sm:$0xff] %vm1529, %v3785
        %3891 = vst.msk [vmem:[%s5 + $0x258] sm:$0xff] %vm1529, %v3786
        %3892 = vst.msk [vmem:[%s5 + $0x260] sm:$0xff] %vm1529, %v3787
        %3893 = vst.msk [vmem:[%s5 + $0x268] sm:$0xff] %vm1529, %v3788
        %3894 = vst.msk [vmem:[%s5 + $0x270] sm:$0xff] %vm1529, %v3789
        %3895 = vst.msk [vmem:[%s5 + $0x278] sm:$0xff] %vm1529, %v3790
        %3896 = vst.msk [vmem:[%s5 + $0x280] sm:$0xff] %vm1529, %v3791
        %3897 = vst.msk [vmem:[%s5 + $0x288] sm:$0xff] %vm1529, %v3792
        %3898 = vst.msk [vmem:[%s5 + $0x290] sm:$0xff] %vm1529, %v3793
        %3899 = vst.msk [vmem:[%s5 + $0x298] sm:$0xff] %vm1529, %v3794
        %3900 = vst.msk [vmem:[%s5 + $0x2a0] sm:$0xff] %vm1529, %v3795
        %3901 = vst.msk [vmem:[%s5 + $0x2a8] sm:$0xff] %vm1529, %v3796
        %3902 = vst.msk [vmem:[%s5 + $0x2b0] sm:$0xff] %vm1529, %v3797
        %3903 = vst.msk [vmem:[%s5 + $0x2b8] sm:$0xff] %vm1529, %v3798
        %3904 = vst.msk [vmem:[%s5 + $0x2c0] sm:$0xff] %vm1529, %v3799
        %3905 = vst.msk [vmem:[%s5 + $0x2c8] sm:$0xff] %vm1529, %v3800
        %3906 = vst.msk [vmem:[%s5 + $0x2d0] sm:$0xff] %vm1529, %v3801
        %3907 = vst.msk [vmem:[%s5 + $0x2d8] sm:$0xff] %vm1529, %v3802
        %3908 = vst.msk [vmem:[%s5 + $0x2e0] sm:$0xff] %vm1529, %v3803
        %3909 = vst.msk [vmem:[%s5 + $0x2e8] sm:$0xff] %vm1529, %v3804
        %3910 = vst.msk [vmem:[%s5 + $0x2f0] sm:$0xff] %vm1529, %v3805
        %3911 = vst.msk [vmem:[%s5 + $0x2f8] sm:$0xff] %vm1529, %v3806
        %3912 = vst.msk [vmem:[%s5 + $0x300] sm:$0xff] %vm1529, %v3807
        %3913 = vst.msk [vmem:[%s5 + $0x308] sm:$0xff] %vm1529, %v3808
        %3914 = vst.msk [vmem:[%s5 + $0x310] sm:$0xff] %vm1529, %v3809
        %3915 = vst.msk [vmem:[%s5 + $0x318] sm:$0xff] %vm1529, %v3810
        %3916 = vst.msk [vmem:[%s5 + $0x320] sm:$0xff] %vm1529, %v3811
        %3917 = vst.msk [vmem:[%s5 + $0x328] sm:$0xff] %vm1529, %v3812
        %3918 = vst.msk [vmem:[%s5 + $0x330] sm:$0xff] %vm1529, %v3813
        %3919 = vst.msk [vmem:[%s5 + $0x338] sm:$0xff] %vm1529, %v3814
        %3920 = vst.msk [vmem:[%s5 + $0x340] sm:$0xff] %vm1529, %v3815
      $region44: #{audio_encoder_forward.6} parent=39 // pred_fallthru
        _
      // Predicated region
      $region45: #{audio_encoder_forward.6} parent=39 // pred_check
        %p3921 = pneg %p139
      $region46: #{audio_encoder_forward.6} parent=39 // pred_check_branch
        %3923 = sbr.rel (%p3921) target = $region48
      $region47: #{audio_encoder_forward.6} parent=39 // pred_region
        _
      $region48: #{audio_encoder_forward.6} parent=39 // pred_fallthru
        _
      // Predicated region
      $region49: #{audio_encoder_forward.6} parent=39 // pred_check
        %p3924 = pneg %p139
      $region50: #{audio_encoder_forward.6} parent=39 // pred_check_branch
        %3926 = sbr.rel (%p3924) target = $region52
      $region51: #{audio_encoder_forward.6} parent=39 // pred_region
        _
      $region52: #{audio_encoder_forward.6} parent=39 // pred_fallthru
        _
    $region40: #{audio_encoder_forward.6} parent=5 // pred_fallthru
      _
    %p3927 = scmp.le.s32.totalorder 2, %s11
    // Predicated region
    $region53: #{audio_encoder_forward.6} parent=5 // pred_check
      %p3928 = pneg %p3927
    $region54: #{audio_encoder_forward.6} parent=5 // pred_check_branch
      %3930 = sbr.rel (%p3928) target = $region56
    $region55: #{audio_encoder_forward.6} parent=5 // pred_region
      %s3931 = ssub.s32 %s11, 2
    $region56: #{audio_encoder_forward.6} parent=5 // pred_fallthru
      _
  $region6: #{audio_encoder_forward.6} parent=0 // loop_footer
    %s15 = sadd.s32 1, %s11
  $region7: #{audio_encoder_forward.6} parent=0 // loop_footer_branch
    %10 = sbr.rel target = $region3
  $region8: #{audio_encoder_forward.6} parent=0 // loop_exit
    _

// kernel: audio_encoder_forward.7
$region0: #{audio_encoder_forward.7}
  #allocation0 [shape = 'u32[]', space=smem, size = 0x4, offset = 0x4, fixed_abs, tag = 'smem constant byte address 0x4 - core index']
  #allocation1 [shape = 'u32[144,128]{1,0:T(1,128)}', space=vmem, size = 0x12000, scoped, tag = 'internal scratch']
  %s0 = inlined_call_operand.vmem [shape: f32[20,7392], index: 0, kind: input, shape index: {}]
  %s1 = inlined_call_operand.vmem [shape: f32[7392,32], index: 1, kind: input, shape index: {}]
  %s2 = inlined_call_operand.vmem [shape: f32[1,32], index: 2, kind: input, shape index: {}]
  %s3 = inlined_call_operand.vmem [shape: f32[1,32], index: 3, kind: input, shape index: {}]
  %s4 = inlined_call_operand.vmem [shape: f32[1,32], index: 4, kind: input, shape index: {}]
  %s5 = inlined_call_operand.vmem [shape: f32[20,32], index: 5, kind: output, shape index: {}]
  %s6 = sld [smem:[#allocation0]]
  $region30: #{audio_encoder_forward.7} parent=0
    _
  %s8 = ssub.s32 1, %s6
  %s9 = scalar_select 0, %s8, %s6
  // Predicated region
  $region2: #{audio_encoder_forward.7} parent=0 // pred_check
    _
  $region3: #{audio_encoder_forward.7} parent=0 // pred_check_branch
    %11 = sbr.rel (0) target = $region5
  $region4: #{audio_encoder_forward.7} parent=0 // pred_region
    _
  $region5: #{audio_encoder_forward.7} parent=0 // pred_fallthru
    _
  // Predicated region
  $region6: #{audio_encoder_forward.7} parent=0 // pred_check
    _
  $region7: #{audio_encoder_forward.7} parent=0 // pred_check_branch
    %13 = sbr.rel (0) target = $region9
  $region8: #{audio_encoder_forward.7} parent=0 // pred_region
    _
  $region9: #{audio_encoder_forward.7} parent=0 // pred_fallthru
    _
  // Predicated region
  $region10: #{audio_encoder_forward.7} parent=0 // pred_check
    _
  $region11: #{audio_encoder_forward.7} parent=0 // pred_check_branch
    %15 = sbr.rel (0) target = $region13
  $region12: #{audio_encoder_forward.7} parent=0 // pred_region
    _
  $region13: #{audio_encoder_forward.7} parent=0 // pred_fallthru
    _
  // Predicated region
  $region14: #{audio_encoder_forward.7} parent=0 // pred_check
    _
  $region15: #{audio_encoder_forward.7} parent=0 // pred_check_branch
    %17 = sbr.rel (0) target = $region17
  $region16: #{audio_encoder_forward.7} parent=0 // pred_region
    _
  $region17: #{audio_encoder_forward.7} parent=0 // pred_fallthru
    _
  // Predicated region
  $region18: #{audio_encoder_forward.7} parent=0 // pred_check
    _
  $region19: #{audio_encoder_forward.7} parent=0 // pred_check_branch
    %19 = sbr.rel (0) target = $region21
  $region20: #{audio_encoder_forward.7} parent=0 // pred_region
    _
  $region21: #{audio_encoder_forward.7} parent=0 // pred_fallthru
    _
  %v20 = vld [vmem:[%s0] sm:$0xff]
  %v21 = vld [vmem:[%s0 + $0x8] sm:$0xff]
  %v22 = vld [vmem:[%s0 + $0x10] sm:$0xff]
  %v23 = vld [vmem:[%s0 + $0x18] sm:$0xff]
  %v24 = vld [vmem:[%s0 + $0x20] sm:$0xff]
  %v25 = vld [vmem:[%s0 + $0x28] sm:$0xff]
  %v26 = vld [vmem:[%s0 + $0x30] sm:$0xff]
  %v27 = vld [vmem:[%s0 + $0x38] sm:$0xff]
  %v28 = vld [vmem:[%s0 + $0x40] sm:$0xff]
  %v29 = vld [vmem:[%s0 + $0x48] sm:$0xff]
  %v30 = vld [vmem:[%s0 + $0x50] sm:$0xff]
  %v31 = vld [vmem:[%s0 + $0x58] sm:$0xff]
  %v32 = vld [vmem:[%s0 + $0x60] sm:$0xff]
  %v33 = vld [vmem:[%s0 + $0x68] sm:$0xff]
  %v34 = vld [vmem:[%s0 + $0x70] sm:$0xff]
  %v35 = vld [vmem:[%s0 + $0x78] sm:$0xff]
  %v36 = vld [vmem:[%s0 + $0x80] sm:$0xff]
  %v37 = vld [vmem:[%s0 + $0x88] sm:$0xff]
  %v38 = vld [vmem:[%s0 + $0x90] sm:$0xff]
  %v39 = vld [vmem:[%s0 + $0x98] sm:$0xff]
  %v40 = vld [vmem:[%s0 + $0xa0] sm:$0xff]
  %v41 = vld [vmem:[%s0 + $0xa8] sm:$0xff]
  %v42 = vld [vmem:[%s0 + $0xb0] sm:$0xff]
  %v43 = vld [vmem:[%s0 + $0xb8] sm:$0xff]
  %v44 = vld [vmem:[%s0 + $0xc0] sm:$0xff]
  %v45 = vld [vmem:[%s0 + $0xc8] sm:$0xff]
  %v46 = vld [vmem:[%s0 + $0xd0] sm:$0xff]
  %v47 = vld [vmem:[%s0 + $0xd8] sm:$0xff]
  %v48 = vld [vmem:[%s0 + $0xe0] sm:$0xff]
  %v49 = vld [vmem:[%s0 + $0xe8] sm:$0xff]
  %v50 = vld [vmem:[%s0 + $0xf0] sm:$0xff]
  %v51 = vld [vmem:[%s0 + $0xf8] sm:$0xff]
  %v52 = vld [vmem:[%s0 + $0x100] sm:$0xff]
  %v53 = vld [vmem:[%s0 + $0x108] sm:$0xff]
  %v54 = vld [vmem:[%s0 + $0x110] sm:$0xff]
  %v55 = vld [vmem:[%s0 + $0x118] sm:$0xff]
  %v56 = vld [vmem:[%s0 + $0x120] sm:$0xff]
  %v57 = vld [vmem:[%s0 + $0x128] sm:$0xff]
  %v58 = vld [vmem:[%s0 + $0x130] sm:$0xff]
  %v59 = vld [vmem:[%s0 + $0x138] sm:$0xff]
  %v60 = vld [vmem:[%s0 + $0x140] sm:$0xff]
  %v61 = vld [vmem:[%s0 + $0x148] sm:$0xff]
  %v62 = vld [vmem:[%s0 + $0x150] sm:$0xff]
  %v63 = vld [vmem:[%s0 + $0x158] sm:$0xff]
  %v64 = vld [vmem:[%s0 + $0x160] sm:$0xff]
  %v65 = vld [vmem:[%s0 + $0x168] sm:$0xff]
  %v66 = vld [vmem:[%s0 + $0x170] sm:$0xff]
  %v67 = vld [vmem:[%s0 + $0x178] sm:$0xff]
  %v68 = vld [vmem:[%s0 + $0x180] sm:$0xff]
  %v69 = vld [vmem:[%s0 + $0x188] sm:$0xff]
  %v70 = vld [vmem:[%s0 + $0x190] sm:$0xff]
  %v71 = vld [vmem:[%s0 + $0x198] sm:$0xff]
  %v72 = vld [vmem:[%s0 + $0x1a0] sm:$0xff]
  %v73 = vld [vmem:[%s0 + $0x1a8] sm:$0xff]
  %v74 = vld [vmem:[%s0 + $0x1b0] sm:$0xff]
  %v75 = vld [vmem:[%s0 + $0x1b8] sm:$0xff]
  %v76 = vld [vmem:[%s0 + $0x1c0] sm:$0xff]
  %v77 = vld [vmem:[%s0 + $0x1c8] sm:$0xff]
  %v78 = vld [vmem:[%s0 + $0x1d0] sm:$0xff]
  %v79 = vld [vmem:[%s0 + $0x1d8] sm:$0xff]
  %v80 = vld [vmem:[%s0 + $0x1e0] sm:$0xff]
  %v81 = vld [vmem:[%s0 + $0x1e8] sm:$0xff]
  %v82 = vld [vmem:[%s0 + $0x1f0] sm:$0xff]
  %v83 = vld [vmem:[%s0 + $0x1f8] sm:$0xff]
  %v84 = vld [vmem:[%s0 + $0x200] sm:$0xff]
  %v85 = vld [vmem:[%s0 + $0x208] sm:$0xff]
  %v86 = vld [vmem:[%s0 + $0x210] sm:$0xff]
  %v87 = vld [vmem:[%s0 + $0x218] sm:$0xff]
  %v88 = vld [vmem:[%s0 + $0x220] sm:$0xff]
  %v89 = vld [vmem:[%s0 + $0x228] sm:$0xff]
  %v90 = vld [vmem:[%s0 + $0x230] sm:$0xff]
  %v91 = vld [vmem:[%s0 + $0x238] sm:$0xff]
  %v92 = vld [vmem:[%s0 + $0x240] sm:$0xff]
  %v93 = vld [vmem:[%s0 + $0x248] sm:$0xff]
  %v94 = vld [vmem:[%s0 + $0x250] sm:$0xff]
  %v95 = vld [vmem:[%s0 + $0x258] sm:$0xff]
  %v96 = vld [vmem:[%s0 + $0x260] sm:$0xff]
  %v97 = vld [vmem:[%s0 + $0x268] sm:$0xff]
  %v98 = vld [vmem:[%s0 + $0x270] sm:$0xff]
  %v99 = vld [vmem:[%s0 + $0x278] sm:$0xff]
  %v100 = vld [vmem:[%s0 + $0x280] sm:$0xff]
  %v101 = vld [vmem:[%s0 + $0x288] sm:$0xff]
  %v102 = vld [vmem:[%s0 + $0x290] sm:$0xff]
  %v103 = vld [vmem:[%s0 + $0x298] sm:$0xff]
  %v104 = vld [vmem:[%s0 + $0x2a0] sm:$0xff]
  %v105 = vld [vmem:[%s0 + $0x2a8] sm:$0xff]
  %v106 = vld [vmem:[%s0 + $0x2b0] sm:$0xff]
  %v107 = vld [vmem:[%s0 + $0x2b8] sm:$0xff]
  %v108 = vld [vmem:[%s0 + $0x2c0] sm:$0xff]
  %v109 = vld [vmem:[%s0 + $0x2c8] sm:$0xff]
  %v110 = vld [vmem:[%s0 + $0x2d0] sm:$0xff]
  %v111 = vld [vmem:[%s0 + $0x2d8] sm:$0xff]
  %v112 = vld [vmem:[%s0 + $0x2e0] sm:$0xff]
  %v113 = vld [vmem:[%s0 + $0x2e8] sm:$0xff]
  %v114 = vld [vmem:[%s0 + $0x2f0] sm:$0xff]
  %v115 = vld [vmem:[%s0 + $0x2f8] sm:$0xff]
  %v116 = vld [vmem:[%s0 + $0x300] sm:$0xff]
  %v117 = vld [vmem:[%s0 + $0x308] sm:$0xff]
  %v118 = vld [vmem:[%s0 + $0x310] sm:$0xff]
  %v119 = vld [vmem:[%s0 + $0x318] sm:$0xff]
  %v120 = vld [vmem:[%s0 + $0x320] sm:$0xff]
  %v121 = vld [vmem:[%s0 + $0x328] sm:$0xff]
  %v122 = vld [vmem:[%s0 + $0x330] sm:$0xff]
  %v123 = vld [vmem:[%s0 + $0x338] sm:$0xff]
  %v124 = vld [vmem:[%s0 + $0x340] sm:$0xff]
  %v125 = vld [vmem:[%s0 + $0x348] sm:$0xff]
  %v126 = vld [vmem:[%s0 + $0x350] sm:$0xff]
  %v127 = vld [vmem:[%s0 + $0x358] sm:$0xff]
  %v128 = vld [vmem:[%s0 + $0x360] sm:$0xff]
  %v129 = vld [vmem:[%s0 + $0x368] sm:$0xff]
  %v130 = vld [vmem:[%s0 + $0x370] sm:$0xff]
  %v131 = vld [vmem:[%s0 + $0x378] sm:$0xff]
  %v132 = vld [vmem:[%s0 + $0x380] sm:$0xff]
  %v133 = vld [vmem:[%s0 + $0x388] sm:$0xff]
  %v134 = vld [vmem:[%s0 + $0x390] sm:$0xff]
  %v135 = vld [vmem:[%s0 + $0x398] sm:$0xff]
  %v136 = vld [vmem:[%s0 + $0x3a0] sm:$0xf]
  %v137 = vld [vmem:[%s0 + $0x3a8] sm:$0xf]
  %v138 = vld [vmem:[%s0 + $0x3b0] sm:$0xf]
  %v139 = vld [vmem:[%s0 + $0x3b8] sm:$0xf]
  %v140 = vld [vmem:[%s0 + $0x3c0] sm:$0xf]
  %v141 = vld [vmem:[%s0 + $0x3c8] sm:$0xf]
  %v142 = vld [vmem:[%s0 + $0x3d0] sm:$0xf]
  %v143 = vld [vmem:[%s0 + $0x3d8] sm:$0xf]
  %v144 = vld [vmem:[%s0 + $0x3e0] sm:$0xf]
  %v145 = vld [vmem:[%s0 + $0x3e8] sm:$0xf]
  %v146 = vld [vmem:[%s0 + $0x3f0] sm:$0xf]
  %v147 = vld [vmem:[%s0 + $0x3f8] sm:$0xf]
  %v148 = vld [vmem:[%s0 + $0x400] sm:$0xf]
  %v149 = vld [vmem:[%s0 + $0x408] sm:$0xf]
  %v150 = vld [vmem:[%s0 + $0x410] sm:$0xf]
  %v151 = vld [vmem:[%s0 + $0x418] sm:$0xf]
  %v152 = vld [vmem:[%s0 + $0x420] sm:$0xf]
  %v153 = vld [vmem:[%s0 + $0x428] sm:$0xf]
  %v154 = vld [vmem:[%s0 + $0x430] sm:$0xf]
  %v155 = vld [vmem:[%s0 + $0x438] sm:$0xf]
  %v156 = vld [vmem:[%s0 + $0x440] sm:$0xf]
  %v157 = vld [vmem:[%s0 + $0x448] sm:$0xf]
  %v158 = vld [vmem:[%s0 + $0x450] sm:$0xf]
  %v159 = vld [vmem:[%s0 + $0x458] sm:$0xf]
  %v160 = vld [vmem:[%s0 + $0x460] sm:$0xf]
  %v161 = vld [vmem:[%s0 + $0x468] sm:$0xf]
  %v162 = vld [vmem:[%s0 + $0x470] sm:$0xf]
  %v163 = vld [vmem:[%s0 + $0x478] sm:$0xf]
  %v164 = vld [vmem:[%s0 + $0x480] sm:$0xf]
  %v165 = vld [vmem:[%s0 + $0x488] sm:$0xf]
  %v166 = vld [vmem:[%s0 + $0x490] sm:$0xf]
  %v167 = vld [vmem:[%s0 + $0x498] sm:$0xf]
  %v168 = vld [vmem:[%s0 + $0x4a0] sm:$0xf]
  %v169 = vld [vmem:[%s0 + $0x4a8] sm:$0xf]
  %v170 = vld [vmem:[%s0 + $0x4b0] sm:$0xf]
  %v171 = vld [vmem:[%s0 + $0x4b8] sm:$0xf]
  %v172 = vld [vmem:[%s0 + $0x4c0] sm:$0xf]
  %v173 = vld [vmem:[%s0 + $0x4c8] sm:$0xf]
  %v174 = vld [vmem:[%s0 + $0x4d0] sm:$0xf]
  %v175 = vld [vmem:[%s0 + $0x4d8] sm:$0xf]
  %v176 = vld [vmem:[%s0 + $0x4e0] sm:$0xf]
  %v177 = vld [vmem:[%s0 + $0x4e8] sm:$0xf]
  %v178 = vld [vmem:[%s0 + $0x4f0] sm:$0xf]
  %v179 = vld [vmem:[%s0 + $0x4f8] sm:$0xf]
  %v180 = vld [vmem:[%s0 + $0x500] sm:$0xf]
  %v181 = vld [vmem:[%s0 + $0x508] sm:$0xf]
  %v182 = vld [vmem:[%s0 + $0x510] sm:$0xf]
  %v183 = vld [vmem:[%s0 + $0x518] sm:$0xf]
  %v184 = vld [vmem:[%s0 + $0x520] sm:$0xf]
  %v185 = vld [vmem:[%s0 + $0x528] sm:$0xf]
  %v186 = vld [vmem:[%s0 + $0x530] sm:$0xf]
  %v187 = vld [vmem:[%s0 + $0x538] sm:$0xf]
  %v188 = vld [vmem:[%s0 + $0x540] sm:$0xf]
  %v189 = vld [vmem:[%s0 + $0x548] sm:$0xf]
  %v190 = vld [vmem:[%s0 + $0x550] sm:$0xf]
  %v191 = vld [vmem:[%s0 + $0x558] sm:$0xf]
  %v192 = vld [vmem:[%s0 + $0x560] sm:$0xf]
  %v193 = vld [vmem:[%s0 + $0x568] sm:$0xf]
  %v194 = vld [vmem:[%s1] sm:$0xff]
  %v195 = vld [vmem:[%s1 + $0x8] sm:$0xff]
  %v196 = vld [vmem:[%s1 + $0x10] sm:$0xff]
  %v197 = vld [vmem:[%s1 + $0x18] sm:$0xff]
  %v198 = vld [vmem:[%s1 + $0x20] sm:$0xff]
  %v199 = vld [vmem:[%s1 + $0x28] sm:$0xff]
  %v200 = vld [vmem:[%s1 + $0x30] sm:$0xff]
  %v201 = vld [vmem:[%s1 + $0x38] sm:$0xff]
  %v202 = vld [vmem:[%s1 + $0x40] sm:$0xff]
  %v203 = vld [vmem:[%s1 + $0x48] sm:$0xff]
  %v204 = vld [vmem:[%s1 + $0x50] sm:$0xff]
  %v205 = vld [vmem:[%s1 + $0x58] sm:$0xff]
  %v206 = vld [vmem:[%s1 + $0x60] sm:$0xff]
  %v207 = vld [vmem:[%s1 + $0x68] sm:$0xff]
  %v208 = vld [vmem:[%s1 + $0x70] sm:$0xff]
  %v209 = vld [vmem:[%s1 + $0x78] sm:$0xff]
  %v210 = vld [vmem:[%s1 + $0x80] sm:$0xff]
  %v211 = vld [vmem:[%s1 + $0x88] sm:$0xff]
  %v212 = vld [vmem:[%s1 + $0x90] sm:$0xff]
  %v213 = vld [vmem:[%s1 + $0x98] sm:$0xff]
  %v214 = vld [vmem:[%s1 + $0xa0] sm:$0xff]
  %v215 = vld [vmem:[%s1 + $0xa8] sm:$0xff]
  %v216 = vld [vmem:[%s1 + $0xb0] sm:$0xff]
  %v217 = vld [vmem:[%s1 + $0xb8] sm:$0xff]
  %v218 = vld [vmem:[%s1 + $0xc0] sm:$0xff]
  %v219 = vld [vmem:[%s1 + $0xc8] sm:$0xff]
  %v220 = vld [vmem:[%s1 + $0xd0] sm:$0xff]
  %v221 = vld [vmem:[%s1 + $0xd8] sm:$0xff]
  %v222 = vld [vmem:[%s1 + $0xe0] sm:$0xff]
  %v223 = vld [vmem:[%s1 + $0xe8] sm:$0xff]
  %v224 = vld [vmem:[%s1 + $0xf0] sm:$0xff]
  %v225 = vld [vmem:[%s1 + $0xf8] sm:$0xff]
  %v226 = vld [vmem:[%s1 + $0x100] sm:$0xff]
  %v227 = vld [vmem:[%s1 + $0x108] sm:$0xff]
  %v228 = vld [vmem:[%s1 + $0x110] sm:$0xff]
  %v229 = vld [vmem:[%s1 + $0x118] sm:$0xff]
  %v230 = vld [vmem:[%s1 + $0x120] sm:$0xff]
  %v231 = vld [vmem:[%s1 + $0x128] sm:$0xff]
  %v232 = vld [vmem:[%s1 + $0x130] sm:$0xff]
  %v233 = vld [vmem:[%s1 + $0x138] sm:$0xff]
  %v234 = vld [vmem:[%s1 + $0x140] sm:$0xff]
  %v235 = vld [vmem:[%s1 + $0x148] sm:$0xff]
  %v236 = vld [vmem:[%s1 + $0x150] sm:$0xff]
  %v237 = vld [vmem:[%s1 + $0x158] sm:$0xff]
  %v238 = vld [vmem:[%s1 + $0x160] sm:$0xff]
  %v239 = vld [vmem:[%s1 + $0x168] sm:$0xff]
  %v240 = vld [vmem:[%s1 + $0x170] sm:$0xff]
  %v241 = vld [vmem:[%s1 + $0x178] sm:$0xff]
  %v242 = vld [vmem:[%s1 + $0x180] sm:$0xff]
  %v243 = vld [vmem:[%s1 + $0x188] sm:$0xff]
  %v244 = vld [vmem:[%s1 + $0x190] sm:$0xff]
  %v245 = vld [vmem:[%s1 + $0x198] sm:$0xff]
  %v246 = vld [vmem:[%s1 + $0x1a0] sm:$0xff]
  %v247 = vld [vmem:[%s1 + $0x1a8] sm:$0xff]
  %v248 = vld [vmem:[%s1 + $0x1b0] sm:$0xff]
  %v249 = vld [vmem:[%s1 + $0x1b8] sm:$0xff]
  %v250 = vld [vmem:[%s1 + $0x1c0] sm:$0xff]
  %v251 = vld [vmem:[%s1 + $0x1c8] sm:$0xff]
  %v252 = vld [vmem:[%s1 + $0x1d0] sm:$0xff]
  %v253 = vld [vmem:[%s1 + $0x1d8] sm:$0xff]
  %v254 = vld [vmem:[%s1 + $0x1e0] sm:$0xff]
  %v255 = vld [vmem:[%s1 + $0x1e8] sm:$0xff]
  %v256 = vld [vmem:[%s1 + $0x1f0] sm:$0xff]
  %v257 = vld [vmem:[%s1 + $0x1f8] sm:$0xff]
  %v258 = vld [vmem:[%s1 + $0x200] sm:$0xff]
  %v259 = vld [vmem:[%s1 + $0x208] sm:$0xff]
  %v260 = vld [vmem:[%s1 + $0x210] sm:$0xff]
  %v261 = vld [vmem:[%s1 + $0x218] sm:$0xff]
  %v262 = vld [vmem:[%s1 + $0x220] sm:$0xff]
  %v263 = vld [vmem:[%s1 + $0x228] sm:$0xff]
  %v264 = vld [vmem:[%s1 + $0x230] sm:$0xff]
  %v265 = vld [vmem:[%s1 + $0x238] sm:$0xff]
  %v266 = vld [vmem:[%s1 + $0x240] sm:$0xff]
  %v267 = vld [vmem:[%s1 + $0x248] sm:$0xff]
  %v268 = vld [vmem:[%s1 + $0x250] sm:$0xff]
  %v269 = vld [vmem:[%s1 + $0x258] sm:$0xff]
  %v270 = vld [vmem:[%s1 + $0x260] sm:$0xff]
  %v271 = vld [vmem:[%s1 + $0x268] sm:$0xff]
  %v272 = vld [vmem:[%s1 + $0x270] sm:$0xff]
  %v273 = vld [vmem:[%s1 + $0x278] sm:$0xff]
  %v274 = vld [vmem:[%s1 + $0x280] sm:$0xff]
  %v275 = vld [vmem:[%s1 + $0x288] sm:$0xff]
  %v276 = vld [vmem:[%s1 + $0x290] sm:$0xff]
  %v277 = vld [vmem:[%s1 + $0x298] sm:$0xff]
  %v278 = vld [vmem:[%s1 + $0x2a0] sm:$0xff]
  %v279 = vld [vmem:[%s1 + $0x2a8] sm:$0xff]
  %v280 = vld [vmem:[%s1 + $0x2b0] sm:$0xff]
  %v281 = vld [vmem:[%s1 + $0x2b8] sm:$0xff]
  %v282 = vld [vmem:[%s1 + $0x2c0] sm:$0xff]
  %v283 = vld [vmem:[%s1 + $0x2c8] sm:$0xff]
  %v284 = vld [vmem:[%s1 + $0x2d0] sm:$0xff]
  %v285 = vld [vmem:[%s1 + $0x2d8] sm:$0xff]
  %v286 = vld [vmem:[%s1 + $0x2e0] sm:$0xff]
  %v287 = vld [vmem:[%s1 + $0x2e8] sm:$0xff]
  %v288 = vld [vmem:[%s1 + $0x2f0] sm:$0xff]
  %v289 = vld [vmem:[%s1 + $0x2f8] sm:$0xff]
  %v290 = vld [vmem:[%s1 + $0x300] sm:$0xff]
  %v291 = vld [vmem:[%s1 + $0x308] sm:$0xff]
  %v292 = vld [vmem:[%s1 + $0x310] sm:$0xff]
  %v293 = vld [vmem:[%s1 + $0x318] sm:$0xff]
  %v294 = vld [vmem:[%s1 + $0x320] sm:$0xff]
  %v295 = vld [vmem:[%s1 + $0x328] sm:$0xff]
  %v296 = vld [vmem:[%s1 + $0x330] sm:$0xff]
  %v297 = vld [vmem:[%s1 + $0x338] sm:$0xff]
  %v298 = vld [vmem:[%s1 + $0x340] sm:$0xff]
  %v299 = vld [vmem:[%s1 + $0x348] sm:$0xff]
  %v300 = vld [vmem:[%s1 + $0x350] sm:$0xff]
  %v301 = vld [vmem:[%s1 + $0x358] sm:$0xff]
  %v302 = vld [vmem:[%s1 + $0x360] sm:$0xff]
  %v303 = vld [vmem:[%s1 + $0x368] sm:$0xff]
  %v304 = vld [vmem:[%s1 + $0x370] sm:$0xff]
  %v305 = vld [vmem:[%s1 + $0x378] sm:$0xff]
  %v306 = vld [vmem:[%s1 + $0x380] sm:$0xff]
  %v307 = vld [vmem:[%s1 + $0x388] sm:$0xff]
  %v308 = vld [vmem:[%s1 + $0x390] sm:$0xff]
  %v309 = vld [vmem:[%s1 + $0x398] sm:$0xff]
  %v310 = vld [vmem:[%s1 + $0x3a0] sm:$0xff]
  %v311 = vld [vmem:[%s1 + $0x3a8] sm:$0xff]
  %v312 = vld [vmem:[%s1 + $0x3b0] sm:$0xff]
  %v313 = vld [vmem:[%s1 + $0x3b8] sm:$0xff]
  %v314 = vld [vmem:[%s1 + $0x3c0] sm:$0xff]
  %v315 = vld [vmem:[%s1 + $0x3c8] sm:$0xff]
  %v316 = vld [vmem:[%s1 + $0x3d0] sm:$0xff]
  %v317 = vld [vmem:[%s1 + $0x3d8] sm:$0xff]
  %v318 = vld [vmem:[%s1 + $0x3e0] sm:$0xff]
  %v319 = vld [vmem:[%s1 + $0x3e8] sm:$0xff]
  %v320 = vld [vmem:[%s1 + $0x3f0] sm:$0xff]
  %v321 = vld [vmem:[%s1 + $0x3f8] sm:$0xff]
  %v322 = vld [vmem:[%s1 + $0x400] sm:$0xff]
  %v323 = vld [vmem:[%s1 + $0x408] sm:$0xff]
  %v324 = vld [vmem:[%s1 + $0x410] sm:$0xff]
  %v325 = vld [vmem:[%s1 + $0x418] sm:$0xff]
  %v326 = vld [vmem:[%s1 + $0x420] sm:$0xff]
  %v327 = vld [vmem:[%s1 + $0x428] sm:$0xff]
  %v328 = vld [vmem:[%s1 + $0x430] sm:$0xff]
  %v329 = vld [vmem:[%s1 + $0x438] sm:$0xff]
  %v330 = vld [vmem:[%s1 + $0x440] sm:$0xff]
  %v331 = vld [vmem:[%s1 + $0x448] sm:$0xff]
  %v332 = vld [vmem:[%s1 + $0x450] sm:$0xff]
  %v333 = vld [vmem:[%s1 + $0x458] sm:$0xff]
  %v334 = vld [vmem:[%s1 + $0x460] sm:$0xff]
  %v335 = vld [vmem:[%s1 + $0x468] sm:$0xff]
  %v336 = vld [vmem:[%s1 + $0x470] sm:$0xff]
  %v337 = vld [vmem:[%s1 + $0x478] sm:$0xff]
  %v338 = vld [vmem:[%s1 + $0x480] sm:$0xff]
  %v339 = vld [vmem:[%s1 + $0x488] sm:$0xff]
  %v340 = vld [vmem:[%s1 + $0x490] sm:$0xff]
  %v341 = vld [vmem:[%s1 + $0x498] sm:$0xff]
  %v342 = vld [vmem:[%s1 + $0x4a0] sm:$0xff]
  %v343 = vld [vmem:[%s1 + $0x4a8] sm:$0xff]
  %v344 = vld [vmem:[%s1 + $0x4b0] sm:$0xff]
  %v345 = vld [vmem:[%s1 + $0x4b8] sm:$0xff]
  %v346 = vld [vmem:[%s1 + $0x4c0] sm:$0xff]
  %v347 = vld [vmem:[%s1 + $0x4c8] sm:$0xff]
  %v348 = vld [vmem:[%s1 + $0x4d0] sm:$0xff]
  %v349 = vld [vmem:[%s1 + $0x4d8] sm:$0xff]
  %v350 = vld [vmem:[%s1 + $0x4e0] sm:$0xff]
  %v351 = vld [vmem:[%s1 + $0x4e8] sm:$0xff]
  %v352 = vld [vmem:[%s1 + $0x4f0] sm:$0xff]
  %v353 = vld [vmem:[%s1 + $0x4f8] sm:$0xff]
  %v354 = vld [vmem:[%s1 + $0x500] sm:$0xff]
  %v355 = vld [vmem:[%s1 + $0x508] sm:$0xff]
  %v356 = vld [vmem:[%s1 + $0x510] sm:$0xff]
  %v357 = vld [vmem:[%s1 + $0x518] sm:$0xff]
  %v358 = vld [vmem:[%s1 + $0x520] sm:$0xff]
  %v359 = vld [vmem:[%s1 + $0x528] sm:$0xff]
  %v360 = vld [vmem:[%s1 + $0x530] sm:$0xff]
  %v361 = vld [vmem:[%s1 + $0x538] sm:$0xff]
  %v362 = vld [vmem:[%s1 + $0x540] sm:$0xff]
  %v363 = vld [vmem:[%s1 + $0x548] sm:$0xff]
  %v364 = vld [vmem:[%s1 + $0x550] sm:$0xff]
  %v365 = vld [vmem:[%s1 + $0x558] sm:$0xff]
  %v366 = vld [vmem:[%s1 + $0x560] sm:$0xff]
  %v367 = vld [vmem:[%s1 + $0x568] sm:$0xff]
  %v368 = vld [vmem:[%s1 + $0x570] sm:$0xff]
  %v369 = vld [vmem:[%s1 + $0x578] sm:$0xff]
  %v370 = vld [vmem:[%s1 + $0x580] sm:$0xff]
  %v371 = vld [vmem:[%s1 + $0x588] sm:$0xff]
  %v372 = vld [vmem:[%s1 + $0x590] sm:$0xff]
  %v373 = vld [vmem:[%s1 + $0x598] sm:$0xff]
  %v374 = vld [vmem:[%s1 + $0x5a0] sm:$0xff]
  %v375 = vld [vmem:[%s1 + $0x5a8] sm:$0xff]
  %v376 = vld [vmem:[%s1 + $0x5b0] sm:$0xff]
  %v377 = vld [vmem:[%s1 + $0x5b8] sm:$0xff]
  %v378 = vld [vmem:[%s1 + $0x5c0] sm:$0xff]
  %v379 = vld [vmem:[%s1 + $0x5c8] sm:$0xff]
  %v380 = vld [vmem:[%s1 + $0x5d0] sm:$0xff]
  %v381 = vld [vmem:[%s1 + $0x5d8] sm:$0xff]
  %v382 = vld [vmem:[%s1 + $0x5e0] sm:$0xff]
  %v383 = vld [vmem:[%s1 + $0x5e8] sm:$0xff]
  %v384 = vld [vmem:[%s1 + $0x5f0] sm:$0xff]
  %v385 = vld [vmem:[%s1 + $0x5f8] sm:$0xff]
  %v386 = vld [vmem:[%s1 + $0x600] sm:$0xff]
  %v387 = vld [vmem:[%s1 + $0x608] sm:$0xff]
  %v388 = vld [vmem:[%s1 + $0x610] sm:$0xff]
  %v389 = vld [vmem:[%s1 + $0x618] sm:$0xff]
  %v390 = vld [vmem:[%s1 + $0x620] sm:$0xff]
  %v391 = vld [vmem:[%s1 + $0x628] sm:$0xff]
  %v392 = vld [vmem:[%s1 + $0x630] sm:$0xff]
  %v393 = vld [vmem:[%s1 + $0x638] sm:$0xff]
  %v394 = vld [vmem:[%s1 + $0x640] sm:$0xff]
  %v395 = vld [vmem:[%s1 + $0x648] sm:$0xff]
  %v396 = vld [vmem:[%s1 + $0x650] sm:$0xff]
  %v397 = vld [vmem:[%s1 + $0x658] sm:$0xff]
  %v398 = vld [vmem:[%s1 + $0x660] sm:$0xff]
  %v399 = vld [vmem:[%s1 + $0x668] sm:$0xff]
  %v400 = vld [vmem:[%s1 + $0x670] sm:$0xff]
  %v401 = vld [vmem:[%s1 + $0x678] sm:$0xff]
  %v402 = vld [vmem:[%s1 + $0x680] sm:$0xff]
  %v403 = vld [vmem:[%s1 + $0x688] sm:$0xff]
  %v404 = vld [vmem:[%s1 + $0x690] sm:$0xff]
  %v405 = vld [vmem:[%s1 + $0x698] sm:$0xff]
  %v406 = vld [vmem:[%s1 + $0x6a0] sm:$0xff]
  %v407 = vld [vmem:[%s1 + $0x6a8] sm:$0xff]
  %v408 = vld [vmem:[%s1 + $0x6b0] sm:$0xff]
  %v409 = vld [vmem:[%s1 + $0x6b8] sm:$0xff]
  %v410 = vld [vmem:[%s1 + $0x6c0] sm:$0xff]
  %v411 = vld [vmem:[%s1 + $0x6c8] sm:$0xff]
  %v412 = vld [vmem:[%s1 + $0x6d0] sm:$0xff]
  %v413 = vld [vmem:[%s1 + $0x6d8] sm:$0xff]
  %v414 = vld [vmem:[%s1 + $0x6e0] sm:$0xff]
  %v415 = vld [vmem:[%s1 + $0x6e8] sm:$0xff]
  %v416 = vld [vmem:[%s1 + $0x6f0] sm:$0xff]
  %v417 = vld [vmem:[%s1 + $0x6f8] sm:$0xff]
  %v418 = vld [vmem:[%s1 + $0x700] sm:$0xff]
  %v419 = vld [vmem:[%s1 + $0x708] sm:$0xff]
  %v420 = vld [vmem:[%s1 + $0x710] sm:$0xff]
  %v421 = vld [vmem:[%s1 + $0x718] sm:$0xff]
  %v422 = vld [vmem:[%s1 + $0x720] sm:$0xff]
  %v423 = vld [vmem:[%s1 + $0x728] sm:$0xff]
  %v424 = vld [vmem:[%s1 + $0x730] sm:$0xff]
  %v425 = vld [vmem:[%s1 + $0x738] sm:$0xff]
  %v426 = vld [vmem:[%s1 + $0x740] sm:$0xff]
  %v427 = vld [vmem:[%s1 + $0x748] sm:$0xff]
  %v428 = vld [vmem:[%s1 + $0x750] sm:$0xff]
  %v429 = vld [vmem:[%s1 + $0x758] sm:$0xff]
  %v430 = vld [vmem:[%s1 + $0x760] sm:$0xff]
  %v431 = vld [vmem:[%s1 + $0x768] sm:$0xff]
  %v432 = vld [vmem:[%s1 + $0x770] sm:$0xff]
  %v433 = vld [vmem:[%s1 + $0x778] sm:$0xff]
  %v434 = vld [vmem:[%s1 + $0x780] sm:$0xff]
  %v435 = vld [vmem:[%s1 + $0x788] sm:$0xff]
  %v436 = vld [vmem:[%s1 + $0x790] sm:$0xff]
  %v437 = vld [vmem:[%s1 + $0x798] sm:$0xff]
  %v438 = vld [vmem:[%s1 + $0x7a0] sm:$0xff]
  %v439 = vld [vmem:[%s1 + $0x7a8] sm:$0xff]
  %v440 = vld [vmem:[%s1 + $0x7b0] sm:$0xff]
  %v441 = vld [vmem:[%s1 + $0x7b8] sm:$0xff]
  %v442 = vld [vmem:[%s1 + $0x7c0] sm:$0xff]
  %v443 = vld [vmem:[%s1 + $0x7c8] sm:$0xff]
  %v444 = vld [vmem:[%s1 + $0x7d0] sm:$0xff]
  %v445 = vld [vmem:[%s1 + $0x7d8] sm:$0xff]
  %v446 = vld [vmem:[%s1 + $0x7e0] sm:$0xff]
  %v447 = vld [vmem:[%s1 + $0x7e8] sm:$0xff]
  %v448 = vld [vmem:[%s1 + $0x7f0] sm:$0xff]
  %v449 = vld [vmem:[%s1 + $0x7f8] sm:$0xff]
  %v450 = vld [vmem:[%s1 + $0x800] sm:$0xff]
  %v451 = vld [vmem:[%s1 + $0x808] sm:$0xff]
  %v452 = vld [vmem:[%s1 + $0x810] sm:$0xff]
  %v453 = vld [vmem:[%s1 + $0x818] sm:$0xff]
  %v454 = vld [vmem:[%s1 + $0x820] sm:$0xff]
  %v455 = vld [vmem:[%s1 + $0x828] sm:$0xff]
  %v456 = vld [vmem:[%s1 + $0x830] sm:$0xff]
  %v457 = vld [vmem:[%s1 + $0x838] sm:$0xff]
  %v458 = vld [vmem:[%s1 + $0x840] sm:$0xff]
  %v459 = vld [vmem:[%s1 + $0x848] sm:$0xff]
  %v460 = vld [vmem:[%s1 + $0x850] sm:$0xff]
  %v461 = vld [vmem:[%s1 + $0x858] sm:$0xff]
  %v462 = vld [vmem:[%s1 + $0x860] sm:$0xff]
  %v463 = vld [vmem:[%s1 + $0x868] sm:$0xff]
  %v464 = vld [vmem:[%s1 + $0x870] sm:$0xff]
  %v465 = vld [vmem:[%s1 + $0x878] sm:$0xff]
  %v466 = vld [vmem:[%s1 + $0x880] sm:$0xff]
  %v467 = vld [vmem:[%s1 + $0x888] sm:$0xff]
  %v468 = vld [vmem:[%s1 + $0x890] sm:$0xff]
  %v469 = vld [vmem:[%s1 + $0x898] sm:$0xff]
  %v470 = vld [vmem:[%s1 + $0x8a0] sm:$0xff]
  %v471 = vld [vmem:[%s1 + $0x8a8] sm:$0xff]
  %v472 = vld [vmem:[%s1 + $0x8b0] sm:$0xff]
  %v473 = vld [vmem:[%s1 + $0x8b8] sm:$0xff]
  %v474 = vld [vmem:[%s1 + $0x8c0] sm:$0xff]
  %v475 = vld [vmem:[%s1 + $0x8c8] sm:$0xff]
  %v476 = vld [vmem:[%s1 + $0x8d0] sm:$0xff]
  %v477 = vld [vmem:[%s1 + $0x8d8] sm:$0xff]
  %v478 = vld [vmem:[%s1 + $0x8e0] sm:$0xff]
  %v479 = vld [vmem:[%s1 + $0x8e8] sm:$0xff]
  %v480 = vld [vmem:[%s1 + $0x8f0] sm:$0xff]
  %v481 = vld [vmem:[%s1 + $0x8f8] sm:$0xff]
  %v482 = vld [vmem:[%s1 + $0x900] sm:$0xff]
  %v483 = vld [vmem:[%s1 + $0x908] sm:$0xff]
  %v484 = vld [vmem:[%s1 + $0x910] sm:$0xff]
  %v485 = vld [vmem:[%s1 + $0x918] sm:$0xff]
  %v486 = vld [vmem:[%s1 + $0x920] sm:$0xff]
  %v487 = vld [vmem:[%s1 + $0x928] sm:$0xff]
  %v488 = vld [vmem:[%s1 + $0x930] sm:$0xff]
  %v489 = vld [vmem:[%s1 + $0x938] sm:$0xff]
  %v490 = vld [vmem:[%s1 + $0x940] sm:$0xff]
  %v491 = vld [vmem:[%s1 + $0x948] sm:$0xff]
  %v492 = vld [vmem:[%s1 + $0x950] sm:$0xff]
  %v493 = vld [vmem:[%s1 + $0x958] sm:$0xff]
  %v494 = vld [vmem:[%s1 + $0x960] sm:$0xff]
  %v495 = vld [vmem:[%s1 + $0x968] sm:$0xff]
  %v496 = vld [vmem:[%s1 + $0x970] sm:$0xff]
  %v497 = vld [vmem:[%s1 + $0x978] sm:$0xff]
  %v498 = vld [vmem:[%s1 + $0x980] sm:$0xff]
  %v499 = vld [vmem:[%s1 + $0x988] sm:$0xff]
  %v500 = vld [vmem:[%s1 + $0x990] sm:$0xff]
  %v501 = vld [vmem:[%s1 + $0x998] sm:$0xff]
  %v502 = vld [vmem:[%s1 + $0x9a0] sm:$0xff]
  %v503 = vld [vmem:[%s1 + $0x9a8] sm:$0xff]
  %v504 = vld [vmem:[%s1 + $0x9b0] sm:$0xff]
  %v505 = vld [vmem:[%s1 + $0x9b8] sm:$0xff]
  %v506 = vld [vmem:[%s1 + $0x9c0] sm:$0xff]
  %v507 = vld [vmem:[%s1 + $0x9c8] sm:$0xff]
  %v508 = vld [vmem:[%s1 + $0x9d0] sm:$0xff]
  %v509 = vld [vmem:[%s1 + $0x9d8] sm:$0xff]
  %v510 = vld [vmem:[%s1 + $0x9e0] sm:$0xff]
  %v511 = vld [vmem:[%s1 + $0x9e8] sm:$0xff]
  %v512 = vld [vmem:[%s1 + $0x9f0] sm:$0xff]
  %v513 = vld [vmem:[%s1 + $0x9f8] sm:$0xff]
  %v514 = vld [vmem:[%s1 + $0xa00] sm:$0xff]
  %v515 = vld [vmem:[%s1 + $0xa08] sm:$0xff]
  %v516 = vld [vmem:[%s1 + $0xa10] sm:$0xff]
  %v517 = vld [vmem:[%s1 + $0xa18] sm:$0xff]
  %v518 = vld [vmem:[%s1 + $0xa20] sm:$0xff]
  %v519 = vld [vmem:[%s1 + $0xa28] sm:$0xff]
  %v520 = vld [vmem:[%s1 + $0xa30] sm:$0xff]
  %v521 = vld [vmem:[%s1 + $0xa38] sm:$0xff]
  %v522 = vld [vmem:[%s1 + $0xa40] sm:$0xff]
  %v523 = vld [vmem:[%s1 + $0xa48] sm:$0xff]
  %v524 = vld [vmem:[%s1 + $0xa50] sm:$0xff]
  %v525 = vld [vmem:[%s1 + $0xa58] sm:$0xff]
  %v526 = vld [vmem:[%s1 + $0xa60] sm:$0xff]
  %v527 = vld [vmem:[%s1 + $0xa68] sm:$0xff]
  %v528 = vld [vmem:[%s1 + $0xa70] sm:$0xff]
  %v529 = vld [vmem:[%s1 + $0xa78] sm:$0xff]
  %v530 = vld [vmem:[%s1 + $0xa80] sm:$0xff]
  %v531 = vld [vmem:[%s1 + $0xa88] sm:$0xff]
  %v532 = vld [vmem:[%s1 + $0xa90] sm:$0xff]
  %v533 = vld [vmem:[%s1 + $0xa98] sm:$0xff]
  %v534 = vld [vmem:[%s1 + $0xaa0] sm:$0xff]
  %v535 = vld [vmem:[%s1 + $0xaa8] sm:$0xff]
  %v536 = vld [vmem:[%s1 + $0xab0] sm:$0xff]
  %v537 = vld [vmem:[%s1 + $0xab8] sm:$0xff]
  %v538 = vld [vmem:[%s1 + $0xac0] sm:$0xff]
  %v539 = vld [vmem:[%s1 + $0xac8] sm:$0xff]
  %v540 = vld [vmem:[%s1 + $0xad0] sm:$0xff]
  %v541 = vld [vmem:[%s1 + $0xad8] sm:$0xff]
  %v542 = vld [vmem:[%s1 + $0xae0] sm:$0xff]
  %v543 = vld [vmem:[%s1 + $0xae8] sm:$0xff]
  %v544 = vld [vmem:[%s1 + $0xaf0] sm:$0xff]
  %v545 = vld [vmem:[%s1 + $0xaf8] sm:$0xff]
  %v546 = vld [vmem:[%s1 + $0xb00] sm:$0xff]
  %v547 = vld [vmem:[%s1 + $0xb08] sm:$0xff]
  %v548 = vld [vmem:[%s1 + $0xb10] sm:$0xff]
  %v549 = vld [vmem:[%s1 + $0xb18] sm:$0xff]
  %v550 = vld [vmem:[%s1 + $0xb20] sm:$0xff]
  %v551 = vld [vmem:[%s1 + $0xb28] sm:$0xff]
  %v552 = vld [vmem:[%s1 + $0xb30] sm:$0xff]
  %v553 = vld [vmem:[%s1 + $0xb38] sm:$0xff]
  %v554 = vld [vmem:[%s1 + $0xb40] sm:$0xff]
  %v555 = vld [vmem:[%s1 + $0xb48] sm:$0xff]
  %v556 = vld [vmem:[%s1 + $0xb50] sm:$0xff]
  %v557 = vld [vmem:[%s1 + $0xb58] sm:$0xff]
  %v558 = vld [vmem:[%s1 + $0xb60] sm:$0xff]
  %v559 = vld [vmem:[%s1 + $0xb68] sm:$0xff]
  %v560 = vld [vmem:[%s1 + $0xb70] sm:$0xff]
  %v561 = vld [vmem:[%s1 + $0xb78] sm:$0xff]
  %v562 = vld [vmem:[%s1 + $0xb80] sm:$0xff]
  %v563 = vld [vmem:[%s1 + $0xb88] sm:$0xff]
  %v564 = vld [vmem:[%s1 + $0xb90] sm:$0xff]
  %v565 = vld [vmem:[%s1 + $0xb98] sm:$0xff]
  %v566 = vld [vmem:[%s1 + $0xba0] sm:$0xff]
  %v567 = vld [vmem:[%s1 + $0xba8] sm:$0xff]
  %v568 = vld [vmem:[%s1 + $0xbb0] sm:$0xff]
  %v569 = vld [vmem:[%s1 + $0xbb8] sm:$0xff]
  %v570 = vld [vmem:[%s1 + $0xbc0] sm:$0xff]
  %v571 = vld [vmem:[%s1 + $0xbc8] sm:$0xff]
  %v572 = vld [vmem:[%s1 + $0xbd0] sm:$0xff]
  %v573 = vld [vmem:[%s1 + $0xbd8] sm:$0xff]
  %v574 = vld [vmem:[%s1 + $0xbe0] sm:$0xff]
  %v575 = vld [vmem:[%s1 + $0xbe8] sm:$0xff]
  %v576 = vld [vmem:[%s1 + $0xbf0] sm:$0xff]
  %v577 = vld [vmem:[%s1 + $0xbf8] sm:$0xff]
  %v578 = vld [vmem:[%s1 + $0xc00] sm:$0xff]
  %v579 = vld [vmem:[%s1 + $0xc08] sm:$0xff]
  %v580 = vld [vmem:[%s1 + $0xc10] sm:$0xff]
  %v581 = vld [vmem:[%s1 + $0xc18] sm:$0xff]
  %v582 = vld [vmem:[%s1 + $0xc20] sm:$0xff]
  %v583 = vld [vmem:[%s1 + $0xc28] sm:$0xff]
  %v584 = vld [vmem:[%s1 + $0xc30] sm:$0xff]
  %v585 = vld [vmem:[%s1 + $0xc38] sm:$0xff]
  %v586 = vld [vmem:[%s1 + $0xc40] sm:$0xff]
  %v587 = vld [vmem:[%s1 + $0xc48] sm:$0xff]
  %v588 = vld [vmem:[%s1 + $0xc50] sm:$0xff]
  %v589 = vld [vmem:[%s1 + $0xc58] sm:$0xff]
  %v590 = vld [vmem:[%s1 + $0xc60] sm:$0xff]
  %v591 = vld [vmem:[%s1 + $0xc68] sm:$0xff]
  %v592 = vld [vmem:[%s1 + $0xc70] sm:$0xff]
  %v593 = vld [vmem:[%s1 + $0xc78] sm:$0xff]
  %v594 = vld [vmem:[%s1 + $0xc80] sm:$0xff]
  %v595 = vld [vmem:[%s1 + $0xc88] sm:$0xff]
  %v596 = vld [vmem:[%s1 + $0xc90] sm:$0xff]
  %v597 = vld [vmem:[%s1 + $0xc98] sm:$0xff]
  %v598 = vld [vmem:[%s1 + $0xca0] sm:$0xff]
  %v599 = vld [vmem:[%s1 + $0xca8] sm:$0xff]
  %v600 = vld [vmem:[%s1 + $0xcb0] sm:$0xff]
  %v601 = vld [vmem:[%s1 + $0xcb8] sm:$0xff]
  %v602 = vld [vmem:[%s1 + $0xcc0] sm:$0xff]
  %v603 = vld [vmem:[%s1 + $0xcc8] sm:$0xff]
  %v604 = vld [vmem:[%s1 + $0xcd0] sm:$0xff]
  %v605 = vld [vmem:[%s1 + $0xcd8] sm:$0xff]
  %v606 = vld [vmem:[%s1 + $0xce0] sm:$0xff]
  %v607 = vld [vmem:[%s1 + $0xce8] sm:$0xff]
  %v608 = vld [vmem:[%s1 + $0xcf0] sm:$0xff]
  %v609 = vld [vmem:[%s1 + $0xcf8] sm:$0xff]
  %v610 = vld [vmem:[%s1 + $0xd00] sm:$0xff]
  %v611 = vld [vmem:[%s1 + $0xd08] sm:$0xff]
  %v612 = vld [vmem:[%s1 + $0xd10] sm:$0xff]
  %v613 = vld [vmem:[%s1 + $0xd18] sm:$0xff]
  %v614 = vld [vmem:[%s1 + $0xd20] sm:$0xff]
  %v615 = vld [vmem:[%s1 + $0xd28] sm:$0xff]
  %v616 = vld [vmem:[%s1 + $0xd30] sm:$0xff]
  %v617 = vld [vmem:[%s1 + $0xd38] sm:$0xff]
  %v618 = vld [vmem:[%s1 + $0xd40] sm:$0xff]
  %v619 = vld [vmem:[%s1 + $0xd48] sm:$0xff]
  %v620 = vld [vmem:[%s1 + $0xd50] sm:$0xff]
  %v621 = vld [vmem:[%s1 + $0xd58] sm:$0xff]
  %v622 = vld [vmem:[%s1 + $0xd60] sm:$0xff]
  %v623 = vld [vmem:[%s1 + $0xd68] sm:$0xff]
  %v624 = vld [vmem:[%s1 + $0xd70] sm:$0xff]
  %v625 = vld [vmem:[%s1 + $0xd78] sm:$0xff]
  %v626 = vld [vmem:[%s1 + $0xd80] sm:$0xff]
  %v627 = vld [vmem:[%s1 + $0xd88] sm:$0xff]
  %v628 = vld [vmem:[%s1 + $0xd90] sm:$0xff]
  %v629 = vld [vmem:[%s1 + $0xd98] sm:$0xff]
  %v630 = vld [vmem:[%s1 + $0xda0] sm:$0xff]
  %v631 = vld [vmem:[%s1 + $0xda8] sm:$0xff]
  %v632 = vld [vmem:[%s1 + $0xdb0] sm:$0xff]
  %v633 = vld [vmem:[%s1 + $0xdb8] sm:$0xff]
  %v634 = vld [vmem:[%s1 + $0xdc0] sm:$0xff]
  %v635 = vld [vmem:[%s1 + $0xdc8] sm:$0xff]
  %v636 = vld [vmem:[%s1 + $0xdd0] sm:$0xff]
  %v637 = vld [vmem:[%s1 + $0xdd8] sm:$0xff]
  %v638 = vld [vmem:[%s1 + $0xde0] sm:$0xff]
  %v639 = vld [vmem:[%s1 + $0xde8] sm:$0xff]
  %v640 = vld [vmem:[%s1 + $0xdf0] sm:$0xff]
  %v641 = vld [vmem:[%s1 + $0xdf8] sm:$0xff]
  %v642 = vld [vmem:[%s1 + $0xe00] sm:$0xff]
  %v643 = vld [vmem:[%s1 + $0xe08] sm:$0xff]
  %v644 = vld [vmem:[%s1 + $0xe10] sm:$0xff]
  %v645 = vld [vmem:[%s1 + $0xe18] sm:$0xff]
  %v646 = vld [vmem:[%s1 + $0xe20] sm:$0xff]
  %v647 = vld [vmem:[%s1 + $0xe28] sm:$0xff]
  %v648 = vld [vmem:[%s1 + $0xe30] sm:$0xff]
  %v649 = vld [vmem:[%s1 + $0xe38] sm:$0xff]
  %v650 = vld [vmem:[%s1 + $0xe40] sm:$0xff]
  %v651 = vld [vmem:[%s1 + $0xe48] sm:$0xff]
  %v652 = vld [vmem:[%s1 + $0xe50] sm:$0xff]
  %v653 = vld [vmem:[%s1 + $0xe58] sm:$0xff]
  %v654 = vld [vmem:[%s1 + $0xe60] sm:$0xff]
  %v655 = vld [vmem:[%s1 + $0xe68] sm:$0xff]
  %v656 = vld [vmem:[%s1 + $0xe70] sm:$0xff]
  %v657 = vld [vmem:[%s1 + $0xe78] sm:$0xff]
  %v658 = vld [vmem:[%s1 + $0xe80] sm:$0xff]
  %v659 = vld [vmem:[%s1 + $0xe88] sm:$0xff]
  %v660 = vld [vmem:[%s1 + $0xe90] sm:$0xff]
  %v661 = vld [vmem:[%s1 + $0xe98] sm:$0xff]
  %v662 = vld [vmem:[%s1 + $0xea0] sm:$0xff]
  %v663 = vld [vmem:[%s1 + $0xea8] sm:$0xff]
  %v664 = vld [vmem:[%s1 + $0xeb0] sm:$0xff]
  %v665 = vld [vmem:[%s1 + $0xeb8] sm:$0xff]
  %v666 = vld [vmem:[%s1 + $0xec0] sm:$0xff]
  %v667 = vld [vmem:[%s1 + $0xec8] sm:$0xff]
  %v668 = vld [vmem:[%s1 + $0xed0] sm:$0xff]
  %v669 = vld [vmem:[%s1 + $0xed8] sm:$0xff]
  %v670 = vld [vmem:[%s1 + $0xee0] sm:$0xff]
  %v671 = vld [vmem:[%s1 + $0xee8] sm:$0xff]
  %v672 = vld [vmem:[%s1 + $0xef0] sm:$0xff]
  %v673 = vld [vmem:[%s1 + $0xef8] sm:$0xff]
  %v674 = vld [vmem:[%s1 + $0xf00] sm:$0xff]
  %v675 = vld [vmem:[%s1 + $0xf08] sm:$0xff]
  %v676 = vld [vmem:[%s1 + $0xf10] sm:$0xff]
  %v677 = vld [vmem:[%s1 + $0xf18] sm:$0xff]
  %v678 = vld [vmem:[%s1 + $0xf20] sm:$0xff]
  %v679 = vld [vmem:[%s1 + $0xf28] sm:$0xff]
  %v680 = vld [vmem:[%s1 + $0xf30] sm:$0xff]
  %v681 = vld [vmem:[%s1 + $0xf38] sm:$0xff]
  %v682 = vld [vmem:[%s1 + $0xf40] sm:$0xff]
  %v683 = vld [vmem:[%s1 + $0xf48] sm:$0xff]
  %v684 = vld [vmem:[%s1 + $0xf50] sm:$0xff]
  %v685 = vld [vmem:[%s1 + $0xf58] sm:$0xff]
  %v686 = vld [vmem:[%s1 + $0xf60] sm:$0xff]
  %v687 = vld [vmem:[%s1 + $0xf68] sm:$0xff]
  %v688 = vld [vmem:[%s1 + $0xf70] sm:$0xff]
  %v689 = vld [vmem:[%s1 + $0xf78] sm:$0xff]
  %v690 = vld [vmem:[%s1 + $0xf80] sm:$0xff]
  %v691 = vld [vmem:[%s1 + $0xf88] sm:$0xff]
  %v692 = vld [vmem:[%s1 + $0xf90] sm:$0xff]
  %v693 = vld [vmem:[%s1 + $0xf98] sm:$0xff]
  %v694 = vld [vmem:[%s1 + $0xfa0] sm:$0xff]
  %v695 = vld [vmem:[%s1 + $0xfa8] sm:$0xff]
  %v696 = vld [vmem:[%s1 + $0xfb0] sm:$0xff]
  %v697 = vld [vmem:[%s1 + $0xfb8] sm:$0xff]
  %v698 = vld [vmem:[%s1 + $0xfc0] sm:$0xff]
  %v699 = vld [vmem:[%s1 + $0xfc8] sm:$0xff]
  %v700 = vld [vmem:[%s1 + $0xfd0] sm:$0xff]
  %v701 = vld [vmem:[%s1 + $0xfd8] sm:$0xff]
  %v702 = vld [vmem:[%s1 + $0xfe0] sm:$0xff]
  %v703 = vld [vmem:[%s1 + $0xfe8] sm:$0xff]
  %v704 = vld [vmem:[%s1 + $0xff0] sm:$0xff]
  %v705 = vld [vmem:[%s1 + $0xff8] sm:$0xff]
  %v706 = vld [vmem:[%s1 + $0x1000] sm:$0xff]
  %v707 = vld [vmem:[%s1 + $0x1008] sm:$0xff]
  %v708 = vld [vmem:[%s1 + $0x1010] sm:$0xff]
  %v709 = vld [vmem:[%s1 + $0x1018] sm:$0xff]
  %v710 = vld [vmem:[%s1 + $0x1020] sm:$0xff]
  %v711 = vld [vmem:[%s1 + $0x1028] sm:$0xff]
  %v712 = vld [vmem:[%s1 + $0x1030] sm:$0xff]
  %v713 = vld [vmem:[%s1 + $0x1038] sm:$0xff]
  %v714 = vld [vmem:[%s1 + $0x1040] sm:$0xff]
  %v715 = vld [vmem:[%s1 + $0x1048] sm:$0xff]
  %v716 = vld [vmem:[%s1 + $0x1050] sm:$0xff]
  %v717 = vld [vmem:[%s1 + $0x1058] sm:$0xff]
  %v718 = vld [vmem:[%s1 + $0x1060] sm:$0xff]
  %v719 = vld [vmem:[%s1 + $0x1068] sm:$0xff]
  %v720 = vld [vmem:[%s1 + $0x1070] sm:$0xff]
  %v721 = vld [vmem:[%s1 + $0x1078] sm:$0xff]
  %v722 = vld [vmem:[%s1 + $0x1080] sm:$0xff]
  %v723 = vld [vmem:[%s1 + $0x1088] sm:$0xff]
  %v724 = vld [vmem:[%s1 + $0x1090] sm:$0xff]
  %v725 = vld [vmem:[%s1 + $0x1098] sm:$0xff]
  %v726 = vld [vmem:[%s1 + $0x10a0] sm:$0xff]
  %v727 = vld [vmem:[%s1 + $0x10a8] sm:$0xff]
  %v728 = vld [vmem:[%s1 + $0x10b0] sm:$0xff]
  %v729 = vld [vmem:[%s1 + $0x10b8] sm:$0xff]
  %v730 = vld [vmem:[%s1 + $0x10c0] sm:$0xff]
  %v731 = vld [vmem:[%s1 + $0x10c8] sm:$0xff]
  %v732 = vld [vmem:[%s1 + $0x10d0] sm:$0xff]
  %v733 = vld [vmem:[%s1 + $0x10d8] sm:$0xff]
  %v734 = vld [vmem:[%s1 + $0x10e0] sm:$0xff]
  %v735 = vld [vmem:[%s1 + $0x10e8] sm:$0xff]
  %v736 = vld [vmem:[%s1 + $0x10f0] sm:$0xff]
  %v737 = vld [vmem:[%s1 + $0x10f8] sm:$0xff]
  %v738 = vld [vmem:[%s1 + $0x1100] sm:$0xff]
  %v739 = vld [vmem:[%s1 + $0x1108] sm:$0xff]
  %v740 = vld [vmem:[%s1 + $0x1110] sm:$0xff]
  %v741 = vld [vmem:[%s1 + $0x1118] sm:$0xff]
  %v742 = vld [vmem:[%s1 + $0x1120] sm:$0xff]
  %v743 = vld [vmem:[%s1 + $0x1128] sm:$0xff]
  %v744 = vld [vmem:[%s1 + $0x1130] sm:$0xff]
  %v745 = vld [vmem:[%s1 + $0x1138] sm:$0xff]
  %v746 = vld [vmem:[%s1 + $0x1140] sm:$0xff]
  %v747 = vld [vmem:[%s1 + $0x1148] sm:$0xff]
  %v748 = vld [vmem:[%s1 + $0x1150] sm:$0xff]
  %v749 = vld [vmem:[%s1 + $0x1158] sm:$0xff]
  %v750 = vld [vmem:[%s1 + $0x1160] sm:$0xff]
  %v751 = vld [vmem:[%s1 + $0x1168] sm:$0xff]
  %v752 = vld [vmem:[%s1 + $0x1170] sm:$0xff]
  %v753 = vld [vmem:[%s1 + $0x1178] sm:$0xff]
  %v754 = vld [vmem:[%s1 + $0x1180] sm:$0xff]
  %v755 = vld [vmem:[%s1 + $0x1188] sm:$0xff]
  %v756 = vld [vmem:[%s1 + $0x1190] sm:$0xff]
  %v757 = vld [vmem:[%s1 + $0x1198] sm:$0xff]
  %v758 = vld [vmem:[%s1 + $0x11a0] sm:$0xff]
  %v759 = vld [vmem:[%s1 + $0x11a8] sm:$0xff]
  %v760 = vld [vmem:[%s1 + $0x11b0] sm:$0xff]
  %v761 = vld [vmem:[%s1 + $0x11b8] sm:$0xff]
  %v762 = vld [vmem:[%s1 + $0x11c0] sm:$0xff]
  %v763 = vld [vmem:[%s1 + $0x11c8] sm:$0xff]
  %v764 = vld [vmem:[%s1 + $0x11d0] sm:$0xff]
  %v765 = vld [vmem:[%s1 + $0x11d8] sm:$0xff]
  %v766 = vld [vmem:[%s1 + $0x11e0] sm:$0xff]
  %v767 = vld [vmem:[%s1 + $0x11e8] sm:$0xff]
  %v768 = vld [vmem:[%s1 + $0x11f0] sm:$0xff]
  %v769 = vld [vmem:[%s1 + $0x11f8] sm:$0xff]
  %v770 = vld [vmem:[%s1 + $0x1200] sm:$0xff]
  %v771 = vld [vmem:[%s1 + $0x1208] sm:$0xff]
  %v772 = vld [vmem:[%s1 + $0x1210] sm:$0xff]
  %v773 = vld [vmem:[%s1 + $0x1218] sm:$0xff]
  %v774 = vld [vmem:[%s1 + $0x1220] sm:$0xff]
  %v775 = vld [vmem:[%s1 + $0x1228] sm:$0xff]
  %v776 = vld [vmem:[%s1 + $0x1230] sm:$0xff]
  %v777 = vld [vmem:[%s1 + $0x1238] sm:$0xff]
  %v778 = vld [vmem:[%s1 + $0x1240] sm:$0xff]
  %v779 = vld [vmem:[%s1 + $0x1248] sm:$0xff]
  %v780 = vld [vmem:[%s1 + $0x1250] sm:$0xff]
  %v781 = vld [vmem:[%s1 + $0x1258] sm:$0xff]
  %v782 = vld [vmem:[%s1 + $0x1260] sm:$0xff]
  %v783 = vld [vmem:[%s1 + $0x1268] sm:$0xff]
  %v784 = vld [vmem:[%s1 + $0x1270] sm:$0xff]
  %v785 = vld [vmem:[%s1 + $0x1278] sm:$0xff]
  %v786 = vld [vmem:[%s1 + $0x1280] sm:$0xff]
  %v787 = vld [vmem:[%s1 + $0x1288] sm:$0xff]
  %v788 = vld [vmem:[%s1 + $0x1290] sm:$0xff]
  %v789 = vld [vmem:[%s1 + $0x1298] sm:$0xff]
  %v790 = vld [vmem:[%s1 + $0x12a0] sm:$0xff]
  %v791 = vld [vmem:[%s1 + $0x12a8] sm:$0xff]
  %v792 = vld [vmem:[%s1 + $0x12b0] sm:$0xff]
  %v793 = vld [vmem:[%s1 + $0x12b8] sm:$0xff]
  %v794 = vld [vmem:[%s1 + $0x12c0] sm:$0xff]
  %v795 = vld [vmem:[%s1 + $0x12c8] sm:$0xff]
  %v796 = vld [vmem:[%s1 + $0x12d0] sm:$0xff]
  %v797 = vld [vmem:[%s1 + $0x12d8] sm:$0xff]
  %v798 = vld [vmem:[%s1 + $0x12e0] sm:$0xff]
  %v799 = vld [vmem:[%s1 + $0x12e8] sm:$0xff]
  %v800 = vld [vmem:[%s1 + $0x12f0] sm:$0xff]
  %v801 = vld [vmem:[%s1 + $0x12f8] sm:$0xff]
  %v802 = vld [vmem:[%s1 + $0x1300] sm:$0xff]
  %v803 = vld [vmem:[%s1 + $0x1308] sm:$0xff]
  %v804 = vld [vmem:[%s1 + $0x1310] sm:$0xff]
  %v805 = vld [vmem:[%s1 + $0x1318] sm:$0xff]
  %v806 = vld [vmem:[%s1 + $0x1320] sm:$0xff]
  %v807 = vld [vmem:[%s1 + $0x1328] sm:$0xff]
  %v808 = vld [vmem:[%s1 + $0x1330] sm:$0xff]
  %v809 = vld [vmem:[%s1 + $0x1338] sm:$0xff]
  %v810 = vld [vmem:[%s1 + $0x1340] sm:$0xff]
  %v811 = vld [vmem:[%s1 + $0x1348] sm:$0xff]
  %v812 = vld [vmem:[%s1 + $0x1350] sm:$0xff]
  %v813 = vld [vmem:[%s1 + $0x1358] sm:$0xff]
  %v814 = vld [vmem:[%s1 + $0x1360] sm:$0xff]
  %v815 = vld [vmem:[%s1 + $0x1368] sm:$0xff]
  %v816 = vld [vmem:[%s1 + $0x1370] sm:$0xff]
  %v817 = vld [vmem:[%s1 + $0x1378] sm:$0xff]
  %v818 = vld [vmem:[%s1 + $0x1380] sm:$0xff]
  %v819 = vld [vmem:[%s1 + $0x1388] sm:$0xff]
  %v820 = vld [vmem:[%s1 + $0x1390] sm:$0xff]
  %v821 = vld [vmem:[%s1 + $0x1398] sm:$0xff]
  %v822 = vld [vmem:[%s1 + $0x13a0] sm:$0xff]
  %v823 = vld [vmem:[%s1 + $0x13a8] sm:$0xff]
  %v824 = vld [vmem:[%s1 + $0x13b0] sm:$0xff]
  %v825 = vld [vmem:[%s1 + $0x13b8] sm:$0xff]
  %v826 = vld [vmem:[%s1 + $0x13c0] sm:$0xff]
  %v827 = vld [vmem:[%s1 + $0x13c8] sm:$0xff]
  %v828 = vld [vmem:[%s1 + $0x13d0] sm:$0xff]
  %v829 = vld [vmem:[%s1 + $0x13d8] sm:$0xff]
  %v830 = vld [vmem:[%s1 + $0x13e0] sm:$0xff]
  %v831 = vld [vmem:[%s1 + $0x13e8] sm:$0xff]
  %v832 = vld [vmem:[%s1 + $0x13f0] sm:$0xff]
  %v833 = vld [vmem:[%s1 + $0x13f8] sm:$0xff]
  %v834 = vld [vmem:[%s1 + $0x1400] sm:$0xff]
  %v835 = vld [vmem:[%s1 + $0x1408] sm:$0xff]
  %v836 = vld [vmem:[%s1 + $0x1410] sm:$0xff]
  %v837 = vld [vmem:[%s1 + $0x1418] sm:$0xff]
  %v838 = vld [vmem:[%s1 + $0x1420] sm:$0xff]
  %v839 = vld [vmem:[%s1 + $0x1428] sm:$0xff]
  %v840 = vld [vmem:[%s1 + $0x1430] sm:$0xff]
  %v841 = vld [vmem:[%s1 + $0x1438] sm:$0xff]
  %v842 = vld [vmem:[%s1 + $0x1440] sm:$0xff]
  %v843 = vld [vmem:[%s1 + $0x1448] sm:$0xff]
  %v844 = vld [vmem:[%s1 + $0x1450] sm:$0xff]
  %v845 = vld [vmem:[%s1 + $0x1458] sm:$0xff]
  %v846 = vld [vmem:[%s1 + $0x1460] sm:$0xff]
  %v847 = vld [vmem:[%s1 + $0x1468] sm:$0xff]
  %v848 = vld [vmem:[%s1 + $0x1470] sm:$0xff]
  %v849 = vld [vmem:[%s1 + $0x1478] sm:$0xff]
  %v850 = vld [vmem:[%s1 + $0x1480] sm:$0xff]
  %v851 = vld [vmem:[%s1 + $0x1488] sm:$0xff]
  %v852 = vld [vmem:[%s1 + $0x1490] sm:$0xff]
  %v853 = vld [vmem:[%s1 + $0x1498] sm:$0xff]
  %v854 = vld [vmem:[%s1 + $0x14a0] sm:$0xff]
  %v855 = vld [vmem:[%s1 + $0x14a8] sm:$0xff]
  %v856 = vld [vmem:[%s1 + $0x14b0] sm:$0xff]
  %v857 = vld [vmem:[%s1 + $0x14b8] sm:$0xff]
  %v858 = vld [vmem:[%s1 + $0x14c0] sm:$0xff]
  %v859 = vld [vmem:[%s1 + $0x14c8] sm:$0xff]
  %v860 = vld [vmem:[%s1 + $0x14d0] sm:$0xff]
  %v861 = vld [vmem:[%s1 + $0x14d8] sm:$0xff]
  %v862 = vld [vmem:[%s1 + $0x14e0] sm:$0xff]
  %v863 = vld [vmem:[%s1 + $0x14e8] sm:$0xff]
  %v864 = vld [vmem:[%s1 + $0x14f0] sm:$0xff]
  %v865 = vld [vmem:[%s1 + $0x14f8] sm:$0xff]
  %v866 = vld [vmem:[%s1 + $0x1500] sm:$0xff]
  %v867 = vld [vmem:[%s1 + $0x1508] sm:$0xff]
  %v868 = vld [vmem:[%s1 + $0x1510] sm:$0xff]
  %v869 = vld [vmem:[%s1 + $0x1518] sm:$0xff]
  %v870 = vld [vmem:[%s1 + $0x1520] sm:$0xff]
  %v871 = vld [vmem:[%s1 + $0x1528] sm:$0xff]
  %v872 = vld [vmem:[%s1 + $0x1530] sm:$0xff]
  %v873 = vld [vmem:[%s1 + $0x1538] sm:$0xff]
  %v874 = vld [vmem:[%s1 + $0x1540] sm:$0xff]
  %v875 = vld [vmem:[%s1 + $0x1548] sm:$0xff]
  %v876 = vld [vmem:[%s1 + $0x1550] sm:$0xff]
  %v877 = vld [vmem:[%s1 + $0x1558] sm:$0xff]
  %v878 = vld [vmem:[%s1 + $0x1560] sm:$0xff]
  %v879 = vld [vmem:[%s1 + $0x1568] sm:$0xff]
  %v880 = vld [vmem:[%s1 + $0x1570] sm:$0xff]
  %v881 = vld [vmem:[%s1 + $0x1578] sm:$0xff]
  %v882 = vld [vmem:[%s1 + $0x1580] sm:$0xff]
  %v883 = vld [vmem:[%s1 + $0x1588] sm:$0xff]
  %v884 = vld [vmem:[%s1 + $0x1590] sm:$0xff]
  %v885 = vld [vmem:[%s1 + $0x1598] sm:$0xff]
  %v886 = vld [vmem:[%s1 + $0x15a0] sm:$0xff]
  %v887 = vld [vmem:[%s1 + $0x15a8] sm:$0xff]
  %v888 = vld [vmem:[%s1 + $0x15b0] sm:$0xff]
  %v889 = vld [vmem:[%s1 + $0x15b8] sm:$0xff]
  %v890 = vld [vmem:[%s1 + $0x15c0] sm:$0xff]
  %v891 = vld [vmem:[%s1 + $0x15c8] sm:$0xff]
  %v892 = vld [vmem:[%s1 + $0x15d0] sm:$0xff]
  %v893 = vld [vmem:[%s1 + $0x15d8] sm:$0xff]
  %v894 = vld [vmem:[%s1 + $0x15e0] sm:$0xff]
  %v895 = vld [vmem:[%s1 + $0x15e8] sm:$0xff]
  %v896 = vld [vmem:[%s1 + $0x15f0] sm:$0xff]
  %v897 = vld [vmem:[%s1 + $0x15f8] sm:$0xff]
  %v898 = vld [vmem:[%s1 + $0x1600] sm:$0xff]
  %v899 = vld [vmem:[%s1 + $0x1608] sm:$0xff]
  %v900 = vld [vmem:[%s1 + $0x1610] sm:$0xff]
  %v901 = vld [vmem:[%s1 + $0x1618] sm:$0xff]
  %v902 = vld [vmem:[%s1 + $0x1620] sm:$0xff]
  %v903 = vld [vmem:[%s1 + $0x1628] sm:$0xff]
  %v904 = vld [vmem:[%s1 + $0x1630] sm:$0xff]
  %v905 = vld [vmem:[%s1 + $0x1638] sm:$0xff]
  %v906 = vld [vmem:[%s1 + $0x1640] sm:$0xff]
  %v907 = vld [vmem:[%s1 + $0x1648] sm:$0xff]
  %v908 = vld [vmem:[%s1 + $0x1650] sm:$0xff]
  %v909 = vld [vmem:[%s1 + $0x1658] sm:$0xff]
  %v910 = vld [vmem:[%s1 + $0x1660] sm:$0xff]
  %v911 = vld [vmem:[%s1 + $0x1668] sm:$0xff]
  %v912 = vld [vmem:[%s1 + $0x1670] sm:$0xff]
  %v913 = vld [vmem:[%s1 + $0x1678] sm:$0xff]
  %v914 = vld [vmem:[%s1 + $0x1680] sm:$0xff]
  %v915 = vld [vmem:[%s1 + $0x1688] sm:$0xff]
  %v916 = vld [vmem:[%s1 + $0x1690] sm:$0xff]
  %v917 = vld [vmem:[%s1 + $0x1698] sm:$0xff]
  %v918 = vld [vmem:[%s1 + $0x16a0] sm:$0xff]
  %v919 = vld [vmem:[%s1 + $0x16a8] sm:$0xff]
  %v920 = vld [vmem:[%s1 + $0x16b0] sm:$0xff]
  %v921 = vld [vmem:[%s1 + $0x16b8] sm:$0xff]
  %v922 = vld [vmem:[%s1 + $0x16c0] sm:$0xff]
  %v923 = vld [vmem:[%s1 + $0x16c8] sm:$0xff]
  %v924 = vld [vmem:[%s1 + $0x16d0] sm:$0xff]
  %v925 = vld [vmem:[%s1 + $0x16d8] sm:$0xff]
  %v926 = vld [vmem:[%s1 + $0x16e0] sm:$0xff]
  %v927 = vld [vmem:[%s1 + $0x16e8] sm:$0xff]
  %v928 = vld [vmem:[%s1 + $0x16f0] sm:$0xff]
  %v929 = vld [vmem:[%s1 + $0x16f8] sm:$0xff]
  %v930 = vld [vmem:[%s1 + $0x1700] sm:$0xff]
  %v931 = vld [vmem:[%s1 + $0x1708] sm:$0xff]
  %v932 = vld [vmem:[%s1 + $0x1710] sm:$0xff]
  %v933 = vld [vmem:[%s1 + $0x1718] sm:$0xff]
  %v934 = vld [vmem:[%s1 + $0x1720] sm:$0xff]
  %v935 = vld [vmem:[%s1 + $0x1728] sm:$0xff]
  %v936 = vld [vmem:[%s1 + $0x1730] sm:$0xff]
  %v937 = vld [vmem:[%s1 + $0x1738] sm:$0xff]
  %v938 = vld [vmem:[%s1 + $0x1740] sm:$0xff]
  %v939 = vld [vmem:[%s1 + $0x1748] sm:$0xff]
  %v940 = vld [vmem:[%s1 + $0x1750] sm:$0xff]
  %v941 = vld [vmem:[%s1 + $0x1758] sm:$0xff]
  %v942 = vld [vmem:[%s1 + $0x1760] sm:$0xff]
  %v943 = vld [vmem:[%s1 + $0x1768] sm:$0xff]
  %v944 = vld [vmem:[%s1 + $0x1770] sm:$0xff]
  %v945 = vld [vmem:[%s1 + $0x1778] sm:$0xff]
  %v946 = vld [vmem:[%s1 + $0x1780] sm:$0xff]
  %v947 = vld [vmem:[%s1 + $0x1788] sm:$0xff]
  %v948 = vld [vmem:[%s1 + $0x1790] sm:$0xff]
  %v949 = vld [vmem:[%s1 + $0x1798] sm:$0xff]
  %v950 = vld [vmem:[%s1 + $0x17a0] sm:$0xff]
  %v951 = vld [vmem:[%s1 + $0x17a8] sm:$0xff]
  %v952 = vld [vmem:[%s1 + $0x17b0] sm:$0xff]
  %v953 = vld [vmem:[%s1 + $0x17b8] sm:$0xff]
  %v954 = vld [vmem:[%s1 + $0x17c0] sm:$0xff]
  %v955 = vld [vmem:[%s1 + $0x17c8] sm:$0xff]
  %v956 = vld [vmem:[%s1 + $0x17d0] sm:$0xff]
  %v957 = vld [vmem:[%s1 + $0x17d8] sm:$0xff]
  %v958 = vld [vmem:[%s1 + $0x17e0] sm:$0xff]
  %v959 = vld [vmem:[%s1 + $0x17e8] sm:$0xff]
  %v960 = vld [vmem:[%s1 + $0x17f0] sm:$0xff]
  %v961 = vld [vmem:[%s1 + $0x17f8] sm:$0xff]
  %v962 = vld [vmem:[%s1 + $0x1800] sm:$0xff]
  %v963 = vld [vmem:[%s1 + $0x1808] sm:$0xff]
  %v964 = vld [vmem:[%s1 + $0x1810] sm:$0xff]
  %v965 = vld [vmem:[%s1 + $0x1818] sm:$0xff]
  %v966 = vld [vmem:[%s1 + $0x1820] sm:$0xff]
  %v967 = vld [vmem:[%s1 + $0x1828] sm:$0xff]
  %v968 = vld [vmem:[%s1 + $0x1830] sm:$0xff]
  %v969 = vld [vmem:[%s1 + $0x1838] sm:$0xff]
  %v970 = vld [vmem:[%s1 + $0x1840] sm:$0xff]
  %v971 = vld [vmem:[%s1 + $0x1848] sm:$0xff]
  %v972 = vld [vmem:[%s1 + $0x1850] sm:$0xff]
  %v973 = vld [vmem:[%s1 + $0x1858] sm:$0xff]
  %v974 = vld [vmem:[%s1 + $0x1860] sm:$0xff]
  %v975 = vld [vmem:[%s1 + $0x1868] sm:$0xff]
  %v976 = vld [vmem:[%s1 + $0x1870] sm:$0xff]
  %v977 = vld [vmem:[%s1 + $0x1878] sm:$0xff]
  %v978 = vld [vmem:[%s1 + $0x1880] sm:$0xff]
  %v979 = vld [vmem:[%s1 + $0x1888] sm:$0xff]
  %v980 = vld [vmem:[%s1 + $0x1890] sm:$0xff]
  %v981 = vld [vmem:[%s1 + $0x1898] sm:$0xff]
  %v982 = vld [vmem:[%s1 + $0x18a0] sm:$0xff]
  %v983 = vld [vmem:[%s1 + $0x18a8] sm:$0xff]
  %v984 = vld [vmem:[%s1 + $0x18b0] sm:$0xff]
  %v985 = vld [vmem:[%s1 + $0x18b8] sm:$0xff]
  %v986 = vld [vmem:[%s1 + $0x18c0] sm:$0xff]
  %v987 = vld [vmem:[%s1 + $0x18c8] sm:$0xff]
  %v988 = vld [vmem:[%s1 + $0x18d0] sm:$0xff]
  %v989 = vld [vmem:[%s1 + $0x18d8] sm:$0xff]
  %v990 = vld [vmem:[%s1 + $0x18e0] sm:$0xff]
  %v991 = vld [vmem:[%s1 + $0x18e8] sm:$0xff]
  %v992 = vld [vmem:[%s1 + $0x18f0] sm:$0xff]
  %v993 = vld [vmem:[%s1 + $0x18f8] sm:$0xff]
  %v994 = vld [vmem:[%s1 + $0x1900] sm:$0xff]
  %v995 = vld [vmem:[%s1 + $0x1908] sm:$0xff]
  %v996 = vld [vmem:[%s1 + $0x1910] sm:$0xff]
  %v997 = vld [vmem:[%s1 + $0x1918] sm:$0xff]
  %v998 = vld [vmem:[%s1 + $0x1920] sm:$0xff]
  %v999 = vld [vmem:[%s1 + $0x1928] sm:$0xff]
  %v1000 = vld [vmem:[%s1 + $0x1930] sm:$0xff]
  %v1001 = vld [vmem:[%s1 + $0x1938] sm:$0xff]
  %v1002 = vld [vmem:[%s1 + $0x1940] sm:$0xff]
  %v1003 = vld [vmem:[%s1 + $0x1948] sm:$0xff]
  %v1004 = vld [vmem:[%s1 + $0x1950] sm:$0xff]
  %v1005 = vld [vmem:[%s1 + $0x1958] sm:$0xff]
  %v1006 = vld [vmem:[%s1 + $0x1960] sm:$0xff]
  %v1007 = vld [vmem:[%s1 + $0x1968] sm:$0xff]
  %v1008 = vld [vmem:[%s1 + $0x1970] sm:$0xff]
  %v1009 = vld [vmem:[%s1 + $0x1978] sm:$0xff]
  %v1010 = vld [vmem:[%s1 + $0x1980] sm:$0xff]
  %v1011 = vld [vmem:[%s1 + $0x1988] sm:$0xff]
  %v1012 = vld [vmem:[%s1 + $0x1990] sm:$0xff]
  %v1013 = vld [vmem:[%s1 + $0x1998] sm:$0xff]
  %v1014 = vld [vmem:[%s1 + $0x19a0] sm:$0xff]
  %v1015 = vld [vmem:[%s1 + $0x19a8] sm:$0xff]
  %v1016 = vld [vmem:[%s1 + $0x19b0] sm:$0xff]
  %v1017 = vld [vmem:[%s1 + $0x19b8] sm:$0xff]
  %v1018 = vld [vmem:[%s1 + $0x19c0] sm:$0xff]
  %v1019 = vld [vmem:[%s1 + $0x19c8] sm:$0xff]
  %v1020 = vld [vmem:[%s1 + $0x19d0] sm:$0xff]
  %v1021 = vld [vmem:[%s1 + $0x19d8] sm:$0xff]
  %v1022 = vld [vmem:[%s1 + $0x19e0] sm:$0xff]
  %v1023 = vld [vmem:[%s1 + $0x19e8] sm:$0xff]
  %v1024 = vld [vmem:[%s1 + $0x19f0] sm:$0xff]
  %v1025 = vld [vmem:[%s1 + $0x19f8] sm:$0xff]
  %v1026 = vld [vmem:[%s1 + $0x1a00] sm:$0xff]
  %v1027 = vld [vmem:[%s1 + $0x1a08] sm:$0xff]
  %v1028 = vld [vmem:[%s1 + $0x1a10] sm:$0xff]
  %v1029 = vld [vmem:[%s1 + $0x1a18] sm:$0xff]
  %v1030 = vld [vmem:[%s1 + $0x1a20] sm:$0xff]
  %v1031 = vld [vmem:[%s1 + $0x1a28] sm:$0xff]
  %v1032 = vld [vmem:[%s1 + $0x1a30] sm:$0xff]
  %v1033 = vld [vmem:[%s1 + $0x1a38] sm:$0xff]
  %v1034 = vld [vmem:[%s1 + $0x1a40] sm:$0xff]
  %v1035 = vld [vmem:[%s1 + $0x1a48] sm:$0xff]
  %v1036 = vld [vmem:[%s1 + $0x1a50] sm:$0xff]
  %v1037 = vld [vmem:[%s1 + $0x1a58] sm:$0xff]
  %v1038 = vld [vmem:[%s1 + $0x1a60] sm:$0xff]
  %v1039 = vld [vmem:[%s1 + $0x1a68] sm:$0xff]
  %v1040 = vld [vmem:[%s1 + $0x1a70] sm:$0xff]
  %v1041 = vld [vmem:[%s1 + $0x1a78] sm:$0xff]
  %v1042 = vld [vmem:[%s1 + $0x1a80] sm:$0xff]
  %v1043 = vld [vmem:[%s1 + $0x1a88] sm:$0xff]
  %v1044 = vld [vmem:[%s1 + $0x1a90] sm:$0xff]
  %v1045 = vld [vmem:[%s1 + $0x1a98] sm:$0xff]
  %v1046 = vld [vmem:[%s1 + $0x1aa0] sm:$0xff]
  %v1047 = vld [vmem:[%s1 + $0x1aa8] sm:$0xff]
  %v1048 = vld [vmem:[%s1 + $0x1ab0] sm:$0xff]
  %v1049 = vld [vmem:[%s1 + $0x1ab8] sm:$0xff]
  %v1050 = vld [vmem:[%s1 + $0x1ac0] sm:$0xff]
  %v1051 = vld [vmem:[%s1 + $0x1ac8] sm:$0xff]
  %v1052 = vld [vmem:[%s1 + $0x1ad0] sm:$0xff]
  %v1053 = vld [vmem:[%s1 + $0x1ad8] sm:$0xff]
  %v1054 = vld [vmem:[%s1 + $0x1ae0] sm:$0xff]
  %v1055 = vld [vmem:[%s1 + $0x1ae8] sm:$0xff]
  %v1056 = vld [vmem:[%s1 + $0x1af0] sm:$0xff]
  %v1057 = vld [vmem:[%s1 + $0x1af8] sm:$0xff]
  %v1058 = vld [vmem:[%s1 + $0x1b00] sm:$0xff]
  %v1059 = vld [vmem:[%s1 + $0x1b08] sm:$0xff]
  %v1060 = vld [vmem:[%s1 + $0x1b10] sm:$0xff]
  %v1061 = vld [vmem:[%s1 + $0x1b18] sm:$0xff]
  %v1062 = vld [vmem:[%s1 + $0x1b20] sm:$0xff]
  %v1063 = vld [vmem:[%s1 + $0x1b28] sm:$0xff]
  %v1064 = vld [vmem:[%s1 + $0x1b30] sm:$0xff]
  %v1065 = vld [vmem:[%s1 + $0x1b38] sm:$0xff]
  %v1066 = vld [vmem:[%s1 + $0x1b40] sm:$0xff]
  %v1067 = vld [vmem:[%s1 + $0x1b48] sm:$0xff]
  %v1068 = vld [vmem:[%s1 + $0x1b50] sm:$0xff]
  %v1069 = vld [vmem:[%s1 + $0x1b58] sm:$0xff]
  %v1070 = vld [vmem:[%s1 + $0x1b60] sm:$0xff]
  %v1071 = vld [vmem:[%s1 + $0x1b68] sm:$0xff]
  %v1072 = vld [vmem:[%s1 + $0x1b70] sm:$0xff]
  %v1073 = vld [vmem:[%s1 + $0x1b78] sm:$0xff]
  %v1074 = vld [vmem:[%s1 + $0x1b80] sm:$0xff]
  %v1075 = vld [vmem:[%s1 + $0x1b88] sm:$0xff]
  %v1076 = vld [vmem:[%s1 + $0x1b90] sm:$0xff]
  %v1077 = vld [vmem:[%s1 + $0x1b98] sm:$0xff]
  %v1078 = vld [vmem:[%s1 + $0x1ba0] sm:$0xff]
  %v1079 = vld [vmem:[%s1 + $0x1ba8] sm:$0xff]
  %v1080 = vld [vmem:[%s1 + $0x1bb0] sm:$0xff]
  %v1081 = vld [vmem:[%s1 + $0x1bb8] sm:$0xff]
  %v1082 = vld [vmem:[%s1 + $0x1bc0] sm:$0xff]
  %v1083 = vld [vmem:[%s1 + $0x1bc8] sm:$0xff]
  %v1084 = vld [vmem:[%s1 + $0x1bd0] sm:$0xff]
  %v1085 = vld [vmem:[%s1 + $0x1bd8] sm:$0xff]
  %v1086 = vld [vmem:[%s1 + $0x1be0] sm:$0xff]
  %v1087 = vld [vmem:[%s1 + $0x1be8] sm:$0xff]
  %v1088 = vld [vmem:[%s1 + $0x1bf0] sm:$0xff]
  %v1089 = vld [vmem:[%s1 + $0x1bf8] sm:$0xff]
  %v1090 = vld [vmem:[%s1 + $0x1c00] sm:$0xff]
  %v1091 = vld [vmem:[%s1 + $0x1c08] sm:$0xff]
  %v1092 = vld [vmem:[%s1 + $0x1c10] sm:$0xff]
  %v1093 = vld [vmem:[%s1 + $0x1c18] sm:$0xff]
  %v1094 = vld [vmem:[%s1 + $0x1c20] sm:$0xff]
  %v1095 = vld [vmem:[%s1 + $0x1c28] sm:$0xff]
  %v1096 = vld [vmem:[%s1 + $0x1c30] sm:$0xff]
  %v1097 = vld [vmem:[%s1 + $0x1c38] sm:$0xff]
  %v1098 = vld [vmem:[%s1 + $0x1c40] sm:$0xff]
  %v1099 = vld [vmem:[%s1 + $0x1c48] sm:$0xff]
  %v1100 = vld [vmem:[%s1 + $0x1c50] sm:$0xff]
  %v1101 = vld [vmem:[%s1 + $0x1c58] sm:$0xff]
  %v1102 = vld [vmem:[%s1 + $0x1c60] sm:$0xff]
  %v1103 = vld [vmem:[%s1 + $0x1c68] sm:$0xff]
  %v1104 = vld [vmem:[%s1 + $0x1c70] sm:$0xff]
  %v1105 = vld [vmem:[%s1 + $0x1c78] sm:$0xff]
  %v1106 = vld [vmem:[%s1 + $0x1c80] sm:$0xff]
  %v1107 = vld [vmem:[%s1 + $0x1c88] sm:$0xff]
  %v1108 = vld [vmem:[%s1 + $0x1c90] sm:$0xff]
  %v1109 = vld [vmem:[%s1 + $0x1c98] sm:$0xff]
  %v1110 = vld [vmem:[%s1 + $0x1ca0] sm:$0xff]
  %v1111 = vld [vmem:[%s1 + $0x1ca8] sm:$0xff]
  %v1112 = vld [vmem:[%s1 + $0x1cb0] sm:$0xff]
  %v1113 = vld [vmem:[%s1 + $0x1cb8] sm:$0xff]
  %v1114 = vld [vmem:[%s1 + $0x1cc0] sm:$0xff]
  %v1115 = vld [vmem:[%s1 + $0x1cc8] sm:$0xff]
  %v1116 = vld [vmem:[%s1 + $0x1cd0] sm:$0xff]
  %v1117 = vld [vmem:[%s1 + $0x1cd8] sm:$0xff]
  %v1118 = vld [vmem:[%s2] sm:$0x1]
  %v1120 = vlaneseq
  %v1121 = vshrl.u32 %v1120, 7
  %v1122 = vsub.s32 0, %v1121
  %v1123 = vrot.slane %v1118, %v1122
  %vm1125 = vcmask 785408
  %v1127 = vsel %vm1125, %v77, 0
  %v1130 = vsel %vm1125, %v135, 0
  %v1133 = vsel %vm1125, %v193, 0
  %1135 = vmatprep.subr.mxu0 0.0
  %1136 = vmatpush1.msra.mxu0 %v194
  %1137 = vmatprep.subr.mxu0 0.0
  %1138 = vmatpush1.msra.mxu0 %v195
  %1139 = vmatprep.subr.mxu0 0.0
  %1140 = vmatpush1.msra.mxu0 %v196
  %1141 = vmatprep.subr.mxu0 0.0
  %1142 = vmatpush1.msra.mxu0 %v197
  %1143 = vmatprep.subr.mxu0 0.0
  %1144 = vmatpush1.msra.mxu0 %v198
  %1145 = vmatprep.subr.mxu0 0.0
  %1146 = vmatpush1.msra.mxu0 %v199
  %1147 = vmatprep.subr.mxu0 0.0
  %1148 = vmatpush1.msra.mxu0 %v200
  %1149 = vmatprep.subr.mxu0 0.0
  %1150 = vmatpush1.msra.mxu0 %v201
  %1151 = vmatprep.subr.mxu0 0.0
  %1152 = vmatpush1.msra.mxu0 %v202
  %1153 = vmatprep.subr.mxu0 0.0
  %1154 = vmatpush1.msra.mxu0 %v203
  %1155 = vmatprep.subr.mxu0 0.0
  %1156 = vmatpush1.msra.mxu0 %v204
  %1157 = vmatprep.subr.mxu0 0.0
  %1158 = vmatpush1.msra.mxu0 %v205
  %1159 = vmatprep.subr.mxu0 0.0
  %1160 = vmatpush1.msra.mxu0 %v206
  %1161 = vmatprep.subr.mxu0 0.0
  %1162 = vmatpush1.msra.mxu0 %v207
  %1163 = vmatprep.subr.mxu0 0.0
  %1164 = vmatpush1.msra.mxu0 %v208
  %1165 = vmatprep.subr.mxu0 0.0
  %1166 = vmatpush1.msra.mxu0 %v209
  %1167 = vmatprep.subr.mxu0 0.0
  %1168 = vmatpush1.msra.mxu0 %v210
  %1169 = vmatprep.subr.mxu0 0.0
  %1170 = vmatpush1.msra.mxu0 %v211
  %1171 = vmatprep.subr.mxu0 0.0
  %1172 = vmatpush1.msra.mxu0 %v212
  %1173 = vmatprep.subr.mxu0 0.0
  %1174 = vmatpush1.msra.mxu0 %v213
  %1175 = vmatprep.subr.mxu0 0.0
  %1176 = vmatpush1.msra.mxu0 %v214
  %1177 = vmatprep.subr.mxu0 0.0
  %1178 = vmatpush1.msra.mxu0 %v215
  %1179 = vmatprep.subr.mxu0 0.0
  %1180 = vmatpush1.msra.mxu0 %v216
  %1181 = vmatprep.subr.mxu0 0.0
  %1182 = vmatpush1.msra.mxu0 %v217
  %1183 = vmatprep.subr.mxu0 0.0
  %1184 = vmatpush1.msra.mxu0 %v218
  %1185 = vmatprep.subr.mxu0 0.0
  %1186 = vmatpush1.msra.mxu0 %v219
  %1187 = vmatprep.subr.mxu0 0.0
  %1188 = vmatpush1.msra.mxu0 %v220
  %1189 = vmatprep.subr.mxu0 0.0
  %1190 = vmatpush1.msra.mxu0 %v221
  %1191 = vmatprep.subr.mxu0 0.0
  %1192 = vmatpush1.msra.mxu0 %v222
  %1193 = vmatprep.subr.mxu0 0.0
  %1194 = vmatpush1.msra.mxu0 %v223
  %1195 = vmatprep.subr.mxu0 0.0
  %1196 = vmatpush1.msra.mxu0 %v224
  %1197 = vmatprep.subr.mxu0 0.0
  %1198 = vmatpush1.msra.mxu0 %v225
  %1199 = vmatprep.mubr.f32.mxu0 %v21
  %1200 = vmatmul.mubr.f32.gmra.mrb[0].mxu0 %v20
  %v1201 = vpop.f32.mrb[0].mxu0
  %v1202 = vadd.f32 %v1123, %v1201
  %v1203 = vpop.f32.mrb[0].mxu0
  %1204 = vmatprep.mubr.f32.mxu0 %v79
  %1205 = vmatmul.mubr.f32.gmra.mrb[0].mxu0 %v78
  %v1206 = vpop.f32.mrb[0].mxu0
  %v1207 = vadd.f32 %v1123, %v1206
  %v1208 = vpop.f32.mrb[0].mxu0
  %1209 = vmatprep.mubr.f32.mxu0 %v137
  %1210 = vmatmul.mubr.f32.gmra.mrb[0].mxu0 %v136
  %v1211 = vpop.f32.mrb[0].mxu0
  %v1212 = vadd.f32 %v1123, %v1211
  %v1213 = vpop.f32.mrb[0].mxu0
  %1214 = vdwg.mxu0
  %1215 = vmatprep.subr.mxu0 0.0
  %1216 = vmatpush1.msra.mxu0 %v226
  %1217 = vmatprep.subr.mxu0 0.0
  %1218 = vmatpush1.msra.mxu0 %v227
  %1219 = vmatprep.subr.mxu0 0.0
  %1220 = vmatpush1.msra.mxu0 %v228
  %1221 = vmatprep.subr.mxu0 0.0
  %1222 = vmatpush1.msra.mxu0 %v229
  %1223 = vmatprep.subr.mxu0 0.0
  %1224 = vmatpush1.msra.mxu0 %v230
  %1225 = vmatprep.subr.mxu0 0.0
  %1226 = vmatpush1.msra.mxu0 %v231
  %1227 = vmatprep.subr.mxu0 0.0
  %1228 = vmatpush1.msra.mxu0 %v232
  %1229 = vmatprep.subr.mxu0 0.0
  %1230 = vmatpush1.msra.mxu0 %v233
  %1231 = vmatprep.subr.mxu0 0.0
  %1232 = vmatpush1.msra.mxu0 %v234
  %1233 = vmatprep.subr.mxu0 0.0
  %1234 = vmatpush1.msra.mxu0 %v235
  %1235 = vmatprep.subr.mxu0 0.0
  %1236 = vmatpush1.msra.mxu0 %v236
  %1237 = vmatprep.subr.mxu0 0.0
  %1238 = vmatpush1.msra.mxu0 %v237
  %1239 = vmatprep.subr.mxu0 0.0
  %1240 = vmatpush1.msra.mxu0 %v238
  %1241 = vmatprep.subr.mxu0 0.0
  %1242 = vmatpush1.msra.mxu0 %v239
  %1243 = vmatprep.subr.mxu0 0.0
  %1244 = vmatpush1.msra.mxu0 %v240
  %1245 = vmatprep.subr.mxu0 0.0
  %1246 = vmatpush1.msra.mxu0 %v241
  %1247 = vmatprep.subr.mxu0 0.0
  %1248 = vmatpush1.msra.mxu0 %v242
  %1249 = vmatprep.subr.mxu0 0.0
  %1250 = vmatpush1.msra.mxu0 %v243
  %1251 = vmatprep.subr.mxu0 0.0
  %1252 = vmatpush1.msra.mxu0 %v244
  %1253 = vmatprep.subr.mxu0 0.0
  %1254 = vmatpush1.msra.mxu0 %v245
  %1255 = vmatprep.subr.mxu0 0.0
  %1256 = vmatpush1.msra.mxu0 %v246
  %1257 = vmatprep.subr.mxu0 0.0
  %1258 = vmatpush1.msra.mxu0 %v247
  %1259 = vmatprep.subr.mxu0 0.0
  %1260 = vmatpush1.msra.mxu0 %v248
  %1261 = vmatprep.subr.mxu0 0.0
  %1262 = vmatpush1.msra.mxu0 %v249
  %1263 = vmatprep.subr.mxu0 0.0
  %1264 = vmatpush1.msra.mxu0 %v250
  %1265 = vmatprep.subr.mxu0 0.0
  %1266 = vmatpush1.msra.mxu0 %v251
  %1267 = vmatprep.subr.mxu0 0.0
  %1268 = vmatpush1.msra.mxu0 %v252
  %1269 = vmatprep.subr.mxu0 0.0
  %1270 = vmatpush1.msra.mxu0 %v253
  %1271 = vmatprep.subr.mxu0 0.0
  %1272 = vmatpush1.msra.mxu0 %v254
  %1273 = vmatprep.subr.mxu0 0.0
  %1274 = vmatpush1.msra.mxu0 %v255
  %1275 = vmatprep.subr.mxu0 0.0
  %1276 = vmatpush1.msra.mxu0 %v256
  %1277 = vmatprep.subr.mxu0 0.0
  %1278 = vmatpush1.msra.mxu0 %v257
  %1279 = vmatprep.mubr.f32.mxu0 %v23
  %1280 = vmatmul.mubr.f32.gmra.mrb[0].mxu0 %v22
  %v1281 = vpop.f32.mrb[0].mxu0
  %v1282 = vadd.f32 %v1202, %v1281
  %v1283 = vpop.f32.mrb[0].mxu0
  %1284 = vmatprep.mubr.f32.mxu0 %v81
  %1285 = vmatmul.mubr.f32.gmra.mrb[0].mxu0 %v80
  %v1286 = vpop.f32.mrb[0].mxu0
  %v1287 = vadd.f32 %v1207, %v1286
  %v1288 = vpop.f32.mrb[0].mxu0
  %1289 = vmatprep.mubr.f32.mxu0 %v139
  %1290 = vmatmul.mubr.f32.gmra.mrb[0].mxu0 %v138
  %v1291 = vpop.f32.mrb[0].mxu0
  %v1292 = vadd.f32 %v1212, %v1291
  %v1293 = vpop.f32.mrb[0].mxu0
  %1294 = vdwg.mxu0
  %1295 = vmatprep.subr.mxu0 0.0
  %1296 = vmatpush1.msra.mxu0 %v258
  %1297 = vmatprep.subr.mxu0 0.0
  %1298 = vmatpush1.msra.mxu0 %v259
  %1299 = vmatprep.subr.mxu0 0.0
  %1300 = vmatpush1.msra.mxu0 %v260
  %1301 = vmatprep.subr.mxu0 0.0
  %1302 = vmatpush1.msra.mxu0 %v261
  %1303 = vmatprep.subr.mxu0 0.0
  %1304 = vmatpush1.msra.mxu0 %v262
  %1305 = vmatprep.subr.mxu0 0.0
  %1306 = vmatpush1.msra.mxu0 %v263
  %1307 = vmatprep.subr.mxu0 0.0
  %1308 = vmatpush1.msra.mxu0 %v264
  %1309 = vmatprep.subr.mxu0 0.0
  %1310 = vmatpush1.msra.mxu0 %v265
  %1311 = vmatprep.subr.mxu0 0.0
  %1312 = vmatpush1.msra.mxu0 %v266
  %1313 = vmatprep.subr.mxu0 0.0
  %1314 = vmatpush1.msra.mxu0 %v267
  %1315 = vmatprep.subr.mxu0 0.0
  %1316 = vmatpush1.msra.mxu0 %v268
  %1317 = vmatprep.subr.mxu0 0.0
  %1318 = vmatpush1.msra.mxu0 %v269
  %1319 = vmatprep.subr.mxu0 0.0
  %1320 = vmatpush1.msra.mxu0 %v270
  %1321 = vmatprep.subr.mxu0 0.0
  %1322 = vmatpush1.msra.mxu0 %v271
  %1323 = vmatprep.subr.mxu0 0.0
  %1324 = vmatpush1.msra.mxu0 %v272
  %1325 = vmatprep.subr.mxu0 0.0
  %1326 = vmatpush1.msra.mxu0 %v273
  %1327 = vmatprep.subr.mxu0 0.0
  %1328 = vmatpush1.msra.mxu0 %v274
  %1329 = vmatprep.subr.mxu0 0.0
  %1330 = vmatpush1.msra.mxu0 %v275
  %1331 = vmatprep.subr.mxu0 0.0
  %1332 = vmatpush1.msra.mxu0 %v276
  %1333 = vmatprep.subr.mxu0 0.0
  %1334 = vmatpush1.msra.mxu0 %v277
  %1335 = vmatprep.subr.mxu0 0.0
  %1336 = vmatpush1.msra.mxu0 %v278
  %1337 = vmatprep.subr.mxu0 0.0
  %1338 = vmatpush1.msra.mxu0 %v279
  %1339 = vmatprep.subr.mxu0 0.0
  %1340 = vmatpush1.msra.mxu0 %v280
  %1341 = vmatprep.subr.mxu0 0.0
  %1342 = vmatpush1.msra.mxu0 %v281
  %1343 = vmatprep.subr.mxu0 0.0
  %1344 = vmatpush1.msra.mxu0 %v282
  %1345 = vmatprep.subr.mxu0 0.0
  %1346 = vmatpush1.msra.mxu0 %v283
  %1347 = vmatprep.subr.mxu0 0.0
  %1348 = vmatpush1.msra.mxu0 %v284
  %1349 = vmatprep.subr.mxu0 0.0
  %1350 = vmatpush1.msra.mxu0 %v285
  %1351 = vmatprep.subr.mxu0 0.0
  %1352 = vmatpush1.msra.mxu0 %v286
  %1353 = vmatprep.subr.mxu0 0.0
  %1354 = vmatpush1.msra.mxu0 %v287
  %1355 = vmatprep.subr.mxu0 0.0
  %1356 = vmatpush1.msra.mxu0 %v288
  %1357 = vmatprep.subr.mxu0 0.0
  %1358 = vmatpush1.msra.mxu0 %v289
  %1359 = vmatprep.mubr.f32.mxu0 %v25
  %1360 = vmatmul.mubr.f32.gmra.mrb[0].mxu0 %v24
  %v1361 = vpop.f32.mrb[0].mxu0
  %v1362 = vadd.f32 %v1282, %v1361
  %v1363 = vpop.f32.mrb[0].mxu0
  %1364 = vmatprep.mubr.f32.mxu0 %v83
  %1365 = vmatmul.mubr.f32.gmra.mrb[0].mxu0 %v82
  %v1366 = vpop.f32.mrb[0].mxu0
  %v1367 = vadd.f32 %v1287, %v1366
  %v1368 = vpop.f32.mrb[0].mxu0
  %1369 = vmatprep.mubr.f32.mxu0 %v141
  %1370 = vmatmul.mubr.f32.gmra.mrb[0].mxu0 %v140
  %v1371 = vpop.f32.mrb[0].mxu0
  %v1372 = vadd.f32 %v1292, %v1371
  %v1373 = vpop.f32.mrb[0].mxu0
  %1374 = vdwg.mxu0
  %1375 = vmatprep.subr.mxu0 0.0
  %1376 = vmatpush1.msra.mxu0 %v290
  %1377 = vmatprep.subr.mxu0 0.0
  %1378 = vmatpush1.msra.mxu0 %v291
  %1379 = vmatprep.subr.mxu0 0.0
  %1380 = vmatpush1.msra.mxu0 %v292
  %1381 = vmatprep.subr.mxu0 0.0
  %1382 = vmatpush1.msra.mxu0 %v293
  %1383 = vmatprep.subr.mxu0 0.0
  %1384 = vmatpush1.msra.mxu0 %v294
  %1385 = vmatprep.subr.mxu0 0.0
  %1386 = vmatpush1.msra.mxu0 %v295
  %1387 = vmatprep.subr.mxu0 0.0
  %1388 = vmatpush1.msra.mxu0 %v296
  %1389 = vmatprep.subr.mxu0 0.0
  %1390 = vmatpush1.msra.mxu0 %v297
  %1391 = vmatprep.subr.mxu0 0.0
  %1392 = vmatpush1.msra.mxu0 %v298
  %1393 = vmatprep.subr.mxu0 0.0
  %1394 = vmatpush1.msra.mxu0 %v299
  %1395 = vmatprep.subr.mxu0 0.0
  %1396 = vmatpush1.msra.mxu0 %v300
  %1397 = vmatprep.subr.mxu0 0.0
  %1398 = vmatpush1.msra.mxu0 %v301
  %1399 = vmatprep.subr.mxu0 0.0
  %1400 = vmatpush1.msra.mxu0 %v302
  %1401 = vmatprep.subr.mxu0 0.0
  %1402 = vmatpush1.msra.mxu0 %v303
  %1403 = vmatprep.subr.mxu0 0.0
  %1404 = vmatpush1.msra.mxu0 %v304
  %1405 = vmatprep.subr.mxu0 0.0
  %1406 = vmatpush1.msra.mxu0 %v305
  %1407 = vmatprep.subr.mxu0 0.0
  %1408 = vmatpush1.msra.mxu0 %v306
  %1409 = vmatprep.subr.mxu0 0.0
  %1410 = vmatpush1.msra.mxu0 %v307
  %1411 = vmatprep.subr.mxu0 0.0
  %1412 = vmatpush1.msra.mxu0 %v308
  %1413 = vmatprep.subr.mxu0 0.0
  %1414 = vmatpush1.msra.mxu0 %v309
  %1415 = vmatprep.subr.mxu0 0.0
  %1416 = vmatpush1.msra.mxu0 %v310
  %1417 = vmatprep.subr.mxu0 0.0
  %1418 = vmatpush1.msra.mxu0 %v311
  %1419 = vmatprep.subr.mxu0 0.0
  %1420 = vmatpush1.msra.mxu0 %v312
  %1421 = vmatprep.subr.mxu0 0.0
  %1422 = vmatpush1.msra.mxu0 %v313
  %1423 = vmatprep.subr.mxu0 0.0
  %1424 = vmatpush1.msra.mxu0 %v314
  %1425 = vmatprep.subr.mxu0 0.0
  %1426 = vmatpush1.msra.mxu0 %v315
  %1427 = vmatprep.subr.mxu0 0.0
  %1428 = vmatpush1.msra.mxu0 %v316
  %1429 = vmatprep.subr.mxu0 0.0
  %1430 = vmatpush1.msra.mxu0 %v317
  %1431 = vmatprep.subr.mxu0 0.0
  %1432 = vmatpush1.msra.mxu0 %v318
  %1433 = vmatprep.subr.mxu0 0.0
  %1434 = vmatpush1.msra.mxu0 %v319
  %1435 = vmatprep.subr.mxu0 0.0
  %1436 = vmatpush1.msra.mxu0 %v320
  %1437 = vmatprep.subr.mxu0 0.0
  %1438 = vmatpush1.msra.mxu0 %v321
  %1439 = vmatprep.mubr.f32.mxu0 %v27
  %1440 = vmatmul.mubr.f32.gmra.mrb[0].mxu0 %v26
  %v1441 = vpop.f32.mrb[0].mxu0
  %v1442 = vadd.f32 %v1362, %v1441
  %v1443 = vpop.f32.mrb[0].mxu0
  %1444 = vmatprep.mubr.f32.mxu0 %v85
  %1445 = vmatmul.mubr.f32.gmra.mrb[0].mxu0 %v84
  %v1446 = vpop.f32.mrb[0].mxu0
  %v1447 = vadd.f32 %v1367, %v1446
  %v1448 = vpop.f32.mrb[0].mxu0
  %1449 = vmatprep.mubr.f32.mxu0 %v143
  %1450 = vmatmul.mubr.f32.gmra.mrb[0].mxu0 %v142
  %v1451 = vpop.f32.mrb[0].mxu0
  %v1452 = vadd.f32 %v1372, %v1451
  %v1453 = vpop.f32.mrb[0].mxu0
  %1454 = vdwg.mxu0
  %1455 = vmatprep.subr.mxu0 0.0
  %1456 = vmatpush1.msra.mxu0 %v322
  %1457 = vmatprep.subr.mxu0 0.0
  %1458 = vmatpush1.msra.mxu0 %v323
  %1459 = vmatprep.subr.mxu0 0.0
  %1460 = vmatpush1.msra.mxu0 %v324
  %1461 = vmatprep.subr.mxu0 0.0
  %1462 = vmatpush1.msra.mxu0 %v325
  %1463 = vmatprep.subr.mxu0 0.0
  %1464 = vmatpush1.msra.mxu0 %v326
  %1465 = vmatprep.subr.mxu0 0.0
  %1466 = vmatpush1.msra.mxu0 %v327
  %1467 = vmatprep.subr.mxu0 0.0
  %1468 = vmatpush1.msra.mxu0 %v328
  %1469 = vmatprep.subr.mxu0 0.0
  %1470 = vmatpush1.msra.mxu0 %v329
  %1471 = vmatprep.subr.mxu0 0.0
  %1472 = vmatpush1.msra.mxu0 %v330
  %1473 = vmatprep.subr.mxu0 0.0
  %1474 = vmatpush1.msra.mxu0 %v331
  %1475 = vmatprep.subr.mxu0 0.0
  %1476 = vmatpush1.msra.mxu0 %v332
  %1477 = vmatprep.subr.mxu0 0.0
  %1478 = vmatpush1.msra.mxu0 %v333
  %1479 = vmatprep.subr.mxu0 0.0
  %1480 = vmatpush1.msra.mxu0 %v334
  %1481 = vmatprep.subr.mxu0 0.0
  %1482 = vmatpush1.msra.mxu0 %v335
  %1483 = vmatprep.subr.mxu0 0.0
  %1484 = vmatpush1.msra.mxu0 %v336
  %1485 = vmatprep.subr.mxu0 0.0
  %1486 = vmatpush1.msra.mxu0 %v337
  %1487 = vmatprep.subr.mxu0 0.0
  %1488 = vmatpush1.msra.mxu0 %v338
  %1489 = vmatprep.subr.mxu0 0.0
  %1490 = vmatpush1.msra.mxu0 %v339
  %1491 = vmatprep.subr.mxu0 0.0
  %1492 = vmatpush1.msra.mxu0 %v340
  %1493 = vmatprep.subr.mxu0 0.0
  %1494 = vmatpush1.msra.mxu0 %v341
  %1495 = vmatprep.subr.mxu0 0.0
  %1496 = vmatpush1.msra.mxu0 %v342
  %1497 = vmatprep.subr.mxu0 0.0
  %1498 = vmatpush1.msra.mxu0 %v343
  %1499 = vmatprep.subr.mxu0 0.0
  %1500 = vmatpush1.msra.mxu0 %v344
  %1501 = vmatprep.subr.mxu0 0.0
  %1502 = vmatpush1.msra.mxu0 %v345
  %1503 = vmatprep.subr.mxu0 0.0
  %1504 = vmatpush1.msra.mxu0 %v346
  %1505 = vmatprep.subr.mxu0 0.0
  %1506 = vmatpush1.msra.mxu0 %v347
  %1507 = vmatprep.subr.mxu0 0.0
  %1508 = vmatpush1.msra.mxu0 %v348
  %1509 = vmatprep.subr.mxu0 0.0
  %1510 = vmatpush1.msra.mxu0 %v349
  %1511 = vmatprep.subr.mxu0 0.0
  %1512 = vmatpush1.msra.mxu0 %v350
  %1513 = vmatprep.subr.mxu0 0.0
  %1514 = vmatpush1.msra.mxu0 %v351
  %1515 = vmatprep.subr.mxu0 0.0
  %1516 = vmatpush1.msra.mxu0 %v352
  %1517 = vmatprep.subr.mxu0 0.0
  %1518 = vmatpush1.msra.mxu0 %v353
  %1519 = vmatprep.mubr.f32.mxu0 %v29
  %1520 = vmatmul.mubr.f32.gmra.mrb[0].mxu0 %v28
  %v1521 = vpop.f32.mrb[0].mxu0
  %v1522 = vadd.f32 %v1442, %v1521
  %v1523 = vpop.f32.mrb[0].mxu0
  %1524 = vmatprep.mubr.f32.mxu0 %v87
  %1525 = vmatmul.mubr.f32.gmra.mrb[0].mxu0 %v86
  %v1526 = vpop.f32.mrb[0].mxu0
  %v1527 = vadd.f32 %v1447, %v1526
  %v1528 = vpop.f32.mrb[0].mxu0
  %1529 = vmatprep.mubr.f32.mxu0 %v145
  %1530 = vmatmul.mubr.f32.gmra.mrb[0].mxu0 %v144
  %v1531 = vpop.f32.mrb[0].mxu0
  %v1532 = vadd.f32 %v1452, %v1531
  %v1533 = vpop.f32.mrb[0].mxu0
  %1534 = vdwg.mxu0
  %1535 = vmatprep.subr.mxu0 0.0
  %1536 = vmatpush1.msra.mxu0 %v354
  %1537 = vmatprep.subr.mxu0 0.0
  %1538 = vmatpush1.msra.mxu0 %v355
  %1539 = vmatprep.subr.mxu0 0.0
  %1540 = vmatpush1.msra.mxu0 %v356
  %1541 = vmatprep.subr.mxu0 0.0
  %1542 = vmatpush1.msra.mxu0 %v357
  %1543 = vmatprep.subr.mxu0 0.0
  %1544 = vmatpush1.msra.mxu0 %v358
  %1545 = vmatprep.subr.mxu0 0.0
  %1546 = vmatpush1.msra.mxu0 %v359
  %1547 = vmatprep.subr.mxu0 0.0
  %1548 = vmatpush1.msra.mxu0 %v360
  %1549 = vmatprep.subr.mxu0 0.0
  %1550 = vmatpush1.msra.mxu0 %v361
  %1551 = vmatprep.subr.mxu0 0.0
  %1552 = vmatpush1.msra.mxu0 %v362
  %1553 = vmatprep.subr.mxu0 0.0
  %1554 = vmatpush1.msra.mxu0 %v363
  %1555 = vmatprep.subr.mxu0 0.0
  %1556 = vmatpush1.msra.mxu0 %v364
  %1557 = vmatprep.subr.mxu0 0.0
  %1558 = vmatpush1.msra.mxu0 %v365
  %1559 = vmatprep.subr.mxu0 0.0
  %1560 = vmatpush1.msra.mxu0 %v366
  %1561 = vmatprep.subr.mxu0 0.0
  %1562 = vmatpush1.msra.mxu0 %v367
  %1563 = vmatprep.subr.mxu0 0.0
  %1564 = vmatpush1.msra.mxu0 %v368
  %1565 = vmatprep.subr.mxu0 0.0
  %1566 = vmatpush1.msra.mxu0 %v369
  %1567 = vmatprep.subr.mxu0 0.0
  %1568 = vmatpush1.msra.mxu0 %v370
  %1569 = vmatprep.subr.mxu0 0.0
  %1570 = vmatpush1.msra.mxu0 %v371
  %1571 = vmatprep.subr.mxu0 0.0
  %1572 = vmatpush1.msra.mxu0 %v372
  %1573 = vmatprep.subr.mxu0 0.0
  %1574 = vmatpush1.msra.mxu0 %v373
  %1575 = vmatprep.subr.mxu0 0.0
  %1576 = vmatpush1.msra.mxu0 %v374
  %1577 = vmatprep.subr.mxu0 0.0
  %1578 = vmatpush1.msra.mxu0 %v375
  %1579 = vmatprep.subr.mxu0 0.0
  %1580 = vmatpush1.msra.mxu0 %v376
  %1581 = vmatprep.subr.mxu0 0.0
  %1582 = vmatpush1.msra.mxu0 %v377
  %1583 = vmatprep.subr.mxu0 0.0
  %1584 = vmatpush1.msra.mxu0 %v378
  %1585 = vmatprep.subr.mxu0 0.0
  %1586 = vmatpush1.msra.mxu0 %v379
  %1587 = vmatprep.subr.mxu0 0.0
  %1588 = vmatpush1.msra.mxu0 %v380
  %1589 = vmatprep.subr.mxu0 0.0
  %1590 = vmatpush1.msra.mxu0 %v381
  %1591 = vmatprep.subr.mxu0 0.0
  %1592 = vmatpush1.msra.mxu0 %v382
  %1593 = vmatprep.subr.mxu0 0.0
  %1594 = vmatpush1.msra.mxu0 %v383
  %1595 = vmatprep.subr.mxu0 0.0
  %1596 = vmatpush1.msra.mxu0 %v384
  %1597 = vmatprep.subr.mxu0 0.0
  %1598 = vmatpush1.msra.mxu0 %v385
  %1599 = vmatprep.mubr.f32.mxu0 %v31
  %1600 = vmatmul.mubr.f32.gmra.mrb[0].mxu0 %v30
  %v1601 = vpop.f32.mrb[0].mxu0
  %v1602 = vadd.f32 %v1522, %v1601
  %v1603 = vpop.f32.mrb[0].mxu0
  %1604 = vmatprep.mubr.f32.mxu0 %v89
  %1605 = vmatmul.mubr.f32.gmra.mrb[0].mxu0 %v88
  %v1606 = vpop.f32.mrb[0].mxu0
  %v1607 = vadd.f32 %v1527, %v1606
  %v1608 = vpop.f32.mrb[0].mxu0
  %1609 = vmatprep.mubr.f32.mxu0 %v147
  %1610 = vmatmul.mubr.f32.gmra.mrb[0].mxu0 %v146
  %v1611 = vpop.f32.mrb[0].mxu0
  %v1612 = vadd.f32 %v1532, %v1611
  %v1613 = vpop.f32.mrb[0].mxu0
  %1614 = vdwg.mxu0
  %1615 = vmatprep.subr.mxu0 0.0
  %1616 = vmatpush1.msra.mxu0 %v386
  %1617 = vmatprep.subr.mxu0 0.0
  %1618 = vmatpush1.msra.mxu0 %v387
  %1619 = vmatprep.subr.mxu0 0.0
  %1620 = vmatpush1.msra.mxu0 %v388
  %1621 = vmatprep.subr.mxu0 0.0
  %1622 = vmatpush1.msra.mxu0 %v389
  %1623 = vmatprep.subr.mxu0 0.0
  %1624 = vmatpush1.msra.mxu0 %v390
  %1625 = vmatprep.subr.mxu0 0.0
  %1626 = vmatpush1.msra.mxu0 %v391
  %1627 = vmatprep.subr.mxu0 0.0
  %1628 = vmatpush1.msra.mxu0 %v392
  %1629 = vmatprep.subr.mxu0 0.0
  %1630 = vmatpush1.msra.mxu0 %v393
  %1631 = vmatprep.subr.mxu0 0.0
  %1632 = vmatpush1.msra.mxu0 %v394
  %1633 = vmatprep.subr.mxu0 0.0
  %1634 = vmatpush1.msra.mxu0 %v395
  %1635 = vmatprep.subr.mxu0 0.0
  %1636 = vmatpush1.msra.mxu0 %v396
  %1637 = vmatprep.subr.mxu0 0.0
  %1638 = vmatpush1.msra.mxu0 %v397
  %1639 = vmatprep.subr.mxu0 0.0
  %1640 = vmatpush1.msra.mxu0 %v398
  %1641 = vmatprep.subr.mxu0 0.0
  %1642 = vmatpush1.msra.mxu0 %v399
  %1643 = vmatprep.subr.mxu0 0.0
  %1644 = vmatpush1.msra.mxu0 %v400
  %1645 = vmatprep.subr.mxu0 0.0
  %1646 = vmatpush1.msra.mxu0 %v401
  %1647 = vmatprep.subr.mxu0 0.0
  %1648 = vmatpush1.msra.mxu0 %v402
  %1649 = vmatprep.subr.mxu0 0.0
  %1650 = vmatpush1.msra.mxu0 %v403
  %1651 = vmatprep.subr.mxu0 0.0
  %1652 = vmatpush1.msra.mxu0 %v404
  %1653 = vmatprep.subr.mxu0 0.0
  %1654 = vmatpush1.msra.mxu0 %v405
  %1655 = vmatprep.subr.mxu0 0.0
  %1656 = vmatpush1.msra.mxu0 %v406
  %1657 = vmatprep.subr.mxu0 0.0
  %1658 = vmatpush1.msra.mxu0 %v407
  %1659 = vmatprep.subr.mxu0 0.0
  %1660 = vmatpush1.msra.mxu0 %v408
  %1661 = vmatprep.subr.mxu0 0.0
  %1662 = vmatpush1.msra.mxu0 %v409
  %1663 = vmatprep.subr.mxu0 0.0
  %1664 = vmatpush1.msra.mxu0 %v410
  %1665 = vmatprep.subr.mxu0 0.0
  %1666 = vmatpush1.msra.mxu0 %v411
  %1667 = vmatprep.subr.mxu0 0.0
  %1668 = vmatpush1.msra.mxu0 %v412
  %1669 = vmatprep.subr.mxu0 0.0
  %1670 = vmatpush1.msra.mxu0 %v413
  %1671 = vmatprep.subr.mxu0 0.0
  %1672 = vmatpush1.msra.mxu0 %v414
  %1673 = vmatprep.subr.mxu0 0.0
  %1674 = vmatpush1.msra.mxu0 %v415
  %1675 = vmatprep.subr.mxu0 0.0
  %1676 = vmatpush1.msra.mxu0 %v416
  %1677 = vmatprep.subr.mxu0 0.0
  %1678 = vmatpush1.msra.mxu0 %v417
  %1679 = vmatprep.mubr.f32.mxu0 %v33
  %1680 = vmatmul.mubr.f32.gmra.mrb[0].mxu0 %v32
  %v1681 = vpop.f32.mrb[0].mxu0
  %v1682 = vadd.f32 %v1602, %v1681
  %v1683 = vpop.f32.mrb[0].mxu0
  %1684 = vmatprep.mubr.f32.mxu0 %v91
  %1685 = vmatmul.mubr.f32.gmra.mrb[0].mxu0 %v90
  %v1686 = vpop.f32.mrb[0].mxu0
  %v1687 = vadd.f32 %v1607, %v1686
  %v1688 = vpop.f32.mrb[0].mxu0
  %1689 = vmatprep.mubr.f32.mxu0 %v149
  %1690 = vmatmul.mubr.f32.gmra.mrb[0].mxu0 %v148
  %v1691 = vpop.f32.mrb[0].mxu0
  %v1692 = vadd.f32 %v1612, %v1691
  %v1693 = vpop.f32.mrb[0].mxu0
  %1694 = vdwg.mxu0
  %1695 = vmatprep.subr.mxu0 0.0
  %1696 = vmatpush1.msra.mxu0 %v418
  %1697 = vmatprep.subr.mxu0 0.0
  %1698 = vmatpush1.msra.mxu0 %v419
  %1699 = vmatprep.subr.mxu0 0.0
  %1700 = vmatpush1.msra.mxu0 %v420
  %1701 = vmatprep.subr.mxu0 0.0
  %1702 = vmatpush1.msra.mxu0 %v421
  %1703 = vmatprep.subr.mxu0 0.0
  %1704 = vmatpush1.msra.mxu0 %v422
  %1705 = vmatprep.subr.mxu0 0.0
  %1706 = vmatpush1.msra.mxu0 %v423
  %1707 = vmatprep.subr.mxu0 0.0
  %1708 = vmatpush1.msra.mxu0 %v424
  %1709 = vmatprep.subr.mxu0 0.0
  %1710 = vmatpush1.msra.mxu0 %v425
  %1711 = vmatprep.subr.mxu0 0.0
  %1712 = vmatpush1.msra.mxu0 %v426
  %1713 = vmatprep.subr.mxu0 0.0
  %1714 = vmatpush1.msra.mxu0 %v427
  %1715 = vmatprep.subr.mxu0 0.0
  %1716 = vmatpush1.msra.mxu0 %v428
  %1717 = vmatprep.subr.mxu0 0.0
  %1718 = vmatpush1.msra.mxu0 %v429
  %1719 = vmatprep.subr.mxu0 0.0
  %1720 = vmatpush1.msra.mxu0 %v430
  %1721 = vmatprep.subr.mxu0 0.0
  %1722 = vmatpush1.msra.mxu0 %v431
  %1723 = vmatprep.subr.mxu0 0.0
  %1724 = vmatpush1.msra.mxu0 %v432
  %1725 = vmatprep.subr.mxu0 0.0
  %1726 = vmatpush1.msra.mxu0 %v433
  %1727 = vmatprep.subr.mxu0 0.0
  %1728 = vmatpush1.msra.mxu0 %v434
  %1729 = vmatprep.subr.mxu0 0.0
  %1730 = vmatpush1.msra.mxu0 %v435
  %1731 = vmatprep.subr.mxu0 0.0
  %1732 = vmatpush1.msra.mxu0 %v436
  %1733 = vmatprep.subr.mxu0 0.0
  %1734 = vmatpush1.msra.mxu0 %v437
  %1735 = vmatprep.subr.mxu0 0.0
  %1736 = vmatpush1.msra.mxu0 %v438
  %1737 = vmatprep.subr.mxu0 0.0
  %1738 = vmatpush1.msra.mxu0 %v439
  %1739 = vmatprep.subr.mxu0 0.0
  %1740 = vmatpush1.msra.mxu0 %v440
  %1741 = vmatprep.subr.mxu0 0.0
  %1742 = vmatpush1.msra.mxu0 %v441
  %1743 = vmatprep.subr.mxu0 0.0
  %1744 = vmatpush1.msra.mxu0 %v442
  %1745 = vmatprep.subr.mxu0 0.0
  %1746 = vmatpush1.msra.mxu0 %v443
  %1747 = vmatprep.subr.mxu0 0.0
  %1748 = vmatpush1.msra.mxu0 %v444
  %1749 = vmatprep.subr.mxu0 0.0
  %1750 = vmatpush1.msra.mxu0 %v445
  %1751 = vmatprep.subr.mxu0 0.0
  %1752 = vmatpush1.msra.mxu0 %v446
  %1753 = vmatprep.subr.mxu0 0.0
  %1754 = vmatpush1.msra.mxu0 %v447
  %1755 = vmatprep.subr.mxu0 0.0
  %1756 = vmatpush1.msra.mxu0 %v448
  %1757 = vmatprep.subr.mxu0 0.0
  %1758 = vmatpush1.msra.mxu0 %v449
  %1759 = vmatprep.mubr.f32.mxu0 %v35
  %1760 = vmatmul.mubr.f32.gmra.mrb[0].mxu0 %v34
  %v1761 = vpop.f32.mrb[0].mxu0
  %v1762 = vadd.f32 %v1682, %v1761
  %v1763 = vpop.f32.mrb[0].mxu0
  %1764 = vmatprep.mubr.f32.mxu0 %v93
  %1765 = vmatmul.mubr.f32.gmra.mrb[0].mxu0 %v92
  %v1766 = vpop.f32.mrb[0].mxu0
  %v1767 = vadd.f32 %v1687, %v1766
  %v1768 = vpop.f32.mrb[0].mxu0
  %1769 = vmatprep.mubr.f32.mxu0 %v151
  %1770 = vmatmul.mubr.f32.gmra.mrb[0].mxu0 %v150
  %v1771 = vpop.f32.mrb[0].mxu0
  %v1772 = vadd.f32 %v1692, %v1771
  %v1773 = vpop.f32.mrb[0].mxu0
  %1774 = vdwg.mxu0
  %1775 = vmatprep.subr.mxu0 0.0
  %1776 = vmatpush1.msra.mxu0 %v450
  %1777 = vmatprep.subr.mxu0 0.0
  %1778 = vmatpush1.msra.mxu0 %v451
  %1779 = vmatprep.subr.mxu0 0.0
  %1780 = vmatpush1.msra.mxu0 %v452
  %1781 = vmatprep.subr.mxu0 0.0
  %1782 = vmatpush1.msra.mxu0 %v453
  %1783 = vmatprep.subr.mxu0 0.0
  %1784 = vmatpush1.msra.mxu0 %v454
  %1785 = vmatprep.subr.mxu0 0.0
  %1786 = vmatpush1.msra.mxu0 %v455
  %1787 = vmatprep.subr.mxu0 0.0
  %1788 = vmatpush1.msra.mxu0 %v456
  %1789 = vmatprep.subr.mxu0 0.0
  %1790 = vmatpush1.msra.mxu0 %v457
  %1791 = vmatprep.subr.mxu0 0.0
  %1792 = vmatpush1.msra.mxu0 %v458
  %1793 = vmatprep.subr.mxu0 0.0
  %1794 = vmatpush1.msra.mxu0 %v459
  %1795 = vmatprep.subr.mxu0 0.0
  %1796 = vmatpush1.msra.mxu0 %v460
  %1797 = vmatprep.subr.mxu0 0.0
  %1798 = vmatpush1.msra.mxu0 %v461
  %1799 = vmatprep.subr.mxu0 0.0
  %1800 = vmatpush1.msra.mxu0 %v462
  %1801 = vmatprep.subr.mxu0 0.0
  %1802 = vmatpush1.msra.mxu0 %v463
  %1803 = vmatprep.subr.mxu0 0.0
  %1804 = vmatpush1.msra.mxu0 %v464
  %1805 = vmatprep.subr.mxu0 0.0
  %1806 = vmatpush1.msra.mxu0 %v465
  %1807 = vmatprep.subr.mxu0 0.0
  %1808 = vmatpush1.msra.mxu0 %v466
  %1809 = vmatprep.subr.mxu0 0.0
  %1810 = vmatpush1.msra.mxu0 %v467
  %1811 = vmatprep.subr.mxu0 0.0
  %1812 = vmatpush1.msra.mxu0 %v468
  %1813 = vmatprep.subr.mxu0 0.0
  %1814 = vmatpush1.msra.mxu0 %v469
  %1815 = vmatprep.subr.mxu0 0.0
  %1816 = vmatpush1.msra.mxu0 %v470
  %1817 = vmatprep.subr.mxu0 0.0
  %1818 = vmatpush1.msra.mxu0 %v471
  %1819 = vmatprep.subr.mxu0 0.0
  %1820 = vmatpush1.msra.mxu0 %v472
  %1821 = vmatprep.subr.mxu0 0.0
  %1822 = vmatpush1.msra.mxu0 %v473
  %1823 = vmatprep.subr.mxu0 0.0
  %1824 = vmatpush1.msra.mxu0 %v474
  %1825 = vmatprep.subr.mxu0 0.0
  %1826 = vmatpush1.msra.mxu0 %v475
  %1827 = vmatprep.subr.mxu0 0.0
  %1828 = vmatpush1.msra.mxu0 %v476
  %1829 = vmatprep.subr.mxu0 0.0
  %1830 = vmatpush1.msra.mxu0 %v477
  %1831 = vmatprep.subr.mxu0 0.0
  %1832 = vmatpush1.msra.mxu0 %v478
  %1833 = vmatprep.subr.mxu0 0.0
  %1834 = vmatpush1.msra.mxu0 %v479
  %1835 = vmatprep.subr.mxu0 0.0
  %1836 = vmatpush1.msra.mxu0 %v480
  %1837 = vmatprep.subr.mxu0 0.0
  %1838 = vmatpush1.msra.mxu0 %v481
  %1839 = vmatprep.mubr.f32.mxu0 %v37
  %1840 = vmatmul.mubr.f32.gmra.mrb[0].mxu0 %v36
  %v1841 = vpop.f32.mrb[0].mxu0
  %v1842 = vadd.f32 %v1762, %v1841
  %v1843 = vpop.f32.mrb[0].mxu0
  %1844 = vmatprep.mubr.f32.mxu0 %v95
  %1845 = vmatmul.mubr.f32.gmra.mrb[0].mxu0 %v94
  %v1846 = vpop.f32.mrb[0].mxu0
  %v1847 = vadd.f32 %v1767, %v1846
  %v1848 = vpop.f32.mrb[0].mxu0
  %1849 = vmatprep.mubr.f32.mxu0 %v153
  %1850 = vmatmul.mubr.f32.gmra.mrb[0].mxu0 %v152
  %v1851 = vpop.f32.mrb[0].mxu0
  %v1852 = vadd.f32 %v1772, %v1851
  %v1853 = vpop.f32.mrb[0].mxu0
  %1854 = vdwg.mxu0
  %1855 = vmatprep.subr.mxu0 0.0
  %1856 = vmatpush1.msra.mxu0 %v482
  %1857 = vmatprep.subr.mxu0 0.0
  %1858 = vmatpush1.msra.mxu0 %v483
  %1859 = vmatprep.subr.mxu0 0.0
  %1860 = vmatpush1.msra.mxu0 %v484
  %1861 = vmatprep.subr.mxu0 0.0
  %1862 = vmatpush1.msra.mxu0 %v485
  %1863 = vmatprep.subr.mxu0 0.0
  %1864 = vmatpush1.msra.mxu0 %v486
  %1865 = vmatprep.subr.mxu0 0.0
  %1866 = vmatpush1.msra.mxu0 %v487
  %1867 = vmatprep.subr.mxu0 0.0
  %1868 = vmatpush1.msra.mxu0 %v488
  %1869 = vmatprep.subr.mxu0 0.0
  %1870 = vmatpush1.msra.mxu0 %v489
  %1871 = vmatprep.subr.mxu0 0.0
  %1872 = vmatpush1.msra.mxu0 %v490
  %1873 = vmatprep.subr.mxu0 0.0
  %1874 = vmatpush1.msra.mxu0 %v491
  %1875 = vmatprep.subr.mxu0 0.0
  %1876 = vmatpush1.msra.mxu0 %v492
  %1877 = vmatprep.subr.mxu0 0.0
  %1878 = vmatpush1.msra.mxu0 %v493
  %1879 = vmatprep.subr.mxu0 0.0
  %1880 = vmatpush1.msra.mxu0 %v494
  %1881 = vmatprep.subr.mxu0 0.0
  %1882 = vmatpush1.msra.mxu0 %v495
  %1883 = vmatprep.subr.mxu0 0.0
  %1884 = vmatpush1.msra.mxu0 %v496
  %1885 = vmatprep.subr.mxu0 0.0
  %1886 = vmatpush1.msra.mxu0 %v497
  %1887 = vmatprep.subr.mxu0 0.0
  %1888 = vmatpush1.msra.mxu0 %v498
  %1889 = vmatprep.subr.mxu0 0.0
  %1890 = vmatpush1.msra.mxu0 %v499
  %1891 = vmatprep.subr.mxu0 0.0
  %1892 = vmatpush1.msra.mxu0 %v500
  %1893 = vmatprep.subr.mxu0 0.0
  %1894 = vmatpush1.msra.mxu0 %v501
  %1895 = vmatprep.subr.mxu0 0.0
  %1896 = vmatpush1.msra.mxu0 %v502
  %1897 = vmatprep.subr.mxu0 0.0
  %1898 = vmatpush1.msra.mxu0 %v503
  %1899 = vmatprep.subr.mxu0 0.0
  %1900 = vmatpush1.msra.mxu0 %v504
  %1901 = vmatprep.subr.mxu0 0.0
  %1902 = vmatpush1.msra.mxu0 %v505
  %1903 = vmatprep.subr.mxu0 0.0
  %1904 = vmatpush1.msra.mxu0 %v506
  %1905 = vmatprep.subr.mxu0 0.0
  %1906 = vmatpush1.msra.mxu0 %v507
  %1907 = vmatprep.subr.mxu0 0.0
  %1908 = vmatpush1.msra.mxu0 %v508
  %1909 = vmatprep.subr.mxu0 0.0
  %1910 = vmatpush1.msra.mxu0 %v509
  %1911 = vmatprep.subr.mxu0 0.0
  %1912 = vmatpush1.msra.mxu0 %v510
  %1913 = vmatprep.subr.mxu0 0.0
  %1914 = vmatpush1.msra.mxu0 %v511
  %1915 = vmatprep.subr.mxu0 0.0
  %1916 = vmatpush1.msra.mxu0 %v512
  %1917 = vmatprep.subr.mxu0 0.0
  %1918 = vmatpush1.msra.mxu0 %v513
  %1919 = vmatprep.mubr.f32.mxu0 %v39
  %1920 = vmatmul.mubr.f32.gmra.mrb[0].mxu0 %v38
  %v1921 = vpop.f32.mrb[0].mxu0
  %v1922 = vadd.f32 %v1842, %v1921
  %v1923 = vpop.f32.mrb[0].mxu0
  %1924 = vmatprep.mubr.f32.mxu0 %v97
  %1925 = vmatmul.mubr.f32.gmra.mrb[0].mxu0 %v96
  %v1926 = vpop.f32.mrb[0].mxu0
  %v1927 = vadd.f32 %v1847, %v1926
  %v1928 = vpop.f32.mrb[0].mxu0
  %1929 = vmatprep.mubr.f32.mxu0 %v155
  %1930 = vmatmul.mubr.f32.gmra.mrb[0].mxu0 %v154
  %v1931 = vpop.f32.mrb[0].mxu0
  %v1932 = vadd.f32 %v1852, %v1931
  %v1933 = vpop.f32.mrb[0].mxu0
  %1934 = vdwg.mxu0
  %1935 = vmatprep.subr.mxu0 0.0
  %1936 = vmatpush1.msra.mxu0 %v514
  %1937 = vmatprep.subr.mxu0 0.0
  %1938 = vmatpush1.msra.mxu0 %v515
  %1939 = vmatprep.subr.mxu0 0.0
  %1940 = vmatpush1.msra.mxu0 %v516
  %1941 = vmatprep.subr.mxu0 0.0
  %1942 = vmatpush1.msra.mxu0 %v517
  %1943 = vmatprep.subr.mxu0 0.0
  %1944 = vmatpush1.msra.mxu0 %v518
  %1945 = vmatprep.subr.mxu0 0.0
  %1946 = vmatpush1.msra.mxu0 %v519
  %1947 = vmatprep.subr.mxu0 0.0
  %1948 = vmatpush1.msra.mxu0 %v520
  %1949 = vmatprep.subr.mxu0 0.0
  %1950 = vmatpush1.msra.mxu0 %v521
  %1951 = vmatprep.subr.mxu0 0.0
  %1952 = vmatpush1.msra.mxu0 %v522
  %1953 = vmatprep.subr.mxu0 0.0
  %1954 = vmatpush1.msra.mxu0 %v523
  %1955 = vmatprep.subr.mxu0 0.0
  %1956 = vmatpush1.msra.mxu0 %v524
  %1957 = vmatprep.subr.mxu0 0.0
  %1958 = vmatpush1.msra.mxu0 %v525
  %1959 = vmatprep.subr.mxu0 0.0
  %1960 = vmatpush1.msra.mxu0 %v526
  %1961 = vmatprep.subr.mxu0 0.0
  %1962 = vmatpush1.msra.mxu0 %v527
  %1963 = vmatprep.subr.mxu0 0.0
  %1964 = vmatpush1.msra.mxu0 %v528
  %1965 = vmatprep.subr.mxu0 0.0
  %1966 = vmatpush1.msra.mxu0 %v529
  %1967 = vmatprep.subr.mxu0 0.0
  %1968 = vmatpush1.msra.mxu0 %v530
  %1969 = vmatprep.subr.mxu0 0.0
  %1970 = vmatpush1.msra.mxu0 %v531
  %1971 = vmatprep.subr.mxu0 0.0
  %1972 = vmatpush1.msra.mxu0 %v532
  %1973 = vmatprep.subr.mxu0 0.0
  %1974 = vmatpush1.msra.mxu0 %v533
  %1975 = vmatprep.subr.mxu0 0.0
  %1976 = vmatpush1.msra.mxu0 %v534
  %1977 = vmatprep.subr.mxu0 0.0
  %1978 = vmatpush1.msra.mxu0 %v535
  %1979 = vmatprep.subr.mxu0 0.0
  %1980 = vmatpush1.msra.mxu0 %v536
  %1981 = vmatprep.subr.mxu0 0.0
  %1982 = vmatpush1.msra.mxu0 %v537
  %1983 = vmatprep.subr.mxu0 0.0
  %1984 = vmatpush1.msra.mxu0 %v538
  %1985 = vmatprep.subr.mxu0 0.0
  %1986 = vmatpush1.msra.mxu0 %v539
  %1987 = vmatprep.subr.mxu0 0.0
  %1988 = vmatpush1.msra.mxu0 %v540
  %1989 = vmatprep.subr.mxu0 0.0
  %1990 = vmatpush1.msra.mxu0 %v541
  %1991 = vmatprep.subr.mxu0 0.0
  %1992 = vmatpush1.msra.mxu0 %v542
  %1993 = vmatprep.subr.mxu0 0.0
  %1994 = vmatpush1.msra.mxu0 %v543
  %1995 = vmatprep.subr.mxu0 0.0
  %1996 = vmatpush1.msra.mxu0 %v544
  %1997 = vmatprep.subr.mxu0 0.0
  %1998 = vmatpush1.msra.mxu0 %v545
  %1999 = vmatprep.mubr.f32.mxu0 %v41
  %2000 = vmatmul.mubr.f32.gmra.mrb[0].mxu0 %v40
  %v2001 = vpop.f32.mrb[0].mxu0
  %v2002 = vadd.f32 %v1922, %v2001
  %v2003 = vpop.f32.mrb[0].mxu0
  %2004 = vmatprep.mubr.f32.mxu0 %v99
  %2005 = vmatmul.mubr.f32.gmra.mrb[0].mxu0 %v98
  %v2006 = vpop.f32.mrb[0].mxu0
  %v2007 = vadd.f32 %v1927, %v2006
  %v2008 = vpop.f32.mrb[0].mxu0
  %2009 = vmatprep.mubr.f32.mxu0 %v157
  %2010 = vmatmul.mubr.f32.gmra.mrb[0].mxu0 %v156
  %v2011 = vpop.f32.mrb[0].mxu0
  %v2012 = vadd.f32 %v1932, %v2011
  %v2013 = vpop.f32.mrb[0].mxu0
  %2014 = vdwg.mxu0
  %2015 = vmatprep.subr.mxu0 0.0
  %2016 = vmatpush1.msra.mxu0 %v546
  %2017 = vmatprep.subr.mxu0 0.0
  %2018 = vmatpush1.msra.mxu0 %v547
  %2019 = vmatprep.subr.mxu0 0.0
  %2020 = vmatpush1.msra.mxu0 %v548
  %2021 = vmatprep.subr.mxu0 0.0
  %2022 = vmatpush1.msra.mxu0 %v549
  %2023 = vmatprep.subr.mxu0 0.0
  %2024 = vmatpush1.msra.mxu0 %v550
  %2025 = vmatprep.subr.mxu0 0.0
  %2026 = vmatpush1.msra.mxu0 %v551
  %2027 = vmatprep.subr.mxu0 0.0
  %2028 = vmatpush1.msra.mxu0 %v552
  %2029 = vmatprep.subr.mxu0 0.0
  %2030 = vmatpush1.msra.mxu0 %v553
  %2031 = vmatprep.subr.mxu0 0.0
  %2032 = vmatpush1.msra.mxu0 %v554
  %2033 = vmatprep.subr.mxu0 0.0
  %2034 = vmatpush1.msra.mxu0 %v555
  %2035 = vmatprep.subr.mxu0 0.0
  %2036 = vmatpush1.msra.mxu0 %v556
  %2037 = vmatprep.subr.mxu0 0.0
  %2038 = vmatpush1.msra.mxu0 %v557
  %2039 = vmatprep.subr.mxu0 0.0
  %2040 = vmatpush1.msra.mxu0 %v558
  %2041 = vmatprep.subr.mxu0 0.0
  %2042 = vmatpush1.msra.mxu0 %v559
  %2043 = vmatprep.subr.mxu0 0.0
  %2044 = vmatpush1.msra.mxu0 %v560
  %2045 = vmatprep.subr.mxu0 0.0
  %2046 = vmatpush1.msra.mxu0 %v561
  %2047 = vmatprep.subr.mxu0 0.0
  %2048 = vmatpush1.msra.mxu0 %v562
  %2049 = vmatprep.subr.mxu0 0.0
  %2050 = vmatpush1.msra.mxu0 %v563
  %2051 = vmatprep.subr.mxu0 0.0
  %2052 = vmatpush1.msra.mxu0 %v564
  %2053 = vmatprep.subr.mxu0 0.0
  %2054 = vmatpush1.msra.mxu0 %v565
  %2055 = vmatprep.subr.mxu0 0.0
  %2056 = vmatpush1.msra.mxu0 %v566
  %2057 = vmatprep.subr.mxu0 0.0
  %2058 = vmatpush1.msra.mxu0 %v567
  %2059 = vmatprep.subr.mxu0 0.0
  %2060 = vmatpush1.msra.mxu0 %v568
  %2061 = vmatprep.subr.mxu0 0.0
  %2062 = vmatpush1.msra.mxu0 %v569
  %2063 = vmatprep.subr.mxu0 0.0
  %2064 = vmatpush1.msra.mxu0 %v570
  %2065 = vmatprep.subr.mxu0 0.0
  %2066 = vmatpush1.msra.mxu0 %v571
  %2067 = vmatprep.subr.mxu0 0.0
  %2068 = vmatpush1.msra.mxu0 %v572
  %2069 = vmatprep.subr.mxu0 0.0
  %2070 = vmatpush1.msra.mxu0 %v573
  %2071 = vmatprep.subr.mxu0 0.0
  %2072 = vmatpush1.msra.mxu0 %v574
  %2073 = vmatprep.subr.mxu0 0.0
  %2074 = vmatpush1.msra.mxu0 %v575
  %2075 = vmatprep.subr.mxu0 0.0
  %2076 = vmatpush1.msra.mxu0 %v576
  %2077 = vmatprep.subr.mxu0 0.0
  %2078 = vmatpush1.msra.mxu0 %v577
  %2079 = vmatprep.mubr.f32.mxu0 %v43
  %2080 = vmatmul.mubr.f32.gmra.mrb[0].mxu0 %v42
  %v2081 = vpop.f32.mrb[0].mxu0
  %v2082 = vadd.f32 %v2002, %v2081
  %v2083 = vpop.f32.mrb[0].mxu0
  %2084 = vmatprep.mubr.f32.mxu0 %v101
  %2085 = vmatmul.mubr.f32.gmra.mrb[0].mxu0 %v100
  %v2086 = vpop.f32.mrb[0].mxu0
  %v2087 = vadd.f32 %v2007, %v2086
  %v2088 = vpop.f32.mrb[0].mxu0
  %2089 = vmatprep.mubr.f32.mxu0 %v159
  %2090 = vmatmul.mubr.f32.gmra.mrb[0].mxu0 %v158
  %v2091 = vpop.f32.mrb[0].mxu0
  %v2092 = vadd.f32 %v2012, %v2091
  %v2093 = vpop.f32.mrb[0].mxu0
  %2094 = vdwg.mxu0
  %2095 = vmatprep.subr.mxu0 0.0
  %2096 = vmatpush1.msra.mxu0 %v578
  %2097 = vmatprep.subr.mxu0 0.0
  %2098 = vmatpush1.msra.mxu0 %v579
  %2099 = vmatprep.subr.mxu0 0.0
  %2100 = vmatpush1.msra.mxu0 %v580
  %2101 = vmatprep.subr.mxu0 0.0
  %2102 = vmatpush1.msra.mxu0 %v581
  %2103 = vmatprep.subr.mxu0 0.0
  %2104 = vmatpush1.msra.mxu0 %v582
  %2105 = vmatprep.subr.mxu0 0.0
  %2106 = vmatpush1.msra.mxu0 %v583
  %2107 = vmatprep.subr.mxu0 0.0
  %2108 = vmatpush1.msra.mxu0 %v584
  %2109 = vmatprep.subr.mxu0 0.0
  %2110 = vmatpush1.msra.mxu0 %v585
  %2111 = vmatprep.subr.mxu0 0.0
  %2112 = vmatpush1.msra.mxu0 %v586
  %2113 = vmatprep.subr.mxu0 0.0
  %2114 = vmatpush1.msra.mxu0 %v587
  %2115 = vmatprep.subr.mxu0 0.0
  %2116 = vmatpush1.msra.mxu0 %v588
  %2117 = vmatprep.subr.mxu0 0.0
  %2118 = vmatpush1.msra.mxu0 %v589
  %2119 = vmatprep.subr.mxu0 0.0
  %2120 = vmatpush1.msra.mxu0 %v590
  %2121 = vmatprep.subr.mxu0 0.0
  %2122 = vmatpush1.msra.mxu0 %v591
  %2123 = vmatprep.subr.mxu0 0.0
  %2124 = vmatpush1.msra.mxu0 %v592
  %2125 = vmatprep.subr.mxu0 0.0
  %2126 = vmatpush1.msra.mxu0 %v593
  %2127 = vmatprep.subr.mxu0 0.0
  %2128 = vmatpush1.msra.mxu0 %v594
  %2129 = vmatprep.subr.mxu0 0.0
  %2130 = vmatpush1.msra.mxu0 %v595
  %2131 = vmatprep.subr.mxu0 0.0
  %2132 = vmatpush1.msra.mxu0 %v596
  %2133 = vmatprep.subr.mxu0 0.0
  %2134 = vmatpush1.msra.mxu0 %v597
  %2135 = vmatprep.subr.mxu0 0.0
  %2136 = vmatpush1.msra.mxu0 %v598
  %2137 = vmatprep.subr.mxu0 0.0
  %2138 = vmatpush1.msra.mxu0 %v599
  %2139 = vmatprep.subr.mxu0 0.0
  %2140 = vmatpush1.msra.mxu0 %v600
  %2141 = vmatprep.subr.mxu0 0.0
  %2142 = vmatpush1.msra.mxu0 %v601
  %2143 = vmatprep.subr.mxu0 0.0
  %2144 = vmatpush1.msra.mxu0 %v602
  %2145 = vmatprep.subr.mxu0 0.0
  %2146 = vmatpush1.msra.mxu0 %v603
  %2147 = vmatprep.subr.mxu0 0.0
  %2148 = vmatpush1.msra.mxu0 %v604
  %2149 = vmatprep.subr.mxu0 0.0
  %2150 = vmatpush1.msra.mxu0 %v605
  %2151 = vmatprep.subr.mxu0 0.0
  %2152 = vmatpush1.msra.mxu0 %v606
  %2153 = vmatprep.subr.mxu0 0.0
  %2154 = vmatpush1.msra.mxu0 %v607
  %2155 = vmatprep.subr.mxu0 0.0
  %2156 = vmatpush1.msra.mxu0 %v608
  %2157 = vmatprep.subr.mxu0 0.0
  %2158 = vmatpush1.msra.mxu0 %v609
  %2159 = vmatprep.mubr.f32.mxu0 %v45
  %2160 = vmatmul.mubr.f32.gmra.mrb[0].mxu0 %v44
  %v2161 = vpop.f32.mrb[0].mxu0
  %v2162 = vadd.f32 %v2082, %v2161
  %v2163 = vpop.f32.mrb[0].mxu0
  %2164 = vmatprep.mubr.f32.mxu0 %v103
  %2165 = vmatmul.mubr.f32.gmra.mrb[0].mxu0 %v102
  %v2166 = vpop.f32.mrb[0].mxu0
  %v2167 = vadd.f32 %v2087, %v2166
  %v2168 = vpop.f32.mrb[0].mxu0
  %2169 = vmatprep.mubr.f32.mxu0 %v161
  %2170 = vmatmul.mubr.f32.gmra.mrb[0].mxu0 %v160
  %v2171 = vpop.f32.mrb[0].mxu0
  %v2172 = vadd.f32 %v2092, %v2171
  %v2173 = vpop.f32.mrb[0].mxu0
  %2174 = vdwg.mxu0
  %2175 = vmatprep.subr.mxu0 0.0
  %2176 = vmatpush1.msra.mxu0 %v610
  %2177 = vmatprep.subr.mxu0 0.0
  %2178 = vmatpush1.msra.mxu0 %v611
  %2179 = vmatprep.subr.mxu0 0.0
  %2180 = vmatpush1.msra.mxu0 %v612
  %2181 = vmatprep.subr.mxu0 0.0
  %2182 = vmatpush1.msra.mxu0 %v613
  %2183 = vmatprep.subr.mxu0 0.0
  %2184 = vmatpush1.msra.mxu0 %v614
  %2185 = vmatprep.subr.mxu0 0.0
  %2186 = vmatpush1.msra.mxu0 %v615
  %2187 = vmatprep.subr.mxu0 0.0
  %2188 = vmatpush1.msra.mxu0 %v616
  %2189 = vmatprep.subr.mxu0 0.0
  %2190 = vmatpush1.msra.mxu0 %v617
  %2191 = vmatprep.subr.mxu0 0.0
  %2192 = vmatpush1.msra.mxu0 %v618
  %2193 = vmatprep.subr.mxu0 0.0
  %2194 = vmatpush1.msra.mxu0 %v619
  %2195 = vmatprep.subr.mxu0 0.0
  %2196 = vmatpush1.msra.mxu0 %v620
  %2197 = vmatprep.subr.mxu0 0.0
  %2198 = vmatpush1.msra.mxu0 %v621
  %2199 = vmatprep.subr.mxu0 0.0
  %2200 = vmatpush1.msra.mxu0 %v622
  %2201 = vmatprep.subr.mxu0 0.0
  %2202 = vmatpush1.msra.mxu0 %v623
  %2203 = vmatprep.subr.mxu0 0.0
  %2204 = vmatpush1.msra.mxu0 %v624
  %2205 = vmatprep.subr.mxu0 0.0
  %2206 = vmatpush1.msra.mxu0 %v625
  %2207 = vmatprep.subr.mxu0 0.0
  %2208 = vmatpush1.msra.mxu0 %v626
  %2209 = vmatprep.subr.mxu0 0.0
  %2210 = vmatpush1.msra.mxu0 %v627
  %2211 = vmatprep.subr.mxu0 0.0
  %2212 = vmatpush1.msra.mxu0 %v628
  %2213 = vmatprep.subr.mxu0 0.0
  %2214 = vmatpush1.msra.mxu0 %v629
  %2215 = vmatprep.subr.mxu0 0.0
  %2216 = vmatpush1.msra.mxu0 %v630
  %2217 = vmatprep.subr.mxu0 0.0
  %2218 = vmatpush1.msra.mxu0 %v631
  %2219 = vmatprep.subr.mxu0 0.0
  %2220 = vmatpush1.msra.mxu0 %v632
  %2221 = vmatprep.subr.mxu0 0.0
  %2222 = vmatpush1.msra.mxu0 %v633
  %2223 = vmatprep.subr.mxu0 0.0
  %2224 = vmatpush1.msra.mxu0 %v634
  %2225 = vmatprep.subr.mxu0 0.0
  %2226 = vmatpush1.msra.mxu0 %v635
  %2227 = vmatprep.subr.mxu0 0.0
  %2228 = vmatpush1.msra.mxu0 %v636
  %2229 = vmatprep.subr.mxu0 0.0
  %2230 = vmatpush1.msra.mxu0 %v637
  %2231 = vmatprep.subr.mxu0 0.0
  %2232 = vmatpush1.msra.mxu0 %v638
  %2233 = vmatprep.subr.mxu0 0.0
  %2234 = vmatpush1.msra.mxu0 %v639
  %2235 = vmatprep.subr.mxu0 0.0
  %2236 = vmatpush1.msra.mxu0 %v640
  %2237 = vmatprep.subr.mxu0 0.0
  %2238 = vmatpush1.msra.mxu0 %v641
  %2239 = vmatprep.mubr.f32.mxu0 %v47
  %2240 = vmatmul.mubr.f32.gmra.mrb[0].mxu0 %v46
  %v2241 = vpop.f32.mrb[0].mxu0
  %v2242 = vadd.f32 %v2162, %v2241
  %v2243 = vpop.f32.mrb[0].mxu0
  %2244 = vmatprep.mubr.f32.mxu0 %v105
  %2245 = vmatmul.mubr.f32.gmra.mrb[0].mxu0 %v104
  %v2246 = vpop.f32.mrb[0].mxu0
  %v2247 = vadd.f32 %v2167, %v2246
  %v2248 = vpop.f32.mrb[0].mxu0
  %2249 = vmatprep.mubr.f32.mxu0 %v163
  %2250 = vmatmul.mubr.f32.gmra.mrb[0].mxu0 %v162
  %v2251 = vpop.f32.mrb[0].mxu0
  %v2252 = vadd.f32 %v2172, %v2251
  %v2253 = vpop.f32.mrb[0].mxu0
  %2254 = vdwg.mxu0
  %2255 = vmatprep.subr.mxu0 0.0
  %2256 = vmatpush1.msra.mxu0 %v642
  %2257 = vmatprep.subr.mxu0 0.0
  %2258 = vmatpush1.msra.mxu0 %v643
  %2259 = vmatprep.subr.mxu0 0.0
  %2260 = vmatpush1.msra.mxu0 %v644
  %2261 = vmatprep.subr.mxu0 0.0
  %2262 = vmatpush1.msra.mxu0 %v645
  %2263 = vmatprep.subr.mxu0 0.0
  %2264 = vmatpush1.msra.mxu0 %v646
  %2265 = vmatprep.subr.mxu0 0.0
  %2266 = vmatpush1.msra.mxu0 %v647
  %2267 = vmatprep.subr.mxu0 0.0
  %2268 = vmatpush1.msra.mxu0 %v648
  %2269 = vmatprep.subr.mxu0 0.0
  %2270 = vmatpush1.msra.mxu0 %v649
  %2271 = vmatprep.subr.mxu0 0.0
  %2272 = vmatpush1.msra.mxu0 %v650
  %2273 = vmatprep.subr.mxu0 0.0
  %2274 = vmatpush1.msra.mxu0 %v651
  %2275 = vmatprep.subr.mxu0 0.0
  %2276 = vmatpush1.msra.mxu0 %v652
  %2277 = vmatprep.subr.mxu0 0.0
  %2278 = vmatpush1.msra.mxu0 %v653
  %2279 = vmatprep.subr.mxu0 0.0
  %2280 = vmatpush1.msra.mxu0 %v654
  %2281 = vmatprep.subr.mxu0 0.0
  %2282 = vmatpush1.msra.mxu0 %v655
  %2283 = vmatprep.subr.mxu0 0.0
  %2284 = vmatpush1.msra.mxu0 %v656
  %2285 = vmatprep.subr.mxu0 0.0
  %2286 = vmatpush1.msra.mxu0 %v657
  %2287 = vmatprep.subr.mxu0 0.0
  %2288 = vmatpush1.msra.mxu0 %v658
  %2289 = vmatprep.subr.mxu0 0.0
  %2290 = vmatpush1.msra.mxu0 %v659
  %2291 = vmatprep.subr.mxu0 0.0
  %2292 = vmatpush1.msra.mxu0 %v660
  %2293 = vmatprep.subr.mxu0 0.0
  %2294 = vmatpush1.msra.mxu0 %v661
  %2295 = vmatprep.subr.mxu0 0.0
  %2296 = vmatpush1.msra.mxu0 %v662
  %2297 = vmatprep.subr.mxu0 0.0
  %2298 = vmatpush1.msra.mxu0 %v663
  %2299 = vmatprep.subr.mxu0 0.0
  %2300 = vmatpush1.msra.mxu0 %v664
  %2301 = vmatprep.subr.mxu0 0.0
  %2302 = vmatpush1.msra.mxu0 %v665
  %2303 = vmatprep.subr.mxu0 0.0
  %2304 = vmatpush1.msra.mxu0 %v666
  %2305 = vmatprep.subr.mxu0 0.0
  %2306 = vmatpush1.msra.mxu0 %v667
  %2307 = vmatprep.subr.mxu0 0.0
  %2308 = vmatpush1.msra.mxu0 %v668
  %2309 = vmatprep.subr.mxu0 0.0
  %2310 = vmatpush1.msra.mxu0 %v669
  %2311 = vmatprep.subr.mxu0 0.0
  %2312 = vmatpush1.msra.mxu0 %v670
  %2313 = vmatprep.subr.mxu0 0.0
  %2314 = vmatpush1.msra.mxu0 %v671
  %2315 = vmatprep.subr.mxu0 0.0
  %2316 = vmatpush1.msra.mxu0 %v672
  %2317 = vmatprep.subr.mxu0 0.0
  %2318 = vmatpush1.msra.mxu0 %v673
  %2319 = vmatprep.mubr.f32.mxu0 %v49
  %2320 = vmatmul.mubr.f32.gmra.mrb[0].mxu0 %v48
  %v2321 = vpop.f32.mrb[0].mxu0
  %v2322 = vadd.f32 %v2242, %v2321
  %v2323 = vpop.f32.mrb[0].mxu0
  %2324 = vmatprep.mubr.f32.mxu0 %v107
  %2325 = vmatmul.mubr.f32.gmra.mrb[0].mxu0 %v106
  %v2326 = vpop.f32.mrb[0].mxu0
  %v2327 = vadd.f32 %v2247, %v2326
  %v2328 = vpop.f32.mrb[0].mxu0
  %2329 = vmatprep.mubr.f32.mxu0 %v165
  %2330 = vmatmul.mubr.f32.gmra.mrb[0].mxu0 %v164
  %v2331 = vpop.f32.mrb[0].mxu0
  %v2332 = vadd.f32 %v2252, %v2331
  %v2333 = vpop.f32.mrb[0].mxu0
  %2334 = vdwg.mxu0
  %2335 = vmatprep.subr.mxu0 0.0
  %2336 = vmatpush1.msra.mxu0 %v674
  %2337 = vmatprep.subr.mxu0 0.0
  %2338 = vmatpush1.msra.mxu0 %v675
  %2339 = vmatprep.subr.mxu0 0.0
  %2340 = vmatpush1.msra.mxu0 %v676
  %2341 = vmatprep.subr.mxu0 0.0
  %2342 = vmatpush1.msra.mxu0 %v677
  %2343 = vmatprep.subr.mxu0 0.0
  %2344 = vmatpush1.msra.mxu0 %v678
  %2345 = vmatprep.subr.mxu0 0.0
  %2346 = vmatpush1.msra.mxu0 %v679
  %2347 = vmatprep.subr.mxu0 0.0
  %2348 = vmatpush1.msra.mxu0 %v680
  %2349 = vmatprep.subr.mxu0 0.0
  %2350 = vmatpush1.msra.mxu0 %v681
  %2351 = vmatprep.subr.mxu0 0.0
  %2352 = vmatpush1.msra.mxu0 %v682
  %2353 = vmatprep.subr.mxu0 0.0
  %2354 = vmatpush1.msra.mxu0 %v683
  %2355 = vmatprep.subr.mxu0 0.0
  %2356 = vmatpush1.msra.mxu0 %v684
  %2357 = vmatprep.subr.mxu0 0.0
  %2358 = vmatpush1.msra.mxu0 %v685
  %2359 = vmatprep.subr.mxu0 0.0
  %2360 = vmatpush1.msra.mxu0 %v686
  %2361 = vmatprep.subr.mxu0 0.0
  %2362 = vmatpush1.msra.mxu0 %v687
  %2363 = vmatprep.subr.mxu0 0.0
  %2364 = vmatpush1.msra.mxu0 %v688
  %2365 = vmatprep.subr.mxu0 0.0
  %2366 = vmatpush1.msra.mxu0 %v689
  %2367 = vmatprep.subr.mxu0 0.0
  %2368 = vmatpush1.msra.mxu0 %v690
  %2369 = vmatprep.subr.mxu0 0.0
  %2370 = vmatpush1.msra.mxu0 %v691
  %2371 = vmatprep.subr.mxu0 0.0
  %2372 = vmatpush1.msra.mxu0 %v692
  %2373 = vmatprep.subr.mxu0 0.0
  %2374 = vmatpush1.msra.mxu0 %v693
  %2375 = vmatprep.subr.mxu0 0.0
  %2376 = vmatpush1.msra.mxu0 %v694
  %2377 = vmatprep.subr.mxu0 0.0
  %2378 = vmatpush1.msra.mxu0 %v695
  %2379 = vmatprep.subr.mxu0 0.0
  %2380 = vmatpush1.msra.mxu0 %v696
  %2381 = vmatprep.subr.mxu0 0.0
  %2382 = vmatpush1.msra.mxu0 %v697
  %2383 = vmatprep.subr.mxu0 0.0
  %2384 = vmatpush1.msra.mxu0 %v698
  %2385 = vmatprep.subr.mxu0 0.0
  %2386 = vmatpush1.msra.mxu0 %v699
  %2387 = vmatprep.subr.mxu0 0.0
  %2388 = vmatpush1.msra.mxu0 %v700
  %2389 = vmatprep.subr.mxu0 0.0
  %2390 = vmatpush1.msra.mxu0 %v701
  %2391 = vmatprep.subr.mxu0 0.0
  %2392 = vmatpush1.msra.mxu0 %v702
  %2393 = vmatprep.subr.mxu0 0.0
  %2394 = vmatpush1.msra.mxu0 %v703
  %2395 = vmatprep.subr.mxu0 0.0
  %2396 = vmatpush1.msra.mxu0 %v704
  %2397 = vmatprep.subr.mxu0 0.0
  %2398 = vmatpush1.msra.mxu0 %v705
  %2399 = vmatprep.mubr.f32.mxu0 %v51
  %2400 = vmatmul.mubr.f32.gmra.mrb[0].mxu0 %v50
  %v2401 = vpop.f32.mrb[0].mxu0
  %v2402 = vadd.f32 %v2322, %v2401
  %v2403 = vpop.f32.mrb[0].mxu0
  %2404 = vmatprep.mubr.f32.mxu0 %v109
  %2405 = vmatmul.mubr.f32.gmra.mrb[0].mxu0 %v108
  %v2406 = vpop.f32.mrb[0].mxu0
  %v2407 = vadd.f32 %v2327, %v2406
  %v2408 = vpop.f32.mrb[0].mxu0
  %2409 = vmatprep.mubr.f32.mxu0 %v167
  %2410 = vmatmul.mubr.f32.gmra.mrb[0].mxu0 %v166
  %v2411 = vpop.f32.mrb[0].mxu0
  %v2412 = vadd.f32 %v2332, %v2411
  %v2413 = vpop.f32.mrb[0].mxu0
  %2414 = vdwg.mxu0
  %2415 = vmatprep.subr.mxu0 0.0
  %2416 = vmatpush1.msra.mxu0 %v706
  %2417 = vmatprep.subr.mxu0 0.0
  %2418 = vmatpush1.msra.mxu0 %v707
  %2419 = vmatprep.subr.mxu0 0.0
  %2420 = vmatpush1.msra.mxu0 %v708
  %2421 = vmatprep.subr.mxu0 0.0
  %2422 = vmatpush1.msra.mxu0 %v709
  %2423 = vmatprep.subr.mxu0 0.0
  %2424 = vmatpush1.msra.mxu0 %v710
  %2425 = vmatprep.subr.mxu0 0.0
  %2426 = vmatpush1.msra.mxu0 %v711
  %2427 = vmatprep.subr.mxu0 0.0
  %2428 = vmatpush1.msra.mxu0 %v712
  %2429 = vmatprep.subr.mxu0 0.0
  %2430 = vmatpush1.msra.mxu0 %v713
  %2431 = vmatprep.subr.mxu0 0.0
  %2432 = vmatpush1.msra.mxu0 %v714
  %2433 = vmatprep.subr.mxu0 0.0
  %2434 = vmatpush1.msra.mxu0 %v715
  %2435 = vmatprep.subr.mxu0 0.0
  %2436 = vmatpush1.msra.mxu0 %v716
  %2437 = vmatprep.subr.mxu0 0.0
  %2438 = vmatpush1.msra.mxu0 %v717
  %2439 = vmatprep.subr.mxu0 0.0
  %2440 = vmatpush1.msra.mxu0 %v718
  %2441 = vmatprep.subr.mxu0 0.0
  %2442 = vmatpush1.msra.mxu0 %v719
  %2443 = vmatprep.subr.mxu0 0.0
  %2444 = vmatpush1.msra.mxu0 %v720
  %2445 = vmatprep.subr.mxu0 0.0
  %2446 = vmatpush1.msra.mxu0 %v721
  %2447 = vmatprep.subr.mxu0 0.0
  %2448 = vmatpush1.msra.mxu0 %v722
  %2449 = vmatprep.subr.mxu0 0.0
  %2450 = vmatpush1.msra.mxu0 %v723
  %2451 = vmatprep.subr.mxu0 0.0
  %2452 = vmatpush1.msra.mxu0 %v724
  %2453 = vmatprep.subr.mxu0 0.0
  %2454 = vmatpush1.msra.mxu0 %v725
  %2455 = vmatprep.subr.mxu0 0.0
  %2456 = vmatpush1.msra.mxu0 %v726
  %2457 = vmatprep.subr.mxu0 0.0
  %2458 = vmatpush1.msra.mxu0 %v727
  %2459 = vmatprep.subr.mxu0 0.0
  %2460 = vmatpush1.msra.mxu0 %v728
  %2461 = vmatprep.subr.mxu0 0.0
  %2462 = vmatpush1.msra.mxu0 %v729
  %2463 = vmatprep.subr.mxu0 0.0
  %2464 = vmatpush1.msra.mxu0 %v730
  %2465 = vmatprep.subr.mxu0 0.0
  %2466 = vmatpush1.msra.mxu0 %v731
  %2467 = vmatprep.subr.mxu0 0.0
  %2468 = vmatpush1.msra.mxu0 %v732
  %2469 = vmatprep.subr.mxu0 0.0
  %2470 = vmatpush1.msra.mxu0 %v733
  %2471 = vmatprep.subr.mxu0 0.0
  %2472 = vmatpush1.msra.mxu0 %v734
  %2473 = vmatprep.subr.mxu0 0.0
  %2474 = vmatpush1.msra.mxu0 %v735
  %2475 = vmatprep.subr.mxu0 0.0
  %2476 = vmatpush1.msra.mxu0 %v736
  %2477 = vmatprep.subr.mxu0 0.0
  %2478 = vmatpush1.msra.mxu0 %v737
  %2479 = vmatprep.mubr.f32.mxu0 %v53
  %2480 = vmatmul.mubr.f32.gmra.mrb[0].mxu0 %v52
  %v2481 = vpop.f32.mrb[0].mxu0
  %v2482 = vadd.f32 %v2402, %v2481
  %v2483 = vpop.f32.mrb[0].mxu0
  %2484 = vmatprep.mubr.f32.mxu0 %v111
  %2485 = vmatmul.mubr.f32.gmra.mrb[0].mxu0 %v110
  %v2486 = vpop.f32.mrb[0].mxu0
  %v2487 = vadd.f32 %v2407, %v2486
  %v2488 = vpop.f32.mrb[0].mxu0
  %2489 = vmatprep.mubr.f32.mxu0 %v169
  %2490 = vmatmul.mubr.f32.gmra.mrb[0].mxu0 %v168
  %v2491 = vpop.f32.mrb[0].mxu0
  %v2492 = vadd.f32 %v2412, %v2491
  %v2493 = vpop.f32.mrb[0].mxu0
  %2494 = vdwg.mxu0
  %2495 = vmatprep.subr.mxu0 0.0
  %2496 = vmatpush1.msra.mxu0 %v738
  %2497 = vmatprep.subr.mxu0 0.0
  %2498 = vmatpush1.msra.mxu0 %v739
  %2499 = vmatprep.subr.mxu0 0.0
  %2500 = vmatpush1.msra.mxu0 %v740
  %2501 = vmatprep.subr.mxu0 0.0
  %2502 = vmatpush1.msra.mxu0 %v741
  %2503 = vmatprep.subr.mxu0 0.0
  %2504 = vmatpush1.msra.mxu0 %v742
  %2505 = vmatprep.subr.mxu0 0.0
  %2506 = vmatpush1.msra.mxu0 %v743
  %2507 = vmatprep.subr.mxu0 0.0
  %2508 = vmatpush1.msra.mxu0 %v744
  %2509 = vmatprep.subr.mxu0 0.0
  %2510 = vmatpush1.msra.mxu0 %v745
  %2511 = vmatprep.subr.mxu0 0.0
  %2512 = vmatpush1.msra.mxu0 %v746
  %2513 = vmatprep.subr.mxu0 0.0
  %2514 = vmatpush1.msra.mxu0 %v747
  %2515 = vmatprep.subr.mxu0 0.0
  %2516 = vmatpush1.msra.mxu0 %v748
  %2517 = vmatprep.subr.mxu0 0.0
  %2518 = vmatpush1.msra.mxu0 %v749
  %2519 = vmatprep.subr.mxu0 0.0
  %2520 = vmatpush1.msra.mxu0 %v750
  %2521 = vmatprep.subr.mxu0 0.0
  %2522 = vmatpush1.msra.mxu0 %v751
  %2523 = vmatprep.subr.mxu0 0.0
  %2524 = vmatpush1.msra.mxu0 %v752
  %2525 = vmatprep.subr.mxu0 0.0
  %2526 = vmatpush1.msra.mxu0 %v753
  %2527 = vmatprep.subr.mxu0 0.0
  %2528 = vmatpush1.msra.mxu0 %v754
  %2529 = vmatprep.subr.mxu0 0.0
  %2530 = vmatpush1.msra.mxu0 %v755
  %2531 = vmatprep.subr.mxu0 0.0
  %2532 = vmatpush1.msra.mxu0 %v756
  %2533 = vmatprep.subr.mxu0 0.0
  %2534 = vmatpush1.msra.mxu0 %v757
  %2535 = vmatprep.subr.mxu0 0.0
  %2536 = vmatpush1.msra.mxu0 %v758
  %2537 = vmatprep.subr.mxu0 0.0
  %2538 = vmatpush1.msra.mxu0 %v759
  %2539 = vmatprep.subr.mxu0 0.0
  %2540 = vmatpush1.msra.mxu0 %v760
  %2541 = vmatprep.subr.mxu0 0.0
  %2542 = vmatpush1.msra.mxu0 %v761
  %2543 = vmatprep.subr.mxu0 0.0
  %2544 = vmatpush1.msra.mxu0 %v762
  %2545 = vmatprep.subr.mxu0 0.0
  %2546 = vmatpush1.msra.mxu0 %v763
  %2547 = vmatprep.subr.mxu0 0.0
  %2548 = vmatpush1.msra.mxu0 %v764
  %2549 = vmatprep.subr.mxu0 0.0
  %2550 = vmatpush1.msra.mxu0 %v765
  %2551 = vmatprep.subr.mxu0 0.0
  %2552 = vmatpush1.msra.mxu0 %v766
  %2553 = vmatprep.subr.mxu0 0.0
  %2554 = vmatpush1.msra.mxu0 %v767
  %2555 = vmatprep.subr.mxu0 0.0
  %2556 = vmatpush1.msra.mxu0 %v768
  %2557 = vmatprep.subr.mxu0 0.0
  %2558 = vmatpush1.msra.mxu0 %v769
  %2559 = vmatprep.mubr.f32.mxu0 %v55
  %2560 = vmatmul.mubr.f32.gmra.mrb[0].mxu0 %v54
  %v2561 = vpop.f32.mrb[0].mxu0
  %v2562 = vadd.f32 %v2482, %v2561
  %v2563 = vpop.f32.mrb[0].mxu0
  %2564 = vmatprep.mubr.f32.mxu0 %v113
  %2565 = vmatmul.mubr.f32.gmra.mrb[0].mxu0 %v112
  %v2566 = vpop.f32.mrb[0].mxu0
  %v2567 = vadd.f32 %v2487, %v2566
  %v2568 = vpop.f32.mrb[0].mxu0
  %2569 = vmatprep.mubr.f32.mxu0 %v171
  %2570 = vmatmul.mubr.f32.gmra.mrb[0].mxu0 %v170
  %v2571 = vpop.f32.mrb[0].mxu0
  %v2572 = vadd.f32 %v2492, %v2571
  %v2573 = vpop.f32.mrb[0].mxu0
  %2574 = vdwg.mxu0
  %2575 = vmatprep.subr.mxu0 0.0
  %2576 = vmatpush1.msra.mxu0 %v770
  %2577 = vmatprep.subr.mxu0 0.0
  %2578 = vmatpush1.msra.mxu0 %v771
  %2579 = vmatprep.subr.mxu0 0.0
  %2580 = vmatpush1.msra.mxu0 %v772
  %2581 = vmatprep.subr.mxu0 0.0
  %2582 = vmatpush1.msra.mxu0 %v773
  %2583 = vmatprep.subr.mxu0 0.0
  %2584 = vmatpush1.msra.mxu0 %v774
  %2585 = vmatprep.subr.mxu0 0.0
  %2586 = vmatpush1.msra.mxu0 %v775
  %2587 = vmatprep.subr.mxu0 0.0
  %2588 = vmatpush1.msra.mxu0 %v776
  %2589 = vmatprep.subr.mxu0 0.0
  %2590 = vmatpush1.msra.mxu0 %v777
  %2591 = vmatprep.subr.mxu0 0.0
  %2592 = vmatpush1.msra.mxu0 %v778
  %2593 = vmatprep.subr.mxu0 0.0
  %2594 = vmatpush1.msra.mxu0 %v779
  %2595 = vmatprep.subr.mxu0 0.0
  %2596 = vmatpush1.msra.mxu0 %v780
  %2597 = vmatprep.subr.mxu0 0.0
  %2598 = vmatpush1.msra.mxu0 %v781
  %2599 = vmatprep.subr.mxu0 0.0
  %2600 = vmatpush1.msra.mxu0 %v782
  %2601 = vmatprep.subr.mxu0 0.0
  %2602 = vmatpush1.msra.mxu0 %v783
  %2603 = vmatprep.subr.mxu0 0.0
  %2604 = vmatpush1.msra.mxu0 %v784
  %2605 = vmatprep.subr.mxu0 0.0
  %2606 = vmatpush1.msra.mxu0 %v785
  %2607 = vmatprep.subr.mxu0 0.0
  %2608 = vmatpush1.msra.mxu0 %v786
  %2609 = vmatprep.subr.mxu0 0.0
  %2610 = vmatpush1.msra.mxu0 %v787
  %2611 = vmatprep.subr.mxu0 0.0
  %2612 = vmatpush1.msra.mxu0 %v788
  %2613 = vmatprep.subr.mxu0 0.0
  %2614 = vmatpush1.msra.mxu0 %v789
  %2615 = vmatprep.subr.mxu0 0.0
  %2616 = vmatpush1.msra.mxu0 %v790
  %2617 = vmatprep.subr.mxu0 0.0
  %2618 = vmatpush1.msra.mxu0 %v791
  %2619 = vmatprep.subr.mxu0 0.0
  %2620 = vmatpush1.msra.mxu0 %v792
  %2621 = vmatprep.subr.mxu0 0.0
  %2622 = vmatpush1.msra.mxu0 %v793
  %2623 = vmatprep.subr.mxu0 0.0
  %2624 = vmatpush1.msra.mxu0 %v794
  %2625 = vmatprep.subr.mxu0 0.0
  %2626 = vmatpush1.msra.mxu0 %v795
  %2627 = vmatprep.subr.mxu0 0.0
  %2628 = vmatpush1.msra.mxu0 %v796
  %2629 = vmatprep.subr.mxu0 0.0
  %2630 = vmatpush1.msra.mxu0 %v797
  %2631 = vmatprep.subr.mxu0 0.0
  %2632 = vmatpush1.msra.mxu0 %v798
  %2633 = vmatprep.subr.mxu0 0.0
  %2634 = vmatpush1.msra.mxu0 %v799
  %2635 = vmatprep.subr.mxu0 0.0
  %2636 = vmatpush1.msra.mxu0 %v800
  %2637 = vmatprep.subr.mxu0 0.0
  %2638 = vmatpush1.msra.mxu0 %v801
  %2639 = vmatprep.mubr.f32.mxu0 %v57
  %2640 = vmatmul.mubr.f32.gmra.mrb[0].mxu0 %v56
  %v2641 = vpop.f32.mrb[0].mxu0
  %v2642 = vadd.f32 %v2562, %v2641
  %v2643 = vpop.f32.mrb[0].mxu0
  %2644 = vmatprep.mubr.f32.mxu0 %v115
  %2645 = vmatmul.mubr.f32.gmra.mrb[0].mxu0 %v114
  %v2646 = vpop.f32.mrb[0].mxu0
  %v2647 = vadd.f32 %v2567, %v2646
  %v2648 = vpop.f32.mrb[0].mxu0
  %2649 = vmatprep.mubr.f32.mxu0 %v173
  %2650 = vmatmul.mubr.f32.gmra.mrb[0].mxu0 %v172
  %v2651 = vpop.f32.mrb[0].mxu0
  %v2652 = vadd.f32 %v2572, %v2651
  %v2653 = vpop.f32.mrb[0].mxu0
  %2654 = vdwg.mxu0
  %2655 = vmatprep.subr.mxu0 0.0
  %2656 = vmatpush1.msra.mxu0 %v802
  %2657 = vmatprep.subr.mxu0 0.0
  %2658 = vmatpush1.msra.mxu0 %v803
  %2659 = vmatprep.subr.mxu0 0.0
  %2660 = vmatpush1.msra.mxu0 %v804
  %2661 = vmatprep.subr.mxu0 0.0
  %2662 = vmatpush1.msra.mxu0 %v805
  %2663 = vmatprep.subr.mxu0 0.0
  %2664 = vmatpush1.msra.mxu0 %v806
  %2665 = vmatprep.subr.mxu0 0.0
  %2666 = vmatpush1.msra.mxu0 %v807
  %2667 = vmatprep.subr.mxu0 0.0
  %2668 = vmatpush1.msra.mxu0 %v808
  %2669 = vmatprep.subr.mxu0 0.0
  %2670 = vmatpush1.msra.mxu0 %v809
  %2671 = vmatprep.subr.mxu0 0.0
  %2672 = vmatpush1.msra.mxu0 %v810
  %2673 = vmatprep.subr.mxu0 0.0
  %2674 = vmatpush1.msra.mxu0 %v811
  %2675 = vmatprep.subr.mxu0 0.0
  %2676 = vmatpush1.msra.mxu0 %v812
  %2677 = vmatprep.subr.mxu0 0.0
  %2678 = vmatpush1.msra.mxu0 %v813
  %2679 = vmatprep.subr.mxu0 0.0
  %2680 = vmatpush1.msra.mxu0 %v814
  %2681 = vmatprep.subr.mxu0 0.0
  %2682 = vmatpush1.msra.mxu0 %v815
  %2683 = vmatprep.subr.mxu0 0.0
  %2684 = vmatpush1.msra.mxu0 %v816
  %2685 = vmatprep.subr.mxu0 0.0
  %2686 = vmatpush1.msra.mxu0 %v817
  %2687 = vmatprep.subr.mxu0 0.0
  %2688 = vmatpush1.msra.mxu0 %v818
  %2689 = vmatprep.subr.mxu0 0.0
  %2690 = vmatpush1.msra.mxu0 %v819
  %2691 = vmatprep.subr.mxu0 0.0
  %2692 = vmatpush1.msra.mxu0 %v820
  %2693 = vmatprep.subr.mxu0 0.0
  %2694 = vmatpush1.msra.mxu0 %v821
  %2695 = vmatprep.subr.mxu0 0.0
  %2696 = vmatpush1.msra.mxu0 %v822
  %2697 = vmatprep.subr.mxu0 0.0
  %2698 = vmatpush1.msra.mxu0 %v823
  %2699 = vmatprep.subr.mxu0 0.0
  %2700 = vmatpush1.msra.mxu0 %v824
  %2701 = vmatprep.subr.mxu0 0.0
  %2702 = vmatpush1.msra.mxu0 %v825
  %2703 = vmatprep.subr.mxu0 0.0
  %2704 = vmatpush1.msra.mxu0 %v826
  %2705 = vmatprep.subr.mxu0 0.0
  %2706 = vmatpush1.msra.mxu0 %v827
  %2707 = vmatprep.subr.mxu0 0.0
  %2708 = vmatpush1.msra.mxu0 %v828
  %2709 = vmatprep.subr.mxu0 0.0
  %2710 = vmatpush1.msra.mxu0 %v829
  %2711 = vmatprep.subr.mxu0 0.0
  %2712 = vmatpush1.msra.mxu0 %v830
  %2713 = vmatprep.subr.mxu0 0.0
  %2714 = vmatpush1.msra.mxu0 %v831
  %2715 = vmatprep.subr.mxu0 0.0
  %2716 = vmatpush1.msra.mxu0 %v832
  %2717 = vmatprep.subr.mxu0 0.0
  %2718 = vmatpush1.msra.mxu0 %v833
  %2719 = vmatprep.mubr.f32.mxu0 %v59
  %2720 = vmatmul.mubr.f32.gmra.mrb[0].mxu0 %v58
  %v2721 = vpop.f32.mrb[0].mxu0
  %v2722 = vadd.f32 %v2642, %v2721
  %v2723 = vpop.f32.mrb[0].mxu0
  %2724 = vmatprep.mubr.f32.mxu0 %v117
  %2725 = vmatmul.mubr.f32.gmra.mrb[0].mxu0 %v116
  %v2726 = vpop.f32.mrb[0].mxu0
  %v2727 = vadd.f32 %v2647, %v2726
  %v2728 = vpop.f32.mrb[0].mxu0
  %2729 = vmatprep.mubr.f32.mxu0 %v175
  %2730 = vmatmul.mubr.f32.gmra.mrb[0].mxu0 %v174
  %v2731 = vpop.f32.mrb[0].mxu0
  %v2732 = vadd.f32 %v2652, %v2731
  %v2733 = vpop.f32.mrb[0].mxu0
  %2734 = vdwg.mxu0
  %2735 = vmatprep.subr.mxu0 0.0
  %2736 = vmatpush1.msra.mxu0 %v834
  %2737 = vmatprep.subr.mxu0 0.0
  %2738 = vmatpush1.msra.mxu0 %v835
  %2739 = vmatprep.subr.mxu0 0.0
  %2740 = vmatpush1.msra.mxu0 %v836
  %2741 = vmatprep.subr.mxu0 0.0
  %2742 = vmatpush1.msra.mxu0 %v837
  %2743 = vmatprep.subr.mxu0 0.0
  %2744 = vmatpush1.msra.mxu0 %v838
  %2745 = vmatprep.subr.mxu0 0.0
  %2746 = vmatpush1.msra.mxu0 %v839
  %2747 = vmatprep.subr.mxu0 0.0
  %2748 = vmatpush1.msra.mxu0 %v840
  %2749 = vmatprep.subr.mxu0 0.0
  %2750 = vmatpush1.msra.mxu0 %v841
  %2751 = vmatprep.subr.mxu0 0.0
  %2752 = vmatpush1.msra.mxu0 %v842
  %2753 = vmatprep.subr.mxu0 0.0
  %2754 = vmatpush1.msra.mxu0 %v843
  %2755 = vmatprep.subr.mxu0 0.0
  %2756 = vmatpush1.msra.mxu0 %v844
  %2757 = vmatprep.subr.mxu0 0.0
  %2758 = vmatpush1.msra.mxu0 %v845
  %2759 = vmatprep.subr.mxu0 0.0
  %2760 = vmatpush1.msra.mxu0 %v846
  %2761 = vmatprep.subr.mxu0 0.0
  %2762 = vmatpush1.msra.mxu0 %v847
  %2763 = vmatprep.subr.mxu0 0.0
  %2764 = vmatpush1.msra.mxu0 %v848
  %2765 = vmatprep.subr.mxu0 0.0
  %2766 = vmatpush1.msra.mxu0 %v849
  %2767 = vmatprep.subr.mxu0 0.0
  %2768 = vmatpush1.msra.mxu0 %v850
  %2769 = vmatprep.subr.mxu0 0.0
  %2770 = vmatpush1.msra.mxu0 %v851
  %2771 = vmatprep.subr.mxu0 0.0
  %2772 = vmatpush1.msra.mxu0 %v852
  %2773 = vmatprep.subr.mxu0 0.0
  %2774 = vmatpush1.msra.mxu0 %v853
  %2775 = vmatprep.subr.mxu0 0.0
  %2776 = vmatpush1.msra.mxu0 %v854
  %2777 = vmatprep.subr.mxu0 0.0
  %2778 = vmatpush1.msra.mxu0 %v855
  %2779 = vmatprep.subr.mxu0 0.0
  %2780 = vmatpush1.msra.mxu0 %v856
  %2781 = vmatprep.subr.mxu0 0.0
  %2782 = vmatpush1.msra.mxu0 %v857
  %2783 = vmatprep.subr.mxu0 0.0
  %2784 = vmatpush1.msra.mxu0 %v858
  %2785 = vmatprep.subr.mxu0 0.0
  %2786 = vmatpush1.msra.mxu0 %v859
  %2787 = vmatprep.subr.mxu0 0.0
  %2788 = vmatpush1.msra.mxu0 %v860
  %2789 = vmatprep.subr.mxu0 0.0
  %2790 = vmatpush1.msra.mxu0 %v861
  %2791 = vmatprep.subr.mxu0 0.0
  %2792 = vmatpush1.msra.mxu0 %v862
  %2793 = vmatprep.subr.mxu0 0.0
  %2794 = vmatpush1.msra.mxu0 %v863
  %2795 = vmatprep.subr.mxu0 0.0
  %2796 = vmatpush1.msra.mxu0 %v864
  %2797 = vmatprep.subr.mxu0 0.0
  %2798 = vmatpush1.msra.mxu0 %v865
  %2799 = vmatprep.mubr.f32.mxu0 %v61
  %2800 = vmatmul.mubr.f32.gmra.mrb[0].mxu0 %v60
  %v2801 = vpop.f32.mrb[0].mxu0
  %v2802 = vadd.f32 %v2722, %v2801
  %v2803 = vpop.f32.mrb[0].mxu0
  %2804 = vmatprep.mubr.f32.mxu0 %v119
  %2805 = vmatmul.mubr.f32.gmra.mrb[0].mxu0 %v118
  %v2806 = vpop.f32.mrb[0].mxu0
  %v2807 = vadd.f32 %v2727, %v2806
  %v2808 = vpop.f32.mrb[0].mxu0
  %2809 = vmatprep.mubr.f32.mxu0 %v177
  %2810 = vmatmul.mubr.f32.gmra.mrb[0].mxu0 %v176
  %v2811 = vpop.f32.mrb[0].mxu0
  %v2812 = vadd.f32 %v2732, %v2811
  %v2813 = vpop.f32.mrb[0].mxu0
  %2814 = vdwg.mxu0
  %2815 = vmatprep.subr.mxu0 0.0
  %2816 = vmatpush1.msra.mxu0 %v866
  %2817 = vmatprep.subr.mxu0 0.0
  %2818 = vmatpush1.msra.mxu0 %v867
  %2819 = vmatprep.subr.mxu0 0.0
  %2820 = vmatpush1.msra.mxu0 %v868
  %2821 = vmatprep.subr.mxu0 0.0
  %2822 = vmatpush1.msra.mxu0 %v869
  %2823 = vmatprep.subr.mxu0 0.0
  %2824 = vmatpush1.msra.mxu0 %v870
  %2825 = vmatprep.subr.mxu0 0.0
  %2826 = vmatpush1.msra.mxu0 %v871
  %2827 = vmatprep.subr.mxu0 0.0
  %2828 = vmatpush1.msra.mxu0 %v872
  %2829 = vmatprep.subr.mxu0 0.0
  %2830 = vmatpush1.msra.mxu0 %v873
  %2831 = vmatprep.subr.mxu0 0.0
  %2832 = vmatpush1.msra.mxu0 %v874
  %2833 = vmatprep.subr.mxu0 0.0
  %2834 = vmatpush1.msra.mxu0 %v875
  %2835 = vmatprep.subr.mxu0 0.0
  %2836 = vmatpush1.msra.mxu0 %v876
  %2837 = vmatprep.subr.mxu0 0.0
  %2838 = vmatpush1.msra.mxu0 %v877
  %2839 = vmatprep.subr.mxu0 0.0
  %2840 = vmatpush1.msra.mxu0 %v878
  %2841 = vmatprep.subr.mxu0 0.0
  %2842 = vmatpush1.msra.mxu0 %v879
  %2843 = vmatprep.subr.mxu0 0.0
  %2844 = vmatpush1.msra.mxu0 %v880
  %2845 = vmatprep.subr.mxu0 0.0
  %2846 = vmatpush1.msra.mxu0 %v881
  %2847 = vmatprep.subr.mxu0 0.0
  %2848 = vmatpush1.msra.mxu0 %v882
  %2849 = vmatprep.subr.mxu0 0.0
  %2850 = vmatpush1.msra.mxu0 %v883
  %2851 = vmatprep.subr.mxu0 0.0
  %2852 = vmatpush1.msra.mxu0 %v884
  %2853 = vmatprep.subr.mxu0 0.0
  %2854 = vmatpush1.msra.mxu0 %v885
  %2855 = vmatprep.subr.mxu0 0.0
  %2856 = vmatpush1.msra.mxu0 %v886
  %2857 = vmatprep.subr.mxu0 0.0
  %2858 = vmatpush1.msra.mxu0 %v887
  %2859 = vmatprep.subr.mxu0 0.0
  %2860 = vmatpush1.msra.mxu0 %v888
  %2861 = vmatprep.subr.mxu0 0.0
  %2862 = vmatpush1.msra.mxu0 %v889
  %2863 = vmatprep.subr.mxu0 0.0
  %2864 = vmatpush1.msra.mxu0 %v890
  %2865 = vmatprep.subr.mxu0 0.0
  %2866 = vmatpush1.msra.mxu0 %v891
  %2867 = vmatprep.subr.mxu0 0.0
  %2868 = vmatpush1.msra.mxu0 %v892
  %2869 = vmatprep.subr.mxu0 0.0
  %2870 = vmatpush1.msra.mxu0 %v893
  %2871 = vmatprep.subr.mxu0 0.0
  %2872 = vmatpush1.msra.mxu0 %v894
  %2873 = vmatprep.subr.mxu0 0.0
  %2874 = vmatpush1.msra.mxu0 %v895
  %2875 = vmatprep.subr.mxu0 0.0
  %2876 = vmatpush1.msra.mxu0 %v896
  %2877 = vmatprep.subr.mxu0 0.0
  %2878 = vmatpush1.msra.mxu0 %v897
  %2879 = vmatprep.mubr.f32.mxu0 %v63
  %2880 = vmatmul.mubr.f32.gmra.mrb[0].mxu0 %v62
  %v2881 = vpop.f32.mrb[0].mxu0
  %v2882 = vadd.f32 %v2802, %v2881
  %v2883 = vpop.f32.mrb[0].mxu0
  %2884 = vmatprep.mubr.f32.mxu0 %v121
  %2885 = vmatmul.mubr.f32.gmra.mrb[0].mxu0 %v120
  %v2886 = vpop.f32.mrb[0].mxu0
  %v2887 = vadd.f32 %v2807, %v2886
  %v2888 = vpop.f32.mrb[0].mxu0
  %2889 = vmatprep.mubr.f32.mxu0 %v179
  %2890 = vmatmul.mubr.f32.gmra.mrb[0].mxu0 %v178
  %v2891 = vpop.f32.mrb[0].mxu0
  %v2892 = vadd.f32 %v2812, %v2891
  %v2893 = vpop.f32.mrb[0].mxu0
  %2894 = vdwg.mxu0
  %2895 = vmatprep.subr.mxu0 0.0
  %2896 = vmatpush1.msra.mxu0 %v898
  %2897 = vmatprep.subr.mxu0 0.0
  %2898 = vmatpush1.msra.mxu0 %v899
  %2899 = vmatprep.subr.mxu0 0.0
  %2900 = vmatpush1.msra.mxu0 %v900
  %2901 = vmatprep.subr.mxu0 0.0
  %2902 = vmatpush1.msra.mxu0 %v901
  %2903 = vmatprep.subr.mxu0 0.0
  %2904 = vmatpush1.msra.mxu0 %v902
  %2905 = vmatprep.subr.mxu0 0.0
  %2906 = vmatpush1.msra.mxu0 %v903
  %2907 = vmatprep.subr.mxu0 0.0
  %2908 = vmatpush1.msra.mxu0 %v904
  %2909 = vmatprep.subr.mxu0 0.0
  %2910 = vmatpush1.msra.mxu0 %v905
  %2911 = vmatprep.subr.mxu0 0.0
  %2912 = vmatpush1.msra.mxu0 %v906
  %2913 = vmatprep.subr.mxu0 0.0
  %2914 = vmatpush1.msra.mxu0 %v907
  %2915 = vmatprep.subr.mxu0 0.0
  %2916 = vmatpush1.msra.mxu0 %v908
  %2917 = vmatprep.subr.mxu0 0.0
  %2918 = vmatpush1.msra.mxu0 %v909
  %2919 = vmatprep.subr.mxu0 0.0
  %2920 = vmatpush1.msra.mxu0 %v910
  %2921 = vmatprep.subr.mxu0 0.0
  %2922 = vmatpush1.msra.mxu0 %v911
  %2923 = vmatprep.subr.mxu0 0.0
  %2924 = vmatpush1.msra.mxu0 %v912
  %2925 = vmatprep.subr.mxu0 0.0
  %2926 = vmatpush1.msra.mxu0 %v913
  %2927 = vmatprep.subr.mxu0 0.0
  %2928 = vmatpush1.msra.mxu0 %v914
  %2929 = vmatprep.subr.mxu0 0.0
  %2930 = vmatpush1.msra.mxu0 %v915
  %2931 = vmatprep.subr.mxu0 0.0
  %2932 = vmatpush1.msra.mxu0 %v916
  %2933 = vmatprep.subr.mxu0 0.0
  %2934 = vmatpush1.msra.mxu0 %v917
  %2935 = vmatprep.subr.mxu0 0.0
  %2936 = vmatpush1.msra.mxu0 %v918
  %2937 = vmatprep.subr.mxu0 0.0
  %2938 = vmatpush1.msra.mxu0 %v919
  %2939 = vmatprep.subr.mxu0 0.0
  %2940 = vmatpush1.msra.mxu0 %v920
  %2941 = vmatprep.subr.mxu0 0.0
  %2942 = vmatpush1.msra.mxu0 %v921
  %2943 = vmatprep.subr.mxu0 0.0
  %2944 = vmatpush1.msra.mxu0 %v922
  %2945 = vmatprep.subr.mxu0 0.0
  %2946 = vmatpush1.msra.mxu0 %v923
  %2947 = vmatprep.subr.mxu0 0.0
  %2948 = vmatpush1.msra.mxu0 %v924
  %2949 = vmatprep.subr.mxu0 0.0
  %2950 = vmatpush1.msra.mxu0 %v925
  %2951 = vmatprep.subr.mxu0 0.0
  %2952 = vmatpush1.msra.mxu0 %v926
  %2953 = vmatprep.subr.mxu0 0.0
  %2954 = vmatpush1.msra.mxu0 %v927
  %2955 = vmatprep.subr.mxu0 0.0
  %2956 = vmatpush1.msra.mxu0 %v928
  %2957 = vmatprep.subr.mxu0 0.0
  %2958 = vmatpush1.msra.mxu0 %v929
  %2959 = vmatprep.mubr.f32.mxu0 %v65
  %2960 = vmatmul.mubr.f32.gmra.mrb[0].mxu0 %v64
  %v2961 = vpop.f32.mrb[0].mxu0
  %v2962 = vadd.f32 %v2882, %v2961
  %v2963 = vpop.f32.mrb[0].mxu0
  %2964 = vmatprep.mubr.f32.mxu0 %v123
  %2965 = vmatmul.mubr.f32.gmra.mrb[0].mxu0 %v122
  %v2966 = vpop.f32.mrb[0].mxu0
  %v2967 = vadd.f32 %v2887, %v2966
  %v2968 = vpop.f32.mrb[0].mxu0
  %2969 = vmatprep.mubr.f32.mxu0 %v181
  %2970 = vmatmul.mubr.f32.gmra.mrb[0].mxu0 %v180
  %v2971 = vpop.f32.mrb[0].mxu0
  %v2972 = vadd.f32 %v2892, %v2971
  %v2973 = vpop.f32.mrb[0].mxu0
  %2974 = vdwg.mxu0
  %2975 = vmatprep.subr.mxu0 0.0
  %2976 = vmatpush1.msra.mxu0 %v930
  %2977 = vmatprep.subr.mxu0 0.0
  %2978 = vmatpush1.msra.mxu0 %v931
  %2979 = vmatprep.subr.mxu0 0.0
  %2980 = vmatpush1.msra.mxu0 %v932
  %2981 = vmatprep.subr.mxu0 0.0
  %2982 = vmatpush1.msra.mxu0 %v933
  %2983 = vmatprep.subr.mxu0 0.0
  %2984 = vmatpush1.msra.mxu0 %v934
  %2985 = vmatprep.subr.mxu0 0.0
  %2986 = vmatpush1.msra.mxu0 %v935
  %2987 = vmatprep.subr.mxu0 0.0
  %2988 = vmatpush1.msra.mxu0 %v936
  %2989 = vmatprep.subr.mxu0 0.0
  %2990 = vmatpush1.msra.mxu0 %v937
  %2991 = vmatprep.subr.mxu0 0.0
  %2992 = vmatpush1.msra.mxu0 %v938
  %2993 = vmatprep.subr.mxu0 0.0
  %2994 = vmatpush1.msra.mxu0 %v939
  %2995 = vmatprep.subr.mxu0 0.0
  %2996 = vmatpush1.msra.mxu0 %v940
  %2997 = vmatprep.subr.mxu0 0.0
  %2998 = vmatpush1.msra.mxu0 %v941
  %2999 = vmatprep.subr.mxu0 0.0
  %3000 = vmatpush1.msra.mxu0 %v942
  %3001 = vmatprep.subr.mxu0 0.0
  %3002 = vmatpush1.msra.mxu0 %v943
  %3003 = vmatprep.subr.mxu0 0.0
  %3004 = vmatpush1.msra.mxu0 %v944
  %3005 = vmatprep.subr.mxu0 0.0
  %3006 = vmatpush1.msra.mxu0 %v945
  %3007 = vmatprep.subr.mxu0 0.0
  %3008 = vmatpush1.msra.mxu0 %v946
  %3009 = vmatprep.subr.mxu0 0.0
  %3010 = vmatpush1.msra.mxu0 %v947
  %3011 = vmatprep.subr.mxu0 0.0
  %3012 = vmatpush1.msra.mxu0 %v948
  %3013 = vmatprep.subr.mxu0 0.0
  %3014 = vmatpush1.msra.mxu0 %v949
  %3015 = vmatprep.subr.mxu0 0.0
  %3016 = vmatpush1.msra.mxu0 %v950
  %3017 = vmatprep.subr.mxu0 0.0
  %3018 = vmatpush1.msra.mxu0 %v951
  %3019 = vmatprep.subr.mxu0 0.0
  %3020 = vmatpush1.msra.mxu0 %v952
  %3021 = vmatprep.subr.mxu0 0.0
  %3022 = vmatpush1.msra.mxu0 %v953
  %3023 = vmatprep.subr.mxu0 0.0
  %3024 = vmatpush1.msra.mxu0 %v954
  %3025 = vmatprep.subr.mxu0 0.0
  %3026 = vmatpush1.msra.mxu0 %v955
  %3027 = vmatprep.subr.mxu0 0.0
  %3028 = vmatpush1.msra.mxu0 %v956
  %3029 = vmatprep.subr.mxu0 0.0
  %3030 = vmatpush1.msra.mxu0 %v957
  %3031 = vmatprep.subr.mxu0 0.0
  %3032 = vmatpush1.msra.mxu0 %v958
  %3033 = vmatprep.subr.mxu0 0.0
  %3034 = vmatpush1.msra.mxu0 %v959
  %3035 = vmatprep.subr.mxu0 0.0
  %3036 = vmatpush1.msra.mxu0 %v960
  %3037 = vmatprep.subr.mxu0 0.0
  %3038 = vmatpush1.msra.mxu0 %v961
  %3039 = vmatprep.mubr.f32.mxu0 %v67
  %3040 = vmatmul.mubr.f32.gmra.mrb[0].mxu0 %v66
  %v3041 = vpop.f32.mrb[0].mxu0
  %v3042 = vadd.f32 %v2962, %v3041
  %v3043 = vpop.f32.mrb[0].mxu0
  %3044 = vmatprep.mubr.f32.mxu0 %v125
  %3045 = vmatmul.mubr.f32.gmra.mrb[0].mxu0 %v124
  %v3046 = vpop.f32.mrb[0].mxu0
  %v3047 = vadd.f32 %v2967, %v3046
  %v3048 = vpop.f32.mrb[0].mxu0
  %3049 = vmatprep.mubr.f32.mxu0 %v183
  %3050 = vmatmul.mubr.f32.gmra.mrb[0].mxu0 %v182
  %v3051 = vpop.f32.mrb[0].mxu0
  %v3052 = vadd.f32 %v2972, %v3051
  %v3053 = vpop.f32.mrb[0].mxu0
  %3054 = vdwg.mxu0
  %3055 = vmatprep.subr.mxu0 0.0
  %3056 = vmatpush1.msra.mxu0 %v962
  %3057 = vmatprep.subr.mxu0 0.0
  %3058 = vmatpush1.msra.mxu0 %v963
  %3059 = vmatprep.subr.mxu0 0.0
  %3060 = vmatpush1.msra.mxu0 %v964
  %3061 = vmatprep.subr.mxu0 0.0
  %3062 = vmatpush1.msra.mxu0 %v965
  %3063 = vmatprep.subr.mxu0 0.0
  %3064 = vmatpush1.msra.mxu0 %v966
  %3065 = vmatprep.subr.mxu0 0.0
  %3066 = vmatpush1.msra.mxu0 %v967
  %3067 = vmatprep.subr.mxu0 0.0
  %3068 = vmatpush1.msra.mxu0 %v968
  %3069 = vmatprep.subr.mxu0 0.0
  %3070 = vmatpush1.msra.mxu0 %v969
  %3071 = vmatprep.subr.mxu0 0.0
  %3072 = vmatpush1.msra.mxu0 %v970
  %3073 = vmatprep.subr.mxu0 0.0
  %3074 = vmatpush1.msra.mxu0 %v971
  %3075 = vmatprep.subr.mxu0 0.0
  %3076 = vmatpush1.msra.mxu0 %v972
  %3077 = vmatprep.subr.mxu0 0.0
  %3078 = vmatpush1.msra.mxu0 %v973
  %3079 = vmatprep.subr.mxu0 0.0
  %3080 = vmatpush1.msra.mxu0 %v974
  %3081 = vmatprep.subr.mxu0 0.0
  %3082 = vmatpush1.msra.mxu0 %v975
  %3083 = vmatprep.subr.mxu0 0.0
  %3084 = vmatpush1.msra.mxu0 %v976
  %3085 = vmatprep.subr.mxu0 0.0
  %3086 = vmatpush1.msra.mxu0 %v977
  %3087 = vmatprep.subr.mxu0 0.0
  %3088 = vmatpush1.msra.mxu0 %v978
  %3089 = vmatprep.subr.mxu0 0.0
  %3090 = vmatpush1.msra.mxu0 %v979
  %3091 = vmatprep.subr.mxu0 0.0
  %3092 = vmatpush1.msra.mxu0 %v980
  %3093 = vmatprep.subr.mxu0 0.0
  %3094 = vmatpush1.msra.mxu0 %v981
  %3095 = vmatprep.subr.mxu0 0.0
  %3096 = vmatpush1.msra.mxu0 %v982
  %3097 = vmatprep.subr.mxu0 0.0
  %3098 = vmatpush1.msra.mxu0 %v983
  %3099 = vmatprep.subr.mxu0 0.0
  %3100 = vmatpush1.msra.mxu0 %v984
  %3101 = vmatprep.subr.mxu0 0.0
  %3102 = vmatpush1.msra.mxu0 %v985
  %3103 = vmatprep.subr.mxu0 0.0
  %3104 = vmatpush1.msra.mxu0 %v986
  %3105 = vmatprep.subr.mxu0 0.0
  %3106 = vmatpush1.msra.mxu0 %v987
  %3107 = vmatprep.subr.mxu0 0.0
  %3108 = vmatpush1.msra.mxu0 %v988
  %3109 = vmatprep.subr.mxu0 0.0
  %3110 = vmatpush1.msra.mxu0 %v989
  %3111 = vmatprep.subr.mxu0 0.0
  %3112 = vmatpush1.msra.mxu0 %v990
  %3113 = vmatprep.subr.mxu0 0.0
  %3114 = vmatpush1.msra.mxu0 %v991
  %3115 = vmatprep.subr.mxu0 0.0
  %3116 = vmatpush1.msra.mxu0 %v992
  %3117 = vmatprep.subr.mxu0 0.0
  %3118 = vmatpush1.msra.mxu0 %v993
  %3119 = vmatprep.mubr.f32.mxu0 %v69
  %3120 = vmatmul.mubr.f32.gmra.mrb[0].mxu0 %v68
  %v3121 = vpop.f32.mrb[0].mxu0
  %v3122 = vadd.f32 %v3042, %v3121
  %v3123 = vpop.f32.mrb[0].mxu0
  %3124 = vmatprep.mubr.f32.mxu0 %v127
  %3125 = vmatmul.mubr.f32.gmra.mrb[0].mxu0 %v126
  %v3126 = vpop.f32.mrb[0].mxu0
  %v3127 = vadd.f32 %v3047, %v3126
  %v3128 = vpop.f32.mrb[0].mxu0
  %3129 = vmatprep.mubr.f32.mxu0 %v185
  %3130 = vmatmul.mubr.f32.gmra.mrb[0].mxu0 %v184
  %v3131 = vpop.f32.mrb[0].mxu0
  %v3132 = vadd.f32 %v3052, %v3131
  %v3133 = vpop.f32.mrb[0].mxu0
  %3134 = vdwg.mxu0
  %3135 = vmatprep.subr.mxu0 0.0
  %3136 = vmatpush1.msra.mxu0 %v994
  %3137 = vmatprep.subr.mxu0 0.0
  %3138 = vmatpush1.msra.mxu0 %v995
  %3139 = vmatprep.subr.mxu0 0.0
  %3140 = vmatpush1.msra.mxu0 %v996
  %3141 = vmatprep.subr.mxu0 0.0
  %3142 = vmatpush1.msra.mxu0 %v997
  %3143 = vmatprep.subr.mxu0 0.0
  %3144 = vmatpush1.msra.mxu0 %v998
  %3145 = vmatprep.subr.mxu0 0.0
  %3146 = vmatpush1.msra.mxu0 %v999
  %3147 = vmatprep.subr.mxu0 0.0
  %3148 = vmatpush1.msra.mxu0 %v1000
  %3149 = vmatprep.subr.mxu0 0.0
  %3150 = vmatpush1.msra.mxu0 %v1001
  %3151 = vmatprep.subr.mxu0 0.0
  %3152 = vmatpush1.msra.mxu0 %v1002
  %3153 = vmatprep.subr.mxu0 0.0
  %3154 = vmatpush1.msra.mxu0 %v1003
  %3155 = vmatprep.subr.mxu0 0.0
  %3156 = vmatpush1.msra.mxu0 %v1004
  %3157 = vmatprep.subr.mxu0 0.0
  %3158 = vmatpush1.msra.mxu0 %v1005
  %3159 = vmatprep.subr.mxu0 0.0
  %3160 = vmatpush1.msra.mxu0 %v1006
  %3161 = vmatprep.subr.mxu0 0.0
  %3162 = vmatpush1.msra.mxu0 %v1007
  %3163 = vmatprep.subr.mxu0 0.0
  %3164 = vmatpush1.msra.mxu0 %v1008
  %3165 = vmatprep.subr.mxu0 0.0
  %3166 = vmatpush1.msra.mxu0 %v1009
  %3167 = vmatprep.subr.mxu0 0.0
  %3168 = vmatpush1.msra.mxu0 %v1010
  %3169 = vmatprep.subr.mxu0 0.0
  %3170 = vmatpush1.msra.mxu0 %v1011
  %3171 = vmatprep.subr.mxu0 0.0
  %3172 = vmatpush1.msra.mxu0 %v1012
  %3173 = vmatprep.subr.mxu0 0.0
  %3174 = vmatpush1.msra.mxu0 %v1013
  %3175 = vmatprep.subr.mxu0 0.0
  %3176 = vmatpush1.msra.mxu0 %v1014
  %3177 = vmatprep.subr.mxu0 0.0
  %3178 = vmatpush1.msra.mxu0 %v1015
  %3179 = vmatprep.subr.mxu0 0.0
  %3180 = vmatpush1.msra.mxu0 %v1016
  %3181 = vmatprep.subr.mxu0 0.0
  %3182 = vmatpush1.msra.mxu0 %v1017
  %3183 = vmatprep.subr.mxu0 0.0
  %3184 = vmatpush1.msra.mxu0 %v1018
  %3185 = vmatprep.subr.mxu0 0.0
  %3186 = vmatpush1.msra.mxu0 %v1019
  %3187 = vmatprep.subr.mxu0 0.0
  %3188 = vmatpush1.msra.mxu0 %v1020
  %3189 = vmatprep.subr.mxu0 0.0
  %3190 = vmatpush1.msra.mxu0 %v1021
  %3191 = vmatprep.subr.mxu0 0.0
  %3192 = vmatpush1.msra.mxu0 %v1022
  %3193 = vmatprep.subr.mxu0 0.0
  %3194 = vmatpush1.msra.mxu0 %v1023
  %3195 = vmatprep.subr.mxu0 0.0
  %3196 = vmatpush1.msra.mxu0 %v1024
  %3197 = vmatprep.subr.mxu0 0.0
  %3198 = vmatpush1.msra.mxu0 %v1025
  %3199 = vmatprep.mubr.f32.mxu0 %v71
  %3200 = vmatmul.mubr.f32.gmra.mrb[0].mxu0 %v70
  %v3201 = vpop.f32.mrb[0].mxu0
  %v3202 = vadd.f32 %v3122, %v3201
  %v3203 = vpop.f32.mrb[0].mxu0
  %3204 = vmatprep.mubr.f32.mxu0 %v129
  %3205 = vmatmul.mubr.f32.gmra.mrb[0].mxu0 %v128
  %v3206 = vpop.f32.mrb[0].mxu0
  %v3207 = vadd.f32 %v3127, %v3206
  %v3208 = vpop.f32.mrb[0].mxu0
  %3209 = vmatprep.mubr.f32.mxu0 %v187
  %3210 = vmatmul.mubr.f32.gmra.mrb[0].mxu0 %v186
  %v3211 = vpop.f32.mrb[0].mxu0
  %v3212 = vadd.f32 %v3132, %v3211
  %v3213 = vpop.f32.mrb[0].mxu0
  %3214 = vdwg.mxu0
  %3215 = vmatprep.subr.mxu0 0.0
  %3216 = vmatpush1.msra.mxu0 %v1026
  %3217 = vmatprep.subr.mxu0 0.0
  %3218 = vmatpush1.msra.mxu0 %v1027
  %3219 = vmatprep.subr.mxu0 0.0
  %3220 = vmatpush1.msra.mxu0 %v1028
  %3221 = vmatprep.subr.mxu0 0.0
  %3222 = vmatpush1.msra.mxu0 %v1029
  %3223 = vmatprep.subr.mxu0 0.0
  %3224 = vmatpush1.msra.mxu0 %v1030
  %3225 = vmatprep.subr.mxu0 0.0
  %3226 = vmatpush1.msra.mxu0 %v1031
  %3227 = vmatprep.subr.mxu0 0.0
  %3228 = vmatpush1.msra.mxu0 %v1032
  %3229 = vmatprep.subr.mxu0 0.0
  %3230 = vmatpush1.msra.mxu0 %v1033
  %3231 = vmatprep.subr.mxu0 0.0
  %3232 = vmatpush1.msra.mxu0 %v1034
  %3233 = vmatprep.subr.mxu0 0.0
  %3234 = vmatpush1.msra.mxu0 %v1035
  %3235 = vmatprep.subr.mxu0 0.0
  %3236 = vmatpush1.msra.mxu0 %v1036
  %3237 = vmatprep.subr.mxu0 0.0
  %3238 = vmatpush1.msra.mxu0 %v1037
  %3239 = vmatprep.subr.mxu0 0.0
  %3240 = vmatpush1.msra.mxu0 %v1038
  %3241 = vmatprep.subr.mxu0 0.0
  %3242 = vmatpush1.msra.mxu0 %v1039
  %3243 = vmatprep.subr.mxu0 0.0
  %3244 = vmatpush1.msra.mxu0 %v1040
  %3245 = vmatprep.subr.mxu0 0.0
  %3246 = vmatpush1.msra.mxu0 %v1041
  %3247 = vmatprep.subr.mxu0 0.0
  %3248 = vmatpush1.msra.mxu0 %v1042
  %3249 = vmatprep.subr.mxu0 0.0
  %3250 = vmatpush1.msra.mxu0 %v1043
  %3251 = vmatprep.subr.mxu0 0.0
  %3252 = vmatpush1.msra.mxu0 %v1044
  %3253 = vmatprep.subr.mxu0 0.0
  %3254 = vmatpush1.msra.mxu0 %v1045
  %3255 = vmatprep.subr.mxu0 0.0
  %3256 = vmatpush1.msra.mxu0 %v1046
  %3257 = vmatprep.subr.mxu0 0.0
  %3258 = vmatpush1.msra.mxu0 %v1047
  %3259 = vmatprep.subr.mxu0 0.0
  %3260 = vmatpush1.msra.mxu0 %v1048
  %3261 = vmatprep.subr.mxu0 0.0
  %3262 = vmatpush1.msra.mxu0 %v1049
  %3263 = vmatprep.subr.mxu0 0.0
  %3264 = vmatpush1.msra.mxu0 %v1050
  %3265 = vmatprep.subr.mxu0 0.0
  %3266 = vmatpush1.msra.mxu0 %v1051
  %3267 = vmatprep.subr.mxu0 0.0
  %3268 = vmatpush1.msra.mxu0 %v1052
  %3269 = vmatprep.subr.mxu0 0.0
  %3270 = vmatpush1.msra.mxu0 %v1053
  %3271 = vmatprep.subr.mxu0 0.0
  %3272 = vmatpush1.msra.mxu0 %v1054
  %3273 = vmatprep.subr.mxu0 0.0
  %3274 = vmatpush1.msra.mxu0 %v1055
  %3275 = vmatprep.subr.mxu0 0.0
  %3276 = vmatpush1.msra.mxu0 %v1056
  %3277 = vmatprep.subr.mxu0 0.0
  %3278 = vmatpush1.msra.mxu0 %v1057
  %3279 = vmatprep.mubr.f32.mxu0 %v73
  %3280 = vmatmul.mubr.f32.gmra.mrb[0].mxu0 %v72
  %v3281 = vpop.f32.mrb[0].mxu0
  %v3282 = vadd.f32 %v3202, %v3281
  %v3283 = vpop.f32.mrb[0].mxu0
  %3284 = vmatprep.mubr.f32.mxu0 %v131
  %3285 = vmatmul.mubr.f32.gmra.mrb[0].mxu0 %v130
  %v3286 = vpop.f32.mrb[0].mxu0
  %v3287 = vadd.f32 %v3207, %v3286
  %v3288 = vpop.f32.mrb[0].mxu0
  %3289 = vmatprep.mubr.f32.mxu0 %v189
  %3290 = vmatmul.mubr.f32.gmra.mrb[0].mxu0 %v188
  %v3291 = vpop.f32.mrb[0].mxu0
  %v3292 = vadd.f32 %v3212, %v3291
  %v3293 = vpop.f32.mrb[0].mxu0
  %3294 = vdwg.mxu0
  %3295 = vmatprep.subr.mxu0 0.0
  %3296 = vmatpush1.msra.mxu0 %v1058
  %3297 = vmatprep.subr.mxu0 0.0
  %3298 = vmatpush1.msra.mxu0 %v1059
  %3299 = vmatprep.subr.mxu0 0.0
  %3300 = vmatpush1.msra.mxu0 %v1060
  %3301 = vmatprep.subr.mxu0 0.0
  %3302 = vmatpush1.msra.mxu0 %v1061
  %3303 = vmatprep.subr.mxu0 0.0
  %3304 = vmatpush1.msra.mxu0 %v1062
  %3305 = vmatprep.subr.mxu0 0.0
  %3306 = vmatpush1.msra.mxu0 %v1063
  %3307 = vmatprep.subr.mxu0 0.0
  %3308 = vmatpush1.msra.mxu0 %v1064
  %3309 = vmatprep.subr.mxu0 0.0
  %3310 = vmatpush1.msra.mxu0 %v1065
  %3311 = vmatprep.subr.mxu0 0.0
  %3312 = vmatpush1.msra.mxu0 %v1066
  %3313 = vmatprep.subr.mxu0 0.0
  %3314 = vmatpush1.msra.mxu0 %v1067
  %3315 = vmatprep.subr.mxu0 0.0
  %3316 = vmatpush1.msra.mxu0 %v1068
  %3317 = vmatprep.subr.mxu0 0.0
  %3318 = vmatpush1.msra.mxu0 %v1069
  %3319 = vmatprep.subr.mxu0 0.0
  %3320 = vmatpush1.msra.mxu0 %v1070
  %3321 = vmatprep.subr.mxu0 0.0
  %3322 = vmatpush1.msra.mxu0 %v1071
  %3323 = vmatprep.subr.mxu0 0.0
  %3324 = vmatpush1.msra.mxu0 %v1072
  %3325 = vmatprep.subr.mxu0 0.0
  %3326 = vmatpush1.msra.mxu0 %v1073
  %3327 = vmatprep.subr.mxu0 0.0
  %3328 = vmatpush1.msra.mxu0 %v1074
  %3329 = vmatprep.subr.mxu0 0.0
  %3330 = vmatpush1.msra.mxu0 %v1075
  %3331 = vmatprep.subr.mxu0 0.0
  %3332 = vmatpush1.msra.mxu0 %v1076
  %3333 = vmatprep.subr.mxu0 0.0
  %3334 = vmatpush1.msra.mxu0 %v1077
  %3335 = vmatprep.subr.mxu0 0.0
  %3336 = vmatpush1.msra.mxu0 %v1078
  %3337 = vmatprep.subr.mxu0 0.0
  %3338 = vmatpush1.msra.mxu0 %v1079
  %3339 = vmatprep.subr.mxu0 0.0
  %3340 = vmatpush1.msra.mxu0 %v1080
  %3341 = vmatprep.subr.mxu0 0.0
  %3342 = vmatpush1.msra.mxu0 %v1081
  %3343 = vmatprep.subr.mxu0 0.0
  %3344 = vmatpush1.msra.mxu0 %v1082
  %3345 = vmatprep.subr.mxu0 0.0
  %3346 = vmatpush1.msra.mxu0 %v1083
  %3347 = vmatprep.subr.mxu0 0.0
  %3348 = vmatpush1.msra.mxu0 %v1084
  %3349 = vmatprep.subr.mxu0 0.0
  %3350 = vmatpush1.msra.mxu0 %v1085
  %3351 = vmatprep.subr.mxu0 0.0
  %3352 = vmatpush1.msra.mxu0 %v1086
  %3353 = vmatprep.subr.mxu0 0.0
  %3354 = vmatpush1.msra.mxu0 %v1087
  %3355 = vmatprep.subr.mxu0 0.0
  %3356 = vmatpush1.msra.mxu0 %v1088
  %3357 = vmatprep.subr.mxu0 0.0
  %3358 = vmatpush1.msra.mxu0 %v1089
  %3359 = vmatprep.mubr.f32.mxu0 %v75
  %3360 = vmatmul.mubr.f32.gmra.mrb[0].mxu0 %v74
  %v3361 = vpop.f32.mrb[0].mxu0
  %v3362 = vadd.f32 %v3282, %v3361
  %v3363 = vpop.f32.mrb[0].mxu0
  %3364 = vmatprep.mubr.f32.mxu0 %v133
  %3365 = vmatmul.mubr.f32.gmra.mrb[0].mxu0 %v132
  %v3366 = vpop.f32.mrb[0].mxu0
  %v3367 = vadd.f32 %v3287, %v3366
  %v3368 = vpop.f32.mrb[0].mxu0
  %3369 = vmatprep.mubr.f32.mxu0 %v191
  %3370 = vmatmul.mubr.f32.gmra.mrb[0].mxu0 %v190
  %v3371 = vpop.f32.mrb[0].mxu0
  %v3372 = vadd.f32 %v3292, %v3371
  %v3373 = vpop.f32.mrb[0].mxu0
  %3374 = vdwg.mxu0
  %3375 = vmatprep.subr.mxu0 0.0
  %3376 = vmatpush1.msra.mxu0 %v1090
  %3377 = vmatprep.subr.mxu0 0.0
  %3378 = vmatpush1.msra.mxu0 %v1091
  %3379 = vmatprep.subr.mxu0 0.0
  %3380 = vmatpush1.msra.mxu0 %v1092
  %3381 = vmatprep.subr.mxu0 0.0
  %3382 = vmatpush1.msra.mxu0 %v1093
  %3383 = vmatprep.subr.mxu0 0.0
  %3384 = vmatpush1.msra.mxu0 %v1094
  %3385 = vmatprep.subr.mxu0 0.0
  %3386 = vmatpush1.msra.mxu0 %v1095
  %3387 = vmatprep.subr.mxu0 0.0
  %3388 = vmatpush1.msra.mxu0 %v1096
  %3389 = vmatprep.subr.mxu0 0.0
  %3390 = vmatpush1.msra.mxu0 %v1097
  %3391 = vmatprep.subr.mxu0 0.0
  %3392 = vmatpush1.msra.mxu0 %v1098
  %3393 = vmatprep.subr.mxu0 0.0
  %3394 = vmatpush1.msra.mxu0 %v1099
  %3395 = vmatprep.subr.mxu0 0.0
  %3396 = vmatpush1.msra.mxu0 %v1100
  %3397 = vmatprep.subr.mxu0 0.0
  %3398 = vmatpush1.msra.mxu0 %v1101
  %3399 = vmatprep.subr.mxu0 0.0
  %3400 = vmatpush1.msra.mxu0 %v1102
  %3401 = vmatprep.subr.mxu0 0.0
  %3402 = vmatpush1.msra.mxu0 %v1103
  %3403 = vmatprep.subr.mxu0 0.0
  %3404 = vmatpush1.msra.mxu0 %v1104
  %3405 = vmatprep.subr.mxu0 0.0
  %3406 = vmatpush1.msra.mxu0 %v1105
  %3407 = vmatprep.subr.mxu0 0.0
  %3408 = vmatpush1.msra.mxu0 %v1106
  %3409 = vmatprep.subr.mxu0 0.0
  %3410 = vmatpush1.msra.mxu0 %v1107
  %3411 = vmatprep.subr.mxu0 0.0
  %3412 = vmatpush1.msra.mxu0 %v1108
  %3413 = vmatprep.subr.mxu0 0.0
  %3414 = vmatpush1.msra.mxu0 %v1109
  %3415 = vmatprep.subr.mxu0 0.0
  %3416 = vmatpush1.msra.mxu0 %v1110
  %3417 = vmatprep.subr.mxu0 0.0
  %3418 = vmatpush1.msra.mxu0 %v1111
  %3419 = vmatprep.subr.mxu0 0.0
  %3420 = vmatpush1.msra.mxu0 %v1112
  %3421 = vmatprep.subr.mxu0 0.0
  %3422 = vmatpush1.msra.mxu0 %v1113
  %3423 = vmatprep.subr.mxu0 0.0
  %3424 = vmatpush1.msra.mxu0 %v1114
  %3425 = vmatprep.subr.mxu0 0.0
  %3426 = vmatpush1.msra.mxu0 %v1115
  %3427 = vmatprep.subr.mxu0 0.0
  %3428 = vmatpush1.msra.mxu0 %v1116
  %3429 = vmatprep.subr.mxu0 0.0
  %3430 = vmatpush1.msra.mxu0 %v1117
  %3431 = vmatprep.subr.mxu0 0.0
  %3432 = vmatpush1.msra.mxu0 0.0
  %3433 = vmatprep.subr.mxu0 0.0
  %3434 = vmatpush1.msra.mxu0 0.0
  %3435 = vmatprep.subr.mxu0 0.0
  %3436 = vmatpush1.msra.mxu0 0.0
  %3437 = vmatprep.subr.mxu0 0.0
  %3438 = vmatpush1.msra.mxu0 0.0
  %3439 = vmatprep.mubr.f32.mxu0 %v1127
  %3440 = vmatmul.mubr.f32.gmra.mrb[0].mxu0 %v76
  %v3441 = vpop.f32.mrb[0].mxu0
  %v3442 = vadd.f32 %v3362, %v3441
  %v3443 = vpop.f32.mrb[0].mxu0
  %3444 = vmatprep.mubr.f32.mxu0 %v1130
  %3445 = vmatmul.mubr.f32.gmra.mrb[0].mxu0 %v134
  %v3446 = vpop.f32.mrb[0].mxu0
  %v3447 = vadd.f32 %v3367, %v3446
  %v3448 = vpop.f32.mrb[0].mxu0
  %3449 = vmatprep.mubr.f32.mxu0 %v1133
  %3450 = vmatmul.mubr.f32.gmra.mrb[0].mxu0 %v192
  %v3451 = vpop.f32.mrb[0].mxu0
  %v3452 = vadd.f32 %v3372, %v3451
  %v3453 = vpop.f32.mrb[0].mxu0
  %3454 = vdwg.mxu0
  %vm3455 = vcmask 261120
  %v3456 = vsel %vm3455, %v3442, 0.0
  %v3457 = vsel %vm3455, %v3447, 0.0
  %v3458 = vadd.f32 %v3456, %v3457
  %vm3459 = vcmask 257024
  %v3460 = vsel %vm3459, %v3452, 0.0
  %v3461 = vadd.f32 %v3458, %v3460
  %v3462 = vrot.slane %v3461, 4
  %v3463 = vadd.f32 %v3461, %v3462
  %v3464 = vrot.slane %v3463, 2
  %v3465 = vadd.f32 %v3463, %v3464
  %v3466 = vrot.slane %v3465, 1
  %v3467 = vadd.f32 %v3465, %v3466
  %v3468 = vrcp.pop 20.0
  %v3469 = vmul.f32 %v3467, %v3468
  %v3470 = vsub.f32 %v3442, %v3469
  %v3471 = vsub.f32 %v3447, %v3469
  %v3472 = vsub.f32 %v3452, %v3469
  %v3473 = vmul.f32 %v3470, %v3470
  %v3474 = vmul.f32 %v3471, %v3471
  %v3475 = vmul.f32 %v3472, %v3472
  %v3476 = vsel %vm3455, %v3473, 0.0
  %v3477 = vsel %vm3455, %v3474, 0.0
  %v3478 = vadd.f32 %v3476, %v3477
  %v3479 = vsel %vm3459, %v3475, 0.0
  %v3480 = vadd.f32 %v3478, %v3479
  %v3481 = vrot.slane %v3480, 4
  %v3482 = vadd.f32 %v3480, %v3481
  %v3483 = vrot.slane %v3482, 2
  %v3484 = vadd.f32 %v3482, %v3483
  %v3485 = vrot.slane %v3484, 1
  %v3486 = vadd.f32 %v3484, %v3485
  %v3487 = vmul.f32 %v3486, %v3468
  %v3488 = vadd.f32 %v3487, 1e-05
  %v3489 = vrsqrt.pop %v3488
  %v3490 = vmul.f32 %v3470, %v3489
  %v3491 = vmul.f32 %v3471, %v3489
  %v3492 = vmul.f32 %v3472, %v3489
  %v3493 = vld [vmem:[%s3] sm:$0x1]
  %v3495 = vlaneseq
  %v3496 = vshrl.u32 %v3495, 7
  %v3497 = vsub.s32 0, %v3496
  %v3498 = vrot.slane %v3493, %v3497
  %v3500 = vmul.f32 %v3490, %v3498
  %v3501 = vmul.f32 %v3491, %v3498
  %v3502 = vmul.f32 %v3492, %v3498
  %v3503 = vld [vmem:[%s4] sm:$0x1]
  %v3505 = vlaneseq
  %v3506 = vshrl.u32 %v3505, 7
  %v3507 = vsub.s32 0, %v3506
  %v3508 = vrot.slane %v3503, %v3507
  %v3510 = vadd.f32 %v3500, %v3508
  %v3511 = vadd.f32 %v3501, %v3508
  %v3512 = vadd.f32 %v3502, %v3508
  %v3513 = vmax.f32 %v3510, 0.0
  %v3514 = vmax.f32 %v3511, 0.0
  %v3515 = vmax.f32 %v3512, 0.0
  %v3516 = vmin.f32 %v3513, 20.0
  %v3517 = vmin.f32 %v3514, 20.0
  %v3518 = vmin.f32 %v3515, 20.0
  %3519 = vst.msk [vmem:[%s5] sm:$0xff] %vm3455, %v3516
  %3520 = vst.msk [vmem:[%s5 + $0x8] sm:$0xff] %vm3455, %v3517
  %3521 = vst.msk [vmem:[%s5 + $0x10] sm:$0xf] %vm3459, %v3518
  // Predicated region
  $region22: #{audio_encoder_forward.7} parent=0 // pred_check
    _
  $region23: #{audio_encoder_forward.7} parent=0 // pred_check_branch
    %3523 = sbr.rel (0) target = $region25
  $region24: #{audio_encoder_forward.7} parent=0 // pred_region
    _
  $region25: #{audio_encoder_forward.7} parent=0 // pred_fallthru
    _
  // Predicated region
  $region26: #{audio_encoder_forward.7} parent=0 // pred_check
    _
  $region27: #{audio_encoder_forward.7} parent=0 // pred_check_branch
    %3525 = sbr.rel (0) target = $region29
  $region28: #{audio_encoder_forward.7} parent=0 // pred_region
    _
  $region29: #{audio_encoder_forward.7} parent=0 // pred_fallthru
    _

// kernel: audio_encoder_forward.8
$region0: #{audio_encoder_forward.8}
  #allocation0 [shape = 'u32[]', space=smem, size = 0x4, offset = 0x4, fixed_abs, tag = 'smem constant byte address 0x4 - core index']
  #allocation1 [shape = 'u32[144,128]{1,0:T(1,128)}', space=vmem, size = 0x12000, scoped, tag = 'internal scratch']
  %s0 = inlined_call_operand.vmem [shape: f32[20,32], index: 0, kind: input, shape index: {}]
  %s1 = inlined_call_operand.vmem [shape: f32[32,256], index: 1, kind: input, shape index: {}]
  %s2 = inlined_call_operand.vmem [shape: f32[1,256], index: 2, kind: input, shape index: {}]
  %s3 = inlined_call_operand.vmem [shape: f32[20,256], index: 3, kind: output, shape index: {}]
  %s4 = sld [smem:[#allocation0]]
  $region22: #{audio_encoder_forward.8} parent=0
    _
  %s6 = ssub.s32 1, %s4
  %s7 = scalar_select 0, %s6, %s4
  // Predicated region
  $region2: #{audio_encoder_forward.8} parent=0 // pred_check
    _
  $region3: #{audio_encoder_forward.8} parent=0 // pred_check_branch
    %9 = sbr.rel (0) target = $region5
  $region4: #{audio_encoder_forward.8} parent=0 // pred_region
    _
  $region5: #{audio_encoder_forward.8} parent=0 // pred_fallthru
    _
  // Predicated region
  $region6: #{audio_encoder_forward.8} parent=0 // pred_check
    _
  $region7: #{audio_encoder_forward.8} parent=0 // pred_check_branch
    %11 = sbr.rel (0) target = $region9
  $region8: #{audio_encoder_forward.8} parent=0 // pred_region
    _
  $region9: #{audio_encoder_forward.8} parent=0 // pred_fallthru
    _
  // Predicated region
  $region10: #{audio_encoder_forward.8} parent=0 // pred_check
    _
  $region11: #{audio_encoder_forward.8} parent=0 // pred_check_branch
    %13 = sbr.rel (0) target = $region13
  $region12: #{audio_encoder_forward.8} parent=0 // pred_region
    _
  $region13: #{audio_encoder_forward.8} parent=0 // pred_fallthru
    _
  %v14 = vld [vmem:[%s0] sm:$0xff]
  %v15 = vld [vmem:[%s0 + $0x8] sm:$0xff]
  %v16 = vld [vmem:[%s0 + $0x10] sm:$0xf]
  %v17 = vld [vmem:[%s1] sm:$0xff]
  %v18 = vld [vmem:[%s1 + $0x8] sm:$0xff]
  %v19 = vld [vmem:[%s1 + $0x10] sm:$0xff]
  %v20 = vld [vmem:[%s1 + $0x18] sm:$0xff]
  %v21 = vld [vmem:[%s1 + $0x20] sm:$0xff]
  %v22 = vld [vmem:[%s1 + $0x28] sm:$0xff]
  %v23 = vld [vmem:[%s1 + $0x30] sm:$0xff]
  %v24 = vld [vmem:[%s1 + $0x38] sm:$0xff]
  %v25 = vld [vmem:[%s2] sm:$0x3]
  %v27 = vlaneseq
  %v28 = vshrl.u32 %v27, 7
  %v29 = vsub.s32 0, %v28
  %v30 = vrot.slane %v25, %v29
  %v31 = vlaneseq
  %v32 = vshrl.u32 %v31, 7
  %v33 = vsub.s32 1, %v32
  %v34 = vrot.slane %v25, %v33
  %vm37 = vcmask 261120
  %v39 = vsel %vm37, %v14, 0
  %v42 = vsel %vm37, %v15, 0
  %v45 = vsel %vm37, %v16, 0
  %47 = vmatprep.subr.mxu0 %v18
  %48 = vmatpush1.msra.mxu0 %v17
  %49 = vmatprep.subr.mxu0 %v20
  %50 = vmatpush1.msra.mxu0 %v19
  %51 = vmatprep.subr.mxu0 %v22
  %52 = vmatpush1.msra.mxu0 %v21
  %53 = vmatprep.subr.mxu0 %v24
  %54 = vmatpush1.msra.mxu0 %v23
  %55 = vmatprep.subr.mxu0 0.0
  %56 = vmatpush1.msra.mxu0 0.0
  %57 = vmatprep.subr.mxu0 0.0
  %58 = vmatpush1.msra.mxu0 0.0
  %59 = vmatprep.subr.mxu0 0.0
  %60 = vmatpush1.msra.mxu0 0.0
  %61 = vmatprep.subr.mxu0 0.0
  %62 = vmatpush1.msra.mxu0 0.0
  %63 = vmatprep.subr.mxu0 0.0
  %64 = vmatpush1.msra.mxu0 0.0
  %65 = vmatprep.subr.mxu0 0.0
  %66 = vmatpush1.msra.mxu0 0.0
  %67 = vmatprep.subr.mxu0 0.0
  %68 = vmatpush1.msra.mxu0 0.0
  %69 = vmatprep.subr.mxu0 0.0
  %70 = vmatpush1.msra.mxu0 0.0
  %71 = vmatprep.subr.mxu0 0.0
  %72 = vmatpush1.msra.mxu0 0.0
  %73 = vmatprep.subr.mxu0 0.0
  %74 = vmatpush1.msra.mxu0 0.0
  %75 = vmatprep.subr.mxu0 0.0
  %76 = vmatpush1.msra.mxu0 0.0
  %77 = vmatprep.subr.mxu0 0.0
  %78 = vmatpush1.msra.mxu0 0.0
  %79 = vmatprep.subr.mxu0 0.0
  %80 = vmatpush1.msra.mxu0 0.0
  %81 = vmatprep.subr.mxu0 0.0
  %82 = vmatpush1.msra.mxu0 0.0
  %83 = vmatprep.subr.mxu0 0.0
  %84 = vmatpush1.msra.mxu0 0.0
  %85 = vmatprep.subr.mxu0 0.0
  %86 = vmatpush1.msra.mxu0 0.0
  %87 = vmatprep.subr.mxu0 0.0
  %88 = vmatpush1.msra.mxu0 0.0
  %89 = vmatprep.subr.mxu0 0.0
  %90 = vmatpush1.msra.mxu0 0.0
  %91 = vmatprep.subr.mxu0 0.0
  %92 = vmatpush1.msra.mxu0 0.0
  %93 = vmatprep.subr.mxu0 0.0
  %94 = vmatpush1.msra.mxu0 0.0
  %95 = vmatprep.subr.mxu0 0.0
  %96 = vmatpush1.msra.mxu0 0.0
  %97 = vmatprep.subr.mxu0 0.0
  %98 = vmatpush1.msra.mxu0 0.0
  %99 = vmatprep.subr.mxu0 0.0
  %100 = vmatpush1.msra.mxu0 0.0
  %101 = vmatprep.subr.mxu0 0.0
  %102 = vmatpush1.msra.mxu0 0.0
  %103 = vmatprep.subr.mxu0 0.0
  %104 = vmatpush1.msra.mxu0 0.0
  %105 = vmatprep.subr.mxu0 0.0
  %106 = vmatpush1.msra.mxu0 0.0
  %107 = vmatprep.subr.mxu0 0.0
  %108 = vmatpush1.msra.mxu0 0.0
  %109 = vmatprep.subr.mxu0 0.0
  %110 = vmatpush1.msra.mxu0 0.0
  %111 = vmatprep.mubr.f32.mxu0 0.0
  %112 = vmatmul.mubr.f32.gmra.mrb[0].mxu0 %v39
  %v113 = vpop.f32.mrb[0].mxu0
  %v114 = vadd.f32 %v30, %v113
  %v115 = vpop.f32.mrb[0].mxu0
  %v116 = vadd.f32 %v34, %v115
  %117 = vmatprep.mubr.f32.mxu0 0.0
  %118 = vmatmul.mubr.f32.gmra.mrb[0].mxu0 %v42
  %v119 = vpop.f32.mrb[0].mxu0
  %v120 = vadd.f32 %v30, %v119
  %v121 = vpop.f32.mrb[0].mxu0
  %v122 = vadd.f32 %v34, %v121
  %123 = vmatprep.mubr.f32.mxu0 0.0
  %124 = vmatmul.mubr.f32.gmra.mrb[0].mxu0 %v45
  %v125 = vpop.f32.mrb[0].mxu0
  %v126 = vadd.f32 %v30, %v125
  %v127 = vpop.f32.mrb[0].mxu0
  %v128 = vadd.f32 %v34, %v127
  %129 = vdwg.mxu0
  %130 = vst [vmem:[%s3] sm:$0xff] %v114
  %131 = vst [vmem:[%s3 + $0x8] sm:$0xff] %v116
  %132 = vst [vmem:[%s3 + $0x10] sm:$0xff] %v120
  %133 = vst [vmem:[%s3 + $0x18] sm:$0xff] %v122
  %134 = vst [vmem:[%s3 + $0x20] sm:$0xf] %v126
  %135 = vst [vmem:[%s3 + $0x28] sm:$0xf] %v128
  // Predicated region
  $region14: #{audio_encoder_forward.8} parent=0 // pred_check
    _
  $region15: #{audio_encoder_forward.8} parent=0 // pred_check_branch
    %137 = sbr.rel (0) target = $region17
  $region16: #{audio_encoder_forward.8} parent=0 // pred_region
    _
  $region17: #{audio_encoder_forward.8} parent=0 // pred_fallthru
    _
  // Predicated region
  $region18: #{audio_encoder_forward.8} parent=0 // pred_check
    _
  $region19: #{audio_encoder_forward.8} parent=0 // pred_check_branch
    %139 = sbr.rel (0) target = $region21
  $region20: #{audio_encoder_forward.8} parent=0 // pred_region
    _
  $region21: #{audio_encoder_forward.8} parent=0 // pred_fallthru
    _

// kernel: audio_encoder_forward.10
$region0: #{audio_encoder_forward.10}
  #allocation0 [shape = 'u32[]', space=smem, size = 0x4, offset = 0x4, fixed_abs, tag = 'smem constant byte address 0x4 - core index']
  #allocation1 [shape = 'u32[144,128]{1,0:T(1,128)}', space=vmem, size = 0x12000, scoped, tag = 'internal scratch']
  %s0 = inlined_call_operand.vmem [shape: f32[20,64], index: 0, kind: input, shape index: {}]
  %s1 = inlined_call_operand.vmem [shape: f32[64,256], index: 1, kind: input, shape index: {}]
  %s2 = inlined_call_operand.vmem [shape: f32[1,256], index: 2, kind: input, shape index: {}]
  %s3 = inlined_call_operand.vmem [shape: f32[20,256], index: 3, kind: output, shape index: {}]
  %s4 = sld [smem:[#allocation0]]
  $region22: #{audio_encoder_forward.10} parent=0
    _
  %s6 = ssub.s32 1, %s4
  %s7 = scalar_select 0, %s6, %s4
  // Predicated region
  $region2: #{audio_encoder_forward.10} parent=0 // pred_check
    _
  $region3: #{audio_encoder_forward.10} parent=0 // pred_check_branch
    %9 = sbr.rel (0) target = $region5
  $region4: #{audio_encoder_forward.10} parent=0 // pred_region
    _
  $region5: #{audio_encoder_forward.10} parent=0 // pred_fallthru
    _
  // Predicated region
  $region6: #{audio_encoder_forward.10} parent=0 // pred_check
    _
  $region7: #{audio_encoder_forward.10} parent=0 // pred_check_branch
    %11 = sbr.rel (0) target = $region9
  $region8: #{audio_encoder_forward.10} parent=0 // pred_region
    _
  $region9: #{audio_encoder_forward.10} parent=0 // pred_fallthru
    _
  // Predicated region
  $region10: #{audio_encoder_forward.10} parent=0 // pred_check
    _
  $region11: #{audio_encoder_forward.10} parent=0 // pred_check_branch
    %13 = sbr.rel (0) target = $region13
  $region12: #{audio_encoder_forward.10} parent=0 // pred_region
    _
  $region13: #{audio_encoder_forward.10} parent=0 // pred_fallthru
    _
  %v14 = vld [vmem:[%s0] sm:$0xff]
  %v15 = vld [vmem:[%s0 + $0x8] sm:$0xff]
  %v16 = vld [vmem:[%s0 + $0x10] sm:$0xf]
  %v17 = vld [vmem:[%s1] sm:$0xff]
  %v18 = vld [vmem:[%s1 + $0x8] sm:$0xff]
  %v19 = vld [vmem:[%s1 + $0x10] sm:$0xff]
  %v20 = vld [vmem:[%s1 + $0x18] sm:$0xff]
  %v21 = vld [vmem:[%s1 + $0x20] sm:$0xff]
  %v22 = vld [vmem:[%s1 + $0x28] sm:$0xff]
  %v23 = vld [vmem:[%s1 + $0x30] sm:$0xff]
  %v24 = vld [vmem:[%s1 + $0x38] sm:$0xff]
  %v25 = vld [vmem:[%s1 + $0x40] sm:$0xff]
  %v26 = vld [vmem:[%s1 + $0x48] sm:$0xff]
  %v27 = vld [vmem:[%s1 + $0x50] sm:$0xff]
  %v28 = vld [vmem:[%s1 + $0x58] sm:$0xff]
  %v29 = vld [vmem:[%s1 + $0x60] sm:$0xff]
  %v30 = vld [vmem:[%s1 + $0x68] sm:$0xff]
  %v31 = vld [vmem:[%s1 + $0x70] sm:$0xff]
  %v32 = vld [vmem:[%s1 + $0x78] sm:$0xff]
  %v33 = vld [vmem:[%s2] sm:$0x3]
  %v35 = vlaneseq
  %v36 = vshrl.u32 %v35, 7
  %v37 = vsub.s32 0, %v36
  %v38 = vrot.slane %v33, %v37
  %v39 = vlaneseq
  %v40 = vshrl.u32 %v39, 7
  %v41 = vsub.s32 1, %v40
  %v42 = vrot.slane %v33, %v41
  %vm45 = vcmask 523264
  %v47 = vsel %vm45, %v14, 0
  %v50 = vsel %vm45, %v15, 0
  %v53 = vsel %vm45, %v16, 0
  %55 = vmatprep.subr.mxu0 %v18
  %56 = vmatpush1.msra.mxu0 %v17
  %57 = vmatprep.subr.mxu0 %v20
  %58 = vmatpush1.msra.mxu0 %v19
  %59 = vmatprep.subr.mxu0 %v22
  %60 = vmatpush1.msra.mxu0 %v21
  %61 = vmatprep.subr.mxu0 %v24
  %62 = vmatpush1.msra.mxu0 %v23
  %63 = vmatprep.subr.mxu0 %v26
  %64 = vmatpush1.msra.mxu0 %v25
  %65 = vmatprep.subr.mxu0 %v28
  %66 = vmatpush1.msra.mxu0 %v27
  %67 = vmatprep.subr.mxu0 %v30
  %68 = vmatpush1.msra.mxu0 %v29
  %69 = vmatprep.subr.mxu0 %v32
  %70 = vmatpush1.msra.mxu0 %v31
  %71 = vmatprep.subr.mxu0 0.0
  %72 = vmatpush1.msra.mxu0 0.0
  %73 = vmatprep.subr.mxu0 0.0
  %74 = vmatpush1.msra.mxu0 0.0
  %75 = vmatprep.subr.mxu0 0.0
  %76 = vmatpush1.msra.mxu0 0.0
  %77 = vmatprep.subr.mxu0 0.0
  %78 = vmatpush1.msra.mxu0 0.0
  %79 = vmatprep.subr.mxu0 0.0
  %80 = vmatpush1.msra.mxu0 0.0
  %81 = vmatprep.subr.mxu0 0.0
  %82 = vmatpush1.msra.mxu0 0.0
  %83 = vmatprep.subr.mxu0 0.0
  %84 = vmatpush1.msra.mxu0 0.0
  %85 = vmatprep.subr.mxu0 0.0
  %86 = vmatpush1.msra.mxu0 0.0
  %87 = vmatprep.subr.mxu0 0.0
  %88 = vmatpush1.msra.mxu0 0.0
  %89 = vmatprep.subr.mxu0 0.0
  %90 = vmatpush1.msra.mxu0 0.0
  %91 = vmatprep.subr.mxu0 0.0
  %92 = vmatpush1.msra.mxu0 0.0
  %93 = vmatprep.subr.mxu0 0.0
  %94 = vmatpush1.msra.mxu0 0.0
  %95 = vmatprep.subr.mxu0 0.0
  %96 = vmatpush1.msra.mxu0 0.0
  %97 = vmatprep.subr.mxu0 0.0
  %98 = vmatpush1.msra.mxu0 0.0
  %99 = vmatprep.subr.mxu0 0.0
  %100 = vmatpush1.msra.mxu0 0.0
  %101 = vmatprep.subr.mxu0 0.0
  %102 = vmatpush1.msra.mxu0 0.0
  %103 = vmatprep.subr.mxu0 0.0
  %104 = vmatpush1.msra.mxu0 0.0
  %105 = vmatprep.subr.mxu0 0.0
  %106 = vmatpush1.msra.mxu0 0.0
  %107 = vmatprep.subr.mxu0 0.0
  %108 = vmatpush1.msra.mxu0 0.0
  %109 = vmatprep.subr.mxu0 0.0
  %110 = vmatpush1.msra.mxu0 0.0
  %111 = vmatprep.subr.mxu0 0.0
  %112 = vmatpush1.msra.mxu0 0.0
  %113 = vmatprep.subr.mxu0 0.0
  %114 = vmatpush1.msra.mxu0 0.0
  %115 = vmatprep.subr.mxu0 0.0
  %116 = vmatpush1.msra.mxu0 0.0
  %117 = vmatprep.subr.mxu0 0.0
  %118 = vmatpush1.msra.mxu0 0.0
  %119 = vmatprep.mubr.f32.mxu0 0.0
  %120 = vmatmul.mubr.f32.gmra.mrb[0].mxu0 %v47
  %v121 = vpop.f32.mrb[0].mxu0
  %v122 = vadd.f32 %v38, %v121
  %v123 = vpop.f32.mrb[0].mxu0
  %v124 = vadd.f32 %v42, %v123
  %125 = vmatprep.mubr.f32.mxu0 0.0
  %126 = vmatmul.mubr.f32.gmra.mrb[0].mxu0 %v50
  %v127 = vpop.f32.mrb[0].mxu0
  %v128 = vadd.f32 %v38, %v127
  %v129 = vpop.f32.mrb[0].mxu0
  %v130 = vadd.f32 %v42, %v129
  %131 = vmatprep.mubr.f32.mxu0 0.0
  %132 = vmatmul.mubr.f32.gmra.mrb[0].mxu0 %v53
  %v133 = vpop.f32.mrb[0].mxu0
  %v134 = vadd.f32 %v38, %v133
  %v135 = vpop.f32.mrb[0].mxu0
  %v136 = vadd.f32 %v42, %v135
  %137 = vdwg.mxu0
  %138 = vst [vmem:[%s3] sm:$0xff] %v122
  %139 = vst [vmem:[%s3 + $0x8] sm:$0xff] %v124
  %140 = vst [vmem:[%s3 + $0x10] sm:$0xff] %v128
  %141 = vst [vmem:[%s3 + $0x18] sm:$0xff] %v130
  %142 = vst [vmem:[%s3 + $0x20] sm:$0xf] %v134
  %143 = vst [vmem:[%s3 + $0x28] sm:$0xf] %v136
  // Predicated region
  $region14: #{audio_encoder_forward.10} parent=0 // pred_check
    _
  $region15: #{audio_encoder_forward.10} parent=0 // pred_check_branch
    %145 = sbr.rel (0) target = $region17
  $region16: #{audio_encoder_forward.10} parent=0 // pred_region
    _
  $region17: #{audio_encoder_forward.10} parent=0 // pred_fallthru
    _
  // Predicated region
  $region18: #{audio_encoder_forward.10} parent=0 // pred_check
    _
  $region19: #{audio_encoder_forward.10} parent=0 // pred_check_branch
    %147 = sbr.rel (0) target = $region21
  $region20: #{audio_encoder_forward.10} parent=0 // pred_region
    _
  $region21: #{audio_encoder_forward.10} parent=0 // pred_fallthru
    _

// kernel: audio_encoder_forward.9
$region0: #{audio_encoder_forward.9}
  #allocation0 [shape = 'u32[]', space=smem, size = 0x4, offset = 0x4, fixed_abs, tag = 'smem constant byte address 0x4 - core index']
  #allocation1 [shape = 'u32[144,128]{1,0:T(1,128)}', space=vmem, size = 0x12000, scoped, tag = 'internal scratch']
  #allocation2 [shape = 'f32[4,32]{1,0:T(4,128)}', space=vmem, size = 0x800, scoped, tag = 'scratch operand']
  #allocation3 [shape = 'f32[4,32]{1,0:T(4,128)}', space=vmem, size = 0x800, scoped, tag = 'scratch operand']
  %s0 = inlined_call_operand.vmem [shape: f32[10,2,256], index: 0, kind: input, shape index: {}]
  %s1 = inlined_call_operand.vmem [shape: f32[32,256], index: 1, kind: input, shape index: {}]
  %s2 = inlined_call_operand.vmem [shape: f32[10,2,32], index: 2, kind: output, shape index: {0}]
  %s3 = inlined_call_operand.vmem [shape: f32[10,2,32], index: 3, kind: output, shape index: {1}]
  %s4 = inlined_call_operand.vmem [shape: f32[4,32], index: 4, kind: output, shape index: {2}]
  %5 = xla_tuple %s2, %s3, %s4
  %s6 = sld [smem:[#allocation0]]
  $region34: #{audio_encoder_forward.9} parent=0
    _
  %s8 = ssub.s32 1, %s6
  %s9 = scalar_select 0, %s8, %s6
  // Predicated region
  $region2: #{audio_encoder_forward.9} parent=0 // pred_check
    _
  $region3: #{audio_encoder_forward.9} parent=0 // pred_check_branch
    %11 = sbr.rel (0) target = $region5
  $region4: #{audio_encoder_forward.9} parent=0 // pred_region
    _
  $region5: #{audio_encoder_forward.9} parent=0 // pred_fallthru
    _
  // Predicated region
  $region6: #{audio_encoder_forward.9} parent=0 // pred_check
    _
  $region7: #{audio_encoder_forward.9} parent=0 // pred_check_branch
    %13 = sbr.rel (0) target = $region9
  $region8: #{audio_encoder_forward.9} parent=0 // pred_region
    _
  $region9: #{audio_encoder_forward.9} parent=0 // pred_fallthru
    _
  %v14 = vlaneseq
  %v15 = vshrl.u32 %v14, 7
  %vm16 = vcmp.lt.s32.totalorder %v15, 2
  %vm17 = vcmask 257024
  %18 = vst.msk [vmem:[#allocation2] sm:$0xf] %vm17, 0.0
  %19 = vst.msk [vmem:[#allocation3] sm:$0xf] %vm17, 0.0
  %v20 = vld [vmem:[%s0] sm:$0xf]
  %s21 = scalar_lea.vmem %s0, 36
  %v22 = vld [vmem:[%s21] sm:$0xf]
  %v24 = vcombine.low %v22, %v22
  %v26 = vunpack.c.l.s4 1983009808
  %v27 = vunpack.c.0.s8 %v26
  %v28 = vlaneseq
  %v29 = vshrl.u32 %v28, 7
  %v30 = vsub.s32 %v27, %v29
  %v31 = vrot.slane %v24, %v30
  %v32 = vcombine.high %v31, %v31
  %vm34 = vcmask 1041408
  %v35 = vsel %vm34, %v20, %v32
  %v36 = vld [vmem:[#allocation2] sm:$0xf]
  %v37 = vld [vmem:[%s1] sm:$0xff]
  %v38 = vld [vmem:[%s1 + $0x8] sm:$0xff]
  %v39 = vld [vmem:[%s1 + $0x10] sm:$0xff]
  %v40 = vld [vmem:[%s1 + $0x18] sm:$0xff]
  %v41 = vld [vmem:[%s1 + $0x20] sm:$0xff]
  %v42 = vld [vmem:[%s1 + $0x28] sm:$0xff]
  %v43 = vld [vmem:[%s1 + $0x30] sm:$0xff]
  %v44 = vld [vmem:[%s1 + $0x38] sm:$0xff]
  %vm45 = vcmask 261120
  %v47 = vsel %vm45, %v36, 0
  %49 = vmatprep.subr.mxu0 %v38
  %50 = vmatpush1.msra.mxu0 %v37
  %51 = vmatprep.subr.mxu0 %v40
  %52 = vmatpush1.msra.mxu0 %v39
  %53 = vmatprep.subr.mxu0 %v42
  %54 = vmatpush1.msra.mxu0 %v41
  %55 = vmatprep.subr.mxu0 %v44
  %56 = vmatpush1.msra.mxu0 %v43
  %57 = vmatprep.subr.mxu0 0.0
  %58 = vmatpush1.msra.mxu0 0.0
  %59 = vmatprep.subr.mxu0 0.0
  %60 = vmatpush1.msra.mxu0 0.0
  %61 = vmatprep.subr.mxu0 0.0
  %62 = vmatpush1.msra.mxu0 0.0
  %63 = vmatprep.subr.mxu0 0.0
  %64 = vmatpush1.msra.mxu0 0.0
  %65 = vmatprep.subr.mxu0 0.0
  %66 = vmatpush1.msra.mxu0 0.0
  %67 = vmatprep.subr.mxu0 0.0
  %68 = vmatpush1.msra.mxu0 0.0
  %69 = vmatprep.subr.mxu0 0.0
  %70 = vmatpush1.msra.mxu0 0.0
  %71 = vmatprep.subr.mxu0 0.0
  %72 = vmatpush1.msra.mxu0 0.0
  %73 = vmatprep.subr.mxu0 0.0
  %74 = vmatpush1.msra.mxu0 0.0
  %75 = vmatprep.subr.mxu0 0.0
  %76 = vmatpush1.msra.mxu0 0.0
  %77 = vmatprep.subr.mxu0 0.0
  %78 = vmatpush1.msra.mxu0 0.0
  %79 = vmatprep.subr.mxu0 0.0
  %80 = vmatpush1.msra.mxu0 0.0
  %81 = vmatprep.subr.mxu0 0.0
  %82 = vmatpush1.msra.mxu0 0.0
  %83 = vmatprep.subr.mxu0 0.0
  %84 = vmatpush1.msra.mxu0 0.0
  %85 = vmatprep.subr.mxu0 0.0
  %86 = vmatpush1.msra.mxu0 0.0
  %87 = vmatprep.subr.mxu0 0.0
  %88 = vmatpush1.msra.mxu0 0.0
  %89 = vmatprep.subr.mxu0 0.0
  %90 = vmatpush1.msra.mxu0 0.0
  %91 = vmatprep.subr.mxu0 0.0
  %92 = vmatpush1.msra.mxu0 0.0
  %93 = vmatprep.subr.mxu0 0.0
  %94 = vmatpush1.msra.mxu0 0.0
  %95 = vmatprep.subr.mxu0 0.0
  %96 = vmatpush1.msra.mxu0 0.0
  %97 = vmatprep.subr.mxu0 0.0
  %98 = vmatpush1.msra.mxu0 0.0
  %99 = vmatprep.subr.mxu0 0.0
  %100 = vmatpush1.msra.mxu0 0.0
  %101 = vmatprep.subr.mxu0 0.0
  %102 = vmatpush1.msra.mxu0 0.0
  %103 = vmatprep.subr.mxu0 0.0
  %104 = vmatpush1.msra.mxu0 0.0
  %105 = vmatprep.subr.mxu0 0.0
  %106 = vmatpush1.msra.mxu0 0.0
  %107 = vmatprep.subr.mxu0 0.0
  %108 = vmatpush1.msra.mxu0 0.0
  %109 = vmatprep.subr.mxu0 0.0
  %110 = vmatpush1.msra.mxu0 0.0
  %111 = vmatprep.subr.mxu0 0.0
  %112 = vmatpush1.msra.mxu0 0.0
  %113 = vmatprep.mubr.f32.mxu0 0.0
  %114 = vmatmul.mubr.f32.gmra.mrb[0].mxu0 %v47
  %v115 = vpop.f32.mrb[0].mxu0
  %v116 = vadd.f32 0.0, %v115
  %v117 = vpop.f32.mrb[0].mxu0
  %v118 = vadd.f32 0.0, %v117
  %119 = vdwg.mxu0
  %v120 = vsel %vm16, 1, 0
  %vm121 = vcmp.eq.s32.totalorder %v120, 1
  %v122 = vsel %vm121, %v116, %v118
  %v123 = vadd.f32 %v35, %v122
  %v124 = vxor.u32 %v123, 2147483648
  %v125 = vmul.f32 %v124, 1.442695
  %v126 = vpow.pop %v125
  %v127 = vadd.f32 %v126, 1.0
  %v128 = vrcp.pop %v127
  %v129 = vmul.f32 1.0, %v128
  %v130 = vtanh.pop %v123
  %v131 = vld [vmem:[#allocation3] sm:$0xf]
  %133 = vrot.lane.b32.xlu0 %v131, 32
  %v134 = vpop.permute.xlu0 %133
  %v136 = vmul.f32 %v129, %v134
  %138 = vrot.lane.b32.xlu0 %v130, 64
  %v139 = vpop.permute.xlu0 %138
  %v141 = vmul.f32 %v129, %v139
  %143 = vrot.lane.b32.xlu0 %v141, 32
  %v144 = vpop.permute.xlu0 %143
  %v146 = vadd.f32 %v136, %v144
  %v147 = vtanh.pop %v146
  %149 = vrot.lane.b32.xlu0 %v147, 64
  %v150 = vpop.permute.xlu0 %149
  %v152 = vmul.f32 %v129, %v150
  %154 = vrot.lane.b32.xlu0 %v146, 96
  %v155 = vpop.permute.xlu0 %154
  %157 = vst.msk [vmem:[#allocation3] sm:$0xf] %vm17, %v155
  %159 = vrot.lane.b32.xlu0 %v152, 32
  %v160 = vpop.permute.xlu0 %159
  %162 = vst.msk [vmem:[#allocation2] sm:$0xf] %vm17, %v160
  %vm163 = vcmask 254976
  %164 = vst.msk [vmem:[%s2] sm:$0x3] %vm163, %v160
  %s165 = scalar_lea.vmem %s3, 18
  %vm166 = vcmask 257026
  %167 = vst.msk [vmem:[%s165 - $0x2] sm:$0xc] %vm166, %v160
  %s168 = scalar_lea.vmem %s0, 4
  %v169 = vld [vmem:[%s168] sm:$0xf]
  %s170 = scalar_lea.vmem %s0, 32
  %v171 = vld [vmem:[%s170] sm:$0xf]
  %v173 = vcombine.low %v171, %v171
  %v175 = vunpack.c.l.s4 1983009808
  %v176 = vunpack.c.0.s8 %v175
  %v177 = vlaneseq
  %v178 = vshrl.u32 %v177, 7
  %v179 = vsub.s32 %v176, %v178
  %v180 = vrot.slane %v173, %v179
  %v181 = vcombine.high %v180, %v180
  %v183 = vsel %vm34, %v169, %v181
  %v184 = vld [vmem:[#allocation2] sm:$0xf]
  %v185 = vld [vmem:[%s1] sm:$0xff]
  %v186 = vld [vmem:[%s1 + $0x8] sm:$0xff]
  %v187 = vld [vmem:[%s1 + $0x10] sm:$0xff]
  %v188 = vld [vmem:[%s1 + $0x18] sm:$0xff]
  %v189 = vld [vmem:[%s1 + $0x20] sm:$0xff]
  %v190 = vld [vmem:[%s1 + $0x28] sm:$0xff]
  %v191 = vld [vmem:[%s1 + $0x30] sm:$0xff]
  %v192 = vld [vmem:[%s1 + $0x38] sm:$0xff]
  %v194 = vsel %vm45, %v184, 0
  %196 = vmatprep.subr.mxu0 %v186
  %197 = vmatpush1.msra.mxu0 %v185
  %198 = vmatprep.subr.mxu0 %v188
  %199 = vmatpush1.msra.mxu0 %v187
  %200 = vmatprep.subr.mxu0 %v190
  %201 = vmatpush1.msra.mxu0 %v189
  %202 = vmatprep.subr.mxu0 %v192
  %203 = vmatpush1.msra.mxu0 %v191
  %204 = vmatprep.subr.mxu0 0.0
  %205 = vmatpush1.msra.mxu0 0.0
  %206 = vmatprep.subr.mxu0 0.0
  %207 = vmatpush1.msra.mxu0 0.0
  %208 = vmatprep.subr.mxu0 0.0
  %209 = vmatpush1.msra.mxu0 0.0
  %210 = vmatprep.subr.mxu0 0.0
  %211 = vmatpush1.msra.mxu0 0.0
  %212 = vmatprep.subr.mxu0 0.0
  %213 = vmatpush1.msra.mxu0 0.0
  %214 = vmatprep.subr.mxu0 0.0
  %215 = vmatpush1.msra.mxu0 0.0
  %216 = vmatprep.subr.mxu0 0.0
  %217 = vmatpush1.msra.mxu0 0.0
  %218 = vmatprep.subr.mxu0 0.0
  %219 = vmatpush1.msra.mxu0 0.0
  %220 = vmatprep.subr.mxu0 0.0
  %221 = vmatpush1.msra.mxu0 0.0
  %222 = vmatprep.subr.mxu0 0.0
  %223 = vmatpush1.msra.mxu0 0.0
  %224 = vmatprep.subr.mxu0 0.0
  %225 = vmatpush1.msra.mxu0 0.0
  %226 = vmatprep.subr.mxu0 0.0
  %227 = vmatpush1.msra.mxu0 0.0
  %228 = vmatprep.subr.mxu0 0.0
  %229 = vmatpush1.msra.mxu0 0.0
  %230 = vmatprep.subr.mxu0 0.0
  %231 = vmatpush1.msra.mxu0 0.0
  %232 = vmatprep.subr.mxu0 0.0
  %233 = vmatpush1.msra.mxu0 0.0
  %234 = vmatprep.subr.mxu0 0.0
  %235 = vmatpush1.msra.mxu0 0.0
  %236 = vmatprep.subr.mxu0 0.0
  %237 = vmatpush1.msra.mxu0 0.0
  %238 = vmatprep.subr.mxu0 0.0
  %239 = vmatpush1.msra.mxu0 0.0
  %240 = vmatprep.subr.mxu0 0.0
  %241 = vmatpush1.msra.mxu0 0.0
  %242 = vmatprep.subr.mxu0 0.0
  %243 = vmatpush1.msra.mxu0 0.0
  %244 = vmatprep.subr.mxu0 0.0
  %245 = vmatpush1.msra.mxu0 0.0
  %246 = vmatprep.subr.mxu0 0.0
  %247 = vmatpush1.msra.mxu0 0.0
  %248 = vmatprep.subr.mxu0 0.0
  %249 = vmatpush1.msra.mxu0 0.0
  %250 = vmatprep.subr.mxu0 0.0
  %251 = vmatpush1.msra.mxu0 0.0
  %252 = vmatprep.subr.mxu0 0.0
  %253 = vmatpush1.msra.mxu0 0.0
  %254 = vmatprep.subr.mxu0 0.0
  %255 = vmatpush1.msra.mxu0 0.0
  %256 = vmatprep.subr.mxu0 0.0
  %257 = vmatpush1.msra.mxu0 0.0
  %258 = vmatprep.subr.mxu0 0.0
  %259 = vmatpush1.msra.mxu0 0.0
  %260 = vmatprep.mubr.f32.mxu0 0.0
  %261 = vmatmul.mubr.f32.gmra.mrb[0].mxu0 %v194
  %v262 = vpop.f32.mrb[0].mxu0
  %v263 = vadd.f32 0.0, %v262
  %v264 = vpop.f32.mrb[0].mxu0
  %v265 = vadd.f32 0.0, %v264
  %266 = vdwg.mxu0
  %v267 = vsel %vm121, %v263, %v265
  %v268 = vadd.f32 %v183, %v267
  %v269 = vxor.u32 %v268, 2147483648
  %v270 = vmul.f32 %v269, 1.442695
  %v271 = vpow.pop %v270
  %v272 = vadd.f32 %v271, 1.0
  %v273 = vrcp.pop %v272
  %v274 = vmul.f32 1.0, %v273
  %v275 = vtanh.pop %v268
  %v276 = vld [vmem:[#allocation3] sm:$0xf]
  %278 = vrot.lane.b32.xlu0 %v276, 32
  %v279 = vpop.permute.xlu0 %278
  %v281 = vmul.f32 %v274, %v279
  %283 = vrot.lane.b32.xlu0 %v275, 64
  %v284 = vpop.permute.xlu0 %283
  %v286 = vmul.f32 %v274, %v284
  %288 = vrot.lane.b32.xlu0 %v286, 32
  %v289 = vpop.permute.xlu0 %288
  %v291 = vadd.f32 %v281, %v289
  %v292 = vtanh.pop %v291
  %294 = vrot.lane.b32.xlu0 %v292, 64
  %v295 = vpop.permute.xlu0 %294
  %v297 = vmul.f32 %v274, %v295
  %299 = vrot.lane.b32.xlu0 %v291, 96
  %v300 = vpop.permute.xlu0 %299
  %302 = vst.msk [vmem:[#allocation3] sm:$0xf] %vm17, %v300
  %304 = vrot.lane.b32.xlu0 %v297, 32
  %v305 = vpop.permute.xlu0 %304
  %307 = vst.msk [vmem:[#allocation2] sm:$0xf] %vm17, %v305
  %s308 = scalar_lea.vmem %s2, 2
  %309 = vst.msk [vmem:[%s308] sm:$0x3] %vm163, %v305
  %s310 = scalar_lea.vmem %s3, 16
  %311 = vst.msk [vmem:[%s310 - $0x2] sm:$0xc] %vm166, %v305
  %s312 = scalar_lea.vmem %s0, 8
  %v313 = vld [vmem:[%s312] sm:$0xf]
  %s314 = scalar_lea.vmem %s0, 28
  %v315 = vld [vmem:[%s314] sm:$0xf]
  %v317 = vcombine.low %v315, %v315
  %v319 = vunpack.c.l.s4 1983009808
  %v320 = vunpack.c.0.s8 %v319
  %v321 = vlaneseq
  %v322 = vshrl.u32 %v321, 7
  %v323 = vsub.s32 %v320, %v322
  %v324 = vrot.slane %v317, %v323
  %v325 = vcombine.high %v324, %v324
  %v327 = vsel %vm34, %v313, %v325
  %v328 = vld [vmem:[#allocation2] sm:$0xf]
  %v329 = vld [vmem:[%s1] sm:$0xff]
  %v330 = vld [vmem:[%s1 + $0x8] sm:$0xff]
  %v331 = vld [vmem:[%s1 + $0x10] sm:$0xff]
  %v332 = vld [vmem:[%s1 + $0x18] sm:$0xff]
  %v333 = vld [vmem:[%s1 + $0x20] sm:$0xff]
  %v334 = vld [vmem:[%s1 + $0x28] sm:$0xff]
  %v335 = vld [vmem:[%s1 + $0x30] sm:$0xff]
  %v336 = vld [vmem:[%s1 + $0x38] sm:$0xff]
  %v338 = vsel %vm45, %v328, 0
  %340 = vmatprep.subr.mxu0 %v330
  %341 = vmatpush1.msra.mxu0 %v329
  %342 = vmatprep.subr.mxu0 %v332
  %343 = vmatpush1.msra.mxu0 %v331
  %344 = vmatprep.subr.mxu0 %v334
  %345 = vmatpush1.msra.mxu0 %v333
  %346 = vmatprep.subr.mxu0 %v336
  %347 = vmatpush1.msra.mxu0 %v335
  %348 = vmatprep.subr.mxu0 0.0
  %349 = vmatpush1.msra.mxu0 0.0
  %350 = vmatprep.subr.mxu0 0.0
  %351 = vmatpush1.msra.mxu0 0.0
  %352 = vmatprep.subr.mxu0 0.0
  %353 = vmatpush1.msra.mxu0 0.0
  %354 = vmatprep.subr.mxu0 0.0
  %355 = vmatpush1.msra.mxu0 0.0
  %356 = vmatprep.subr.mxu0 0.0
  %357 = vmatpush1.msra.mxu0 0.0
  %358 = vmatprep.subr.mxu0 0.0
  %359 = vmatpush1.msra.mxu0 0.0
  %360 = vmatprep.subr.mxu0 0.0
  %361 = vmatpush1.msra.mxu0 0.0
  %362 = vmatprep.subr.mxu0 0.0
  %363 = vmatpush1.msra.mxu0 0.0
  %364 = vmatprep.subr.mxu0 0.0
  %365 = vmatpush1.msra.mxu0 0.0
  %366 = vmatprep.subr.mxu0 0.0
  %367 = vmatpush1.msra.mxu0 0.0
  %368 = vmatprep.subr.mxu0 0.0
  %369 = vmatpush1.msra.mxu0 0.0
  %370 = vmatprep.subr.mxu0 0.0
  %371 = vmatpush1.msra.mxu0 0.0
  %372 = vmatprep.subr.mxu0 0.0
  %373 = vmatpush1.msra.mxu0 0.0
  %374 = vmatprep.subr.mxu0 0.0
  %375 = vmatpush1.msra.mxu0 0.0
  %376 = vmatprep.subr.mxu0 0.0
  %377 = vmatpush1.msra.mxu0 0.0
  %378 = vmatprep.subr.mxu0 0.0
  %379 = vmatpush1.msra.mxu0 0.0
  %380 = vmatprep.subr.mxu0 0.0
  %381 = vmatpush1.msra.mxu0 0.0
  %382 = vmatprep.subr.mxu0 0.0
  %383 = vmatpush1.msra.mxu0 0.0
  %384 = vmatprep.subr.mxu0 0.0
  %385 = vmatpush1.msra.mxu0 0.0
  %386 = vmatprep.subr.mxu0 0.0
  %387 = vmatpush1.msra.mxu0 0.0
  %388 = vmatprep.subr.mxu0 0.0
  %389 = vmatpush1.msra.mxu0 0.0
  %390 = vmatprep.subr.mxu0 0.0
  %391 = vmatpush1.msra.mxu0 0.0
  %392 = vmatprep.subr.mxu0 0.0
  %393 = vmatpush1.msra.mxu0 0.0
  %394 = vmatprep.subr.mxu0 0.0
  %395 = vmatpush1.msra.mxu0 0.0
  %396 = vmatprep.subr.mxu0 0.0
  %397 = vmatpush1.msra.mxu0 0.0
  %398 = vmatprep.subr.mxu0 0.0
  %399 = vmatpush1.msra.mxu0 0.0
  %400 = vmatprep.subr.mxu0 0.0
  %401 = vmatpush1.msra.mxu0 0.0
  %402 = vmatprep.subr.mxu0 0.0
  %403 = vmatpush1.msra.mxu0 0.0
  %404 = vmatprep.mubr.f32.mxu0 0.0
  %405 = vmatmul.mubr.f32.gmra.mrb[0].mxu0 %v338
  %v406 = vpop.f32.mrb[0].mxu0
  %v407 = vadd.f32 0.0, %v406
  %v408 = vpop.f32.mrb[0].mxu0
  %v409 = vadd.f32 0.0, %v408
  %410 = vdwg.mxu0
  %v411 = vsel %vm121, %v407, %v409
  %v412 = vadd.f32 %v327, %v411
  %v413 = vxor.u32 %v412, 2147483648
  %v414 = vmul.f32 %v413, 1.442695
  %v415 = vpow.pop %v414
  %v416 = vadd.f32 %v415, 1.0
  %v417 = vrcp.pop %v416
  %v418 = vmul.f32 1.0, %v417
  %v419 = vtanh.pop %v412
  %v420 = vld [vmem:[#allocation3] sm:$0xf]
  %422 = vrot.lane.b32.xlu0 %v420, 32
  %v423 = vpop.permute.xlu0 %422
  %v425 = vmul.f32 %v418, %v423
  %427 = vrot.lane.b32.xlu0 %v419, 64
  %v428 = vpop.permute.xlu0 %427
  %v430 = vmul.f32 %v418, %v428
  %432 = vrot.lane.b32.xlu0 %v430, 32
  %v433 = vpop.permute.xlu0 %432
  %v435 = vadd.f32 %v425, %v433
  %v436 = vtanh.pop %v435
  %438 = vrot.lane.b32.xlu0 %v436, 64
  %v439 = vpop.permute.xlu0 %438
  %v441 = vmul.f32 %v418, %v439
  %443 = vrot.lane.b32.xlu0 %v435, 96
  %v444 = vpop.permute.xlu0 %443
  %446 = vst.msk [vmem:[#allocation3] sm:$0xf] %vm17, %v444
  %448 = vrot.lane.b32.xlu0 %v441, 32
  %v449 = vpop.permute.xlu0 %448
  %451 = vst.msk [vmem:[#allocation2] sm:$0xf] %vm17, %v449
  %s452 = scalar_lea.vmem %s2, 4
  %453 = vst.msk [vmem:[%s452] sm:$0x3] %vm163, %v449
  %s454 = scalar_lea.vmem %s3, 14
  %455 = vst.msk [vmem:[%s454 - $0x2] sm:$0xc] %vm166, %v449
  %s456 = scalar_lea.vmem %s0, 12
  %v457 = vld [vmem:[%s456] sm:$0xf]
  %s458 = scalar_lea.vmem %s0, 24
  %v459 = vld [vmem:[%s458] sm:$0xf]
  %v461 = vcombine.low %v459, %v459
  %v463 = vunpack.c.l.s4 1983009808
  %v464 = vunpack.c.0.s8 %v463
  %v465 = vlaneseq
  %v466 = vshrl.u32 %v465, 7
  %v467 = vsub.s32 %v464, %v466
  %v468 = vrot.slane %v461, %v467
  %v469 = vcombine.high %v468, %v468
  %v471 = vsel %vm34, %v457, %v469
  %v472 = vld [vmem:[#allocation2] sm:$0xf]
  %v473 = vld [vmem:[%s1] sm:$0xff]
  %v474 = vld [vmem:[%s1 + $0x8] sm:$0xff]
  %v475 = vld [vmem:[%s1 + $0x10] sm:$0xff]
  %v476 = vld [vmem:[%s1 + $0x18] sm:$0xff]
  %v477 = vld [vmem:[%s1 + $0x20] sm:$0xff]
  %v478 = vld [vmem:[%s1 + $0x28] sm:$0xff]
  %v479 = vld [vmem:[%s1 + $0x30] sm:$0xff]
  %v480 = vld [vmem:[%s1 + $0x38] sm:$0xff]
  %v482 = vsel %vm45, %v472, 0
  %484 = vmatprep.subr.mxu0 %v474
  %485 = vmatpush1.msra.mxu0 %v473
  %486 = vmatprep.subr.mxu0 %v476
  %487 = vmatpush1.msra.mxu0 %v475
  %488 = vmatprep.subr.mxu0 %v478
  %489 = vmatpush1.msra.mxu0 %v477
  %490 = vmatprep.subr.mxu0 %v480
  %491 = vmatpush1.msra.mxu0 %v479
  %492 = vmatprep.subr.mxu0 0.0
  %493 = vmatpush1.msra.mxu0 0.0
  %494 = vmatprep.subr.mxu0 0.0
  %495 = vmatpush1.msra.mxu0 0.0
  %496 = vmatprep.subr.mxu0 0.0
  %497 = vmatpush1.msra.mxu0 0.0
  %498 = vmatprep.subr.mxu0 0.0
  %499 = vmatpush1.msra.mxu0 0.0
  %500 = vmatprep.subr.mxu0 0.0
  %501 = vmatpush1.msra.mxu0 0.0
  %502 = vmatprep.subr.mxu0 0.0
  %503 = vmatpush1.msra.mxu0 0.0
  %504 = vmatprep.subr.mxu0 0.0
  %505 = vmatpush1.msra.mxu0 0.0
  %506 = vmatprep.subr.mxu0 0.0
  %507 = vmatpush1.msra.mxu0 0.0
  %508 = vmatprep.subr.mxu0 0.0
  %509 = vmatpush1.msra.mxu0 0.0
  %510 = vmatprep.subr.mxu0 0.0
  %511 = vmatpush1.msra.mxu0 0.0
  %512 = vmatprep.subr.mxu0 0.0
  %513 = vmatpush1.msra.mxu0 0.0
  %514 = vmatprep.subr.mxu0 0.0
  %515 = vmatpush1.msra.mxu0 0.0
  %516 = vmatprep.subr.mxu0 0.0
  %517 = vmatpush1.msra.mxu0 0.0
  %518 = vmatprep.subr.mxu0 0.0
  %519 = vmatpush1.msra.mxu0 0.0
  %520 = vmatprep.subr.mxu0 0.0
  %521 = vmatpush1.msra.mxu0 0.0
  %522 = vmatprep.subr.mxu0 0.0
  %523 = vmatpush1.msra.mxu0 0.0
  %524 = vmatprep.subr.mxu0 0.0
  %525 = vmatpush1.msra.mxu0 0.0
  %526 = vmatprep.subr.mxu0 0.0
  %527 = vmatpush1.msra.mxu0 0.0
  %528 = vmatprep.subr.mxu0 0.0
  %529 = vmatpush1.msra.mxu0 0.0
  %530 = vmatprep.subr.mxu0 0.0
  %531 = vmatpush1.msra.mxu0 0.0
  %532 = vmatprep.subr.mxu0 0.0
  %533 = vmatpush1.msra.mxu0 0.0
  %534 = vmatprep.subr.mxu0 0.0
  %535 = vmatpush1.msra.mxu0 0.0
  %536 = vmatprep.subr.mxu0 0.0
  %537 = vmatpush1.msra.mxu0 0.0
  %538 = vmatprep.subr.mxu0 0.0
  %539 = vmatpush1.msra.mxu0 0.0
  %540 = vmatprep.subr.mxu0 0.0
  %541 = vmatpush1.msra.mxu0 0.0
  %542 = vmatprep.subr.mxu0 0.0
  %543 = vmatpush1.msra.mxu0 0.0
  %544 = vmatprep.subr.mxu0 0.0
  %545 = vmatpush1.msra.mxu0 0.0
  %546 = vmatprep.subr.mxu0 0.0
  %547 = vmatpush1.msra.mxu0 0.0
  %548 = vmatprep.mubr.f32.mxu0 0.0
  %549 = vmatmul.mubr.f32.gmra.mrb[0].mxu0 %v482
  %v550 = vpop.f32.mrb[0].mxu0
  %v551 = vadd.f32 0.0, %v550
  %v552 = vpop.f32.mrb[0].mxu0
  %v553 = vadd.f32 0.0, %v552
  %554 = vdwg.mxu0
  %v555 = vsel %vm121, %v551, %v553
  %v556 = vadd.f32 %v471, %v555
  %v557 = vxor.u32 %v556, 2147483648
  %v558 = vmul.f32 %v557, 1.442695
  %v559 = vpow.pop %v558
  %v560 = vadd.f32 %v559, 1.0
  %v561 = vrcp.pop %v560
  %v562 = vmul.f32 1.0, %v561
  %v563 = vtanh.pop %v556
  %v564 = vld [vmem:[#allocation3] sm:$0xf]
  %566 = vrot.lane.b32.xlu0 %v564, 32
  %v567 = vpop.permute.xlu0 %566
  %v569 = vmul.f32 %v562, %v567
  %571 = vrot.lane.b32.xlu0 %v563, 64
  %v572 = vpop.permute.xlu0 %571
  %v574 = vmul.f32 %v562, %v572
  %576 = vrot.lane.b32.xlu0 %v574, 32
  %v577 = vpop.permute.xlu0 %576
  %v579 = vadd.f32 %v569, %v577
  %v580 = vtanh.pop %v579
  %582 = vrot.lane.b32.xlu0 %v580, 64
  %v583 = vpop.permute.xlu0 %582
  %v585 = vmul.f32 %v562, %v583
  %587 = vrot.lane.b32.xlu0 %v579, 96
  %v588 = vpop.permute.xlu0 %587
  %590 = vst.msk [vmem:[#allocation3] sm:$0xf] %vm17, %v588
  %592 = vrot.lane.b32.xlu0 %v585, 32
  %v593 = vpop.permute.xlu0 %592
  %595 = vst.msk [vmem:[#allocation2] sm:$0xf] %vm17, %v593
  %s596 = scalar_lea.vmem %s2, 6
  %597 = vst.msk [vmem:[%s596] sm:$0x3] %vm163, %v593
  %s598 = scalar_lea.vmem %s3, 12
  %599 = vst.msk [vmem:[%s598 - $0x2] sm:$0xc] %vm166, %v593
  %s600 = scalar_lea.vmem %s0, 16
  %v601 = vld [vmem:[%s600] sm:$0xf]
  %s602 = scalar_lea.vmem %s0, 20
  %v603 = vld [vmem:[%s602] sm:$0xf]
  %v605 = vcombine.low %v603, %v603
  %v607 = vunpack.c.l.s4 1983009808
  %v608 = vunpack.c.0.s8 %v607
  %v609 = vlaneseq
  %v610 = vshrl.u32 %v609, 7
  %v611 = vsub.s32 %v608, %v610
  %v612 = vrot.slane %v605, %v611
  %v613 = vcombine.high %v612, %v612
  %v615 = vsel %vm34, %v601, %v613
  %v616 = vld [vmem:[#allocation2] sm:$0xf]
  %v617 = vld [vmem:[%s1] sm:$0xff]
  %v618 = vld [vmem:[%s1 + $0x8] sm:$0xff]
  %v619 = vld [vmem:[%s1 + $0x10] sm:$0xff]
  %v620 = vld [vmem:[%s1 + $0x18] sm:$0xff]
  %v621 = vld [vmem:[%s1 + $0x20] sm:$0xff]
  %v622 = vld [vmem:[%s1 + $0x28] sm:$0xff]
  %v623 = vld [vmem:[%s1 + $0x30] sm:$0xff]
  %v624 = vld [vmem:[%s1 + $0x38] sm:$0xff]
  %v626 = vsel %vm45, %v616, 0
  %628 = vmatprep.subr.mxu0 %v618
  %629 = vmatpush1.msra.mxu0 %v617
  %630 = vmatprep.subr.mxu0 %v620
  %631 = vmatpush1.msra.mxu0 %v619
  %632 = vmatprep.subr.mxu0 %v622
  %633 = vmatpush1.msra.mxu0 %v621
  %634 = vmatprep.subr.mxu0 %v624
  %635 = vmatpush1.msra.mxu0 %v623
  %636 = vmatprep.subr.mxu0 0.0
  %637 = vmatpush1.msra.mxu0 0.0
  %638 = vmatprep.subr.mxu0 0.0
  %639 = vmatpush1.msra.mxu0 0.0
  %640 = vmatprep.subr.mxu0 0.0
  %641 = vmatpush1.msra.mxu0 0.0
  %642 = vmatprep.subr.mxu0 0.0
  %643 = vmatpush1.msra.mxu0 0.0
  %644 = vmatprep.subr.mxu0 0.0
  %645 = vmatpush1.msra.mxu0 0.0
  %646 = vmatprep.subr.mxu0 0.0
  %647 = vmatpush1.msra.mxu0 0.0
  %648 = vmatprep.subr.mxu0 0.0
  %649 = vmatpush1.msra.mxu0 0.0
  %650 = vmatprep.subr.mxu0 0.0
  %651 = vmatpush1.msra.mxu0 0.0
  %652 = vmatprep.subr.mxu0 0.0
  %653 = vmatpush1.msra.mxu0 0.0
  %654 = vmatprep.subr.mxu0 0.0
  %655 = vmatpush1.msra.mxu0 0.0
  %656 = vmatprep.subr.mxu0 0.0
  %657 = vmatpush1.msra.mxu0 0.0
  %658 = vmatprep.subr.mxu0 0.0
  %659 = vmatpush1.msra.mxu0 0.0
  %660 = vmatprep.subr.mxu0 0.0
  %661 = vmatpush1.msra.mxu0 0.0
  %662 = vmatprep.subr.mxu0 0.0
  %663 = vmatpush1.msra.mxu0 0.0
  %664 = vmatprep.subr.mxu0 0.0
  %665 = vmatpush1.msra.mxu0 0.0
  %666 = vmatprep.subr.mxu0 0.0
  %667 = vmatpush1.msra.mxu0 0.0
  %668 = vmatprep.subr.mxu0 0.0
  %669 = vmatpush1.msra.mxu0 0.0
  %670 = vmatprep.subr.mxu0 0.0
  %671 = vmatpush1.msra.mxu0 0.0
  %672 = vmatprep.subr.mxu0 0.0
  %673 = vmatpush1.msra.mxu0 0.0
  %674 = vmatprep.subr.mxu0 0.0
  %675 = vmatpush1.msra.mxu0 0.0
  %676 = vmatprep.subr.mxu0 0.0
  %677 = vmatpush1.msra.mxu0 0.0
  %678 = vmatprep.subr.mxu0 0.0
  %679 = vmatpush1.msra.mxu0 0.0
  %680 = vmatprep.subr.mxu0 0.0
  %681 = vmatpush1.msra.mxu0 0.0
  %682 = vmatprep.subr.mxu0 0.0
  %683 = vmatpush1.msra.mxu0 0.0
  %684 = vmatprep.subr.mxu0 0.0
  %685 = vmatpush1.msra.mxu0 0.0
  %686 = vmatprep.subr.mxu0 0.0
  %687 = vmatpush1.msra.mxu0 0.0
  %688 = vmatprep.subr.mxu0 0.0
  %689 = vmatpush1.msra.mxu0 0.0
  %690 = vmatprep.subr.mxu0 0.0
  %691 = vmatpush1.msra.mxu0 0.0
  %692 = vmatprep.mubr.f32.mxu0 0.0
  %693 = vmatmul.mubr.f32.gmra.mrb[0].mxu0 %v626
  %v694 = vpop.f32.mrb[0].mxu0
  %v695 = vadd.f32 0.0, %v694
  %v696 = vpop.f32.mrb[0].mxu0
  %v697 = vadd.f32 0.0, %v696
  %698 = vdwg.mxu0
  %v699 = vsel %vm121, %v695, %v697
  %v700 = vadd.f32 %v615, %v699
  %v701 = vxor.u32 %v700, 2147483648
  %v702 = vmul.f32 %v701, 1.442695
  %v703 = vpow.pop %v702
  %v704 = vadd.f32 %v703, 1.0
  %v705 = vrcp.pop %v704
  %v706 = vmul.f32 1.0, %v705
  %v707 = vtanh.pop %v700
  %v708 = vld [vmem:[#allocation3] sm:$0xf]
  %710 = vrot.lane.b32.xlu0 %v708, 32
  %v711 = vpop.permute.xlu0 %710
  %v713 = vmul.f32 %v706, %v711
  %715 = vrot.lane.b32.xlu0 %v707, 64
  %v716 = vpop.permute.xlu0 %715
  %v718 = vmul.f32 %v706, %v716
  %720 = vrot.lane.b32.xlu0 %v718, 32
  %v721 = vpop.permute.xlu0 %720
  %v723 = vadd.f32 %v713, %v721
  %v724 = vtanh.pop %v723
  %726 = vrot.lane.b32.xlu0 %v724, 64
  %v727 = vpop.permute.xlu0 %726
  %v729 = vmul.f32 %v706, %v727
  %731 = vrot.lane.b32.xlu0 %v723, 96
  %v732 = vpop.permute.xlu0 %731
  %734 = vst.msk [vmem:[#allocation3] sm:$0xf] %vm17, %v732
  %736 = vrot.lane.b32.xlu0 %v729, 32
  %v737 = vpop.permute.xlu0 %736
  %739 = vst.msk [vmem:[#allocation2] sm:$0xf] %vm17, %v737
  %s740 = scalar_lea.vmem %s2, 8
  %741 = vst.msk [vmem:[%s740] sm:$0x3] %vm163, %v737
  %s742 = scalar_lea.vmem %s3, 10
  %743 = vst.msk [vmem:[%s742 - $0x2] sm:$0xc] %vm166, %v737
  %v744 = vld [vmem:[%s602] sm:$0xf]
  %v745 = vld [vmem:[%s600] sm:$0xf]
  %v747 = vcombine.low %v745, %v745
  %v749 = vunpack.c.l.s4 1983009808
  %v750 = vunpack.c.0.s8 %v749
  %v751 = vlaneseq
  %v752 = vshrl.u32 %v751, 7
  %v753 = vsub.s32 %v750, %v752
  %v754 = vrot.slane %v747, %v753
  %v755 = vcombine.high %v754, %v754
  %v757 = vsel %vm34, %v744, %v755
  %v758 = vld [vmem:[#allocation2] sm:$0xf]
  %v759 = vld [vmem:[%s1] sm:$0xff]
  %v760 = vld [vmem:[%s1 + $0x8] sm:$0xff]
  %v761 = vld [vmem:[%s1 + $0x10] sm:$0xff]
  %v762 = vld [vmem:[%s1 + $0x18] sm:$0xff]
  %v763 = vld [vmem:[%s1 + $0x20] sm:$0xff]
  %v764 = vld [vmem:[%s1 + $0x28] sm:$0xff]
  %v765 = vld [vmem:[%s1 + $0x30] sm:$0xff]
  %v766 = vld [vmem:[%s1 + $0x38] sm:$0xff]
  %v768 = vsel %vm45, %v758, 0
  %770 = vmatprep.subr.mxu0 %v760
  %771 = vmatpush1.msra.mxu0 %v759
  %772 = vmatprep.subr.mxu0 %v762
  %773 = vmatpush1.msra.mxu0 %v761
  %774 = vmatprep.subr.mxu0 %v764
  %775 = vmatpush1.msra.mxu0 %v763
  %776 = vmatprep.subr.mxu0 %v766
  %777 = vmatpush1.msra.mxu0 %v765
  %778 = vmatprep.subr.mxu0 0.0
  %779 = vmatpush1.msra.mxu0 0.0
  %780 = vmatprep.subr.mxu0 0.0
  %781 = vmatpush1.msra.mxu0 0.0
  %782 = vmatprep.subr.mxu0 0.0
  %783 = vmatpush1.msra.mxu0 0.0
  %784 = vmatprep.subr.mxu0 0.0
  %785 = vmatpush1.msra.mxu0 0.0
  %786 = vmatprep.subr.mxu0 0.0
  %787 = vmatpush1.msra.mxu0 0.0
  %788 = vmatprep.subr.mxu0 0.0
  %789 = vmatpush1.msra.mxu0 0.0
  %790 = vmatprep.subr.mxu0 0.0
  %791 = vmatpush1.msra.mxu0 0.0
  %792 = vmatprep.subr.mxu0 0.0
  %793 = vmatpush1.msra.mxu0 0.0
  %794 = vmatprep.subr.mxu0 0.0
  %795 = vmatpush1.msra.mxu0 0.0
  %796 = vmatprep.subr.mxu0 0.0
  %797 = vmatpush1.msra.mxu0 0.0
  %798 = vmatprep.subr.mxu0 0.0
  %799 = vmatpush1.msra.mxu0 0.0
  %800 = vmatprep.subr.mxu0 0.0
  %801 = vmatpush1.msra.mxu0 0.0
  %802 = vmatprep.subr.mxu0 0.0
  %803 = vmatpush1.msra.mxu0 0.0
  %804 = vmatprep.subr.mxu0 0.0
  %805 = vmatpush1.msra.mxu0 0.0
  %806 = vmatprep.subr.mxu0 0.0
  %807 = vmatpush1.msra.mxu0 0.0
  %808 = vmatprep.subr.mxu0 0.0
  %809 = vmatpush1.msra.mxu0 0.0
  %810 = vmatprep.subr.mxu0 0.0
  %811 = vmatpush1.msra.mxu0 0.0
  %812 = vmatprep.subr.mxu0 0.0
  %813 = vmatpush1.msra.mxu0 0.0
  %814 = vmatprep.subr.mxu0 0.0
  %815 = vmatpush1.msra.mxu0 0.0
  %816 = vmatprep.subr.mxu0 0.0
  %817 = vmatpush1.msra.mxu0 0.0
  %818 = vmatprep.subr.mxu0 0.0
  %819 = vmatpush1.msra.mxu0 0.0
  %820 = vmatprep.subr.mxu0 0.0
  %821 = vmatpush1.msra.mxu0 0.0
  %822 = vmatprep.subr.mxu0 0.0
  %823 = vmatpush1.msra.mxu0 0.0
  %824 = vmatprep.subr.mxu0 0.0
  %825 = vmatpush1.msra.mxu0 0.0
  %826 = vmatprep.subr.mxu0 0.0
  %827 = vmatpush1.msra.mxu0 0.0
  %828 = vmatprep.subr.mxu0 0.0
  %829 = vmatpush1.msra.mxu0 0.0
  %830 = vmatprep.subr.mxu0 0.0
  %831 = vmatpush1.msra.mxu0 0.0
  %832 = vmatprep.subr.mxu0 0.0
  %833 = vmatpush1.msra.mxu0 0.0
  %834 = vmatprep.mubr.f32.mxu0 0.0
  %835 = vmatmul.mubr.f32.gmra.mrb[0].mxu0 %v768
  %v836 = vpop.f32.mrb[0].mxu0
  %v837 = vadd.f32 0.0, %v836
  %v838 = vpop.f32.mrb[0].mxu0
  %v839 = vadd.f32 0.0, %v838
  %840 = vdwg.mxu0
  %v841 = vsel %vm121, %v837, %v839
  %v842 = vadd.f32 %v757, %v841
  %v843 = vxor.u32 %v842, 2147483648
  %v844 = vmul.f32 %v843, 1.442695
  %v845 = vpow.pop %v844
  %v846 = vadd.f32 %v845, 1.0
  %v847 = vrcp.pop %v846
  %v848 = vmul.f32 1.0, %v847
  %v849 = vtanh.pop %v842
  %v850 = vld [vmem:[#allocation3] sm:$0xf]
  %852 = vrot.lane.b32.xlu0 %v850, 32
  %v853 = vpop.permute.xlu0 %852
  %v855 = vmul.f32 %v848, %v853
  %857 = vrot.lane.b32.xlu0 %v849, 64
  %v858 = vpop.permute.xlu0 %857
  %v860 = vmul.f32 %v848, %v858
  %862 = vrot.lane.b32.xlu0 %v860, 32
  %v863 = vpop.permute.xlu0 %862
  %v865 = vadd.f32 %v855, %v863
  %v866 = vtanh.pop %v865
  %868 = vrot.lane.b32.xlu0 %v866, 64
  %v869 = vpop.permute.xlu0 %868
  %v871 = vmul.f32 %v848, %v869
  %873 = vrot.lane.b32.xlu0 %v865, 96
  %v874 = vpop.permute.xlu0 %873
  %876 = vst.msk [vmem:[#allocation3] sm:$0xf] %vm17, %v874
  %878 = vrot.lane.b32.xlu0 %v871, 32
  %v879 = vpop.permute.xlu0 %878
  %881 = vst.msk [vmem:[#allocation2] sm:$0xf] %vm17, %v879
  %s882 = scalar_lea.vmem %s2, 10
  %883 = vst.msk [vmem:[%s882] sm:$0x3] %vm163, %v879
  %s884 = scalar_lea.vmem %s3, 8
  %885 = vst.msk [vmem:[%s884 - $0x2] sm:$0xc] %vm166, %v879
  %v886 = vld [vmem:[%s458] sm:$0xf]
  %v887 = vld [vmem:[%s456] sm:$0xf]
  %v889 = vcombine.low %v887, %v887
  %v891 = vunpack.c.l.s4 1983009808
  %v892 = vunpack.c.0.s8 %v891
  %v893 = vlaneseq
  %v894 = vshrl.u32 %v893, 7
  %v895 = vsub.s32 %v892, %v894
  %v896 = vrot.slane %v889, %v895
  %v897 = vcombine.high %v896, %v896
  %v899 = vsel %vm34, %v886, %v897
  %v900 = vld [vmem:[#allocation2] sm:$0xf]
  %v901 = vld [vmem:[%s1] sm:$0xff]
  %v902 = vld [vmem:[%s1 + $0x8] sm:$0xff]
  %v903 = vld [vmem:[%s1 + $0x10] sm:$0xff]
  %v904 = vld [vmem:[%s1 + $0x18] sm:$0xff]
  %v905 = vld [vmem:[%s1 + $0x20] sm:$0xff]
  %v906 = vld [vmem:[%s1 + $0x28] sm:$0xff]
  %v907 = vld [vmem:[%s1 + $0x30] sm:$0xff]
  %v908 = vld [vmem:[%s1 + $0x38] sm:$0xff]
  %v910 = vsel %vm45, %v900, 0
  %912 = vmatprep.subr.mxu0 %v902
  %913 = vmatpush1.msra.mxu0 %v901
  %914 = vmatprep.subr.mxu0 %v904
  %915 = vmatpush1.msra.mxu0 %v903
  %916 = vmatprep.subr.mxu0 %v906
  %917 = vmatpush1.msra.mxu0 %v905
  %918 = vmatprep.subr.mxu0 %v908
  %919 = vmatpush1.msra.mxu0 %v907
  %920 = vmatprep.subr.mxu0 0.0
  %921 = vmatpush1.msra.mxu0 0.0
  %922 = vmatprep.subr.mxu0 0.0
  %923 = vmatpush1.msra.mxu0 0.0
  %924 = vmatprep.subr.mxu0 0.0
  %925 = vmatpush1.msra.mxu0 0.0
  %926 = vmatprep.subr.mxu0 0.0
  %927 = vmatpush1.msra.mxu0 0.0
  %928 = vmatprep.subr.mxu0 0.0
  %929 = vmatpush1.msra.mxu0 0.0
  %930 = vmatprep.subr.mxu0 0.0
  %931 = vmatpush1.msra.mxu0 0.0
  %932 = vmatprep.subr.mxu0 0.0
  %933 = vmatpush1.msra.mxu0 0.0
  %934 = vmatprep.subr.mxu0 0.0
  %935 = vmatpush1.msra.mxu0 0.0
  %936 = vmatprep.subr.mxu0 0.0
  %937 = vmatpush1.msra.mxu0 0.0
  %938 = vmatprep.subr.mxu0 0.0
  %939 = vmatpush1.msra.mxu0 0.0
  %940 = vmatprep.subr.mxu0 0.0
  %941 = vmatpush1.msra.mxu0 0.0
  %942 = vmatprep.subr.mxu0 0.0
  %943 = vmatpush1.msra.mxu0 0.0
  %944 = vmatprep.subr.mxu0 0.0
  %945 = vmatpush1.msra.mxu0 0.0
  %946 = vmatprep.subr.mxu0 0.0
  %947 = vmatpush1.msra.mxu0 0.0
  %948 = vmatprep.subr.mxu0 0.0
  %949 = vmatpush1.msra.mxu0 0.0
  %950 = vmatprep.subr.mxu0 0.0
  %951 = vmatpush1.msra.mxu0 0.0
  %952 = vmatprep.subr.mxu0 0.0
  %953 = vmatpush1.msra.mxu0 0.0
  %954 = vmatprep.subr.mxu0 0.0
  %955 = vmatpush1.msra.mxu0 0.0
  %956 = vmatprep.subr.mxu0 0.0
  %957 = vmatpush1.msra.mxu0 0.0
  %958 = vmatprep.subr.mxu0 0.0
  %959 = vmatpush1.msra.mxu0 0.0
  %960 = vmatprep.subr.mxu0 0.0
  %961 = vmatpush1.msra.mxu0 0.0
  %962 = vmatprep.subr.mxu0 0.0
  %963 = vmatpush1.msra.mxu0 0.0
  %964 = vmatprep.subr.mxu0 0.0
  %965 = vmatpush1.msra.mxu0 0.0
  %966 = vmatprep.subr.mxu0 0.0
  %967 = vmatpush1.msra.mxu0 0.0
  %968 = vmatprep.subr.mxu0 0.0
  %969 = vmatpush1.msra.mxu0 0.0
  %970 = vmatprep.subr.mxu0 0.0
  %971 = vmatpush1.msra.mxu0 0.0
  %972 = vmatprep.subr.mxu0 0.0
  %973 = vmatpush1.msra.mxu0 0.0
  %974 = vmatprep.subr.mxu0 0.0
  %975 = vmatpush1.msra.mxu0 0.0
  %976 = vmatprep.mubr.f32.mxu0 0.0
  %977 = vmatmul.mubr.f32.gmra.mrb[0].mxu0 %v910
  %v978 = vpop.f32.mrb[0].mxu0
  %v979 = vadd.f32 0.0, %v978
  %v980 = vpop.f32.mrb[0].mxu0
  %v981 = vadd.f32 0.0, %v980
  %982 = vdwg.mxu0
  %v983 = vsel %vm121, %v979, %v981
  %v984 = vadd.f32 %v899, %v983
  %v985 = vxor.u32 %v984, 2147483648
  %v986 = vmul.f32 %v985, 1.442695
  %v987 = vpow.pop %v986
  %v988 = vadd.f32 %v987, 1.0
  %v989 = vrcp.pop %v988
  %v990 = vmul.f32 1.0, %v989
  %v991 = vtanh.pop %v984
  %v992 = vld [vmem:[#allocation3] sm:$0xf]
  %994 = vrot.lane.b32.xlu0 %v992, 32
  %v995 = vpop.permute.xlu0 %994
  %v997 = vmul.f32 %v990, %v995
  %999 = vrot.lane.b32.xlu0 %v991, 64
  %v1000 = vpop.permute.xlu0 %999
  %v1002 = vmul.f32 %v990, %v1000
  %1004 = vrot.lane.b32.xlu0 %v1002, 32
  %v1005 = vpop.permute.xlu0 %1004
  %v1007 = vadd.f32 %v997, %v1005
  %v1008 = vtanh.pop %v1007
  %1010 = vrot.lane.b32.xlu0 %v1008, 64
  %v1011 = vpop.permute.xlu0 %1010
  %v1013 = vmul.f32 %v990, %v1011
  %1015 = vrot.lane.b32.xlu0 %v1007, 96
  %v1016 = vpop.permute.xlu0 %1015
  %1018 = vst.msk [vmem:[#allocation3] sm:$0xf] %vm17, %v1016
  %1020 = vrot.lane.b32.xlu0 %v1013, 32
  %v1021 = vpop.permute.xlu0 %1020
  %1023 = vst.msk [vmem:[#allocation2] sm:$0xf] %vm17, %v1021
  %s1024 = scalar_lea.vmem %s2, 12
  %1025 = vst.msk [vmem:[%s1024] sm:$0x3] %vm163, %v1021
  %s1026 = scalar_lea.vmem %s3, 6
  %1027 = vst.msk [vmem:[%s1026 - $0x2] sm:$0xc] %vm166, %v1021
  %v1028 = vld [vmem:[%s314] sm:$0xf]
  %v1029 = vld [vmem:[%s312] sm:$0xf]
  %v1031 = vcombine.low %v1029, %v1029
  %v1033 = vunpack.c.l.s4 1983009808
  %v1034 = vunpack.c.0.s8 %v1033
  %v1035 = vlaneseq
  %v1036 = vshrl.u32 %v1035, 7
  %v1037 = vsub.s32 %v1034, %v1036
  %v1038 = vrot.slane %v1031, %v1037
  %v1039 = vcombine.high %v1038, %v1038
  %v1041 = vsel %vm34, %v1028, %v1039
  %v1042 = vld [vmem:[#allocation2] sm:$0xf]
  %v1043 = vld [vmem:[%s1] sm:$0xff]
  %v1044 = vld [vmem:[%s1 + $0x8] sm:$0xff]
  %v1045 = vld [vmem:[%s1 + $0x10] sm:$0xff]
  %v1046 = vld [vmem:[%s1 + $0x18] sm:$0xff]
  %v1047 = vld [vmem:[%s1 + $0x20] sm:$0xff]
  %v1048 = vld [vmem:[%s1 + $0x28] sm:$0xff]
  %v1049 = vld [vmem:[%s1 + $0x30] sm:$0xff]
  %v1050 = vld [vmem:[%s1 + $0x38] sm:$0xff]
  %v1052 = vsel %vm45, %v1042, 0
  %1054 = vmatprep.subr.mxu0 %v1044
  %1055 = vmatpush1.msra.mxu0 %v1043
  %1056 = vmatprep.subr.mxu0 %v1046
  %1057 = vmatpush1.msra.mxu0 %v1045
  %1058 = vmatprep.subr.mxu0 %v1048
  %1059 = vmatpush1.msra.mxu0 %v1047
  %1060 = vmatprep.subr.mxu0 %v1050
  %1061 = vmatpush1.msra.mxu0 %v1049
  %1062 = vmatprep.subr.mxu0 0.0
  %1063 = vmatpush1.msra.mxu0 0.0
  %1064 = vmatprep.subr.mxu0 0.0
  %1065 = vmatpush1.msra.mxu0 0.0
  %1066 = vmatprep.subr.mxu0 0.0
  %1067 = vmatpush1.msra.mxu0 0.0
  %1068 = vmatprep.subr.mxu0 0.0
  %1069 = vmatpush1.msra.mxu0 0.0
  %1070 = vmatprep.subr.mxu0 0.0
  %1071 = vmatpush1.msra.mxu0 0.0
  %1072 = vmatprep.subr.mxu0 0.0
  %1073 = vmatpush1.msra.mxu0 0.0
  %1074 = vmatprep.subr.mxu0 0.0
  %1075 = vmatpush1.msra.mxu0 0.0
  %1076 = vmatprep.subr.mxu0 0.0
  %1077 = vmatpush1.msra.mxu0 0.0
  %1078 = vmatprep.subr.mxu0 0.0
  %1079 = vmatpush1.msra.mxu0 0.0
  %1080 = vmatprep.subr.mxu0 0.0
  %1081 = vmatpush1.msra.mxu0 0.0
  %1082 = vmatprep.subr.mxu0 0.0
  %1083 = vmatpush1.msra.mxu0 0.0
  %1084 = vmatprep.subr.mxu0 0.0
  %1085 = vmatpush1.msra.mxu0 0.0
  %1086 = vmatprep.subr.mxu0 0.0
  %1087 = vmatpush1.msra.mxu0 0.0
  %1088 = vmatprep.subr.mxu0 0.0
  %1089 = vmatpush1.msra.mxu0 0.0
  %1090 = vmatprep.subr.mxu0 0.0
  %1091 = vmatpush1.msra.mxu0 0.0
  %1092 = vmatprep.subr.mxu0 0.0
  %1093 = vmatpush1.msra.mxu0 0.0
  %1094 = vmatprep.subr.mxu0 0.0
  %1095 = vmatpush1.msra.mxu0 0.0
  %1096 = vmatprep.subr.mxu0 0.0
  %1097 = vmatpush1.msra.mxu0 0.0
  %1098 = vmatprep.subr.mxu0 0.0
  %1099 = vmatpush1.msra.mxu0 0.0
  %1100 = vmatprep.subr.mxu0 0.0
  %1101 = vmatpush1.msra.mxu0 0.0
  %1102 = vmatprep.subr.mxu0 0.0
  %1103 = vmatpush1.msra.mxu0 0.0
  %1104 = vmatprep.subr.mxu0 0.0
  %1105 = vmatpush1.msra.mxu0 0.0
  %1106 = vmatprep.subr.mxu0 0.0
  %1107 = vmatpush1.msra.mxu0 0.0
  %1108 = vmatprep.subr.mxu0 0.0
  %1109 = vmatpush1.msra.mxu0 0.0
  %1110 = vmatprep.subr.mxu0 0.0
  %1111 = vmatpush1.msra.mxu0 0.0
  %1112 = vmatprep.subr.mxu0 0.0
  %1113 = vmatpush1.msra.mxu0 0.0
  %1114 = vmatprep.subr.mxu0 0.0
  %1115 = vmatpush1.msra.mxu0 0.0
  %1116 = vmatprep.subr.mxu0 0.0
  %1117 = vmatpush1.msra.mxu0 0.0
  %1118 = vmatprep.mubr.f32.mxu0 0.0
  %1119 = vmatmul.mubr.f32.gmra.mrb[0].mxu0 %v1052
  %v1120 = vpop.f32.mrb[0].mxu0
  %v1121 = vadd.f32 0.0, %v1120
  %v1122 = vpop.f32.mrb[0].mxu0
  %v1123 = vadd.f32 0.0, %v1122
  %1124 = vdwg.mxu0
  %v1125 = vsel %vm121, %v1121, %v1123
  %v1126 = vadd.f32 %v1041, %v1125
  %v1127 = vxor.u32 %v1126, 2147483648
  %v1128 = vmul.f32 %v1127, 1.442695
  %v1129 = vpow.pop %v1128
  %v1130 = vadd.f32 %v1129, 1.0
  %v1131 = vrcp.pop %v1130
  %v1132 = vmul.f32 1.0, %v1131
  %v1133 = vtanh.pop %v1126
  %v1134 = vld [vmem:[#allocation3] sm:$0xf]
  %1136 = vrot.lane.b32.xlu0 %v1134, 32
  %v1137 = vpop.permute.xlu0 %1136
  %v1139 = vmul.f32 %v1132, %v1137
  %1141 = vrot.lane.b32.xlu0 %v1133, 64
  %v1142 = vpop.permute.xlu0 %1141
  %v1144 = vmul.f32 %v1132, %v1142
  %1146 = vrot.lane.b32.xlu0 %v1144, 32
  %v1147 = vpop.permute.xlu0 %1146
  %v1149 = vadd.f32 %v1139, %v1147
  %v1150 = vtanh.pop %v1149
  %1152 = vrot.lane.b32.xlu0 %v1150, 64
  %v1153 = vpop.permute.xlu0 %1152
  %v1155 = vmul.f32 %v1132, %v1153
  %1157 = vrot.lane.b32.xlu0 %v1149, 96
  %v1158 = vpop.permute.xlu0 %1157
  %1160 = vst.msk [vmem:[#allocation3] sm:$0xf] %vm17, %v1158
  %1162 = vrot.lane.b32.xlu0 %v1155, 32
  %v1163 = vpop.permute.xlu0 %1162
  %1165 = vst.msk [vmem:[#allocation2] sm:$0xf] %vm17, %v1163
  %s1166 = scalar_lea.vmem %s2, 14
  %1167 = vst.msk [vmem:[%s1166] sm:$0x3] %vm163, %v1163
  %s1168 = scalar_lea.vmem %s3, 4
  %1169 = vst.msk [vmem:[%s1168 - $0x2] sm:$0xc] %vm166, %v1163
  %v1170 = vld [vmem:[%s170] sm:$0xf]
  %v1171 = vld [vmem:[%s168] sm:$0xf]
  %v1173 = vcombine.low %v1171, %v1171
  %v1175 = vunpack.c.l.s4 1983009808
  %v1176 = vunpack.c.0.s8 %v1175
  %v1177 = vlaneseq
  %v1178 = vshrl.u32 %v1177, 7
  %v1179 = vsub.s32 %v1176, %v1178
  %v1180 = vrot.slane %v1173, %v1179
  %v1181 = vcombine.high %v1180, %v1180
  %v1183 = vsel %vm34, %v1170, %v1181
  %v1184 = vld [vmem:[#allocation2] sm:$0xf]
  %v1185 = vld [vmem:[%s1] sm:$0xff]
  %v1186 = vld [vmem:[%s1 + $0x8] sm:$0xff]
  %v1187 = vld [vmem:[%s1 + $0x10] sm:$0xff]
  %v1188 = vld [vmem:[%s1 + $0x18] sm:$0xff]
  %v1189 = vld [vmem:[%s1 + $0x20] sm:$0xff]
  %v1190 = vld [vmem:[%s1 + $0x28] sm:$0xff]
  %v1191 = vld [vmem:[%s1 + $0x30] sm:$0xff]
  %v1192 = vld [vmem:[%s1 + $0x38] sm:$0xff]
  %v1194 = vsel %vm45, %v1184, 0
  %1196 = vmatprep.subr.mxu0 %v1186
  %1197 = vmatpush1.msra.mxu0 %v1185
  %1198 = vmatprep.subr.mxu0 %v1188
  %1199 = vmatpush1.msra.mxu0 %v1187
  %1200 = vmatprep.subr.mxu0 %v1190
  %1201 = vmatpush1.msra.mxu0 %v1189
  %1202 = vmatprep.subr.mxu0 %v1192
  %1203 = vmatpush1.msra.mxu0 %v1191
  %1204 = vmatprep.subr.mxu0 0.0
  %1205 = vmatpush1.msra.mxu0 0.0
  %1206 = vmatprep.subr.mxu0 0.0
  %1207 = vmatpush1.msra.mxu0 0.0
  %1208 = vmatprep.subr.mxu0 0.0
  %1209 = vmatpush1.msra.mxu0 0.0
  %1210 = vmatprep.subr.mxu0 0.0
  %1211 = vmatpush1.msra.mxu0 0.0
  %1212 = vmatprep.subr.mxu0 0.0
  %1213 = vmatpush1.msra.mxu0 0.0
  %1214 = vmatprep.subr.mxu0 0.0
  %1215 = vmatpush1.msra.mxu0 0.0
  %1216 = vmatprep.subr.mxu0 0.0
  %1217 = vmatpush1.msra.mxu0 0.0
  %1218 = vmatprep.subr.mxu0 0.0
  %1219 = vmatpush1.msra.mxu0 0.0
  %1220 = vmatprep.subr.mxu0 0.0
  %1221 = vmatpush1.msra.mxu0 0.0
  %1222 = vmatprep.subr.mxu0 0.0
  %1223 = vmatpush1.msra.mxu0 0.0
  %1224 = vmatprep.subr.mxu0 0.0
  %1225 = vmatpush1.msra.mxu0 0.0
  %1226 = vmatprep.subr.mxu0 0.0
  %1227 = vmatpush1.msra.mxu0 0.0
  %1228 = vmatprep.subr.mxu0 0.0
  %1229 = vmatpush1.msra.mxu0 0.0
  %1230 = vmatprep.subr.mxu0 0.0
  %1231 = vmatpush1.msra.mxu0 0.0
  %1232 = vmatprep.subr.mxu0 0.0
  %1233 = vmatpush1.msra.mxu0 0.0
  %1234 = vmatprep.subr.mxu0 0.0
  %1235 = vmatpush1.msra.mxu0 0.0
  %1236 = vmatprep.subr.mxu0 0.0
  %1237 = vmatpush1.msra.mxu0 0.0
  %1238 = vmatprep.subr.mxu0 0.0
  %1239 = vmatpush1.msra.mxu0 0.0
  %1240 = vmatprep.subr.mxu0 0.0
  %1241 = vmatpush1.msra.mxu0 0.0
  %1242 = vmatprep.subr.mxu0 0.0
  %1243 = vmatpush1.msra.mxu0 0.0
  %1244 = vmatprep.subr.mxu0 0.0
  %1245 = vmatpush1.msra.mxu0 0.0
  %1246 = vmatprep.subr.mxu0 0.0
  %1247 = vmatpush1.msra.mxu0 0.0
  %1248 = vmatprep.subr.mxu0 0.0
  %1249 = vmatpush1.msra.mxu0 0.0
  %1250 = vmatprep.subr.mxu0 0.0
  %1251 = vmatpush1.msra.mxu0 0.0
  %1252 = vmatprep.subr.mxu0 0.0
  %1253 = vmatpush1.msra.mxu0 0.0
  %1254 = vmatprep.subr.mxu0 0.0
  %1255 = vmatpush1.msra.mxu0 0.0
  %1256 = vmatprep.subr.mxu0 0.0
  %1257 = vmatpush1.msra.mxu0 0.0
  %1258 = vmatprep.subr.mxu0 0.0
  %1259 = vmatpush1.msra.mxu0 0.0
  %1260 = vmatprep.mubr.f32.mxu0 0.0
  %1261 = vmatmul.mubr.f32.gmra.mrb[0].mxu0 %v1194
  %v1262 = vpop.f32.mrb[0].mxu0
  %v1263 = vadd.f32 0.0, %v1262
  %v1264 = vpop.f32.mrb[0].mxu0
  %v1265 = vadd.f32 0.0, %v1264
  %1266 = vdwg.mxu0
  %v1267 = vsel %vm121, %v1263, %v1265
  %v1268 = vadd.f32 %v1183, %v1267
  %v1269 = vxor.u32 %v1268, 2147483648
  %v1270 = vmul.f32 %v1269, 1.442695
  %v1271 = vpow.pop %v1270
  %v1272 = vadd.f32 %v1271, 1.0
  %v1273 = vrcp.pop %v1272
  %v1274 = vmul.f32 1.0, %v1273
  %v1275 = vtanh.pop %v1268
  %v1276 = vld [vmem:[#allocation3] sm:$0xf]
  %1278 = vrot.lane.b32.xlu0 %v1276, 32
  %v1279 = vpop.permute.xlu0 %1278
  %v1281 = vmul.f32 %v1274, %v1279
  %1283 = vrot.lane.b32.xlu0 %v1275, 64
  %v1284 = vpop.permute.xlu0 %1283
  %v1286 = vmul.f32 %v1274, %v1284
  %1288 = vrot.lane.b32.xlu0 %v1286, 32
  %v1289 = vpop.permute.xlu0 %1288
  %v1291 = vadd.f32 %v1281, %v1289
  %v1292 = vtanh.pop %v1291
  %1294 = vrot.lane.b32.xlu0 %v1292, 64
  %v1295 = vpop.permute.xlu0 %1294
  %v1297 = vmul.f32 %v1274, %v1295
  %1299 = vrot.lane.b32.xlu0 %v1291, 96
  %v1300 = vpop.permute.xlu0 %1299
  %1302 = vst.msk [vmem:[#allocation3] sm:$0xf] %vm17, %v1300
  %1304 = vrot.lane.b32.xlu0 %v1297, 32
  %v1305 = vpop.permute.xlu0 %1304
  %1307 = vst.msk [vmem:[#allocation2] sm:$0xf] %vm17, %v1305
  %s1308 = scalar_lea.vmem %s2, 16
  %1309 = vst.msk [vmem:[%s1308] sm:$0x3] %vm163, %v1305
  %s1310 = scalar_lea.vmem %s3, 2
  %1311 = vst.msk [vmem:[%s1310 - $0x2] sm:$0xc] %vm166, %v1305
  %v1312 = vld [vmem:[%s21] sm:$0xf]
  %v1313 = vld [vmem:[%s0] sm:$0xf]
  %v1315 = vcombine.low %v1313, %v1313
  %v1317 = vunpack.c.l.s4 1983009808
  %v1318 = vunpack.c.0.s8 %v1317
  %v1319 = vlaneseq
  %v1320 = vshrl.u32 %v1319, 7
  %v1321 = vsub.s32 %v1318, %v1320
  %v1322 = vrot.slane %v1315, %v1321
  %v1323 = vcombine.high %v1322, %v1322
  %v1325 = vsel %vm34, %v1312, %v1323
  %v1326 = vld [vmem:[#allocation2] sm:$0xf]
  %v1327 = vld [vmem:[%s1] sm:$0xff]
  %v1328 = vld [vmem:[%s1 + $0x8] sm:$0xff]
  %v1329 = vld [vmem:[%s1 + $0x10] sm:$0xff]
  %v1330 = vld [vmem:[%s1 + $0x18] sm:$0xff]
  %v1331 = vld [vmem:[%s1 + $0x20] sm:$0xff]
  %v1332 = vld [vmem:[%s1 + $0x28] sm:$0xff]
  %v1333 = vld [vmem:[%s1 + $0x30] sm:$0xff]
  %v1334 = vld [vmem:[%s1 + $0x38] sm:$0xff]
  %v1336 = vsel %vm45, %v1326, 0
  %1338 = vmatprep.subr.mxu0 %v1328
  %1339 = vmatpush1.msra.mxu0 %v1327
  %1340 = vmatprep.subr.mxu0 %v1330
  %1341 = vmatpush1.msra.mxu0 %v1329
  %1342 = vmatprep.subr.mxu0 %v1332
  %1343 = vmatpush1.msra.mxu0 %v1331
  %1344 = vmatprep.subr.mxu0 %v1334
  %1345 = vmatpush1.msra.mxu0 %v1333
  %1346 = vmatprep.subr.mxu0 0.0
  %1347 = vmatpush1.msra.mxu0 0.0
  %1348 = vmatprep.subr.mxu0 0.0
  %1349 = vmatpush1.msra.mxu0 0.0
  %1350 = vmatprep.subr.mxu0 0.0
  %1351 = vmatpush1.msra.mxu0 0.0
  %1352 = vmatprep.subr.mxu0 0.0
  %1353 = vmatpush1.msra.mxu0 0.0
  %1354 = vmatprep.subr.mxu0 0.0
  %1355 = vmatpush1.msra.mxu0 0.0
  %1356 = vmatprep.subr.mxu0 0.0
  %1357 = vmatpush1.msra.mxu0 0.0
  %1358 = vmatprep.subr.mxu0 0.0
  %1359 = vmatpush1.msra.mxu0 0.0
  %1360 = vmatprep.subr.mxu0 0.0
  %1361 = vmatpush1.msra.mxu0 0.0
  %1362 = vmatprep.subr.mxu0 0.0
  %1363 = vmatpush1.msra.mxu0 0.0
  %1364 = vmatprep.subr.mxu0 0.0
  %1365 = vmatpush1.msra.mxu0 0.0
  %1366 = vmatprep.subr.mxu0 0.0
  %1367 = vmatpush1.msra.mxu0 0.0
  %1368 = vmatprep.subr.mxu0 0.0
  %1369 = vmatpush1.msra.mxu0 0.0
  %1370 = vmatprep.subr.mxu0 0.0
  %1371 = vmatpush1.msra.mxu0 0.0
  %1372 = vmatprep.subr.mxu0 0.0
  %1373 = vmatpush1.msra.mxu0 0.0
  %1374 = vmatprep.subr.mxu0 0.0
  %1375 = vmatpush1.msra.mxu0 0.0
  %1376 = vmatprep.subr.mxu0 0.0
  %1377 = vmatpush1.msra.mxu0 0.0
  %1378 = vmatprep.subr.mxu0 0.0
  %1379 = vmatpush1.msra.mxu0 0.0
  %1380 = vmatprep.subr.mxu0 0.0
  %1381 = vmatpush1.msra.mxu0 0.0
  %1382 = vmatprep.subr.mxu0 0.0
  %1383 = vmatpush1.msra.mxu0 0.0
  %1384 = vmatprep.subr.mxu0 0.0
  %1385 = vmatpush1.msra.mxu0 0.0
  %1386 = vmatprep.subr.mxu0 0.0
  %1387 = vmatpush1.msra.mxu0 0.0
  %1388 = vmatprep.subr.mxu0 0.0
  %1389 = vmatpush1.msra.mxu0 0.0
  %1390 = vmatprep.subr.mxu0 0.0
  %1391 = vmatpush1.msra.mxu0 0.0
  %1392 = vmatprep.subr.mxu0 0.0
  %1393 = vmatpush1.msra.mxu0 0.0
  %1394 = vmatprep.subr.mxu0 0.0
  %1395 = vmatpush1.msra.mxu0 0.0
  %1396 = vmatprep.subr.mxu0 0.0
  %1397 = vmatpush1.msra.mxu0 0.0
  %1398 = vmatprep.subr.mxu0 0.0
  %1399 = vmatpush1.msra.mxu0 0.0
  %1400 = vmatprep.subr.mxu0 0.0
  %1401 = vmatpush1.msra.mxu0 0.0
  %1402 = vmatprep.mubr.f32.mxu0 0.0
  %1403 = vmatmul.mubr.f32.gmra.mrb[0].mxu0 %v1336
  %v1404 = vpop.f32.mrb[0].mxu0
  %v1405 = vadd.f32 0.0, %v1404
  %v1406 = vpop.f32.mrb[0].mxu0
  %v1407 = vadd.f32 0.0, %v1406
  %1408 = vdwg.mxu0
  %v1409 = vsel %vm121, %v1405, %v1407
  %v1410 = vadd.f32 %v1325, %v1409
  %v1411 = vxor.u32 %v1410, 2147483648
  %v1412 = vmul.f32 %v1411, 1.442695
  %v1413 = vpow.pop %v1412
  %v1414 = vadd.f32 %v1413, 1.0
  %v1415 = vrcp.pop %v1414
  %v1416 = vmul.f32 1.0, %v1415
  %v1417 = vtanh.pop %v1410
  %v1418 = vld [vmem:[#allocation3] sm:$0xf]
  %1420 = vrot.lane.b32.xlu0 %v1418, 32
  %v1421 = vpop.permute.xlu0 %1420
  %v1423 = vmul.f32 %v1416, %v1421
  %1425 = vrot.lane.b32.xlu0 %v1417, 64
  %v1426 = vpop.permute.xlu0 %1425
  %v1428 = vmul.f32 %v1416, %v1426
  %1430 = vrot.lane.b32.xlu0 %v1428, 32
  %v1431 = vpop.permute.xlu0 %1430
  %v1433 = vadd.f32 %v1423, %v1431
  %v1434 = vtanh.pop %v1433
  %1436 = vrot.lane.b32.xlu0 %v1434, 64
  %v1437 = vpop.permute.xlu0 %1436
  %v1439 = vmul.f32 %v1416, %v1437
  %1441 = vrot.lane.b32.xlu0 %v1433, 96
  %v1442 = vpop.permute.xlu0 %1441
  %1444 = vst.msk [vmem:[#allocation3] sm:$0xf] %vm17, %v1442
  %1446 = vrot.lane.b32.xlu0 %v1439, 32
  %v1447 = vpop.permute.xlu0 %1446
  %1449 = vst.msk [vmem:[#allocation2] sm:$0xf] %vm17, %v1447
  %s1450 = scalar_lea.vmem %s2, 18
  %1451 = vst.msk [vmem:[%s1450] sm:$0x3] %vm163, %v1447
  %1452 = vst.msk [vmem:[%s3 - $0x2] sm:$0xc] %vm166, %v1447
  %v1453 = vld [vmem:[#allocation3] sm:$0xf]
  %1454 = vst.msk [vmem:[%s4] sm:$0xf] %vm17, %v1453
  // Predicated region
  $region10: #{audio_encoder_forward.9} parent=0 // pred_check
    _
  $region11: #{audio_encoder_forward.9} parent=0 // pred_check_branch
    %1456 = sbr.rel (0) target = $region13
  $region12: #{audio_encoder_forward.9} parent=0 // pred_region
    _
  $region13: #{audio_encoder_forward.9} parent=0 // pred_fallthru
    _
  // Predicated region
  $region14: #{audio_encoder_forward.9} parent=0 // pred_check
    _
  $region15: #{audio_encoder_forward.9} parent=0 // pred_check_branch
    %1458 = sbr.rel (0) target = $region17
  $region16: #{audio_encoder_forward.9} parent=0 // pred_region
    _
  $region17: #{audio_encoder_forward.9} parent=0 // pred_fallthru
    _
  // Predicated region
  $region18: #{audio_encoder_forward.9} parent=0 // pred_check
    _
  $region19: #{audio_encoder_forward.9} parent=0 // pred_check_branch
    %1460 = sbr.rel (0) target = $region21
  $region20: #{audio_encoder_forward.9} parent=0 // pred_region
    _
  $region21: #{audio_encoder_forward.9} parent=0 // pred_fallthru
    _
  // Predicated region
  $region22: #{audio_encoder_forward.9} parent=0 // pred_check
    _
  $region23: #{audio_encoder_forward.9} parent=0 // pred_check_branch
    %1462 = sbr.rel (0) target = $region25
  $region24: #{audio_encoder_forward.9} parent=0 // pred_region
    _
  $region25: #{audio_encoder_forward.9} parent=0 // pred_fallthru
    _
  // Predicated region
  $region26: #{audio_encoder_forward.9} parent=0 // pred_check
    _
  $region27: #{audio_encoder_forward.9} parent=0 // pred_check_branch
    %1464 = sbr.rel (0) target = $region29
  $region28: #{audio_encoder_forward.9} parent=0 // pred_region
    _
  $region29: #{audio_encoder_forward.9} parent=0 // pred_fallthru
    _
  // Predicated region
  $region30: #{audio_encoder_forward.9} parent=0 // pred_check
    _
  $region31: #{audio_encoder_forward.9} parent=0 // pred_check_branch
    %1466 = sbr.rel (0) target = $region33
  $region32: #{audio_encoder_forward.9} parent=0 // pred_region
    _
  $region33: #{audio_encoder_forward.9} parent=0 // pred_fallthru
    _

</llo_original>
